<compile_context>
chip_gen: v7x
topology: tpu7x:2x2x1
jax: 0.10.0
libtpu: 0.0.40
codegen_flags: <defaults>
</compile_context>

<pallas_src>
import numpy as np
import jax
import jax.numpy as jnp
from jax.experimental import pallas as pl
from jax.experimental.pallas import tpu as pltpu

# ----------------------------- configuration --------------------------------
B = 2
H = W = 8
C = 32                        # dim
NUM_HEADS = 4
HEAD_DIM = C // NUM_HEADS
WS = 4                        # window size (min(input_res)=8 > 4 -> shift=0)
N = WS * WS                   # tokens per window
NWB = B * (H // WS) * (W // WS)   # windows across the whole batch = 8
L = H * W
R = NWB * N                   # window-ordered rows per branch = 128
HIDDEN = int(C * 4.0)         # mlp_ratio = 4.0
EPS = 1e-5
SCALE = HEAD_DIM ** -0.5


def _gelu(x):
    # TODO(synk): PyTorch nn.GELU default is exact erf-GELU; the tanh
    # approximation is used because lax.erf is not reliably lowerable in Mosaic.
    return jax.nn.gelu(x, approximate=True)


# ------------------------------ fused Pallas kernel --------------------------
def stblock_kernel(xw_ref, taps_ref, norms_ref,
                   wqkv_ref, bqkv_ref, bias_ref, wproj_ref, bproj_ref,
                   wdw_ref, bdw_ref, wpw_ref, bpw_ref,
                   wfc1_ref, bfc1_ref, wfc2_ref, bfc2_ref,
                   o_ref):
    """One branch (attn1/conv1/mlp1 or attn2/conv2/mlp2) per grid step.

    Rows are in window-token order (window_partition done by the wrapper), so
    the whole branch is: norm1 -> one 128-row QKV matmul -> head-batched
    windowed MHSA -> one 128-row proj -> LFE conv branch -> residual fuse ->
    norm2 -> 128-row MLP -> residual, all resident in VMEM.
    """
    x = xw_ref[0]                                   # (R, C) raw tokens (= shortcut)
    norms = norms_ref[...]                          # (4, C) shared norm1/norm2
    g1, b1, g2, b2 = norms[0:1], norms[1:2], norms[2:3], norms[3:4]

    # ---------------- norm1 (per token; commutes with window permutation) ----
    mu = jnp.mean(x, axis=-1, keepdims=True)
    var = jnp.mean((x - mu) ** 2, axis=-1, keepdims=True)
    xn = (x - mu) * jax.lax.rsqrt(var + EPS) * g1 + b1

    # ---------------- fused QKV: one (R,C)@(C,3C) matmul ----------------------
    # (q-scale already folded into the q columns of wqkv/bqkv by the wrapper)
    qkv = jnp.dot(xn, wqkv_ref[0], preferred_element_type=jnp.float32) + bqkv_ref[0]

    # ---------------- head-batched windowed attention -------------------------
    # batch index = head * NWB + window; rows of each window stay contiguous.
    def gather_heads(sel):
        pieces = []
        for h in range(NUM_HEADS):
            col = qkv[:, sel * C + h * HEAD_DIM: sel * C + (h + 1) * HEAD_DIM]
            pieces.append(col.reshape(NWB, N, HEAD_DIM))
        return jnp.concatenate(pieces, axis=0)      # (NUM_HEADS*NWB, N, HEAD_DIM)

    qh = gather_heads(0)                            # already scaled
    kh = gather_heads(1)
    vh = gather_heads(2)

    s = jnp.einsum('bnd,bmd->bnm', qh, kh,
                   preferred_element_type=jnp.float32)        # (NH*NWB, N, N)
    s = s + bias_ref[0]                                        # rel-pos bias (tiled)
    m = jnp.max(s, axis=-1, keepdims=True)
    e = jnp.exp(s - m)
    prob = e * pl.reciprocal(jnp.sum(e, axis=-1, keepdims=True), approx=True)
    oh = jnp.einsum('bnm,bmd->bnd', prob, vh,
                    preferred_element_type=jnp.float32)        # (NH*NWB, N, HD)

    # merge heads back to (R, C) and project with a single matmul
    o_heads = jnp.concatenate(
        [oh[h * NWB:(h + 1) * NWB].reshape(R, HEAD_DIM) for h in range(NUM_HEADS)],
        axis=1)                                                # (R, C)
    attn = jnp.dot(o_heads, wproj_ref[0],
                   preferred_element_type=jnp.float32) + bproj_ref[0]

    # ---------------- LFE conv branch -----------------------------------------
    # TODO(synk): LFE's exact definition is not in the provided source; a
    # depthwise-3x3 (+bias, GELU) -> pointwise-1x1 (+bias) block is assumed.
    # Taps are pre-shifted + window-ordered by the wrapper -> aligned accesses.
    wdw = wdw_ref[0]                                           # (9, C)
    cacc = taps_ref[0, 0] * wdw[0:1]
    for t in range(1, 9):
        cacc = cacc + taps_ref[0, t] * wdw[t:t + 1]
    cacc = _gelu(cacc + bdw_ref[0])
    conv = jnp.dot(cacc, wpw_ref[0],
                   preferred_element_type=jnp.float32) + bpw_ref[0]

    # ---------------- residual fuse + norm2 + MLP (128-row GEMMs) -------------
    y = x + attn + conv
    mu2 = jnp.mean(y, axis=-1, keepdims=True)
    var2 = jnp.mean((y - mu2) ** 2, axis=-1, keepdims=True)
    yn = (y - mu2) * jax.lax.rsqrt(var2 + EPS) * g2 + b2
    hid = _gelu(jnp.dot(yn, wfc1_ref[0],
                        preferred_element_type=jnp.float32) + bfc1_ref[0])
    o_ref[0] = y + jnp.dot(hid, wfc2_ref[0],
                           preferred_element_type=jnp.float32) + bfc2_ref[0]


def fused_stblock_call(xw, taps, norms, wqkv, bqkv, bias_t, wproj, bproj,
                       wdw, bdw, wpw, bpw, wfc1, bfc1, wfc2, bfc2):
    def pb(*dims):
        # per-branch tensor: grid axis selects the branch, block covers the rest
        return pl.BlockSpec((1,) + dims, lambda i, _d=len(dims): (i,) + (0,) * _d)

    shared = pl.BlockSpec((4, C), lambda i: (0, 0))

    return pl.pallas_call(
        stblock_kernel,
        out_shape=jax.ShapeDtypeStruct((2, R, C), jnp.float32),
        grid=(2,),
        in_specs=[
            pb(R, C),                      # xw (window-ordered tokens)
            pb(9, R, C),                   # conv taps (pre-shifted, window order)
            shared,                        # norm1/norm2 gamma+beta (shared)
            pb(C, 3 * C),                  # wqkv (q columns pre-scaled)
            pb(1, 3 * C),                  # bqkv
            pb(NUM_HEADS * NWB, N, N),     # relative position bias, tiled per window
            pb(C, C),                      # wproj
            pb(1, C),                      # bproj
            pb(9, C),                      # depthwise 3x3 weights (flattened taps)
            pb(1, C),                      # depthwise bias
            pb(C, C),                      # pointwise 1x1 weight
            pb(1, C),                      # pointwise bias
            pb(C, HIDDEN),                 # mlp fc1
            pb(1, HIDDEN),
            pb(HIDDEN, C),                 # mlp fc2
            pb(1, C),
        ],
        out_specs=pb(R, C),
        compiler_params=pltpu.CompilerParams(
            dimension_semantics=("parallel",)),   # one branch per TC on v7x
        # NOTE: total per-step VMEM working set is < 1 MiB, far under the scoped
        # default on v5e/v6e/v7x, so no vmem_limit_bytes override is needed.
    )(xw, taps, norms, wqkv, bqkv, bias_t, wproj, bproj,
      wdw, bdw, wpw, bpw, wfc1, bfc1, wfc2, bfc2)


# ------------------------------ JAX glue --------------------------------------
def window_partition(x, ws):
    b, h, w, c = x.shape
    x = x.reshape(b, h // ws, ws, w // ws, ws, c)
    return x.transpose(0, 1, 3, 2, 4, 5).reshape(-1, ws, ws, c)


def window_reverse(windows, ws, h, w):
    b = windows.shape[0] // (h * w // ws // ws)
    x = windows.reshape(b, h // ws, w // ws, ws, ws, -1)
    return x.transpose(0, 1, 3, 2, 4, 5).reshape(b, h, w, -1)


def relative_position_bias(table, ws, num_heads):
    coords = np.stack(np.meshgrid(np.arange(ws), np.arange(ws), indexing="ij"))
    coords_flat = coords.reshape(2, -1)
    rel = coords_flat[:, :, None] - coords_flat[:, None, :]
    rel = rel.transpose(1, 2, 0).astype(np.int64)
    rel[..., 0] += ws - 1
    rel[..., 1] += ws - 1
    rel[..., 0] *= 2 * ws - 1
    idx = rel.sum(-1).astype(np.int32)                       # (N, N)
    bias = table[jnp.asarray(idx.reshape(-1))].reshape(ws * ws, ws * ws, num_heads)
    return jnp.transpose(bias, (2, 0, 1))                    # (num_heads, N, N)


def _branch_inputs(x):
    """Window-ordered tokens + pre-shifted window-ordered conv taps for one branch."""
    xv = x.reshape(B, H, W, C)
    xw = window_partition(xv, WS).reshape(R, C)
    xp = jnp.pad(xv, ((0, 0), (1, 1), (1, 1), (0, 0)))       # zero-pad for 3x3 conv
    taps = []
    for dy in range(3):
        for dx in range(3):
            sh = xp[:, dy:dy + H, dx:dx + W, :]               # shifted image
            taps.append(window_partition(sh, WS).reshape(R, C))
    return xw, jnp.stack(taps, axis=0)                        # (R,C), (9,R,C)


def _pack_params(p):
    """Stack per-branch weights along a leading branch axis; fold the q scale."""
    norms = jnp.concatenate([p["g1"], p["b1"], p["g2"], p["b2"]], axis=0)  # (4, C)
    st = lambda name: jnp.stack([p[name + "1"], p[name + "2"]], axis=0)
    qscale = jnp.concatenate([jnp.full((C,), SCALE, jnp.float32),
                              jnp.ones((2 * C,), jnp.float32)])
    wqkv = st("wqkv") * qscale                                # scale folded into q cols
    bqkv = st("bqkv") * qscale
    bias_t = jnp.repeat(st("bias"), NWB, axis=1)              # (2, NH*NWB, N, N), head-major
    wdw = st("wdw").reshape(2, 9, C)                          # taps flattened dy*3+dx
    return dict(norms=norms, wqkv=wqkv, bqkv=bqkv, bias_t=bias_t,
                wproj=st("wproj"), bproj=st("bproj"),
                wdw=wdw, bdw=st("bdw"), wpw=st("wpw"), bpw=st("bpw"),
                wfc1=st("wfc1"), bfc1=st("bfc1"),
                wfc2=st("wfc2"), bfc2=st("bfc2"))


def stblock_forward(x1, x2, p):
    # shift_size == 0 -> no roll, no attention mask; all drop rates are 0.
    xw1, taps1 = _branch_inputs(x1)
    xw2, taps2 = _branch_inputs(x2)
    xw = jnp.stack([xw1, xw2], axis=0)                        # (2, R, C)
    taps = jnp.stack([taps1, taps2], axis=0)                  # (2, 9, R, C)
    pk = _pack_params(p)
    yw = fused_stblock_call(
        xw, taps, pk["norms"], pk["wqkv"], pk["bqkv"], pk["bias_t"], pk["wproj"],
        pk["bproj"], pk["wdw"], pk["bdw"], pk["wpw"], pk["bpw"],
        pk["wfc1"], pk["bfc1"], pk["wfc2"], pk["bfc2"])       # (2, R, C)
    outs = []
    for i in range(2):
        yv = window_reverse(yw[i].reshape(NWB, WS, WS, C), WS, H, W)
        outs.append(yv.reshape(B, L, C))
    return outs[0], outs[1]


# ------------------------------ pure-JAX reference -----------------------------
def _layer_norm(x, g, b):
    mu = jnp.mean(x, axis=-1, keepdims=True)
    var = jnp.mean((x - mu) ** 2, axis=-1, keepdims=True)
    return (x - mu) * jax.lax.rsqrt(var + EPS) * g + b


def stblock_reference(x1, x2, p):
    outs = []
    for x, suf in ((x1, "1"), (x2, "2")):
        shortcut = x
        xn = _layer_norm(x, p["g1"][0], p["b1"][0])
        xwin = window_partition(xn.reshape(B, H, W, C), WS).reshape(NWB, N, C)
        qkv = xwin @ p[f"wqkv{suf}"] + p[f"bqkv{suf}"][0]
        qkv = qkv.reshape(NWB, N, 3, NUM_HEADS, HEAD_DIM).transpose(2, 0, 3, 1, 4)
        q, k, v = qkv[0] * SCALE, qkv[1], qkv[2]
        att = jnp.einsum('whnd,whmd->whnm', q, k) + p[f"bias{suf}"][None]
        att = jax.nn.softmax(att, axis=-1)
        o = jnp.einsum('whnm,whmd->whnd', att, v)
        o = o.transpose(0, 2, 1, 3).reshape(NWB, N, C)
        o = o @ p[f"wproj{suf}"] + p[f"bproj{suf}"][0]
        attn_out = window_reverse(o.reshape(NWB, WS, WS, C), WS, H, W).reshape(B, L, C)
        xv = shortcut.reshape(B, H, W, C)
        xp = jnp.pad(xv, ((0, 0), (1, 1), (1, 1), (0, 0)))
        acc = jnp.zeros((B, H, W, C), jnp.float32)
        for dy in range(3):
            for dx in range(3):
                acc = acc + xp[:, dy:dy + H, dx:dx + W, :] * p[f"wdw{suf}"][dy, dx]
        acc = _gelu(acc + p[f"bdw{suf}"][0])
        conv_out = (acc.reshape(B * L, C) @ p[f"wpw{suf}"]
                    + p[f"bpw{suf}"][0]).reshape(B, L, C)
        y = shortcut + attn_out + conv_out
        yn = _layer_norm(y, p["g2"][0], p["b2"][0])
        hid = _gelu(yn @ p[f"wfc1{suf}"] + p[f"bfc1{suf}"][0])
        outs.append(y + hid @ p[f"wfc2{suf}"] + p[f"bfc2{suf}"][0])
    return tuple(outs)


# ------------------------------ parameters -------------------------------------
def init_params(key):
    ks = list(jax.random.split(key, 32))
    nrm = lambda k, shape, s=0.02: jax.random.normal(k, shape, jnp.float32) * s
    p = {
        "g1": jnp.ones((1, C), jnp.float32), "b1": jnp.zeros((1, C), jnp.float32),
        "g2": jnp.ones((1, C), jnp.float32), "b2": jnp.zeros((1, C), jnp.float32),
    }
    for i, suf in enumerate(("1", "2")):
        o = 14 * i
        p[f"wqkv{suf}"] = nrm(ks[o + 0], (C, 3 * C))
        p[f"bqkv{suf}"] = nrm(ks[o + 1], (1, 3 * C))
        p[f"wproj{suf}"] = nrm(ks[o + 2], (C, C))
        p[f"bproj{suf}"] = nrm(ks[o + 3], (1, C))
        rpb_table = nrm(ks[o + 4], ((2 * WS - 1) * (2 * WS - 1), NUM_HEADS))
        p[f"bias{suf}"] = relative_position_bias(rpb_table, WS, NUM_HEADS)
        p[f"wfc1{suf}"] = nrm(ks[o + 5], (C, HIDDEN))
        p[f"bfc1{suf}"] = nrm(ks[o + 6], (1, HIDDEN))
        p[f"wfc2{suf}"] = nrm(ks[o + 7], (HIDDEN, C))
        p[f"bfc2{suf}"] = nrm(ks[o + 8], (1, C))
        p[f"wdw{suf}"] = nrm(ks[o + 9], (3, 3, C))
        p[f"bdw{suf}"] = nrm(ks[o + 10], (1, C))
        p[f"wpw{suf}"] = nrm(ks[o + 11], (C, C))
        p[f"bpw{suf}"] = nrm(ks[o + 12], (1, C))
    return p


# ---------------------------------- main ----------------------------------------
if __name__ == "__main__":
    key = jax.random.PRNGKey(0)
    k_x1, k_x2, k_p = jax.random.split(key, 3)
    x1 = jax.random.normal(k_x1, (B, L, C), jnp.float32)
    x2 = jax.random.normal(k_x2, (B, L, C), jnp.float32)
    params = init_params(k_p)

    fwd = jax.jit(stblock_forward)
    y1, y2 = fwd(x1, x2, params)
    jax.block_until_ready((y1, y2))

    assert y1.shape == (B, L, C) and y2.shape == (B, L, C)
    assert bool(jnp.all(jnp.isfinite(y1))) and bool(jnp.all(jnp.isfinite(y2)))

    # correctness check against a pure-JAX mirror of the PyTorch forward
    r1, r2 = stblock_reference(x1, x2, params)
    err = max(float(jnp.max(jnp.abs(y1 - r1))), float(jnp.max(jnp.abs(y2 - r2))))
    assert err < 5e-2, f"mismatch vs reference: {err}"

    print("KERNEL_OK")
</pallas_src>

<mosaic_0001>
module attributes {stable_mosaic.version = 11 : i64} {
  func.func @stblock_kernel(%arg0: i32, %arg1: memref<1x128x32xf32, #tpu.memory_space<vmem>>, %arg2: memref<1x9x128x32xf32, #tpu.memory_space<vmem>>, %arg3: memref<4x32xf32, #tpu.memory_space<vmem>>, %arg4: memref<1x32x96xf32, #tpu.memory_space<vmem>>, %arg5: memref<1x1x96xf32, #tpu.memory_space<vmem>>, %arg6: memref<1x32x16x16xf32, #tpu.memory_space<vmem>>, %arg7: memref<1x32x32xf32, #tpu.memory_space<vmem>>, %arg8: memref<1x1x32xf32, #tpu.memory_space<vmem>>, %arg9: memref<1x9x32xf32, #tpu.memory_space<vmem>>, %arg10: memref<1x1x32xf32, #tpu.memory_space<vmem>>, %arg11: memref<1x32x32xf32, #tpu.memory_space<vmem>>, %arg12: memref<1x1x32xf32, #tpu.memory_space<vmem>>, %arg13: memref<1x32x128xf32, #tpu.memory_space<vmem>>, %arg14: memref<1x1x128xf32, #tpu.memory_space<vmem>>, %arg15: memref<1x128x32xf32, #tpu.memory_space<vmem>>, %arg16: memref<1x1x32xf32, #tpu.memory_space<vmem>>, %arg17: memref<1x128x32xf32, #tpu.memory_space<vmem>>) attributes {dimension_semantics = [#tpu.dimension_semantics<parallel>], iteration_bounds = array<i64: 2>, scalar_prefetch = 0 : i64, scratch_operands = 0 : i64, tpu.core_type = #tpu.core_type<tc>, window_params = [{transform_indices = @transform_0, window_bounds = array<i64: 1, 128, 32>}, {transform_indices = @transform_1, window_bounds = array<i64: 1, 9, 128, 32>}, {pipeline_mode = #tpu.pipeline_mode<synchronous>, transform_indices = @transform_2, window_bounds = array<i64: 4, 32>}, {transform_indices = @transform_3, window_bounds = array<i64: 1, 32, 96>}, {transform_indices = @transform_4, window_bounds = array<i64: 1, 1, 96>}, {transform_indices = @transform_5, window_bounds = array<i64: 1, 32, 16, 16>}, {transform_indices = @transform_6, window_bounds = array<i64: 1, 32, 32>}, {transform_indices = @transform_7, window_bounds = array<i64: 1, 1, 32>}, {transform_indices = @transform_8, window_bounds = array<i64: 1, 9, 32>}, {transform_indices = @transform_9, window_bounds = array<i64: 1, 1, 32>}, {transform_indices = @transform_10, window_bounds = array<i64: 1, 32, 32>}, {transform_indices = @transform_11, window_bounds = array<i64: 1, 1, 32>}, {transform_indices = @transform_12, window_bounds = array<i64: 1, 32, 128>}, {transform_indices = @transform_13, window_bounds = array<i64: 1, 1, 128>}, {transform_indices = @transform_14, window_bounds = array<i64: 1, 128, 32>}, {transform_indices = @transform_15, window_bounds = array<i64: 1, 1, 32>}, {transform_indices = @transform_16, window_bounds = array<i64: 1, 128, 32>}]} {
    %c0 = arith.constant 0 : index
    %c0_0 = arith.constant 0 : index
    %c0_1 = arith.constant 0 : index
    %0 = vector.load %arg1[%c0, %c0_0, %c0_1] : memref<1x128x32xf32, #tpu.memory_space<vmem>>, vector<1x128x32xf32>
    %1 = vector.shape_cast %0 : vector<1x128x32xf32> to vector<128x32xf32>
    %c0_2 = arith.constant 0 : index
    %c0_3 = arith.constant 0 : index
    %2 = vector.load %arg3[%c0_2, %c0_3] : memref<4x32xf32, #tpu.memory_space<vmem>>, vector<4x32xf32>
    %3 = vector.extract_strided_slice %2 {offsets = [0, 0], sizes = [1, 32], strides = [1, 1]} : vector<4x32xf32> to vector<1x32xf32>
    %4 = vector.extract_strided_slice %2 {offsets = [1, 0], sizes = [1, 32], strides = [1, 1]} : vector<4x32xf32> to vector<1x32xf32>
    %5 = vector.extract_strided_slice %2 {offsets = [2, 0], sizes = [1, 32], strides = [1, 1]} : vector<4x32xf32> to vector<1x32xf32>
    %6 = vector.extract_strided_slice %2 {offsets = [3, 0], sizes = [1, 32], strides = [1, 1]} : vector<4x32xf32> to vector<1x32xf32>
    %cst = arith.constant dense<0.000000e+00> : vector<128xf32>
    %7 = vector.multi_reduction <add>, %1, %cst [1] : vector<128x32xf32> to vector<128xf32>
    %8 = vector.shape_cast %7 : vector<128xf32> to vector<128x1xf32>
    %cst_4 = arith.constant 3.200000e+01 : f32
    %9 = vector.broadcast %cst_4 : f32 to vector<128x1xf32>
    %10 = arith.divf %8, %9 : vector<128x1xf32>
    %11 = vector.broadcast %10 : vector<128x1xf32> to vector<128x32xf32>
    %12 = arith.subf %1, %11 : vector<128x32xf32>
    %13 = arith.mulf %12, %12 : vector<128x32xf32>
    %cst_5 = arith.constant dense<0.000000e+00> : vector<128xf32>
    %14 = vector.multi_reduction <add>, %13, %cst_5 [1] : vector<128x32xf32> to vector<128xf32>
    %15 = vector.shape_cast %14 : vector<128xf32> to vector<128x1xf32>
    %cst_6 = arith.constant 3.200000e+01 : f32
    %16 = vector.broadcast %cst_6 : f32 to vector<128x1xf32>
    %17 = arith.divf %15, %16 : vector<128x1xf32>
    %18 = vector.broadcast %10 : vector<128x1xf32> to vector<128x32xf32>
    %19 = arith.subf %1, %18 : vector<128x32xf32>
    %cst_7 = arith.constant 9.99999974E-6 : f32
    %20 = vector.broadcast %cst_7 : f32 to vector<128x1xf32>
    %21 = arith.addf %17, %20 : vector<128x1xf32>
    %22 = math.rsqrt %21 : vector<128x1xf32>
    %23 = vector.broadcast %22 : vector<128x1xf32> to vector<128x32xf32>
    %24 = arith.mulf %19, %23 : vector<128x32xf32>
    %25 = vector.broadcast %3 : vector<1x32xf32> to vector<128x32xf32>
    %26 = arith.mulf %24, %25 : vector<128x32xf32>
    %27 = vector.broadcast %4 : vector<1x32xf32> to vector<128x32xf32>
    %28 = arith.addf %26, %27 : vector<128x32xf32>
    %c0_8 = arith.constant 0 : index
    %c0_9 = arith.constant 0 : index
    %c0_10 = arith.constant 0 : index
    %29 = vector.load %arg4[%c0_8, %c0_9, %c0_10] : memref<1x32x96xf32, #tpu.memory_space<vmem>>, vector<1x32x96xf32>
    %30 = vector.shape_cast %29 : vector<1x32x96xf32> to vector<32x96xf32>
    %cst_11 = arith.constant dense<0.000000e+00> : vector<128x96xf32>
    %31 = tpu.matmul %28, %30, %cst_11 {dimension_numbers = #tpu.dot_dimension_numbers<[1], [0], [0], [1], [0, 0, 1, 1], [], []>} : vector<128x32xf32>, vector<32x96xf32>, vector<128x96xf32> -> vector<128x96xf32>
    %c0_12 = arith.constant 0 : index
    %c0_13 = arith.constant 0 : index
    %c0_14 = arith.constant 0 : index
    %32 = vector.load %arg5[%c0_12, %c0_13, %c0_14] : memref<1x1x96xf32, #tpu.memory_space<vmem>>, vector<1x1x96xf32>
    %33 = vector.shape_cast %32 : vector<1x1x96xf32> to vector<1x96xf32>
    %34 = vector.broadcast %33 : vector<1x96xf32> to vector<128x96xf32>
    %35 = arith.addf %31, %34 : vector<128x96xf32>
    %36 = vector.extract_strided_slice %35 {offsets = [0, 0], sizes = [128, 8], strides = [1, 1]} : vector<128x96xf32> to vector<128x8xf32>
    %37 = vector.shape_cast %36 : vector<128x8xf32> to vector<8x16x8xf32>
    %38 = vector.extract_strided_slice %35 {offsets = [0, 8], sizes = [128, 8], strides = [1, 1]} : vector<128x96xf32> to vector<128x8xf32>
    %39 = vector.shape_cast %38 : vector<128x8xf32> to vector<8x16x8xf32>
    %40 = vector.extract_strided_slice %35 {offsets = [0, 16], sizes = [128, 8], strides = [1, 1]} : vector<128x96xf32> to vector<128x8xf32>
    %41 = vector.shape_cast %40 : vector<128x8xf32> to vector<8x16x8xf32>
    %42 = vector.extract_strided_slice %35 {offsets = [0, 24], sizes = [128, 8], strides = [1, 1]} : vector<128x96xf32> to vector<128x8xf32>
    %43 = vector.shape_cast %42 : vector<128x8xf32> to vector<8x16x8xf32>
    %44 = tpu.concatenate %37, %39, %41, %43 in 0 : vector<8x16x8xf32>, vector<8x16x8xf32>, vector<8x16x8xf32>, vector<8x16x8xf32> -> vector<32x16x8xf32>
    %45 = vector.extract_strided_slice %35 {offsets = [0, 32], sizes = [128, 8], strides = [1, 1]} : vector<128x96xf32> to vector<128x8xf32>
    %46 = vector.shape_cast %45 : vector<128x8xf32> to vector<8x16x8xf32>
    %47 = vector.extract_strided_slice %35 {offsets = [0, 40], sizes = [128, 8], strides = [1, 1]} : vector<128x96xf32> to vector<128x8xf32>
    %48 = vector.shape_cast %47 : vector<128x8xf32> to vector<8x16x8xf32>
    %49 = vector.extract_strided_slice %35 {offsets = [0, 48], sizes = [128, 8], strides = [1, 1]} : vector<128x96xf32> to vector<128x8xf32>
    %50 = vector.shape_cast %49 : vector<128x8xf32> to vector<8x16x8xf32>
    %51 = vector.extract_strided_slice %35 {offsets = [0, 56], sizes = [128, 8], strides = [1, 1]} : vector<128x96xf32> to vector<128x8xf32>
    %52 = vector.shape_cast %51 : vector<128x8xf32> to vector<8x16x8xf32>
    %53 = tpu.concatenate %46, %48, %50, %52 in 0 : vector<8x16x8xf32>, vector<8x16x8xf32>, vector<8x16x8xf32>, vector<8x16x8xf32> -> vector<32x16x8xf32>
    %54 = vector.extract_strided_slice %35 {offsets = [0, 64], sizes = [128, 8], strides = [1, 1]} : vector<128x96xf32> to vector<128x8xf32>
    %55 = vector.shape_cast %54 : vector<128x8xf32> to vector<8x16x8xf32>
    %56 = vector.extract_strided_slice %35 {offsets = [0, 72], sizes = [128, 8], strides = [1, 1]} : vector<128x96xf32> to vector<128x8xf32>
    %57 = vector.shape_cast %56 : vector<128x8xf32> to vector<8x16x8xf32>
    %58 = vector.extract_strided_slice %35 {offsets = [0, 80], sizes = [128, 8], strides = [1, 1]} : vector<128x96xf32> to vector<128x8xf32>
    %59 = vector.shape_cast %58 : vector<128x8xf32> to vector<8x16x8xf32>
    %60 = vector.extract_strided_slice %35 {offsets = [0, 88], sizes = [128, 8], strides = [1, 1]} : vector<128x96xf32> to vector<128x8xf32>
    %61 = vector.shape_cast %60 : vector<128x8xf32> to vector<8x16x8xf32>
    %62 = tpu.concatenate %55, %57, %59, %61 in 0 : vector<8x16x8xf32>, vector<8x16x8xf32>, vector<8x16x8xf32>, vector<8x16x8xf32> -> vector<32x16x8xf32>
    "tpu.trace_start"() <{level = 10 : i32, message = "bnd,bmd->bnm"}> : () -> ()
    %cst_15 = arith.constant dense<0.000000e+00> : vector<32x16x16xf32>
    %63 = tpu.matmul %44, %53, %cst_15 {dimension_numbers = #tpu.dot_dimension_numbers<[2], [2], [1], [1], [0, 0, 0, 1, 1, 1], [0], [0]>} : vector<32x16x8xf32>, vector<32x16x8xf32>, vector<32x16x16xf32> -> vector<32x16x16xf32>
    "tpu.trace_stop"() : () -> ()
    %c0_16 = arith.constant 0 : index
    %c0_17 = arith.constant 0 : index
    %c0_18 = arith.constant 0 : index
    %c0_19 = arith.constant 0 : index
    %64 = vector.load %arg6[%c0_16, %c0_17, %c0_18, %c0_19] : memref<1x32x16x16xf32, #tpu.memory_space<vmem>>, vector<1x32x16x16xf32>
    %65 = vector.shape_cast %64 : vector<1x32x16x16xf32> to vector<32x16x16xf32>
    %66 = arith.addf %63, %65 : vector<32x16x16xf32>
    %cst_20 = arith.constant dense<0xFF800000> : vector<32x16xf32>
    %67 = vector.multi_reduction <maximumf>, %66, %cst_20 [2] : vector<32x16x16xf32> to vector<32x16xf32>
    %68 = vector.shape_cast %67 : vector<32x16xf32> to vector<32x16x1xf32>
    %69 = vector.broadcast %68 : vector<32x16x1xf32> to vector<32x16x16xf32>
    %70 = arith.subf %66, %69 : vector<32x16x16xf32>
    %71 = math.exp %70 : vector<32x16x16xf32>
    %cst_21 = arith.constant dense<0.000000e+00> : vector<32x16xf32>
    %72 = vector.multi_reduction <add>, %71, %cst_21 [2] : vector<32x16x16xf32> to vector<32x16xf32>
    %73 = vector.shape_cast %72 : vector<32x16xf32> to vector<32x16x1xf32>
    %74 = tpu.reciprocal %73 {approx = true} : vector<32x16x1xf32> -> vector<32x16x1xf32>
    %75 = vector.broadcast %74 : vector<32x16x1xf32> to vector<32x16x16xf32>
    %76 = arith.mulf %71, %75 : vector<32x16x16xf32>
    "tpu.trace_start"() <{level = 10 : i32, message = "bnm,bmd->bnd"}> : () -> ()
    %cst_22 = arith.constant dense<0.000000e+00> : vector<32x16x8xf32>
    %77 = tpu.matmul %76, %62, %cst_22 {dimension_numbers = #tpu.dot_dimension_numbers<[2], [1], [1], [2], [0, 0, 0, 1, 1, 2], [0], [0]>} : vector<32x16x16xf32>, vector<32x16x8xf32>, vector<32x16x8xf32> -> vector<32x16x8xf32>
    "tpu.trace_stop"() : () -> ()
    %78 = vector.extract_strided_slice %77 {offsets = [0, 0, 0], sizes = [8, 16, 8], strides = [1, 1, 1]} : vector<32x16x8xf32> to vector<8x16x8xf32>
    %79 = vector.shape_cast %78 : vector<8x16x8xf32> to vector<128x8xf32>
    %80 = vector.extract_strided_slice %77 {offsets = [8, 0, 0], sizes = [8, 16, 8], strides = [1, 1, 1]} : vector<32x16x8xf32> to vector<8x16x8xf32>
    %81 = vector.shape_cast %80 : vector<8x16x8xf32> to vector<128x8xf32>
    %82 = vector.extract_strided_slice %77 {offsets = [16, 0, 0], sizes = [8, 16, 8], strides = [1, 1, 1]} : vector<32x16x8xf32> to vector<8x16x8xf32>
    %83 = vector.shape_cast %82 : vector<8x16x8xf32> to vector<128x8xf32>
    %84 = vector.extract_strided_slice %77 {offsets = [24, 0, 0], sizes = [8, 16, 8], strides = [1, 1, 1]} : vector<32x16x8xf32> to vector<8x16x8xf32>
    %85 = vector.shape_cast %84 : vector<8x16x8xf32> to vector<128x8xf32>
    %86 = tpu.concatenate %79, %81, %83, %85 in 1 : vector<128x8xf32>, vector<128x8xf32>, vector<128x8xf32>, vector<128x8xf32> -> vector<128x32xf32>
    %c0_23 = arith.constant 0 : index
    %c0_24 = arith.constant 0 : index
    %c0_25 = arith.constant 0 : index
    %87 = vector.load %arg7[%c0_23, %c0_24, %c0_25] : memref<1x32x32xf32, #tpu.memory_space<vmem>>, vector<1x32x32xf32>
    %88 = vector.shape_cast %87 : vector<1x32x32xf32> to vector<32x32xf32>
    %cst_26 = arith.constant dense<0.000000e+00> : vector<128x32xf32>
    %89 = tpu.matmul %86, %88, %cst_26 {dimension_numbers = #tpu.dot_dimension_numbers<[1], [0], [0], [1], [0, 0, 1, 1], [], []>} : vector<128x32xf32>, vector<32x32xf32>, vector<128x32xf32> -> vector<128x32xf32>
    %c0_27 = arith.constant 0 : index
    %c0_28 = arith.constant 0 : index
    %c0_29 = arith.constant 0 : index
    %90 = vector.load %arg8[%c0_27, %c0_28, %c0_29] : memref<1x1x32xf32, #tpu.memory_space<vmem>>, vector<1x1x32xf32>
    %91 = vector.shape_cast %90 : vector<1x1x32xf32> to vector<1x32xf32>
    %92 = vector.broadcast %91 : vector<1x32xf32> to vector<128x32xf32>
    %93 = arith.addf %89, %92 : vector<128x32xf32>
    %c0_30 = arith.constant 0 : index
    %c0_31 = arith.constant 0 : index
    %c0_32 = arith.constant 0 : index
    %94 = vector.load %arg9[%c0_30, %c0_31, %c0_32] : memref<1x9x32xf32, #tpu.memory_space<vmem>>, vector<1x9x32xf32>
    %95 = vector.shape_cast %94 : vector<1x9x32xf32> to vector<9x32xf32>
    %c0_33 = arith.constant 0 : index
    %c0_34 = arith.constant 0 : index
    %c0_35 = arith.constant 0 : index
    %c0_36 = arith.constant 0 : index
    %96 = vector.load %arg2[%c0_33, %c0_34, %c0_35, %c0_36] : memref<1x9x128x32xf32, #tpu.memory_space<vmem>>, vector<1x1x128x32xf32>
    %97 = vector.shape_cast %96 : vector<1x1x128x32xf32> to vector<128x32xf32>
    %98 = vector.extract_strided_slice %95 {offsets = [0, 0], sizes = [1, 32], strides = [1, 1]} : vector<9x32xf32> to vector<1x32xf32>
    %99 = vector.broadcast %98 : vector<1x32xf32> to vector<128x32xf32>
    %100 = arith.mulf %97, %99 : vector<128x32xf32>
    %c0_37 = arith.constant 0 : index
    %c1 = arith.constant 1 : index
    %c0_38 = arith.constant 0 : index
    %c0_39 = arith.constant 0 : index
    %101 = vector.load %arg2[%c0_37, %c1, %c0_38, %c0_39] : memref<1x9x128x32xf32, #tpu.memory_space<vmem>>, vector<1x1x128x32xf32>
    %102 = vector.shape_cast %101 : vector<1x1x128x32xf32> to vector<128x32xf32>
    %103 = vector.extract_strided_slice %95 {offsets = [1, 0], sizes = [1, 32], strides = [1, 1]} : vector<9x32xf32> to vector<1x32xf32>
    %104 = vector.broadcast %103 : vector<1x32xf32> to vector<128x32xf32>
    %105 = arith.mulf %102, %104 : vector<128x32xf32>
    %106 = arith.addf %100, %105 : vector<128x32xf32>
    %c0_40 = arith.constant 0 : index
    %c2 = arith.constant 2 : index
    %c0_41 = arith.constant 0 : index
    %c0_42 = arith.constant 0 : index
    %107 = vector.load %arg2[%c0_40, %c2, %c0_41, %c0_42] : memref<1x9x128x32xf32, #tpu.memory_space<vmem>>, vector<1x1x128x32xf32>
    %108 = vector.shape_cast %107 : vector<1x1x128x32xf32> to vector<128x32xf32>
    %109 = vector.extract_strided_slice %95 {offsets = [2, 0], sizes = [1, 32], strides = [1, 1]} : vector<9x32xf32> to vector<1x32xf32>
    %110 = vector.broadcast %109 : vector<1x32xf32> to vector<128x32xf32>
    %111 = arith.mulf %108, %110 : vector<128x32xf32>
    %112 = arith.addf %106, %111 : vector<128x32xf32>
    %c0_43 = arith.constant 0 : index
    %c3 = arith.constant 3 : index
    %c0_44 = arith.constant 0 : index
    %c0_45 = arith.constant 0 : index
    %113 = vector.load %arg2[%c0_43, %c3, %c0_44, %c0_45] : memref<1x9x128x32xf32, #tpu.memory_space<vmem>>, vector<1x1x128x32xf32>
    %114 = vector.shape_cast %113 : vector<1x1x128x32xf32> to vector<128x32xf32>
    %115 = vector.extract_strided_slice %95 {offsets = [3, 0], sizes = [1, 32], strides = [1, 1]} : vector<9x32xf32> to vector<1x32xf32>
    %116 = vector.broadcast %115 : vector<1x32xf32> to vector<128x32xf32>
    %117 = arith.mulf %114, %116 : vector<128x32xf32>
    %118 = arith.addf %112, %117 : vector<128x32xf32>
    %c0_46 = arith.constant 0 : index
    %c4 = arith.constant 4 : index
    %c0_47 = arith.constant 0 : index
    %c0_48 = arith.constant 0 : index
    %119 = vector.load %arg2[%c0_46, %c4, %c0_47, %c0_48] : memref<1x9x128x32xf32, #tpu.memory_space<vmem>>, vector<1x1x128x32xf32>
    %120 = vector.shape_cast %119 : vector<1x1x128x32xf32> to vector<128x32xf32>
    %121 = vector.extract_strided_slice %95 {offsets = [4, 0], sizes = [1, 32], strides = [1, 1]} : vector<9x32xf32> to vector<1x32xf32>
    %122 = vector.broadcast %121 : vector<1x32xf32> to vector<128x32xf32>
    %123 = arith.mulf %120, %122 : vector<128x32xf32>
    %124 = arith.addf %118, %123 : vector<128x32xf32>
    %c0_49 = arith.constant 0 : index
    %c5 = arith.constant 5 : index
    %c0_50 = arith.constant 0 : index
    %c0_51 = arith.constant 0 : index
    %125 = vector.load %arg2[%c0_49, %c5, %c0_50, %c0_51] : memref<1x9x128x32xf32, #tpu.memory_space<vmem>>, vector<1x1x128x32xf32>
    %126 = vector.shape_cast %125 : vector<1x1x128x32xf32> to vector<128x32xf32>
    %127 = vector.extract_strided_slice %95 {offsets = [5, 0], sizes = [1, 32], strides = [1, 1]} : vector<9x32xf32> to vector<1x32xf32>
    %128 = vector.broadcast %127 : vector<1x32xf32> to vector<128x32xf32>
    %129 = arith.mulf %126, %128 : vector<128x32xf32>
    %130 = arith.addf %124, %129 : vector<128x32xf32>
    %c0_52 = arith.constant 0 : index
    %c6 = arith.constant 6 : index
    %c0_53 = arith.constant 0 : index
    %c0_54 = arith.constant 0 : index
    %131 = vector.load %arg2[%c0_52, %c6, %c0_53, %c0_54] : memref<1x9x128x32xf32, #tpu.memory_space<vmem>>, vector<1x1x128x32xf32>
    %132 = vector.shape_cast %131 : vector<1x1x128x32xf32> to vector<128x32xf32>
    %133 = vector.extract_strided_slice %95 {offsets = [6, 0], sizes = [1, 32], strides = [1, 1]} : vector<9x32xf32> to vector<1x32xf32>
    %134 = vector.broadcast %133 : vector<1x32xf32> to vector<128x32xf32>
    %135 = arith.mulf %132, %134 : vector<128x32xf32>
    %136 = arith.addf %130, %135 : vector<128x32xf32>
    %c0_55 = arith.constant 0 : index
    %c7 = arith.constant 7 : index
    %c0_56 = arith.constant 0 : index
    %c0_57 = arith.constant 0 : index
    %137 = vector.load %arg2[%c0_55, %c7, %c0_56, %c0_57] : memref<1x9x128x32xf32, #tpu.memory_space<vmem>>, vector<1x1x128x32xf32>
    %138 = vector.shape_cast %137 : vector<1x1x128x32xf32> to vector<128x32xf32>
    %139 = vector.extract_strided_slice %95 {offsets = [7, 0], sizes = [1, 32], strides = [1, 1]} : vector<9x32xf32> to vector<1x32xf32>
    %140 = vector.broadcast %139 : vector<1x32xf32> to vector<128x32xf32>
    %141 = arith.mulf %138, %140 : vector<128x32xf32>
    %142 = arith.addf %136, %141 : vector<128x32xf32>
    %c0_58 = arith.constant 0 : index
    %c8 = arith.constant 8 : index
    %c0_59 = arith.constant 0 : index
    %c0_60 = arith.constant 0 : index
    %143 = vector.load %arg2[%c0_58, %c8, %c0_59, %c0_60] : memref<1x9x128x32xf32, #tpu.memory_space<vmem>>, vector<1x1x128x32xf32>
    %144 = vector.shape_cast %143 : vector<1x1x128x32xf32> to vector<128x32xf32>
    %145 = vector.extract_strided_slice %95 {offsets = [8, 0], sizes = [1, 32], strides = [1, 1]} : vector<9x32xf32> to vector<1x32xf32>
    %146 = vector.broadcast %145 : vector<1x32xf32> to vector<128x32xf32>
    %147 = arith.mulf %144, %146 : vector<128x32xf32>
    %148 = arith.addf %142, %147 : vector<128x32xf32>
    %c0_61 = arith.constant 0 : index
    %c0_62 = arith.constant 0 : index
    %c0_63 = arith.constant 0 : index
    %149 = vector.load %arg10[%c0_61, %c0_62, %c0_63] : memref<1x1x32xf32, #tpu.memory_space<vmem>>, vector<1x1x32xf32>
    %150 = vector.shape_cast %149 : vector<1x1x32xf32> to vector<1x32xf32>
    %151 = vector.broadcast %150 : vector<1x32xf32> to vector<128x32xf32>
    %152 = arith.addf %148, %151 : vector<128x32xf32>
    %153 = arith.mulf %152, %152 : vector<128x32xf32>
    %154 = arith.mulf %152, %153 : vector<128x32xf32>
    %cst_64 = arith.constant 4.471500e-02 : f32
    %155 = vector.broadcast %cst_64 : f32 to vector<128x32xf32>
    %156 = arith.mulf %155, %154 : vector<128x32xf32>
    %157 = arith.addf %152, %156 : vector<128x32xf32>
    %cst_65 = arith.constant 0.797884583 : f32
    %158 = vector.broadcast %cst_65 : f32 to vector<128x32xf32>
    %159 = arith.mulf %158, %157 : vector<128x32xf32>
    %160 = math.tanh %159 : vector<128x32xf32>
    %cst_66 = arith.constant 1.000000e+00 : f32
    %161 = vector.broadcast %cst_66 : f32 to vector<128x32xf32>
    %162 = arith.addf %161, %160 : vector<128x32xf32>
    %cst_67 = arith.constant 5.000000e-01 : f32
    %163 = vector.broadcast %cst_67 : f32 to vector<128x32xf32>
    %164 = arith.mulf %163, %162 : vector<128x32xf32>
    %165 = arith.mulf %152, %164 : vector<128x32xf32>
    %c0_68 = arith.constant 0 : index
    %c0_69 = arith.constant 0 : index
    %c0_70 = arith.constant 0 : index
    %166 = vector.load %arg11[%c0_68, %c0_69, %c0_70] : memref<1x32x32xf32, #tpu.memory_space<vmem>>, vector<1x32x32xf32>
    %167 = vector.shape_cast %166 : vector<1x32x32xf32> to vector<32x32xf32>
    %cst_71 = arith.constant dense<0.000000e+00> : vector<128x32xf32>
    %168 = tpu.matmul %165, %167, %cst_71 {dimension_numbers = #tpu.dot_dimension_numbers<[1], [0], [0], [1], [0, 0, 1, 1], [], []>} : vector<128x32xf32>, vector<32x32xf32>, vector<128x32xf32> -> vector<128x32xf32>
    %c0_72 = arith.constant 0 : index
    %c0_73 = arith.constant 0 : index
    %c0_74 = arith.constant 0 : index
    %169 = vector.load %arg12[%c0_72, %c0_73, %c0_74] : memref<1x1x32xf32, #tpu.memory_space<vmem>>, vector<1x1x32xf32>
    %170 = vector.shape_cast %169 : vector<1x1x32xf32> to vector<1x32xf32>
    %171 = vector.broadcast %170 : vector<1x32xf32> to vector<128x32xf32>
    %172 = arith.addf %168, %171 : vector<128x32xf32>
    %173 = arith.addf %1, %93 : vector<128x32xf32>
    %174 = arith.addf %173, %172 : vector<128x32xf32>
    %cst_75 = arith.constant dense<0.000000e+00> : vector<128xf32>
    %175 = vector.multi_reduction <add>, %174, %cst_75 [1] : vector<128x32xf32> to vector<128xf32>
    %176 = vector.shape_cast %175 : vector<128xf32> to vector<128x1xf32>
    %cst_76 = arith.constant 3.200000e+01 : f32
    %177 = vector.broadcast %cst_76 : f32 to vector<128x1xf32>
    %178 = arith.divf %176, %177 : vector<128x1xf32>
    %179 = vector.broadcast %178 : vector<128x1xf32> to vector<128x32xf32>
    %180 = arith.subf %174, %179 : vector<128x32xf32>
    %181 = arith.mulf %180, %180 : vector<128x32xf32>
    %cst_77 = arith.constant dense<0.000000e+00> : vector<128xf32>
    %182 = vector.multi_reduction <add>, %181, %cst_77 [1] : vector<128x32xf32> to vector<128xf32>
    %183 = vector.shape_cast %182 : vector<128xf32> to vector<128x1xf32>
    %cst_78 = arith.constant 3.200000e+01 : f32
    %184 = vector.broadcast %cst_78 : f32 to vector<128x1xf32>
    %185 = arith.divf %183, %184 : vector<128x1xf32>
    %186 = vector.broadcast %178 : vector<128x1xf32> to vector<128x32xf32>
    %187 = arith.subf %174, %186 : vector<128x32xf32>
    %cst_79 = arith.constant 9.99999974E-6 : f32
    %188 = vector.broadcast %cst_79 : f32 to vector<128x1xf32>
    %189 = arith.addf %185, %188 : vector<128x1xf32>
    %190 = math.rsqrt %189 : vector<128x1xf32>
    %191 = vector.broadcast %190 : vector<128x1xf32> to vector<128x32xf32>
    %192 = arith.mulf %187, %191 : vector<128x32xf32>
    %193 = vector.broadcast %5 : vector<1x32xf32> to vector<128x32xf32>
    %194 = arith.mulf %192, %193 : vector<128x32xf32>
    %195 = vector.broadcast %6 : vector<1x32xf32> to vector<128x32xf32>
    %196 = arith.addf %194, %195 : vector<128x32xf32>
    %c0_80 = arith.constant 0 : index
    %c0_81 = arith.constant 0 : index
    %c0_82 = arith.constant 0 : index
    %197 = vector.load %arg13[%c0_80, %c0_81, %c0_82] : memref<1x32x128xf32, #tpu.memory_space<vmem>>, vector<1x32x128xf32>
    %198 = vector.shape_cast %197 : vector<1x32x128xf32> to vector<32x128xf32>
    %cst_83 = arith.constant dense<0.000000e+00> : vector<128x128xf32>
    %199 = tpu.matmul %196, %198, %cst_83 {dimension_numbers = #tpu.dot_dimension_numbers<[1], [0], [0], [1], [0, 0, 1, 1], [], []>} : vector<128x32xf32>, vector<32x128xf32>, vector<128x128xf32> -> vector<128x128xf32>
    %c0_84 = arith.constant 0 : index
    %c0_85 = arith.constant 0 : index
    %c0_86 = arith.constant 0 : index
    %200 = vector.load %arg14[%c0_84, %c0_85, %c0_86] : memref<1x1x128xf32, #tpu.memory_space<vmem>>, vector<1x1x128xf32>
    %201 = vector.shape_cast %200 : vector<1x1x128xf32> to vector<1x128xf32>
    %202 = vector.broadcast %201 : vector<1x128xf32> to vector<128x128xf32>
    %203 = arith.addf %199, %202 : vector<128x128xf32>
    %204 = arith.mulf %203, %203 : vector<128x128xf32>
    %205 = arith.mulf %203, %204 : vector<128x128xf32>
    %cst_87 = arith.constant 4.471500e-02 : f32
    %206 = vector.broadcast %cst_87 : f32 to vector<128x128xf32>
    %207 = arith.mulf %206, %205 : vector<128x128xf32>
    %208 = arith.addf %203, %207 : vector<128x128xf32>
    %cst_88 = arith.constant 0.797884583 : f32
    %209 = vector.broadcast %cst_88 : f32 to vector<128x128xf32>
    %210 = arith.mulf %209, %208 : vector<128x128xf32>
    %211 = math.tanh %210 : vector<128x128xf32>
    %cst_89 = arith.constant 1.000000e+00 : f32
    %212 = vector.broadcast %cst_89 : f32 to vector<128x128xf32>
    %213 = arith.addf %212, %211 : vector<128x128xf32>
    %cst_90 = arith.constant 5.000000e-01 : f32
    %214 = vector.broadcast %cst_90 : f32 to vector<128x128xf32>
    %215 = arith.mulf %214, %213 : vector<128x128xf32>
    %216 = arith.mulf %203, %215 : vector<128x128xf32>
    %c0_91 = arith.constant 0 : index
    %c0_92 = arith.constant 0 : index
    %c0_93 = arith.constant 0 : index
    %217 = vector.load %arg15[%c0_91, %c0_92, %c0_93] : memref<1x128x32xf32, #tpu.memory_space<vmem>>, vector<1x128x32xf32>
    %218 = vector.shape_cast %217 : vector<1x128x32xf32> to vector<128x32xf32>
    %cst_94 = arith.constant dense<0.000000e+00> : vector<128x32xf32>
    %219 = tpu.matmul %216, %218, %cst_94 {dimension_numbers = #tpu.dot_dimension_numbers<[1], [0], [0], [1], [0, 0, 1, 1], [], []>} : vector<128x128xf32>, vector<128x32xf32>, vector<128x32xf32> -> vector<128x32xf32>
    %220 = arith.addf %174, %219 : vector<128x32xf32>
    %c0_95 = arith.constant 0 : index
    %c0_96 = arith.constant 0 : index
    %c0_97 = arith.constant 0 : index
    %221 = vector.load %arg16[%c0_95, %c0_96, %c0_97] : memref<1x1x32xf32, #tpu.memory_space<vmem>>, vector<1x1x32xf32>
    %222 = vector.shape_cast %221 : vector<1x1x32xf32> to vector<1x32xf32>
    %223 = vector.broadcast %222 : vector<1x32xf32> to vector<128x32xf32>
    %224 = arith.addf %220, %223 : vector<128x32xf32>
    %c0_98 = arith.constant 0 : index
    %c0_99 = arith.constant 0 : index
    %c0_100 = arith.constant 0 : index
    %225 = vector.load %arg17[%c0_98, %c0_99, %c0_100] : memref<1x128x32xf32, #tpu.memory_space<vmem>>, vector<1x128x32xf32>
    %226 = vector.shape_cast %225 : vector<1x128x32xf32> to vector<128x32xf32>
    %227 = vector.shape_cast %224 : vector<128x32xf32> to vector<1x128x32xf32>
    tpu.vector_store %arg17[%c0_98, %c0_99, %c0_100], %227 {strides = array<i32>} : memref<1x128x32xf32, #tpu.memory_space<vmem>>, vector<1x128x32xf32>,
    return
  }
  func.func @transform_0(%arg0: i32) -> (i32, i32, i32) {
    %c0_i32 = arith.constant 0 : i32
    %c0_i32_0 = arith.constant 0 : i32
    %c0_i32_1 = arith.constant 0 : i32
    return %arg0, %c0_i32, %c0_i32_0 : i32, i32, i32
  }
  func.func @transform_1(%arg0: i32) -> (i32, i32, i32, i32) {
    %c0_i32 = arith.constant 0 : i32
    %c0_i32_0 = arith.constant 0 : i32
    %c0_i32_1 = arith.constant 0 : i32
    %c0_i32_2 = arith.constant 0 : i32
    return %arg0, %c0_i32, %c0_i32_0, %c0_i32_1 : i32, i32, i32, i32
  }
  func.func @transform_2(%arg0: i32) -> (i32, i32) {
    %c0_i32 = arith.constant 0 : i32
    %c0_i32_0 = arith.constant 0 : i32
    %c0_i32_1 = arith.constant 0 : i32
    return %c0_i32, %c0_i32_0 : i32, i32
  }
  func.func @transform_3(%arg0: i32) -> (i32, i32, i32) {
    %c0_i32 = arith.constant 0 : i32
    %c0_i32_0 = arith.constant 0 : i32
    %c0_i32_1 = arith.constant 0 : i32
    return %arg0, %c0_i32, %c0_i32_0 : i32, i32, i32
  }
  func.func @transform_4(%arg0: i32) -> (i32, i32, i32) {
    %c0_i32 = arith.constant 0 : i32
    %c0_i32_0 = arith.constant 0 : i32
    %c0_i32_1 = arith.constant 0 : i32
    return %arg0, %c0_i32, %c0_i32_0 : i32, i32, i32
  }
  func.func @transform_5(%arg0: i32) -> (i32, i32, i32, i32) {
    %c0_i32 = arith.constant 0 : i32
    %c0_i32_0 = arith.constant 0 : i32
    %c0_i32_1 = arith.constant 0 : i32
    %c0_i32_2 = arith.constant 0 : i32
    return %arg0, %c0_i32, %c0_i32_0, %c0_i32_1 : i32, i32, i32, i32
  }
  func.func @transform_6(%arg0: i32) -> (i32, i32, i32) {
    %c0_i32 = arith.constant 0 : i32
    %c0_i32_0 = arith.constant 0 : i32
    %c0_i32_1 = arith.constant 0 : i32
    return %arg0, %c0_i32, %c0_i32_0 : i32, i32, i32
  }
  func.func @transform_7(%arg0: i32) -> (i32, i32, i32) {
    %c0_i32 = arith.constant 0 : i32
    %c0_i32_0 = arith.constant 0 : i32
    %c0_i32_1 = arith.constant 0 : i32
    return %arg0, %c0_i32, %c0_i32_0 : i32, i32, i32
  }
  func.func @transform_8(%arg0: i32) -> (i32, i32, i32) {
    %c0_i32 = arith.constant 0 : i32
    %c0_i32_0 = arith.constant 0 : i32
    %c0_i32_1 = arith.constant 0 : i32
    return %arg0, %c0_i32, %c0_i32_0 : i32, i32, i32
  }
  func.func @transform_9(%arg0: i32) -> (i32, i32, i32) {
    %c0_i32 = arith.constant 0 : i32
    %c0_i32_0 = arith.constant 0 : i32
    %c0_i32_1 = arith.constant 0 : i32
    return %arg0, %c0_i32, %c0_i32_0 : i32, i32, i32
  }
  func.func @transform_10(%arg0: i32) -> (i32, i32, i32) {
    %c0_i32 = arith.constant 0 : i32
    %c0_i32_0 = arith.constant 0 : i32
    %c0_i32_1 = arith.constant 0 : i32
    return %arg0, %c0_i32, %c0_i32_0 : i32, i32, i32
  }
  func.func @transform_11(%arg0: i32) -> (i32, i32, i32) {
    %c0_i32 = arith.constant 0 : i32
    %c0_i32_0 = arith.constant 0 : i32
    %c0_i32_1 = arith.constant 0 : i32
    return %arg0, %c0_i32, %c0_i32_0 : i32, i32, i32
  }
  func.func @transform_12(%arg0: i32) -> (i32, i32, i32) {
    %c0_i32 = arith.constant 0 : i32
    %c0_i32_0 = arith.constant 0 : i32
    %c0_i32_1 = arith.constant 0 : i32
    return %arg0, %c0_i32, %c0_i32_0 : i32, i32, i32
  }
  func.func @transform_13(%arg0: i32) -> (i32, i32, i32) {
    %c0_i32 = arith.constant 0 : i32
    %c0_i32_0 = arith.constant 0 : i32
    %c0_i32_1 = arith.constant 0 : i32
    return %arg0, %c0_i32, %c0_i32_0 : i32, i32, i32
  }
  func.func @transform_14(%arg0: i32) -> (i32, i32, i32) {
    %c0_i32 = arith.constant 0 : i32
    %c0_i32_0 = arith.constant 0 : i32
    %c0_i32_1 = arith.constant 0 : i32
    return %arg0, %c0_i32, %c0_i32_0 : i32, i32, i32
  }
  func.func @transform_15(%arg0: i32) -> (i32, i32, i32) {
    %c0_i32 = arith.constant 0 : i32
    %c0_i32_0 = arith.constant 0 : i32
    %c0_i32_1 = arith.constant 0 : i32
    return %arg0, %c0_i32, %c0_i32_0 : i32, i32, i32
  }
  func.func @transform_16(%arg0: i32) -> (i32, i32, i32) {
    %c0_i32 = arith.constant 0 : i32
    %c0_i32_0 = arith.constant 0 : i32
    %c0_i32_1 = arith.constant 0 : i32
    return %arg0, %c0_i32, %c0_i32_0 : i32, i32, i32
  }
}

</mosaic_0001>

<llo_original>
// kernel: stblock_forward.1
$region0: #{stblock_forward.1}
  #allocation0 [shape = 'u32[]', space=smem, size = 0x4, offset = 0x4, fixed_abs, tag = 'smem constant byte address 0x4 - core index']
  #allocation1 [shape = 'u32[144,128]{1,0:T(1,128)}', space=vmem, size = 0x12000, scoped, tag = 'internal scratch']
  %s0 = inlined_call_operand.vmem [shape: f32[2,128,32], index: 0, kind: input, shape index: {}]
  %s1 = inlined_call_operand.vmem [shape: f32[2,9,128,32], index: 1, kind: input, shape index: {}]
  %s2 = inlined_call_operand.vmem [shape: f32[4,32], index: 2, kind: input, shape index: {}]
  %s3 = inlined_call_operand.vmem [shape: f32[2,32,96], index: 3, kind: input, shape index: {}]
  %s4 = inlined_call_operand.vmem [shape: f32[2,1,96], index: 4, kind: input, shape index: {}]
  %s5 = inlined_call_operand.vmem [shape: f32[2,32,16,16], index: 5, kind: input, shape index: {}]
  %s6 = inlined_call_operand.vmem [shape: f32[2,32,32], index: 6, kind: input, shape index: {}]
  %s7 = inlined_call_operand.vmem [shape: f32[2,1,32], index: 7, kind: input, shape index: {}]
  %s8 = inlined_call_operand.vmem [shape: f32[2,9,32], index: 8, kind: input, shape index: {}]
  %s9 = inlined_call_operand.vmem [shape: f32[2,1,32], index: 9, kind: input, shape index: {}]
  %s10 = inlined_call_operand.vmem [shape: f32[2,32,32], index: 10, kind: input, shape index: {}]
  %s11 = inlined_call_operand.vmem [shape: f32[2,1,32], index: 11, kind: input, shape index: {}]
  %s12 = inlined_call_operand.vmem [shape: f32[2,32,128], index: 12, kind: input, shape index: {}]
  %s13 = inlined_call_operand.vmem [shape: f32[2,1,128], index: 13, kind: input, shape index: {}]
  %s14 = inlined_call_operand.vmem [shape: f32[2,128,32], index: 14, kind: input, shape index: {}]
  %s15 = inlined_call_operand.vmem [shape: f32[2,1,32], index: 15, kind: input, shape index: {}]
  %s16 = inlined_call_operand.vmem [shape: f32[2,128,32], index: 16, kind: output, shape index: {}]
  %s17 = sld [smem:[#allocation0]]
  $region97: #{stblock_forward.1} parent=0
    _
  %s19 = ssub.s32 1, %s17
  %s20 = scalar_select 0, %s19, %s17
  loop: start=0, step=1, limit=4
  $region2: #{stblock_forward.1} parent=0 // loop_pre_header
    _
  $region3: #{stblock_forward.1} parent=0 // loop_header
    %s22 = sphi 0, %s26
    %p23 = scmp.ge.s32.totalorder %s22, 4
    %s32 = sphi 0, %s34
    %s35 = sphi 0, %s32
    %s36 = sphi 0, %s35
    %s52 = sphi 0, %s36
    %s58 = sphi 0, %s60
    %s61 = sphi 0, %s58
    %s62 = sphi 0, %s61
    %s78 = sphi 0, %s62
    %s82 = sphi 0, %s82
    %s84 = sphi 0, %s82
    %s85 = sphi 0, %s84
    %s99 = sphi 0, %s85
    %s105 = sphi 0, %s107
    %s108 = sphi 0, %s105
    %s109 = sphi 0, %s108
    %s125 = sphi 0, %s109
    %s131 = sphi 0, %s133
    %s134 = sphi 0, %s131
    %s135 = sphi 0, %s134
    %s151 = sphi 0, %s135
    %s157 = sphi 0, %s159
    %s160 = sphi 0, %s157
    %s161 = sphi 0, %s160
    %s177 = sphi 0, %s161
    %s183 = sphi 0, %s185
    %s186 = sphi 0, %s183
    %s187 = sphi 0, %s186
    %s203 = sphi 0, %s187
    %s209 = sphi 0, %s211
    %s212 = sphi 0, %s209
    %s213 = sphi 0, %s212
    %s229 = sphi 0, %s213
    %s235 = sphi 0, %s237
    %s238 = sphi 0, %s235
    %s239 = sphi 0, %s238
    %s255 = sphi 0, %s239
    %s261 = sphi 0, %s263
    %s264 = sphi 0, %s261
    %s265 = sphi 0, %s264
    %s281 = sphi 0, %s265
    %s287 = sphi 0, %s289
    %s290 = sphi 0, %s287
    %s291 = sphi 0, %s290
    %s307 = sphi 0, %s291
    %s313 = sphi 0, %s315
    %s316 = sphi 0, %s313
    %s317 = sphi 0, %s316
    %s333 = sphi 0, %s317
    %s339 = sphi 0, %s341
    %s342 = sphi 0, %s339
    %s343 = sphi 0, %s342
    %s359 = sphi 0, %s343
    %s365 = sphi 0, %s367
    %s368 = sphi 0, %s365
    %s369 = sphi 0, %s368
    %s385 = sphi 0, %s369
    %s391 = sphi 0, %s393
    %s394 = sphi 0, %s391
    %s395 = sphi 0, %s394
    %s411 = sphi 0, %s395
    %s417 = sphi 0, %s419
    %s420 = sphi 0, %s417
    %s421 = sphi 0, %s420
    %s437 = sphi 0, %s421
    %s443 = sphi 0, %s445
    %s446 = sphi 0, %s443
    %s447 = sphi 0, %s446
    %s463 = sphi 0, %s447
  $region4: #{stblock_forward.1} parent=0 // loop_header_branch
    %25 = sbr.rel (%p23) target = $region8
  $region5: #{stblock_forward.1} parent=0 // loop_body
    %s27 = ssub.s32 %s22, 1
    %s28 = ssub.s32 %s22, 2
    %s29 = sadd.s32 %s22, 1
    %s30 = ssub.s32 %s22, %s29
    %p31 = scmp.eq.s32.totalorder %s30, 0
    %s33 = sadd.s32 %s32, 1
    %s34 = scalar_select %p31, %s32, %s33
    %p37 = pneg %p31
    %p38 = scmp.eq.s32.totalorder %s22, 1
    %p39 = por %p37, %p38
    %p40 = scmp.ne.s32.totalorder %s32, %s35
    %p41 = scmp.eq.s32.totalorder %s22, 0
    %p42 = por %p40, %p41
    %p43 = scmp.ne.s32.totalorder %s32, %s35
    %p44 = scmp.eq.s32.totalorder %s27, 1
    %p45 = por %p43, %p44
    %p46 = scmp.ne.s32.totalorder %s35, %s36
    %p47 = scmp.eq.s32.totalorder %s27, 0
    %p48 = por %p46, %p47
    %p49 = scmp.ne.s32.totalorder %s35, %s36
    %p50 = scmp.eq.s32.totalorder %s28, 1
    %p51 = por %p49, %p50
    %p53 = scmp.ne.s32.totalorder %s36, %s52
    %p54 = scmp.eq.s32.totalorder %s28, 0
    %p55 = por %p53, %p54
    %s56 = ssub.s32 %s22, %s29
    %p57 = scmp.eq.s32.totalorder %s56, 0
    %s59 = sadd.s32 %s58, 1
    %s60 = scalar_select %p57, %s58, %s59
    %p63 = pneg %p57
    %p64 = scmp.eq.s32.totalorder %s22, 1
    %p65 = por %p63, %p64
    %p66 = scmp.ne.s32.totalorder %s58, %s61
    %p67 = scmp.eq.s32.totalorder %s22, 0
    %p68 = por %p66, %p67
    %p69 = scmp.ne.s32.totalorder %s58, %s61
    %p70 = scmp.eq.s32.totalorder %s27, 1
    %p71 = por %p69, %p70
    %p72 = scmp.ne.s32.totalorder %s61, %s62
    %p73 = scmp.eq.s32.totalorder %s27, 0
    %p74 = por %p72, %p73
    %p75 = scmp.ne.s32.totalorder %s61, %s62
    %p76 = scmp.eq.s32.totalorder %s28, 1
    %p77 = por %p75, %p76
    %p79 = scmp.ne.s32.totalorder %s62, %s78
    %p80 = scmp.eq.s32.totalorder %s28, 0
    %p81 = por %p79, %p80
    %s83 = sadd.s32 %s82, 1
    %p86 = scmp.eq.s32.totalorder %s22, 1
    %p87 = scmp.ne.s32.totalorder %s82, %s84
    %p88 = scmp.eq.s32.totalorder %s22, 0
    %p89 = por %p87, %p88
    %p90 = scmp.ne.s32.totalorder %s82, %s84
    %p91 = scmp.eq.s32.totalorder %s27, 1
    %p92 = por %p90, %p91
    %p93 = scmp.ne.s32.totalorder %s84, %s85
    %p94 = scmp.eq.s32.totalorder %s27, 0
    %p95 = por %p93, %p94
    %p96 = scmp.ne.s32.totalorder %s84, %s85
    %p97 = scmp.eq.s32.totalorder %s28, 1
    %p98 = por %p96, %p97
    %p100 = scmp.ne.s32.totalorder %s85, %s99
    %p101 = scmp.eq.s32.totalorder %s28, 0
    %p102 = por %p100, %p101
    %s103 = ssub.s32 %s22, %s29
    %p104 = scmp.eq.s32.totalorder %s103, 0
    %s106 = sadd.s32 %s105, 1
    %s107 = scalar_select %p104, %s105, %s106
    %p110 = pneg %p104
    %p111 = scmp.eq.s32.totalorder %s22, 1
    %p112 = por %p110, %p111
    %p113 = scmp.ne.s32.totalorder %s105, %s108
    %p114 = scmp.eq.s32.totalorder %s22, 0
    %p115 = por %p113, %p114
    %p116 = scmp.ne.s32.totalorder %s105, %s108
    %p117 = scmp.eq.s32.totalorder %s27, 1
    %p118 = por %p116, %p117
    %p119 = scmp.ne.s32.totalorder %s108, %s109
    %p120 = scmp.eq.s32.totalorder %s27, 0
    %p121 = por %p119, %p120
    %p122 = scmp.ne.s32.totalorder %s108, %s109
    %p123 = scmp.eq.s32.totalorder %s28, 1
    %p124 = por %p122, %p123
    %p126 = scmp.ne.s32.totalorder %s109, %s125
    %p127 = scmp.eq.s32.totalorder %s28, 0
    %p128 = por %p126, %p127
    %s129 = ssub.s32 %s22, %s29
    %p130 = scmp.eq.s32.totalorder %s129, 0
    %s132 = sadd.s32 %s131, 1
    %s133 = scalar_select %p130, %s131, %s132
    %p136 = pneg %p130
    %p137 = scmp.eq.s32.totalorder %s22, 1
    %p138 = por %p136, %p137
    %p139 = scmp.ne.s32.totalorder %s131, %s134
    %p140 = scmp.eq.s32.totalorder %s22, 0
    %p141 = por %p139, %p140
    %p142 = scmp.ne.s32.totalorder %s131, %s134
    %p143 = scmp.eq.s32.totalorder %s27, 1
    %p144 = por %p142, %p143
    %p145 = scmp.ne.s32.totalorder %s134, %s135
    %p146 = scmp.eq.s32.totalorder %s27, 0
    %p147 = por %p145, %p146
    %p148 = scmp.ne.s32.totalorder %s134, %s135
    %p149 = scmp.eq.s32.totalorder %s28, 1
    %p150 = por %p148, %p149
    %p152 = scmp.ne.s32.totalorder %s135, %s151
    %p153 = scmp.eq.s32.totalorder %s28, 0
    %p154 = por %p152, %p153
    %s155 = ssub.s32 %s22, %s29
    %p156 = scmp.eq.s32.totalorder %s155, 0
    %s158 = sadd.s32 %s157, 1
    %s159 = scalar_select %p156, %s157, %s158
    %p162 = pneg %p156
    %p163 = scmp.eq.s32.totalorder %s22, 1
    %p164 = por %p162, %p163
    %p165 = scmp.ne.s32.totalorder %s157, %s160
    %p166 = scmp.eq.s32.totalorder %s22, 0
    %p167 = por %p165, %p166
    %p168 = scmp.ne.s32.totalorder %s157, %s160
    %p169 = scmp.eq.s32.totalorder %s27, 1
    %p170 = por %p168, %p169
    %p171 = scmp.ne.s32.totalorder %s160, %s161
    %p172 = scmp.eq.s32.totalorder %s27, 0
    %p173 = por %p171, %p172
    %p174 = scmp.ne.s32.totalorder %s160, %s161
    %p175 = scmp.eq.s32.totalorder %s28, 1
    %p176 = por %p174, %p175
    %p178 = scmp.ne.s32.totalorder %s161, %s177
    %p179 = scmp.eq.s32.totalorder %s28, 0
    %p180 = por %p178, %p179
    %s181 = ssub.s32 %s22, %s29
    %p182 = scmp.eq.s32.totalorder %s181, 0
    %s184 = sadd.s32 %s183, 1
    %s185 = scalar_select %p182, %s183, %s184
    %p188 = pneg %p182
    %p189 = scmp.eq.s32.totalorder %s22, 1
    %p190 = por %p188, %p189
    %p191 = scmp.ne.s32.totalorder %s183, %s186
    %p192 = scmp.eq.s32.totalorder %s22, 0
    %p193 = por %p191, %p192
    %p194 = scmp.ne.s32.totalorder %s183, %s186
    %p195 = scmp.eq.s32.totalorder %s27, 1
    %p196 = por %p194, %p195
    %p197 = scmp.ne.s32.totalorder %s186, %s187
    %p198 = scmp.eq.s32.totalorder %s27, 0
    %p199 = por %p197, %p198
    %p200 = scmp.ne.s32.totalorder %s186, %s187
    %p201 = scmp.eq.s32.totalorder %s28, 1
    %p202 = por %p200, %p201
    %p204 = scmp.ne.s32.totalorder %s187, %s203
    %p205 = scmp.eq.s32.totalorder %s28, 0
    %p206 = por %p204, %p205
    %s207 = ssub.s32 %s22, %s29
    %p208 = scmp.eq.s32.totalorder %s207, 0
    %s210 = sadd.s32 %s209, 1
    %s211 = scalar_select %p208, %s209, %s210
    %p214 = pneg %p208
    %p215 = scmp.eq.s32.totalorder %s22, 1
    %p216 = por %p214, %p215
    %p217 = scmp.ne.s32.totalorder %s209, %s212
    %p218 = scmp.eq.s32.totalorder %s22, 0
    %p219 = por %p217, %p218
    %p220 = scmp.ne.s32.totalorder %s209, %s212
    %p221 = scmp.eq.s32.totalorder %s27, 1
    %p222 = por %p220, %p221
    %p223 = scmp.ne.s32.totalorder %s212, %s213
    %p224 = scmp.eq.s32.totalorder %s27, 0
    %p225 = por %p223, %p224
    %p226 = scmp.ne.s32.totalorder %s212, %s213
    %p227 = scmp.eq.s32.totalorder %s28, 1
    %p228 = por %p226, %p227
    %p230 = scmp.ne.s32.totalorder %s213, %s229
    %p231 = scmp.eq.s32.totalorder %s28, 0
    %p232 = por %p230, %p231
    %s233 = ssub.s32 %s22, %s29
    %p234 = scmp.eq.s32.totalorder %s233, 0
    %s236 = sadd.s32 %s235, 1
    %s237 = scalar_select %p234, %s235, %s236
    %p240 = pneg %p234
    %p241 = scmp.eq.s32.totalorder %s22, 1
    %p242 = por %p240, %p241
    %p243 = scmp.ne.s32.totalorder %s235, %s238
    %p244 = scmp.eq.s32.totalorder %s22, 0
    %p245 = por %p243, %p244
    %p246 = scmp.ne.s32.totalorder %s235, %s238
    %p247 = scmp.eq.s32.totalorder %s27, 1
    %p248 = por %p246, %p247
    %p249 = scmp.ne.s32.totalorder %s238, %s239
    %p250 = scmp.eq.s32.totalorder %s27, 0
    %p251 = por %p249, %p250
    %p252 = scmp.ne.s32.totalorder %s238, %s239
    %p253 = scmp.eq.s32.totalorder %s28, 1
    %p254 = por %p252, %p253
    %p256 = scmp.ne.s32.totalorder %s239, %s255
    %p257 = scmp.eq.s32.totalorder %s28, 0
    %p258 = por %p256, %p257
    %s259 = ssub.s32 %s22, %s29
    %p260 = scmp.eq.s32.totalorder %s259, 0
    %s262 = sadd.s32 %s261, 1
    %s263 = scalar_select %p260, %s261, %s262
    %p266 = pneg %p260
    %p267 = scmp.eq.s32.totalorder %s22, 1
    %p268 = por %p266, %p267
    %p269 = scmp.ne.s32.totalorder %s261, %s264
    %p270 = scmp.eq.s32.totalorder %s22, 0
    %p271 = por %p269, %p270
    %p272 = scmp.ne.s32.totalorder %s261, %s264
    %p273 = scmp.eq.s32.totalorder %s27, 1
    %p274 = por %p272, %p273
    %p275 = scmp.ne.s32.totalorder %s264, %s265
    %p276 = scmp.eq.s32.totalorder %s27, 0
    %p277 = por %p275, %p276
    %p278 = scmp.ne.s32.totalorder %s264, %s265
    %p279 = scmp.eq.s32.totalorder %s28, 1
    %p280 = por %p278, %p279
    %p282 = scmp.ne.s32.totalorder %s265, %s281
    %p283 = scmp.eq.s32.totalorder %s28, 0
    %p284 = por %p282, %p283
    %s285 = ssub.s32 %s22, %s29
    %p286 = scmp.eq.s32.totalorder %s285, 0
    %s288 = sadd.s32 %s287, 1
    %s289 = scalar_select %p286, %s287, %s288
    %p292 = pneg %p286
    %p293 = scmp.eq.s32.totalorder %s22, 1
    %p294 = por %p292, %p293
    %p295 = scmp.ne.s32.totalorder %s287, %s290
    %p296 = scmp.eq.s32.totalorder %s22, 0
    %p297 = por %p295, %p296
    %p298 = scmp.ne.s32.totalorder %s287, %s290
    %p299 = scmp.eq.s32.totalorder %s27, 1
    %p300 = por %p298, %p299
    %p301 = scmp.ne.s32.totalorder %s290, %s291
    %p302 = scmp.eq.s32.totalorder %s27, 0
    %p303 = por %p301, %p302
    %p304 = scmp.ne.s32.totalorder %s290, %s291
    %p305 = scmp.eq.s32.totalorder %s28, 1
    %p306 = por %p304, %p305
    %p308 = scmp.ne.s32.totalorder %s291, %s307
    %p309 = scmp.eq.s32.totalorder %s28, 0
    %p310 = por %p308, %p309
    %s311 = ssub.s32 %s22, %s29
    %p312 = scmp.eq.s32.totalorder %s311, 0
    %s314 = sadd.s32 %s313, 1
    %s315 = scalar_select %p312, %s313, %s314
    %p318 = pneg %p312
    %p319 = scmp.eq.s32.totalorder %s22, 1
    %p320 = por %p318, %p319
    %p321 = scmp.ne.s32.totalorder %s313, %s316
    %p322 = scmp.eq.s32.totalorder %s22, 0
    %p323 = por %p321, %p322
    %p324 = scmp.ne.s32.totalorder %s313, %s316
    %p325 = scmp.eq.s32.totalorder %s27, 1
    %p326 = por %p324, %p325
    %p327 = scmp.ne.s32.totalorder %s316, %s317
    %p328 = scmp.eq.s32.totalorder %s27, 0
    %p329 = por %p327, %p328
    %p330 = scmp.ne.s32.totalorder %s316, %s317
    %p331 = scmp.eq.s32.totalorder %s28, 1
    %p332 = por %p330, %p331
    %p334 = scmp.ne.s32.totalorder %s317, %s333
    %p335 = scmp.eq.s32.totalorder %s28, 0
    %p336 = por %p334, %p335
    %s337 = ssub.s32 %s22, %s29
    %p338 = scmp.eq.s32.totalorder %s337, 0
    %s340 = sadd.s32 %s339, 1
    %s341 = scalar_select %p338, %s339, %s340
    %p344 = pneg %p338
    %p345 = scmp.eq.s32.totalorder %s22, 1
    %p346 = por %p344, %p345
    %p347 = scmp.ne.s32.totalorder %s339, %s342
    %p348 = scmp.eq.s32.totalorder %s22, 0
    %p349 = por %p347, %p348
    %p350 = scmp.ne.s32.totalorder %s339, %s342
    %p351 = scmp.eq.s32.totalorder %s27, 1
    %p352 = por %p350, %p351
    %p353 = scmp.ne.s32.totalorder %s342, %s343
    %p354 = scmp.eq.s32.totalorder %s27, 0
    %p355 = por %p353, %p354
    %p356 = scmp.ne.s32.totalorder %s342, %s343
    %p357 = scmp.eq.s32.totalorder %s28, 1
    %p358 = por %p356, %p357
    %p360 = scmp.ne.s32.totalorder %s343, %s359
    %p361 = scmp.eq.s32.totalorder %s28, 0
    %p362 = por %p360, %p361
    %s363 = ssub.s32 %s22, %s29
    %p364 = scmp.eq.s32.totalorder %s363, 0
    %s366 = sadd.s32 %s365, 1
    %s367 = scalar_select %p364, %s365, %s366
    %p370 = pneg %p364
    %p371 = scmp.eq.s32.totalorder %s22, 1
    %p372 = por %p370, %p371
    %p373 = scmp.ne.s32.totalorder %s365, %s368
    %p374 = scmp.eq.s32.totalorder %s22, 0
    %p375 = por %p373, %p374
    %p376 = scmp.ne.s32.totalorder %s365, %s368
    %p377 = scmp.eq.s32.totalorder %s27, 1
    %p378 = por %p376, %p377
    %p379 = scmp.ne.s32.totalorder %s368, %s369
    %p380 = scmp.eq.s32.totalorder %s27, 0
    %p381 = por %p379, %p380
    %p382 = scmp.ne.s32.totalorder %s368, %s369
    %p383 = scmp.eq.s32.totalorder %s28, 1
    %p384 = por %p382, %p383
    %p386 = scmp.ne.s32.totalorder %s369, %s385
    %p387 = scmp.eq.s32.totalorder %s28, 0
    %p388 = por %p386, %p387
    %s389 = ssub.s32 %s22, %s29
    %p390 = scmp.eq.s32.totalorder %s389, 0
    %s392 = sadd.s32 %s391, 1
    %s393 = scalar_select %p390, %s391, %s392
    %p396 = pneg %p390
    %p397 = scmp.eq.s32.totalorder %s22, 1
    %p398 = por %p396, %p397
    %p399 = scmp.ne.s32.totalorder %s391, %s394
    %p400 = scmp.eq.s32.totalorder %s22, 0
    %p401 = por %p399, %p400
    %p402 = scmp.ne.s32.totalorder %s391, %s394
    %p403 = scmp.eq.s32.totalorder %s27, 1
    %p404 = por %p402, %p403
    %p405 = scmp.ne.s32.totalorder %s394, %s395
    %p406 = scmp.eq.s32.totalorder %s27, 0
    %p407 = por %p405, %p406
    %p408 = scmp.ne.s32.totalorder %s394, %s395
    %p409 = scmp.eq.s32.totalorder %s28, 1
    %p410 = por %p408, %p409
    %p412 = scmp.ne.s32.totalorder %s395, %s411
    %p413 = scmp.eq.s32.totalorder %s28, 0
    %p414 = por %p412, %p413
    %s415 = ssub.s32 %s22, %s29
    %p416 = scmp.eq.s32.totalorder %s415, 0
    %s418 = sadd.s32 %s417, 1
    %s419 = scalar_select %p416, %s417, %s418
    %p422 = pneg %p416
    %p423 = scmp.eq.s32.totalorder %s22, 1
    %p424 = por %p422, %p423
    %p425 = scmp.ne.s32.totalorder %s417, %s420
    %p426 = scmp.eq.s32.totalorder %s22, 0
    %p427 = por %p425, %p426
    %p428 = scmp.ne.s32.totalorder %s417, %s420
    %p429 = scmp.eq.s32.totalorder %s27, 1
    %p430 = por %p428, %p429
    %p431 = scmp.ne.s32.totalorder %s420, %s421
    %p432 = scmp.eq.s32.totalorder %s27, 0
    %p433 = por %p431, %p432
    %p434 = scmp.ne.s32.totalorder %s420, %s421
    %p435 = scmp.eq.s32.totalorder %s28, 1
    %p436 = por %p434, %p435
    %p438 = scmp.ne.s32.totalorder %s421, %s437
    %p439 = scmp.eq.s32.totalorder %s28, 0
    %p440 = por %p438, %p439
    %s441 = ssub.s32 %s22, %s29
    %p442 = scmp.eq.s32.totalorder %s441, 0
    %s444 = sadd.s32 %s443, 1
    %s445 = scalar_select %p442, %s443, %s444
    %p448 = pneg %p442
    %p449 = scmp.eq.s32.totalorder %s22, 1
    %p450 = por %p448, %p449
    %p451 = scmp.ne.s32.totalorder %s443, %s446
    %p452 = scmp.eq.s32.totalorder %s22, 0
    %p453 = por %p451, %p452
    %p454 = scmp.ne.s32.totalorder %s443, %s446
    %p455 = scmp.eq.s32.totalorder %s27, 1
    %p456 = por %p454, %p455
    %p457 = scmp.ne.s32.totalorder %s446, %s447
    %p458 = scmp.eq.s32.totalorder %s27, 0
    %p459 = por %p457, %p458
    %p460 = scmp.ne.s32.totalorder %s446, %s447
    %p461 = scmp.eq.s32.totalorder %s28, 1
    %p462 = por %p460, %p461
    %p464 = scmp.ne.s32.totalorder %s447, %s463
    %p465 = scmp.eq.s32.totalorder %s28, 0
    %p466 = por %p464, %p465
    %p467 = scmp.le.s32.totalorder 1, %s22
    %p468 = scmp.lt.s32.totalorder %s22, 3
    %p469 = pnand %p467, %p468
    %p470 = pneg %p469
    // Predicated region
    $region9: #{stblock_forward.1} parent=5 // pred_check
      _
    $region10: #{stblock_forward.1} parent=5 // pred_check_branch
      %472 = sbr.rel (%p469) target = $region12
    $region11: #{stblock_forward.1} parent=5 // pred_region
      %s473 = ssub.s32 %s22, 1
      // Predicated region
      $region13: #{stblock_forward.1} parent=11 // pred_check
        %p474 = pneg %p95
      $region14: #{stblock_forward.1} parent=11 // pred_check_branch
        %476 = sbr.rel (%p474) target = $region16
      $region15: #{stblock_forward.1} parent=11 // pred_region
        _
      $region16: #{stblock_forward.1} parent=11 // pred_fallthru
        _
    $region12: #{stblock_forward.1} parent=5 // pred_fallthru
      _
    %p477 = scmp.lt.s32.totalorder %s22, 2
    // Predicated region
    $region17: #{stblock_forward.1} parent=5 // pred_check
      %p478 = pneg %p477
    $region18: #{stblock_forward.1} parent=5 // pred_check_branch
      %480 = sbr.rel (%p478) target = $region20
    $region19: #{stblock_forward.1} parent=5 // pred_region
      // Predicated region
      $region21: #{stblock_forward.1} parent=19 // pred_check
        %p481 = pneg %p42
      $region22: #{stblock_forward.1} parent=19 // pred_check_branch
        %483 = sbr.rel (%p481) target = $region24
      $region23: #{stblock_forward.1} parent=19 // pred_region
        %p484 = scmp.lt.s32.totalorder %s22, 1
        %s485 = scalar_select %p484, %s22, 1
        %s486 = smul.addr %s485, 16
        %s487 = smul.addr %s486, 8
        %s488 = scalar_lea.vmem %s0, %s487
      $region24: #{stblock_forward.1} parent=19 // pred_fallthru
        _
      // Predicated region
      $region25: #{stblock_forward.1} parent=19 // pred_check
        %p489 = pneg %p68
      $region26: #{stblock_forward.1} parent=19 // pred_check_branch
        %491 = sbr.rel (%p489) target = $region28
      $region27: #{stblock_forward.1} parent=19 // pred_region
        %p492 = scmp.lt.s32.totalorder %s22, 1
        %s493 = scalar_select %p492, %s22, 1
        %s494 = smul.addr %s493, 144
        %s495 = smul.addr %s494, 8
        %s496 = scalar_lea.vmem %s1, %s495
      $region28: #{stblock_forward.1} parent=19 // pred_fallthru
        _
      // Predicated region
      $region29: #{stblock_forward.1} parent=19 // pred_check
        %p497 = pneg %p115
      $region30: #{stblock_forward.1} parent=19 // pred_check_branch
        %499 = sbr.rel (%p497) target = $region32
      $region31: #{stblock_forward.1} parent=19 // pred_region
        %p500 = scmp.lt.s32.totalorder %s22, 1
        %s501 = scalar_select %p500, %s22, 1
        %s502 = smul.addr %s501, 4
        %s503 = smul.addr %s502, 8
        %s504 = scalar_lea.vmem %s3, %s503
      $region32: #{stblock_forward.1} parent=19 // pred_fallthru
        _
      // Predicated region
      $region33: #{stblock_forward.1} parent=19 // pred_check
        %p505 = pneg %p141
      $region34: #{stblock_forward.1} parent=19 // pred_check_branch
        %507 = sbr.rel (%p505) target = $region36
      $region35: #{stblock_forward.1} parent=19 // pred_region
        %p508 = scmp.lt.s32.totalorder %s22, 1
        %s509 = scalar_select %p508, %s22, 1
        %s510 = scalar_lea.vmem %s4, %s509
      $region36: #{stblock_forward.1} parent=19 // pred_fallthru
        _
      // Predicated region
      $region37: #{stblock_forward.1} parent=19 // pred_check
        %p511 = pneg %p167
      $region38: #{stblock_forward.1} parent=19 // pred_check_branch
        %513 = sbr.rel (%p511) target = $region40
      $region39: #{stblock_forward.1} parent=19 // pred_region
        %p514 = scmp.lt.s32.totalorder %s22, 1
        %s515 = scalar_select %p514, %s22, 1
        %s516 = smul.addr %s515, 64
        %s517 = smul.addr %s516, 8
        %s518 = scalar_lea.vmem %s5, %s517
      $region40: #{stblock_forward.1} parent=19 // pred_fallthru
        _
      // Predicated region
      $region41: #{stblock_forward.1} parent=19 // pred_check
        %p519 = pneg %p193
      $region42: #{stblock_forward.1} parent=19 // pred_check_branch
        %521 = sbr.rel (%p519) target = $region44
      $region43: #{stblock_forward.1} parent=19 // pred_region
        %p522 = scmp.lt.s32.totalorder %s22, 1
        %s523 = scalar_select %p522, %s22, 1
        %s524 = smul.addr %s523, 4
        %s525 = smul.addr %s524, 8
        %s526 = scalar_lea.vmem %s6, %s525
      $region44: #{stblock_forward.1} parent=19 // pred_fallthru
        _
      // Predicated region
      $region45: #{stblock_forward.1} parent=19 // pred_check
        %p527 = pneg %p219
      $region46: #{stblock_forward.1} parent=19 // pred_check_branch
        %529 = sbr.rel (%p527) target = $region48
      $region47: #{stblock_forward.1} parent=19 // pred_region
        %p530 = scmp.lt.s32.totalorder %s22, 1
        %s531 = scalar_select %p530, %s22, 1
        %s532 = scalar_lea.vmem %s7, %s531
      $region48: #{stblock_forward.1} parent=19 // pred_fallthru
        _
      // Predicated region
      $region49: #{stblock_forward.1} parent=19 // pred_check
        %p533 = pneg %p245
      $region50: #{stblock_forward.1} parent=19 // pred_check_branch
        %535 = sbr.rel (%p533) target = $region52
      $region51: #{stblock_forward.1} parent=19 // pred_region
        %p536 = scmp.lt.s32.totalorder %s22, 1
        %s537 = scalar_select %p536, %s22, 1
        %s538 = smul.addr %s537, 2
        %s539 = smul.addr %s538, 8
        %s540 = scalar_lea.vmem %s8, %s539
      $region52: #{stblock_forward.1} parent=19 // pred_fallthru
        _
      // Predicated region
      $region53: #{stblock_forward.1} parent=19 // pred_check
        %p541 = pneg %p271
      $region54: #{stblock_forward.1} parent=19 // pred_check_branch
        %543 = sbr.rel (%p541) target = $region56
      $region55: #{stblock_forward.1} parent=19 // pred_region
        %p544 = scmp.lt.s32.totalorder %s22, 1
        %s545 = scalar_select %p544, %s22, 1
        %s546 = scalar_lea.vmem %s9, %s545
      $region56: #{stblock_forward.1} parent=19 // pred_fallthru
        _
      // Predicated region
      $region57: #{stblock_forward.1} parent=19 // pred_check
        %p547 = pneg %p297
      $region58: #{stblock_forward.1} parent=19 // pred_check_branch
        %549 = sbr.rel (%p547) target = $region60
      $region59: #{stblock_forward.1} parent=19 // pred_region
        %p550 = scmp.lt.s32.totalorder %s22, 1
        %s551 = scalar_select %p550, %s22, 1
        %s552 = smul.addr %s551, 4
        %s553 = smul.addr %s552, 8
        %s554 = scalar_lea.vmem %s10, %s553
      $region60: #{stblock_forward.1} parent=19 // pred_fallthru
        _
      // Predicated region
      $region61: #{stblock_forward.1} parent=19 // pred_check
        %p555 = pneg %p323
      $region62: #{stblock_forward.1} parent=19 // pred_check_branch
        %557 = sbr.rel (%p555) target = $region64
      $region63: #{stblock_forward.1} parent=19 // pred_region
        %p558 = scmp.lt.s32.totalorder %s22, 1
        %s559 = scalar_select %p558, %s22, 1
        %s560 = scalar_lea.vmem %s11, %s559
      $region64: #{stblock_forward.1} parent=19 // pred_fallthru
        _
      // Predicated region
      $region65: #{stblock_forward.1} parent=19 // pred_check
        %p561 = pneg %p349
      $region66: #{stblock_forward.1} parent=19 // pred_check_branch
        %563 = sbr.rel (%p561) target = $region68
      $region67: #{stblock_forward.1} parent=19 // pred_region
        %p564 = scmp.lt.s32.totalorder %s22, 1
        %s565 = scalar_select %p564, %s22, 1
        %s566 = smul.addr %s565, 4
        %s567 = smul.addr %s566, 8
        %s568 = scalar_lea.vmem %s12, %s567
      $region68: #{stblock_forward.1} parent=19 // pred_fallthru
        _
      // Predicated region
      $region69: #{stblock_forward.1} parent=19 // pred_check
        %p569 = pneg %p375
      $region70: #{stblock_forward.1} parent=19 // pred_check_branch
        %571 = sbr.rel (%p569) target = $region72
      $region71: #{stblock_forward.1} parent=19 // pred_region
        %p572 = scmp.lt.s32.totalorder %s22, 1
        %s573 = scalar_select %p572, %s22, 1
        %s574 = scalar_lea.vmem %s13, %s573
      $region72: #{stblock_forward.1} parent=19 // pred_fallthru
        _
      // Predicated region
      $region73: #{stblock_forward.1} parent=19 // pred_check
        %p575 = pneg %p401
      $region74: #{stblock_forward.1} parent=19 // pred_check_branch
        %577 = sbr.rel (%p575) target = $region76
      $region75: #{stblock_forward.1} parent=19 // pred_region
        %p578 = scmp.lt.s32.totalorder %s22, 1
        %s579 = scalar_select %p578, %s22, 1
        %s580 = smul.addr %s579, 16
        %s581 = smul.addr %s580, 8
        %s582 = scalar_lea.vmem %s14, %s581
      $region76: #{stblock_forward.1} parent=19 // pred_fallthru
        _
      // Predicated region
      $region77: #{stblock_forward.1} parent=19 // pred_check
        %p583 = pneg %p427
      $region78: #{stblock_forward.1} parent=19 // pred_check_branch
        %585 = sbr.rel (%p583) target = $region80
      $region79: #{stblock_forward.1} parent=19 // pred_region
        %p586 = scmp.lt.s32.totalorder %s22, 1
        %s587 = scalar_select %p586, %s22, 1
        %s588 = scalar_lea.vmem %s15, %s587
      $region80: #{stblock_forward.1} parent=19 // pred_fallthru
        _
    $region20: #{stblock_forward.1} parent=5 // pred_fallthru
      _
    %p589 = scmp.le.s32.totalorder 1, %s22
    %p590 = scmp.lt.s32.totalorder %s22, 3
    %p591 = pnand %p589, %p590
    %p592 = pneg %p591
    // Predicated region
    $region81: #{stblock_forward.1} parent=5 // pred_check
      _
    $region82: #{stblock_forward.1} parent=5 // pred_check_branch
      %594 = sbr.rel (%p591) target = $region84
    $region83: #{stblock_forward.1} parent=5 // pred_region
      %s595 = ssub.s32 %s22, 1
      %p596 = scmp.lt.s32.totalorder %s27, 1
      %s597 = scalar_select %p596, %s27, 1
      %s598 = smul.addr %s597, 16
      %s599 = smul.addr %s598, 8
      %s600 = scalar_lea.vmem %s0, %s599
      %p601 = pneg %p48
      %p602 = pneg %p45
      %p603 = scmp.lt.s32.totalorder %s27, 1
      %s604 = scalar_select %p603, %s27, 1
      %s605 = smul.addr %s604, 144
      %s606 = smul.addr %s605, 8
      %s607 = scalar_lea.vmem %s1, %s606
      %p608 = pneg %p74
      %p609 = pneg %p71
      %p610 = pneg %p95
      %p611 = pneg %p92
      %p612 = scmp.lt.s32.totalorder %s27, 1
      %s613 = scalar_select %p612, %s27, 1
      %s614 = smul.addr %s613, 4
      %s615 = smul.addr %s614, 8
      %s616 = scalar_lea.vmem %s3, %s615
      %p617 = pneg %p121
      %p618 = pneg %p118
      %p619 = scmp.lt.s32.totalorder %s27, 1
      %s620 = scalar_select %p619, %s27, 1
      %s621 = scalar_lea.vmem %s4, %s620
      %p622 = pneg %p147
      %p623 = pneg %p144
      %p624 = scmp.lt.s32.totalorder %s27, 1
      %s625 = scalar_select %p624, %s27, 1
      %s626 = smul.addr %s625, 64
      %s627 = smul.addr %s626, 8
      %s628 = scalar_lea.vmem %s5, %s627
      %p629 = pneg %p173
      %p630 = pneg %p170
      %p631 = scmp.lt.s32.totalorder %s27, 1
      %s632 = scalar_select %p631, %s27, 1
      %s633 = smul.addr %s632, 4
      %s634 = smul.addr %s633, 8
      %s635 = scalar_lea.vmem %s6, %s634
      %p636 = pneg %p199
      %p637 = pneg %p196
      %p638 = scmp.lt.s32.totalorder %s27, 1
      %s639 = scalar_select %p638, %s27, 1
      %s640 = scalar_lea.vmem %s7, %s639
      %p641 = pneg %p225
      %p642 = pneg %p222
      %p643 = scmp.lt.s32.totalorder %s27, 1
      %s644 = scalar_select %p643, %s27, 1
      %s645 = smul.addr %s644, 2
      %s646 = smul.addr %s645, 8
      %s647 = scalar_lea.vmem %s8, %s646
      %p648 = pneg %p251
      %p649 = pneg %p248
      %p650 = scmp.lt.s32.totalorder %s27, 1
      %s651 = scalar_select %p650, %s27, 1
      %s652 = scalar_lea.vmem %s9, %s651
      %p653 = pneg %p277
      %p654 = pneg %p274
      %p655 = scmp.lt.s32.totalorder %s27, 1
      %s656 = scalar_select %p655, %s27, 1
      %s657 = smul.addr %s656, 4
      %s658 = smul.addr %s657, 8
      %s659 = scalar_lea.vmem %s10, %s658
      %p660 = pneg %p303
      %p661 = pneg %p300
      %p662 = scmp.lt.s32.totalorder %s27, 1
      %s663 = scalar_select %p662, %s27, 1
      %s664 = scalar_lea.vmem %s11, %s663
      %p665 = pneg %p329
      %p666 = pneg %p326
      %p667 = scmp.lt.s32.totalorder %s27, 1
      %s668 = scalar_select %p667, %s27, 1
      %s669 = smul.addr %s668, 4
      %s670 = smul.addr %s669, 8
      %s671 = scalar_lea.vmem %s12, %s670
      %p672 = pneg %p355
      %p673 = pneg %p352
      %p674 = scmp.lt.s32.totalorder %s27, 1
      %s675 = scalar_select %p674, %s27, 1
      %s676 = scalar_lea.vmem %s13, %s675
      %p677 = pneg %p381
      %p678 = pneg %p378
      %p679 = scmp.lt.s32.totalorder %s27, 1
      %s680 = scalar_select %p679, %s27, 1
      %s681 = smul.addr %s680, 16
      %s682 = smul.addr %s681, 8
      %s683 = scalar_lea.vmem %s14, %s682
      %p684 = pneg %p407
      %p685 = pneg %p404
      %p686 = scmp.lt.s32.totalorder %s27, 1
      %s687 = scalar_select %p686, %s27, 1
      %s688 = scalar_lea.vmem %s15, %s687
      %p689 = pneg %p433
      %p690 = pneg %p430
      %p691 = pneg %p459
      %p692 = pneg %p456
      %p693 = scmp.lt.s32.totalorder %s27, 1
      %s694 = scalar_select %p693, %s27, 1
      %s695 = smul.addr %s694, 16
      %s696 = smul.addr %s695, 8
      %s697 = scalar_lea.vmem %s16, %s696
      %p698 = scmp.lt.s32.totalorder %s27, 1
      %s699 = scalar_select %p698, %s27, 1
      %s700 = smul.addr %s699, 16
      %s701 = smul.addr %s700, 8
      %s702 = scalar_lea.vmem %s0, %s701
      %p703 = scmp.lt.s32.totalorder %s27, 1
      %s704 = scalar_select %p703, %s27, 1
      %s705 = smul.addr %s704, 144
      %s706 = smul.addr %s705, 8
      %s707 = scalar_lea.vmem %s1, %s706
      %p708 = scmp.lt.s32.totalorder %s27, 1
      %s709 = scalar_select %p708, %s27, 1
      %s710 = smul.addr %s709, 4
      %s711 = smul.addr %s710, 8
      %s712 = scalar_lea.vmem %s3, %s711
      %p713 = scmp.lt.s32.totalorder %s27, 1
      %s714 = scalar_select %p713, %s27, 1
      %s715 = scalar_lea.vmem %s4, %s714
      %p716 = scmp.lt.s32.totalorder %s27, 1
      %s717 = scalar_select %p716, %s27, 1
      %s718 = smul.addr %s717, 64
      %s719 = smul.addr %s718, 8
      %s720 = scalar_lea.vmem %s5, %s719
      %p721 = scmp.lt.s32.totalorder %s27, 1
      %s722 = scalar_select %p721, %s27, 1
      %s723 = smul.addr %s722, 4
      %s724 = smul.addr %s723, 8
      %s725 = scalar_lea.vmem %s6, %s724
      %p726 = scmp.lt.s32.totalorder %s27, 1
      %s727 = scalar_select %p726, %s27, 1
      %s728 = scalar_lea.vmem %s7, %s727
      %p729 = scmp.lt.s32.totalorder %s27, 1
      %s730 = scalar_select %p729, %s27, 1
      %s731 = smul.addr %s730, 2
      %s732 = smul.addr %s731, 8
      %s733 = scalar_lea.vmem %s8, %s732
      %p734 = scmp.lt.s32.totalorder %s27, 1
      %s735 = scalar_select %p734, %s27, 1
      %s736 = scalar_lea.vmem %s9, %s735
      %p737 = scmp.lt.s32.totalorder %s27, 1
      %s738 = scalar_select %p737, %s27, 1
      %s739 = smul.addr %s738, 4
      %s740 = smul.addr %s739, 8
      %s741 = scalar_lea.vmem %s10, %s740
      %p742 = scmp.lt.s32.totalorder %s27, 1
      %s743 = scalar_select %p742, %s27, 1
      %s744 = scalar_lea.vmem %s11, %s743
      %p745 = scmp.lt.s32.totalorder %s27, 1
      %s746 = scalar_select %p745, %s27, 1
      %s747 = smul.addr %s746, 4
      %s748 = smul.addr %s747, 8
      %s749 = scalar_lea.vmem %s12, %s748
      %p750 = scmp.lt.s32.totalorder %s27, 1
      %s751 = scalar_select %p750, %s27, 1
      %s752 = scalar_lea.vmem %s13, %s751
      %p753 = scmp.lt.s32.totalorder %s27, 1
      %s754 = scalar_select %p753, %s27, 1
      %s755 = smul.addr %s754, 16
      %s756 = smul.addr %s755, 8
      %s757 = scalar_lea.vmem %s14, %s756
      %p758 = scmp.lt.s32.totalorder %s27, 1
      %s759 = scalar_select %p758, %s27, 1
      %s760 = scalar_lea.vmem %s15, %s759
      %p761 = scmp.lt.s32.totalorder %s27, 1
      %s762 = scalar_select %p761, %s27, 1
      %s763 = smul.addr %s762, 16
      %s764 = smul.addr %s763, 8
      %s765 = scalar_lea.vmem %s16, %s764
      %v766 = vld [vmem:[%s702] sm:$0xff]
      %v767 = vld [vmem:[%s702 + $0x8] sm:$0xff]
      %v768 = vld [vmem:[%s702 + $0x10] sm:$0xff]
      %v769 = vld [vmem:[%s702 + $0x18] sm:$0xff]
      %v770 = vld [vmem:[%s702 + $0x20] sm:$0xff]
      %v771 = vld [vmem:[%s702 + $0x28] sm:$0xff]
      %v772 = vld [vmem:[%s702 + $0x30] sm:$0xff]
      %v773 = vld [vmem:[%s702 + $0x38] sm:$0xff]
      %v774 = vld [vmem:[%s702 + $0x40] sm:$0xff]
      %v775 = vld [vmem:[%s702 + $0x48] sm:$0xff]
      %v776 = vld [vmem:[%s702 + $0x50] sm:$0xff]
      %v777 = vld [vmem:[%s702 + $0x58] sm:$0xff]
      %v778 = vld [vmem:[%s702 + $0x60] sm:$0xff]
      %v779 = vld [vmem:[%s702 + $0x68] sm:$0xff]
      %v780 = vld [vmem:[%s702 + $0x70] sm:$0xff]
      %v781 = vld [vmem:[%s702 + $0x78] sm:$0xff]
      %v782 = vld [vmem:[%s2] sm:$0xf]
      %vm783 = vcmask 261120
      %v784 = vsel %vm783, %v766, 0.0
      %785 = vadd.xlane.f32.xlu0 %v784
      %v786 = vpop.xlane.xlu0 %785
      %v787 = vsel %vm783, %v767, 0.0
      %788 = vadd.xlane.f32.xlu0 %v787
      %v789 = vpop.xlane.xlu0 %788
      %v790 = vsel %vm783, %v768, 0.0
      %791 = vadd.xlane.f32.xlu0 %v790
      %v792 = vpop.xlane.xlu0 %791
      %v793 = vsel %vm783, %v769, 0.0
      %794 = vadd.xlane.f32.xlu0 %v793
      %v795 = vpop.xlane.xlu0 %794
      %v796 = vsel %vm783, %v770, 0.0
      %797 = vadd.xlane.f32.xlu0 %v796
      %v798 = vpop.xlane.xlu0 %797
      %v799 = vsel %vm783, %v771, 0.0
      %800 = vadd.xlane.f32.xlu0 %v799
      %v801 = vpop.xlane.xlu0 %800
      %v802 = vsel %vm783, %v772, 0.0
      %803 = vadd.xlane.f32.xlu0 %v802
      %v804 = vpop.xlane.xlu0 %803
      %v805 = vsel %vm783, %v773, 0.0
      %806 = vadd.xlane.f32.xlu0 %v805
      %v807 = vpop.xlane.xlu0 %806
      %v808 = vsel %vm783, %v774, 0.0
      %809 = vadd.xlane.f32.xlu0 %v808
      %v810 = vpop.xlane.xlu0 %809
      %v811 = vsel %vm783, %v775, 0.0
      %812 = vadd.xlane.f32.xlu0 %v811
      %v813 = vpop.xlane.xlu0 %812
      %v814 = vsel %vm783, %v776, 0.0
      %815 = vadd.xlane.f32.xlu0 %v814
      %v816 = vpop.xlane.xlu0 %815
      %v817 = vsel %vm783, %v777, 0.0
      %818 = vadd.xlane.f32.xlu0 %v817
      %v819 = vpop.xlane.xlu0 %818
      %v820 = vsel %vm783, %v778, 0.0
      %821 = vadd.xlane.f32.xlu0 %v820
      %v822 = vpop.xlane.xlu0 %821
      %v823 = vsel %vm783, %v779, 0.0
      %824 = vadd.xlane.f32.xlu0 %v823
      %v825 = vpop.xlane.xlu0 %824
      %v826 = vsel %vm783, %v780, 0.0
      %827 = vadd.xlane.f32.xlu0 %v826
      %v828 = vpop.xlane.xlu0 %827
      %v829 = vsel %vm783, %v781, 0.0
      %830 = vadd.xlane.f32.xlu0 %v829
      %v831 = vpop.xlane.xlu0 %830
      %v832 = vrcp.pop 32.0
      %v833 = vmul.f32 %v786, %v832
      %v834 = vmul.f32 %v789, %v832
      %v835 = vmul.f32 %v792, %v832
      %v836 = vmul.f32 %v795, %v832
      %v837 = vmul.f32 %v798, %v832
      %v838 = vmul.f32 %v801, %v832
      %v839 = vmul.f32 %v804, %v832
      %v840 = vmul.f32 %v807, %v832
      %v841 = vmul.f32 %v810, %v832
      %v842 = vmul.f32 %v813, %v832
      %v843 = vmul.f32 %v816, %v832
      %v844 = vmul.f32 %v819, %v832
      %v845 = vmul.f32 %v822, %v832
      %v846 = vmul.f32 %v825, %v832
      %v847 = vmul.f32 %v828, %v832
      %v848 = vmul.f32 %v831, %v832
      %v849 = vsub.f32 %v766, %v833
      %v850 = vsub.f32 %v767, %v834
      %v851 = vsub.f32 %v768, %v835
      %v852 = vsub.f32 %v769, %v836
      %v853 = vsub.f32 %v770, %v837
      %v854 = vsub.f32 %v771, %v838
      %v855 = vsub.f32 %v772, %v839
      %v856 = vsub.f32 %v773, %v840
      %v857 = vsub.f32 %v774, %v841
      %v858 = vsub.f32 %v775, %v842
      %v859 = vsub.f32 %v776, %v843
      %v860 = vsub.f32 %v777, %v844
      %v861 = vsub.f32 %v778, %v845
      %v862 = vsub.f32 %v779, %v846
      %v863 = vsub.f32 %v780, %v847
      %v864 = vsub.f32 %v781, %v848
      %v865 = vmul.f32 %v849, %v849
      %v866 = vmul.f32 %v850, %v850
      %v867 = vmul.f32 %v851, %v851
      %v868 = vmul.f32 %v852, %v852
      %v869 = vmul.f32 %v853, %v853
      %v870 = vmul.f32 %v854, %v854
      %v871 = vmul.f32 %v855, %v855
      %v872 = vmul.f32 %v856, %v856
      %v873 = vmul.f32 %v857, %v857
      %v874 = vmul.f32 %v858, %v858
      %v875 = vmul.f32 %v859, %v859
      %v876 = vmul.f32 %v860, %v860
      %v877 = vmul.f32 %v861, %v861
      %v878 = vmul.f32 %v862, %v862
      %v879 = vmul.f32 %v863, %v863
      %v880 = vmul.f32 %v864, %v864
      %v881 = vsel %vm783, %v865, 0.0
      %882 = vadd.xlane.f32.xlu0 %v881
      %v883 = vpop.xlane.xlu0 %882
      %v884 = vsel %vm783, %v866, 0.0
      %885 = vadd.xlane.f32.xlu0 %v884
      %v886 = vpop.xlane.xlu0 %885
      %v887 = vsel %vm783, %v867, 0.0
      %888 = vadd.xlane.f32.xlu0 %v887
      %v889 = vpop.xlane.xlu0 %888
      %v890 = vsel %vm783, %v868, 0.0
      %891 = vadd.xlane.f32.xlu0 %v890
      %v892 = vpop.xlane.xlu0 %891
      %v893 = vsel %vm783, %v869, 0.0
      %894 = vadd.xlane.f32.xlu0 %v893
      %v895 = vpop.xlane.xlu0 %894
      %v896 = vsel %vm783, %v870, 0.0
      %897 = vadd.xlane.f32.xlu0 %v896
      %v898 = vpop.xlane.xlu0 %897
      %v899 = vsel %vm783, %v871, 0.0
      %900 = vadd.xlane.f32.xlu0 %v899
      %v901 = vpop.xlane.xlu0 %900
      %v902 = vsel %vm783, %v872, 0.0
      %903 = vadd.xlane.f32.xlu0 %v902
      %v904 = vpop.xlane.xlu0 %903
      %v905 = vsel %vm783, %v873, 0.0
      %906 = vadd.xlane.f32.xlu0 %v905
      %v907 = vpop.xlane.xlu0 %906
      %v908 = vsel %vm783, %v874, 0.0
      %909 = vadd.xlane.f32.xlu0 %v908
      %v910 = vpop.xlane.xlu0 %909
      %v911 = vsel %vm783, %v875, 0.0
      %912 = vadd.xlane.f32.xlu0 %v911
      %v913 = vpop.xlane.xlu0 %912
      %v914 = vsel %vm783, %v876, 0.0
      %915 = vadd.xlane.f32.xlu0 %v914
      %v916 = vpop.xlane.xlu0 %915
      %v917 = vsel %vm783, %v877, 0.0
      %918 = vadd.xlane.f32.xlu0 %v917
      %v919 = vpop.xlane.xlu0 %918
      %v920 = vsel %vm783, %v878, 0.0
      %921 = vadd.xlane.f32.xlu0 %v920
      %v922 = vpop.xlane.xlu0 %921
      %v923 = vsel %vm783, %v879, 0.0
      %924 = vadd.xlane.f32.xlu0 %v923
      %v925 = vpop.xlane.xlu0 %924
      %v926 = vsel %vm783, %v880, 0.0
      %927 = vadd.xlane.f32.xlu0 %v926
      %v928 = vpop.xlane.xlu0 %927
      %v929 = vmul.f32 %v883, %v832
      %v930 = vmul.f32 %v886, %v832
      %v931 = vmul.f32 %v889, %v832
      %v932 = vmul.f32 %v892, %v832
      %v933 = vmul.f32 %v895, %v832
      %v934 = vmul.f32 %v898, %v832
      %v935 = vmul.f32 %v901, %v832
      %v936 = vmul.f32 %v904, %v832
      %v937 = vmul.f32 %v907, %v832
      %v938 = vmul.f32 %v910, %v832
      %v939 = vmul.f32 %v913, %v832
      %v940 = vmul.f32 %v916, %v832
      %v941 = vmul.f32 %v919, %v832
      %v942 = vmul.f32 %v922, %v832
      %v943 = vmul.f32 %v925, %v832
      %v944 = vmul.f32 %v928, %v832
      %v945 = vadd.f32 %v929, 1e-05
      %v946 = vadd.f32 %v930, 1e-05
      %v947 = vadd.f32 %v931, 1e-05
      %v948 = vadd.f32 %v932, 1e-05
      %v949 = vadd.f32 %v933, 1e-05
      %v950 = vadd.f32 %v934, 1e-05
      %v951 = vadd.f32 %v935, 1e-05
      %v952 = vadd.f32 %v936, 1e-05
      %v953 = vadd.f32 %v937, 1e-05
      %v954 = vadd.f32 %v938, 1e-05
      %v955 = vadd.f32 %v939, 1e-05
      %v956 = vadd.f32 %v940, 1e-05
      %v957 = vadd.f32 %v941, 1e-05
      %v958 = vadd.f32 %v942, 1e-05
      %v959 = vadd.f32 %v943, 1e-05
      %v960 = vadd.f32 %v944, 1e-05
      %v961 = vrsqrt.pop %v945
      %v962 = vrsqrt.pop %v946
      %v963 = vrsqrt.pop %v947
      %v964 = vrsqrt.pop %v948
      %v965 = vrsqrt.pop %v949
      %v966 = vrsqrt.pop %v950
      %v967 = vrsqrt.pop %v951
      %v968 = vrsqrt.pop %v952
      %v969 = vrsqrt.pop %v953
      %v970 = vrsqrt.pop %v954
      %v971 = vrsqrt.pop %v955
      %v972 = vrsqrt.pop %v956
      %v973 = vrsqrt.pop %v957
      %v974 = vrsqrt.pop %v958
      %v975 = vrsqrt.pop %v959
      %v976 = vrsqrt.pop %v960
      %v977 = vmul.f32 %v849, %v961
      %v978 = vmul.f32 %v850, %v962
      %v979 = vmul.f32 %v851, %v963
      %v980 = vmul.f32 %v852, %v964
      %v981 = vmul.f32 %v853, %v965
      %v982 = vmul.f32 %v854, %v966
      %v983 = vmul.f32 %v855, %v967
      %v984 = vmul.f32 %v856, %v968
      %v985 = vmul.f32 %v857, %v969
      %v986 = vmul.f32 %v858, %v970
      %v987 = vmul.f32 %v859, %v971
      %v988 = vmul.f32 %v860, %v972
      %v989 = vmul.f32 %v861, %v973
      %v990 = vmul.f32 %v862, %v974
      %v991 = vmul.f32 %v863, %v975
      %v992 = vmul.f32 %v864, %v976
      %v993 = vlaneseq
      %v994 = vshrl.u32 %v993, 7
      %v995 = vsub.s32 0, %v994
      %v996 = vrot.slane %v782, %v995
      %v997 = vmul.f32 %v977, %v996
      %v998 = vmul.f32 %v978, %v996
      %v999 = vmul.f32 %v979, %v996
      %v1000 = vmul.f32 %v980, %v996
      %v1001 = vmul.f32 %v981, %v996
      %v1002 = vmul.f32 %v982, %v996
      %v1003 = vmul.f32 %v983, %v996
      %v1004 = vmul.f32 %v984, %v996
      %v1005 = vmul.f32 %v985, %v996
      %v1006 = vmul.f32 %v986, %v996
      %v1007 = vmul.f32 %v987, %v996
      %v1008 = vmul.f32 %v988, %v996
      %v1009 = vmul.f32 %v989, %v996
      %v1010 = vmul.f32 %v990, %v996
      %v1011 = vmul.f32 %v991, %v996
      %v1012 = vmul.f32 %v992, %v996
      %v1013 = vlaneseq
      %v1014 = vshrl.u32 %v1013, 7
      %v1015 = vsub.s32 1, %v1014
      %v1016 = vrot.slane %v782, %v1015
      %v1017 = vadd.f32 %v997, %v1016
      %v1018 = vadd.f32 %v998, %v1016
      %v1019 = vadd.f32 %v999, %v1016
      %v1020 = vadd.f32 %v1000, %v1016
      %v1021 = vadd.f32 %v1001, %v1016
      %v1022 = vadd.f32 %v1002, %v1016
      %v1023 = vadd.f32 %v1003, %v1016
      %v1024 = vadd.f32 %v1004, %v1016
      %v1025 = vadd.f32 %v1005, %v1016
      %v1026 = vadd.f32 %v1006, %v1016
      %v1027 = vadd.f32 %v1007, %v1016
      %v1028 = vadd.f32 %v1008, %v1016
      %v1029 = vadd.f32 %v1009, %v1016
      %v1030 = vadd.f32 %v1010, %v1016
      %v1031 = vadd.f32 %v1011, %v1016
      %v1032 = vadd.f32 %v1012, %v1016
      %v1033 = vld [vmem:[%s712] sm:$0xff]
      %v1034 = vld [vmem:[%s712 + $0x8] sm:$0xff]
      %v1035 = vld [vmem:[%s712 + $0x10] sm:$0xff]
      %v1036 = vld [vmem:[%s712 + $0x18] sm:$0xff]
      %v1037 = vld [vmem:[%s715] sm:$0x1]
      %v1039 = vlaneseq
      %v1040 = vshrl.u32 %v1039, 7
      %v1041 = vsub.s32 0, %v1040
      %v1042 = vrot.slane %v1037, %v1041
      %v1045 = vsel %vm783, %v1017, 0
      %v1048 = vsel %vm783, %v1018, 0
      %v1051 = vsel %vm783, %v1019, 0
      %v1054 = vsel %vm783, %v1020, 0
      %v1057 = vsel %vm783, %v1021, 0
      %v1060 = vsel %vm783, %v1022, 0
      %v1063 = vsel %vm783, %v1023, 0
      %v1066 = vsel %vm783, %v1024, 0
      %v1069 = vsel %vm783, %v1025, 0
      %v1072 = vsel %vm783, %v1026, 0
      %v1075 = vsel %vm783, %v1027, 0
      %v1078 = vsel %vm783, %v1028, 0
      %v1081 = vsel %vm783, %v1029, 0
      %v1084 = vsel %vm783, %v1030, 0
      %v1087 = vsel %vm783, %v1031, 0
      %v1090 = vsel %vm783, %v1032, 0
      %1092 = vmatprep.subr.mxu0 0.0
      %1093 = vmatpush1.msra.mxu0 %v1033
      %1094 = vmatprep.subr.mxu0 0.0
      %1095 = vmatpush1.msra.mxu0 %v1034
      %1096 = vmatprep.subr.mxu0 0.0
      %1097 = vmatpush1.msra.mxu0 %v1035
      %1098 = vmatprep.subr.mxu0 0.0
      %1099 = vmatpush1.msra.mxu0 %v1036
      %1100 = vmatprep.subr.mxu0 0.0
      %1101 = vmatpush1.msra.mxu0 0.0
      %1102 = vmatprep.subr.mxu0 0.0
      %1103 = vmatpush1.msra.mxu0 0.0
      %1104 = vmatprep.subr.mxu0 0.0
      %1105 = vmatpush1.msra.mxu0 0.0
      %1106 = vmatprep.subr.mxu0 0.0
      %1107 = vmatpush1.msra.mxu0 0.0
      %1108 = vmatprep.subr.mxu0 0.0
      %1109 = vmatpush1.msra.mxu0 0.0
      %1110 = vmatprep.subr.mxu0 0.0
      %1111 = vmatpush1.msra.mxu0 0.0
      %1112 = vmatprep.subr.mxu0 0.0
      %1113 = vmatpush1.msra.mxu0 0.0
      %1114 = vmatprep.subr.mxu0 0.0
      %1115 = vmatpush1.msra.mxu0 0.0
      %1116 = vmatprep.subr.mxu0 0.0
      %1117 = vmatpush1.msra.mxu0 0.0
      %1118 = vmatprep.subr.mxu0 0.0
      %1119 = vmatpush1.msra.mxu0 0.0
      %1120 = vmatprep.subr.mxu0 0.0
      %1121 = vmatpush1.msra.mxu0 0.0
      %1122 = vmatprep.subr.mxu0 0.0
      %1123 = vmatpush1.msra.mxu0 0.0
      %1124 = vmatprep.subr.mxu0 0.0
      %1125 = vmatpush1.msra.mxu0 0.0
      %1126 = vmatprep.subr.mxu0 0.0
      %1127 = vmatpush1.msra.mxu0 0.0
      %1128 = vmatprep.subr.mxu0 0.0
      %1129 = vmatpush1.msra.mxu0 0.0
      %1130 = vmatprep.subr.mxu0 0.0
      %1131 = vmatpush1.msra.mxu0 0.0
      %1132 = vmatprep.subr.mxu0 0.0
      %1133 = vmatpush1.msra.mxu0 0.0
      %1134 = vmatprep.subr.mxu0 0.0
      %1135 = vmatpush1.msra.mxu0 0.0
      %1136 = vmatprep.subr.mxu0 0.0
      %1137 = vmatpush1.msra.mxu0 0.0
      %1138 = vmatprep.subr.mxu0 0.0
      %1139 = vmatpush1.msra.mxu0 0.0
      %1140 = vmatprep.subr.mxu0 0.0
      %1141 = vmatpush1.msra.mxu0 0.0
      %1142 = vmatprep.subr.mxu0 0.0
      %1143 = vmatpush1.msra.mxu0 0.0
      %1144 = vmatprep.subr.mxu0 0.0
      %1145 = vmatpush1.msra.mxu0 0.0
      %1146 = vmatprep.subr.mxu0 0.0
      %1147 = vmatpush1.msra.mxu0 0.0
      %1148 = vmatprep.subr.mxu0 0.0
      %1149 = vmatpush1.msra.mxu0 0.0
      %1150 = vmatprep.subr.mxu0 0.0
      %1151 = vmatpush1.msra.mxu0 0.0
      %1152 = vmatprep.subr.mxu0 0.0
      %1153 = vmatpush1.msra.mxu0 0.0
      %1154 = vmatprep.subr.mxu0 0.0
      %1155 = vmatpush1.msra.mxu0 0.0
      %1156 = vmatprep.mubr.f32.mxu0 0.0
      %1157 = vmatmul.mubr.f32.gmra.mrb[0].mxu0 %v1045
      %v1158 = vpop.f32.mrb[0].mxu0
      %v1159 = vadd.f32 %v1042, %v1158
      %v1160 = vpop.f32.mrb[0].mxu0
      %1161 = vmatprep.mubr.f32.mxu0 0.0
      %1162 = vmatmul.mubr.f32.gmra.mrb[0].mxu0 %v1048
      %v1163 = vpop.f32.mrb[0].mxu0
      %v1164 = vadd.f32 %v1042, %v1163
      %v1165 = vpop.f32.mrb[0].mxu0
      %1166 = vmatprep.mubr.f32.mxu0 0.0
      %1167 = vmatmul.mubr.f32.gmra.mrb[0].mxu0 %v1051
      %v1168 = vpop.f32.mrb[0].mxu0
      %v1169 = vadd.f32 %v1042, %v1168
      %v1170 = vpop.f32.mrb[0].mxu0
      %1171 = vmatprep.mubr.f32.mxu0 0.0
      %1172 = vmatmul.mubr.f32.gmra.mrb[0].mxu0 %v1054
      %v1173 = vpop.f32.mrb[0].mxu0
      %v1174 = vadd.f32 %v1042, %v1173
      %v1175 = vpop.f32.mrb[0].mxu0
      %1176 = vmatprep.mubr.f32.mxu0 0.0
      %1177 = vmatmul.mubr.f32.gmra.mrb[0].mxu0 %v1057
      %v1178 = vpop.f32.mrb[0].mxu0
      %v1179 = vadd.f32 %v1042, %v1178
      %v1180 = vpop.f32.mrb[0].mxu0
      %1181 = vmatprep.mubr.f32.mxu0 0.0
      %1182 = vmatmul.mubr.f32.gmra.mrb[0].mxu0 %v1060
      %v1183 = vpop.f32.mrb[0].mxu0
      %v1184 = vadd.f32 %v1042, %v1183
      %v1185 = vpop.f32.mrb[0].mxu0
      %1186 = vmatprep.mubr.f32.mxu0 0.0
      %1187 = vmatmul.mubr.f32.gmra.mrb[0].mxu0 %v1063
      %v1188 = vpop.f32.mrb[0].mxu0
      %v1189 = vadd.f32 %v1042, %v1188
      %v1190 = vpop.f32.mrb[0].mxu0
      %1191 = vmatprep.mubr.f32.mxu0 0.0
      %1192 = vmatmul.mubr.f32.gmra.mrb[0].mxu0 %v1066
      %v1193 = vpop.f32.mrb[0].mxu0
      %v1194 = vadd.f32 %v1042, %v1193
      %v1195 = vpop.f32.mrb[0].mxu0
      %1196 = vmatprep.mubr.f32.mxu0 0.0
      %1197 = vmatmul.mubr.f32.gmra.mrb[0].mxu0 %v1069
      %v1198 = vpop.f32.mrb[0].mxu0
      %v1199 = vadd.f32 %v1042, %v1198
      %v1200 = vpop.f32.mrb[0].mxu0
      %1201 = vmatprep.mubr.f32.mxu0 0.0
      %1202 = vmatmul.mubr.f32.gmra.mrb[0].mxu0 %v1072
      %v1203 = vpop.f32.mrb[0].mxu0
      %v1204 = vadd.f32 %v1042, %v1203
      %v1205 = vpop.f32.mrb[0].mxu0
      %1206 = vmatprep.mubr.f32.mxu0 0.0
      %1207 = vmatmul.mubr.f32.gmra.mrb[0].mxu0 %v1075
      %v1208 = vpop.f32.mrb[0].mxu0
      %v1209 = vadd.f32 %v1042, %v1208
      %v1210 = vpop.f32.mrb[0].mxu0
      %1211 = vmatprep.mubr.f32.mxu0 0.0
      %1212 = vmatmul.mubr.f32.gmra.mrb[0].mxu0 %v1078
      %v1213 = vpop.f32.mrb[0].mxu0
      %v1214 = vadd.f32 %v1042, %v1213
      %v1215 = vpop.f32.mrb[0].mxu0
      %1216 = vmatprep.mubr.f32.mxu0 0.0
      %1217 = vmatmul.mubr.f32.gmra.mrb[0].mxu0 %v1081
      %v1218 = vpop.f32.mrb[0].mxu0
      %v1219 = vadd.f32 %v1042, %v1218
      %v1220 = vpop.f32.mrb[0].mxu0
      %1221 = vmatprep.mubr.f32.mxu0 0.0
      %1222 = vmatmul.mubr.f32.gmra.mrb[0].mxu0 %v1084
      %v1223 = vpop.f32.mrb[0].mxu0
      %v1224 = vadd.f32 %v1042, %v1223
      %v1225 = vpop.f32.mrb[0].mxu0
      %1226 = vmatprep.mubr.f32.mxu0 0.0
      %1227 = vmatmul.mubr.f32.gmra.mrb[0].mxu0 %v1087
      %v1228 = vpop.f32.mrb[0].mxu0
      %v1229 = vadd.f32 %v1042, %v1228
      %v1230 = vpop.f32.mrb[0].mxu0
      %1231 = vmatprep.mubr.f32.mxu0 0.0
      %1232 = vmatmul.mubr.f32.gmra.mrb[0].mxu0 %v1090
      %v1233 = vpop.f32.mrb[0].mxu0
      %v1234 = vadd.f32 %v1042, %v1233
      %v1235 = vpop.f32.mrb[0].mxu0
      %1236 = vdwg.mxu0
      %1253 = vrot.lane.b32.xlu0 %v1159, 120
      %v1254 = vpop.permute.xlu0 %1253
      %1255 = vrot.lane.b32.xlu0 %v1164, 120
      %v1256 = vpop.permute.xlu0 %1255
      %1257 = vrot.lane.b32.xlu0 %v1169, 120
      %v1258 = vpop.permute.xlu0 %1257
      %1259 = vrot.lane.b32.xlu0 %v1174, 120
      %v1260 = vpop.permute.xlu0 %1259
      %1261 = vrot.lane.b32.xlu0 %v1179, 120
      %v1262 = vpop.permute.xlu0 %1261
      %1263 = vrot.lane.b32.xlu0 %v1184, 120
      %v1264 = vpop.permute.xlu0 %1263
      %1265 = vrot.lane.b32.xlu0 %v1189, 120
      %v1266 = vpop.permute.xlu0 %1265
      %1267 = vrot.lane.b32.xlu0 %v1194, 120
      %v1268 = vpop.permute.xlu0 %1267
      %1269 = vrot.lane.b32.xlu0 %v1199, 120
      %v1270 = vpop.permute.xlu0 %1269
      %1271 = vrot.lane.b32.xlu0 %v1204, 120
      %v1272 = vpop.permute.xlu0 %1271
      %1273 = vrot.lane.b32.xlu0 %v1209, 120
      %v1274 = vpop.permute.xlu0 %1273
      %1275 = vrot.lane.b32.xlu0 %v1214, 120
      %v1276 = vpop.permute.xlu0 %1275
      %1277 = vrot.lane.b32.xlu0 %v1219, 120
      %v1278 = vpop.permute.xlu0 %1277
      %1279 = vrot.lane.b32.xlu0 %v1224, 120
      %v1280 = vpop.permute.xlu0 %1279
      %1281 = vrot.lane.b32.xlu0 %v1229, 120
      %v1282 = vpop.permute.xlu0 %1281
      %1283 = vrot.lane.b32.xlu0 %v1234, 120
      %v1284 = vpop.permute.xlu0 %1283
      %1285 = vrot.lane.b32.xlu0 %v1159, 112
      %v1286 = vpop.permute.xlu0 %1285
      %1287 = vrot.lane.b32.xlu0 %v1164, 112
      %v1288 = vpop.permute.xlu0 %1287
      %1289 = vrot.lane.b32.xlu0 %v1169, 112
      %v1290 = vpop.permute.xlu0 %1289
      %1291 = vrot.lane.b32.xlu0 %v1174, 112
      %v1292 = vpop.permute.xlu0 %1291
      %1293 = vrot.lane.b32.xlu0 %v1179, 112
      %v1294 = vpop.permute.xlu0 %1293
      %1295 = vrot.lane.b32.xlu0 %v1184, 112
      %v1296 = vpop.permute.xlu0 %1295
      %1297 = vrot.lane.b32.xlu0 %v1189, 112
      %v1298 = vpop.permute.xlu0 %1297
      %1299 = vrot.lane.b32.xlu0 %v1194, 112
      %v1300 = vpop.permute.xlu0 %1299
      %1301 = vrot.lane.b32.xlu0 %v1199, 112
      %v1302 = vpop.permute.xlu0 %1301
      %1303 = vrot.lane.b32.xlu0 %v1204, 112
      %v1304 = vpop.permute.xlu0 %1303
      %1305 = vrot.lane.b32.xlu0 %v1209, 112
      %v1306 = vpop.permute.xlu0 %1305
      %1307 = vrot.lane.b32.xlu0 %v1214, 112
      %v1308 = vpop.permute.xlu0 %1307
      %1309 = vrot.lane.b32.xlu0 %v1219, 112
      %v1310 = vpop.permute.xlu0 %1309
      %1311 = vrot.lane.b32.xlu0 %v1224, 112
      %v1312 = vpop.permute.xlu0 %1311
      %1313 = vrot.lane.b32.xlu0 %v1229, 112
      %v1314 = vpop.permute.xlu0 %1313
      %1315 = vrot.lane.b32.xlu0 %v1234, 112
      %v1316 = vpop.permute.xlu0 %1315
      %1317 = vrot.lane.b32.xlu0 %v1159, 104
      %v1318 = vpop.permute.xlu0 %1317
      %1319 = vrot.lane.b32.xlu0 %v1164, 104
      %v1320 = vpop.permute.xlu0 %1319
      %1321 = vrot.lane.b32.xlu0 %v1169, 104
      %v1322 = vpop.permute.xlu0 %1321
      %1323 = vrot.lane.b32.xlu0 %v1174, 104
      %v1324 = vpop.permute.xlu0 %1323
      %1325 = vrot.lane.b32.xlu0 %v1179, 104
      %v1326 = vpop.permute.xlu0 %1325
      %1327 = vrot.lane.b32.xlu0 %v1184, 104
      %v1328 = vpop.permute.xlu0 %1327
      %1329 = vrot.lane.b32.xlu0 %v1189, 104
      %v1330 = vpop.permute.xlu0 %1329
      %1331 = vrot.lane.b32.xlu0 %v1194, 104
      %v1332 = vpop.permute.xlu0 %1331
      %1333 = vrot.lane.b32.xlu0 %v1199, 104
      %v1334 = vpop.permute.xlu0 %1333
      %1335 = vrot.lane.b32.xlu0 %v1204, 104
      %v1336 = vpop.permute.xlu0 %1335
      %1337 = vrot.lane.b32.xlu0 %v1209, 104
      %v1338 = vpop.permute.xlu0 %1337
      %1339 = vrot.lane.b32.xlu0 %v1214, 104
      %v1340 = vpop.permute.xlu0 %1339
      %1341 = vrot.lane.b32.xlu0 %v1219, 104
      %v1342 = vpop.permute.xlu0 %1341
      %1343 = vrot.lane.b32.xlu0 %v1224, 104
      %v1344 = vpop.permute.xlu0 %1343
      %1345 = vrot.lane.b32.xlu0 %v1229, 104
      %v1346 = vpop.permute.xlu0 %1345
      %1347 = vrot.lane.b32.xlu0 %v1234, 104
      %v1348 = vpop.permute.xlu0 %1347
      %v1349 = vld [vmem:[%s720] sm:$0xff]
      %v1350 = vld [vmem:[%s720 + $0x8] sm:$0xff]
      %v1351 = vld [vmem:[%s720 + $0x10] sm:$0xff]
      %v1352 = vld [vmem:[%s720 + $0x18] sm:$0xff]
      %v1353 = vld [vmem:[%s720 + $0x20] sm:$0xff]
      %v1354 = vld [vmem:[%s720 + $0x28] sm:$0xff]
      %v1355 = vld [vmem:[%s720 + $0x30] sm:$0xff]
      %v1356 = vld [vmem:[%s720 + $0x38] sm:$0xff]
      %v1357 = vld [vmem:[%s720 + $0x40] sm:$0xff]
      %v1358 = vld [vmem:[%s720 + $0x48] sm:$0xff]
      %v1359 = vld [vmem:[%s720 + $0x50] sm:$0xff]
      %v1360 = vld [vmem:[%s720 + $0x58] sm:$0xff]
      %v1361 = vld [vmem:[%s720 + $0x60] sm:$0xff]
      %v1362 = vld [vmem:[%s720 + $0x68] sm:$0xff]
      %v1363 = vld [vmem:[%s720 + $0x70] sm:$0xff]
      %v1364 = vld [vmem:[%s720 + $0x78] sm:$0xff]
      %v1365 = vld [vmem:[%s720 + $0x80] sm:$0xff]
      %v1366 = vld [vmem:[%s720 + $0x88] sm:$0xff]
      %v1367 = vld [vmem:[%s720 + $0x90] sm:$0xff]
      %v1368 = vld [vmem:[%s720 + $0x98] sm:$0xff]
      %v1369 = vld [vmem:[%s720 + $0xa0] sm:$0xff]
      %v1370 = vld [vmem:[%s720 + $0xa8] sm:$0xff]
      %v1371 = vld [vmem:[%s720 + $0xb0] sm:$0xff]
      %v1372 = vld [vmem:[%s720 + $0xb8] sm:$0xff]
      %v1373 = vld [vmem:[%s720 + $0xc0] sm:$0xff]
      %v1374 = vld [vmem:[%s720 + $0xc8] sm:$0xff]
      %v1375 = vld [vmem:[%s720 + $0xd0] sm:$0xff]
      %v1376 = vld [vmem:[%s720 + $0xd8] sm:$0xff]
      %v1377 = vld [vmem:[%s720 + $0xe0] sm:$0xff]
      %v1378 = vld [vmem:[%s720 + $0xe8] sm:$0xff]
      %v1379 = vld [vmem:[%s720 + $0xf0] sm:$0xff]
      %v1380 = vld [vmem:[%s720 + $0xf8] sm:$0xff]
      %v1381 = vld [vmem:[%s720 + $0x100] sm:$0xff]
      %v1382 = vld [vmem:[%s720 + $0x108] sm:$0xff]
      %v1383 = vld [vmem:[%s720 + $0x110] sm:$0xff]
      %v1384 = vld [vmem:[%s720 + $0x118] sm:$0xff]
      %v1385 = vld [vmem:[%s720 + $0x120] sm:$0xff]
      %v1386 = vld [vmem:[%s720 + $0x128] sm:$0xff]
      %v1387 = vld [vmem:[%s720 + $0x130] sm:$0xff]
      %v1388 = vld [vmem:[%s720 + $0x138] sm:$0xff]
      %v1389 = vld [vmem:[%s720 + $0x140] sm:$0xff]
      %v1390 = vld [vmem:[%s720 + $0x148] sm:$0xff]
      %v1391 = vld [vmem:[%s720 + $0x150] sm:$0xff]
      %v1392 = vld [vmem:[%s720 + $0x158] sm:$0xff]
      %v1393 = vld [vmem:[%s720 + $0x160] sm:$0xff]
      %v1394 = vld [vmem:[%s720 + $0x168] sm:$0xff]
      %v1395 = vld [vmem:[%s720 + $0x170] sm:$0xff]
      %v1396 = vld [vmem:[%s720 + $0x178] sm:$0xff]
      %v1397 = vld [vmem:[%s720 + $0x180] sm:$0xff]
      %v1398 = vld [vmem:[%s720 + $0x188] sm:$0xff]
      %v1399 = vld [vmem:[%s720 + $0x190] sm:$0xff]
      %v1400 = vld [vmem:[%s720 + $0x198] sm:$0xff]
      %v1401 = vld [vmem:[%s720 + $0x1a0] sm:$0xff]
      %v1402 = vld [vmem:[%s720 + $0x1a8] sm:$0xff]
      %v1403 = vld [vmem:[%s720 + $0x1b0] sm:$0xff]
      %v1404 = vld [vmem:[%s720 + $0x1b8] sm:$0xff]
      %v1405 = vld [vmem:[%s720 + $0x1c0] sm:$0xff]
      %v1406 = vld [vmem:[%s720 + $0x1c8] sm:$0xff]
      %v1407 = vld [vmem:[%s720 + $0x1d0] sm:$0xff]
      %v1408 = vld [vmem:[%s720 + $0x1d8] sm:$0xff]
      %v1409 = vld [vmem:[%s720 + $0x1e0] sm:$0xff]
      %v1410 = vld [vmem:[%s720 + $0x1e8] sm:$0xff]
      %v1411 = vld [vmem:[%s720 + $0x1f0] sm:$0xff]
      %v1412 = vld [vmem:[%s720 + $0x1f8] sm:$0xff]
      %1413 = vrot.lane.b32.xlu0 %v1159, 96
      %v1414 = vpop.permute.xlu0 %1413
      %1415 = vrot.lane.b32.xlu0 %v1164, 96
      %v1416 = vpop.permute.xlu0 %1415
      %vm1417 = vcmask 64512
      %v1418 = vsel %vm1417, %v1159, 0
      %v1420 = vsel %vm1417, %v1164, 0
      %v1422 = vsel %vm1417, %v1414, 0
      %v1424 = vsel %vm1417, %v1416, 0
      %1426 = vmatprep.subr.mxu0 0.0
      %1427 = vmatpush1.xpose.msra.mxu0 %v1422
      %1428 = vmatprep.subr.mxu0 0.0
      %1429 = vmatpush1.xpose.msra.mxu0 %v1424
      %1430 = vmatprep.subr.mxu0 0.0
      %1431 = vmatpush1.xpose.msra.mxu0 0.0
      %1432 = vmatprep.subr.mxu0 0.0
      %1433 = vmatpush1.xpose.msra.mxu0 0.0
      %1434 = vmatprep.subr.mxu0 0.0
      %1435 = vmatpush1.xpose.msra.mxu0 0.0
      %1436 = vmatprep.subr.mxu0 0.0
      %1437 = vmatpush1.xpose.msra.mxu0 0.0
      %1438 = vmatprep.subr.mxu0 0.0
      %1439 = vmatpush1.xpose.msra.mxu0 0.0
      %1440 = vmatprep.subr.mxu0 0.0
      %1441 = vmatpush1.xpose.msra.mxu0 0.0
      %1442 = vmatprep.subr.mxu0 0.0
      %1443 = vmatpush1.xpose.msra.mxu0 0.0
      %1444 = vmatprep.subr.mxu0 0.0
      %1445 = vmatpush1.xpose.msra.mxu0 0.0
      %1446 = vmatprep.subr.mxu0 0.0
      %1447 = vmatpush1.xpose.msra.mxu0 0.0
      %1448 = vmatprep.subr.mxu0 0.0
      %1449 = vmatpush1.xpose.msra.mxu0 0.0
      %1450 = vmatprep.subr.mxu0 0.0
      %1451 = vmatpush1.xpose.msra.mxu0 0.0
      %1452 = vmatprep.subr.mxu0 0.0
      %1453 = vmatpush1.xpose.msra.mxu0 0.0
      %1454 = vmatprep.subr.mxu0 0.0
      %1455 = vmatpush1.xpose.msra.mxu0 0.0
      %1456 = vmatprep.subr.mxu0 0.0
      %1457 = vmatpush1.xpose.msra.mxu0 0.0
      %1458 = vmatprep.subr.mxu0 0.0
      %1459 = vmatpush1.xpose.msra.mxu0 0.0
      %1460 = vmatprep.subr.mxu0 0.0
      %1461 = vmatpush1.xpose.msra.mxu0 0.0
      %1462 = vmatprep.subr.mxu0 0.0
      %1463 = vmatpush1.xpose.msra.mxu0 0.0
      %1464 = vmatprep.subr.mxu0 0.0
      %1465 = vmatpush1.xpose.msra.mxu0 0.0
      %1466 = vmatprep.subr.mxu0 0.0
      %1467 = vmatpush1.xpose.msra.mxu0 0.0
      %1468 = vmatprep.subr.mxu0 0.0
      %1469 = vmatpush1.xpose.msra.mxu0 0.0
      %1470 = vmatprep.subr.mxu0 0.0
      %1471 = vmatpush1.xpose.msra.mxu0 0.0
      %1472 = vmatprep.subr.mxu0 0.0
      %1473 = vmatpush1.xpose.msra.mxu0 0.0
      %1474 = vmatprep.subr.mxu0 0.0
      %1475 = vmatpush1.xpose.msra.mxu0 0.0
      %1476 = vmatprep.subr.mxu0 0.0
      %1477 = vmatpush1.xpose.msra.mxu0 0.0
      %1478 = vmatprep.subr.mxu0 0.0
      %1479 = vmatpush1.xpose.msra.mxu0 0.0
      %1480 = vmatprep.subr.mxu0 0.0
      %1481 = vmatpush1.xpose.msra.mxu0 0.0
      %1482 = vmatprep.subr.mxu0 0.0
      %1483 = vmatpush1.xpose.msra.mxu0 0.0
      %1484 = vmatprep.subr.mxu0 0.0
      %1485 = vmatpush1.xpose.msra.mxu0 0.0
      %1486 = vmatprep.subr.mxu0 0.0
      %1487 = vmatpush1.xpose.msra.mxu0 0.0
      %1488 = vmatprep.subr.mxu0 0.0
      %1489 = vmatpush1.xpose.msra.mxu0 0.0
      %1490 = vmatprep.mubr.f32.mxu0 0.0
      %1491 = vmatmul.mubr.f32.gmra.mrb[0].mxu0 %v1418
      %v1492 = vpop.f32.mrb[0].mxu0
      %v1493 = vadd.f32 %v1349, %v1492
      %v1494 = vpop.f32.mrb[0].mxu0
      %1495 = vmatprep.mubr.f32.mxu0 0.0
      %1496 = vmatmul.mubr.f32.gmra.mrb[0].mxu0 %v1420
      %v1497 = vpop.f32.mrb[0].mxu0
      %v1498 = vadd.f32 %v1350, %v1497
      %v1499 = vpop.f32.mrb[0].mxu0
      %1500 = vdwg.mxu0
      %1501 = vrot.lane.b32.xlu0 %v1169, 96
      %v1502 = vpop.permute.xlu0 %1501
      %1503 = vrot.lane.b32.xlu0 %v1174, 96
      %v1504 = vpop.permute.xlu0 %1503
      %v1505 = vsel %vm1417, %v1169, 0
      %v1507 = vsel %vm1417, %v1174, 0
      %v1509 = vsel %vm1417, %v1502, 0
      %v1511 = vsel %vm1417, %v1504, 0
      %1513 = vmatprep.subr.mxu0 0.0
      %1514 = vmatpush1.xpose.msra.mxu0 %v1509
      %1515 = vmatprep.subr.mxu0 0.0
      %1516 = vmatpush1.xpose.msra.mxu0 %v1511
      %1517 = vmatprep.subr.mxu0 0.0
      %1518 = vmatpush1.xpose.msra.mxu0 0.0
      %1519 = vmatprep.subr.mxu0 0.0
      %1520 = vmatpush1.xpose.msra.mxu0 0.0
      %1521 = vmatprep.subr.mxu0 0.0
      %1522 = vmatpush1.xpose.msra.mxu0 0.0
      %1523 = vmatprep.subr.mxu0 0.0
      %1524 = vmatpush1.xpose.msra.mxu0 0.0
      %1525 = vmatprep.subr.mxu0 0.0
      %1526 = vmatpush1.xpose.msra.mxu0 0.0
      %1527 = vmatprep.subr.mxu0 0.0
      %1528 = vmatpush1.xpose.msra.mxu0 0.0
      %1529 = vmatprep.subr.mxu0 0.0
      %1530 = vmatpush1.xpose.msra.mxu0 0.0
      %1531 = vmatprep.subr.mxu0 0.0
      %1532 = vmatpush1.xpose.msra.mxu0 0.0
      %1533 = vmatprep.subr.mxu0 0.0
      %1534 = vmatpush1.xpose.msra.mxu0 0.0
      %1535 = vmatprep.subr.mxu0 0.0
      %1536 = vmatpush1.xpose.msra.mxu0 0.0
      %1537 = vmatprep.subr.mxu0 0.0
      %1538 = vmatpush1.xpose.msra.mxu0 0.0
      %1539 = vmatprep.subr.mxu0 0.0
      %1540 = vmatpush1.xpose.msra.mxu0 0.0
      %1541 = vmatprep.subr.mxu0 0.0
      %1542 = vmatpush1.xpose.msra.mxu0 0.0
      %1543 = vmatprep.subr.mxu0 0.0
      %1544 = vmatpush1.xpose.msra.mxu0 0.0
      %1545 = vmatprep.subr.mxu0 0.0
      %1546 = vmatpush1.xpose.msra.mxu0 0.0
      %1547 = vmatprep.subr.mxu0 0.0
      %1548 = vmatpush1.xpose.msra.mxu0 0.0
      %1549 = vmatprep.subr.mxu0 0.0
      %1550 = vmatpush1.xpose.msra.mxu0 0.0
      %1551 = vmatprep.subr.mxu0 0.0
      %1552 = vmatpush1.xpose.msra.mxu0 0.0
      %1553 = vmatprep.subr.mxu0 0.0
      %1554 = vmatpush1.xpose.msra.mxu0 0.0
      %1555 = vmatprep.subr.mxu0 0.0
      %1556 = vmatpush1.xpose.msra.mxu0 0.0
      %1557 = vmatprep.subr.mxu0 0.0
      %1558 = vmatpush1.xpose.msra.mxu0 0.0
      %1559 = vmatprep.subr.mxu0 0.0
      %1560 = vmatpush1.xpose.msra.mxu0 0.0
      %1561 = vmatprep.subr.mxu0 0.0
      %1562 = vmatpush1.xpose.msra.mxu0 0.0
      %1563 = vmatprep.subr.mxu0 0.0
      %1564 = vmatpush1.xpose.msra.mxu0 0.0
      %1565 = vmatprep.subr.mxu0 0.0
      %1566 = vmatpush1.xpose.msra.mxu0 0.0
      %1567 = vmatprep.subr.mxu0 0.0
      %1568 = vmatpush1.xpose.msra.mxu0 0.0
      %1569 = vmatprep.subr.mxu0 0.0
      %1570 = vmatpush1.xpose.msra.mxu0 0.0
      %1571 = vmatprep.subr.mxu0 0.0
      %1572 = vmatpush1.xpose.msra.mxu0 0.0
      %1573 = vmatprep.subr.mxu0 0.0
      %1574 = vmatpush1.xpose.msra.mxu0 0.0
      %1575 = vmatprep.subr.mxu0 0.0
      %1576 = vmatpush1.xpose.msra.mxu0 0.0
      %1577 = vmatprep.mubr.f32.mxu0 0.0
      %1578 = vmatmul.mubr.f32.gmra.mrb[0].mxu0 %v1505
      %v1579 = vpop.f32.mrb[0].mxu0
      %v1580 = vadd.f32 %v1351, %v1579
      %v1581 = vpop.f32.mrb[0].mxu0
      %1582 = vmatprep.mubr.f32.mxu0 0.0
      %1583 = vmatmul.mubr.f32.gmra.mrb[0].mxu0 %v1507
      %v1584 = vpop.f32.mrb[0].mxu0
      %v1585 = vadd.f32 %v1352, %v1584
      %v1586 = vpop.f32.mrb[0].mxu0
      %1587 = vdwg.mxu0
      %1588 = vrot.lane.b32.xlu0 %v1179, 96
      %v1589 = vpop.permute.xlu0 %1588
      %1590 = vrot.lane.b32.xlu0 %v1184, 96
      %v1591 = vpop.permute.xlu0 %1590
      %v1592 = vsel %vm1417, %v1179, 0
      %v1594 = vsel %vm1417, %v1184, 0
      %v1596 = vsel %vm1417, %v1589, 0
      %v1598 = vsel %vm1417, %v1591, 0
      %1600 = vmatprep.subr.mxu0 0.0
      %1601 = vmatpush1.xpose.msra.mxu0 %v1596
      %1602 = vmatprep.subr.mxu0 0.0
      %1603 = vmatpush1.xpose.msra.mxu0 %v1598
      %1604 = vmatprep.subr.mxu0 0.0
      %1605 = vmatpush1.xpose.msra.mxu0 0.0
      %1606 = vmatprep.subr.mxu0 0.0
      %1607 = vmatpush1.xpose.msra.mxu0 0.0
      %1608 = vmatprep.subr.mxu0 0.0
      %1609 = vmatpush1.xpose.msra.mxu0 0.0
      %1610 = vmatprep.subr.mxu0 0.0
      %1611 = vmatpush1.xpose.msra.mxu0 0.0
      %1612 = vmatprep.subr.mxu0 0.0
      %1613 = vmatpush1.xpose.msra.mxu0 0.0
      %1614 = vmatprep.subr.mxu0 0.0
      %1615 = vmatpush1.xpose.msra.mxu0 0.0
      %1616 = vmatprep.subr.mxu0 0.0
      %1617 = vmatpush1.xpose.msra.mxu0 0.0
      %1618 = vmatprep.subr.mxu0 0.0
      %1619 = vmatpush1.xpose.msra.mxu0 0.0
      %1620 = vmatprep.subr.mxu0 0.0
      %1621 = vmatpush1.xpose.msra.mxu0 0.0
      %1622 = vmatprep.subr.mxu0 0.0
      %1623 = vmatpush1.xpose.msra.mxu0 0.0
      %1624 = vmatprep.subr.mxu0 0.0
      %1625 = vmatpush1.xpose.msra.mxu0 0.0
      %1626 = vmatprep.subr.mxu0 0.0
      %1627 = vmatpush1.xpose.msra.mxu0 0.0
      %1628 = vmatprep.subr.mxu0 0.0
      %1629 = vmatpush1.xpose.msra.mxu0 0.0
      %1630 = vmatprep.subr.mxu0 0.0
      %1631 = vmatpush1.xpose.msra.mxu0 0.0
      %1632 = vmatprep.subr.mxu0 0.0
      %1633 = vmatpush1.xpose.msra.mxu0 0.0
      %1634 = vmatprep.subr.mxu0 0.0
      %1635 = vmatpush1.xpose.msra.mxu0 0.0
      %1636 = vmatprep.subr.mxu0 0.0
      %1637 = vmatpush1.xpose.msra.mxu0 0.0
      %1638 = vmatprep.subr.mxu0 0.0
      %1639 = vmatpush1.xpose.msra.mxu0 0.0
      %1640 = vmatprep.subr.mxu0 0.0
      %1641 = vmatpush1.xpose.msra.mxu0 0.0
      %1642 = vmatprep.subr.mxu0 0.0
      %1643 = vmatpush1.xpose.msra.mxu0 0.0
      %1644 = vmatprep.subr.mxu0 0.0
      %1645 = vmatpush1.xpose.msra.mxu0 0.0
      %1646 = vmatprep.subr.mxu0 0.0
      %1647 = vmatpush1.xpose.msra.mxu0 0.0
      %1648 = vmatprep.subr.mxu0 0.0
      %1649 = vmatpush1.xpose.msra.mxu0 0.0
      %1650 = vmatprep.subr.mxu0 0.0
      %1651 = vmatpush1.xpose.msra.mxu0 0.0
      %1652 = vmatprep.subr.mxu0 0.0
      %1653 = vmatpush1.xpose.msra.mxu0 0.0
      %1654 = vmatprep.subr.mxu0 0.0
      %1655 = vmatpush1.xpose.msra.mxu0 0.0
      %1656 = vmatprep.subr.mxu0 0.0
      %1657 = vmatpush1.xpose.msra.mxu0 0.0
      %1658 = vmatprep.subr.mxu0 0.0
      %1659 = vmatpush1.xpose.msra.mxu0 0.0
      %1660 = vmatprep.subr.mxu0 0.0
      %1661 = vmatpush1.xpose.msra.mxu0 0.0
      %1662 = vmatprep.subr.mxu0 0.0
      %1663 = vmatpush1.xpose.msra.mxu0 0.0
      %1664 = vmatprep.mubr.f32.mxu0 0.0
      %1665 = vmatmul.mubr.f32.gmra.mrb[0].mxu0 %v1592
      %v1666 = vpop.f32.mrb[0].mxu0
      %v1667 = vadd.f32 %v1353, %v1666
      %v1668 = vpop.f32.mrb[0].mxu0
      %1669 = vmatprep.mubr.f32.mxu0 0.0
      %1670 = vmatmul.mubr.f32.gmra.mrb[0].mxu0 %v1594
      %v1671 = vpop.f32.mrb[0].mxu0
      %v1672 = vadd.f32 %v1354, %v1671
      %v1673 = vpop.f32.mrb[0].mxu0
      %1674 = vdwg.mxu0
      %1675 = vrot.lane.b32.xlu0 %v1189, 96
      %v1676 = vpop.permute.xlu0 %1675
      %1677 = vrot.lane.b32.xlu0 %v1194, 96
      %v1678 = vpop.permute.xlu0 %1677
      %v1679 = vsel %vm1417, %v1189, 0
      %v1681 = vsel %vm1417, %v1194, 0
      %v1683 = vsel %vm1417, %v1676, 0
      %v1685 = vsel %vm1417, %v1678, 0
      %1687 = vmatprep.subr.mxu0 0.0
      %1688 = vmatpush1.xpose.msra.mxu0 %v1683
      %1689 = vmatprep.subr.mxu0 0.0
      %1690 = vmatpush1.xpose.msra.mxu0 %v1685
      %1691 = vmatprep.subr.mxu0 0.0
      %1692 = vmatpush1.xpose.msra.mxu0 0.0
      %1693 = vmatprep.subr.mxu0 0.0
      %1694 = vmatpush1.xpose.msra.mxu0 0.0
      %1695 = vmatprep.subr.mxu0 0.0
      %1696 = vmatpush1.xpose.msra.mxu0 0.0
      %1697 = vmatprep.subr.mxu0 0.0
      %1698 = vmatpush1.xpose.msra.mxu0 0.0
      %1699 = vmatprep.subr.mxu0 0.0
      %1700 = vmatpush1.xpose.msra.mxu0 0.0
      %1701 = vmatprep.subr.mxu0 0.0
      %1702 = vmatpush1.xpose.msra.mxu0 0.0
      %1703 = vmatprep.subr.mxu0 0.0
      %1704 = vmatpush1.xpose.msra.mxu0 0.0
      %1705 = vmatprep.subr.mxu0 0.0
      %1706 = vmatpush1.xpose.msra.mxu0 0.0
      %1707 = vmatprep.subr.mxu0 0.0
      %1708 = vmatpush1.xpose.msra.mxu0 0.0
      %1709 = vmatprep.subr.mxu0 0.0
      %1710 = vmatpush1.xpose.msra.mxu0 0.0
      %1711 = vmatprep.subr.mxu0 0.0
      %1712 = vmatpush1.xpose.msra.mxu0 0.0
      %1713 = vmatprep.subr.mxu0 0.0
      %1714 = vmatpush1.xpose.msra.mxu0 0.0
      %1715 = vmatprep.subr.mxu0 0.0
      %1716 = vmatpush1.xpose.msra.mxu0 0.0
      %1717 = vmatprep.subr.mxu0 0.0
      %1718 = vmatpush1.xpose.msra.mxu0 0.0
      %1719 = vmatprep.subr.mxu0 0.0
      %1720 = vmatpush1.xpose.msra.mxu0 0.0
      %1721 = vmatprep.subr.mxu0 0.0
      %1722 = vmatpush1.xpose.msra.mxu0 0.0
      %1723 = vmatprep.subr.mxu0 0.0
      %1724 = vmatpush1.xpose.msra.mxu0 0.0
      %1725 = vmatprep.subr.mxu0 0.0
      %1726 = vmatpush1.xpose.msra.mxu0 0.0
      %1727 = vmatprep.subr.mxu0 0.0
      %1728 = vmatpush1.xpose.msra.mxu0 0.0
      %1729 = vmatprep.subr.mxu0 0.0
      %1730 = vmatpush1.xpose.msra.mxu0 0.0
      %1731 = vmatprep.subr.mxu0 0.0
      %1732 = vmatpush1.xpose.msra.mxu0 0.0
      %1733 = vmatprep.subr.mxu0 0.0
      %1734 = vmatpush1.xpose.msra.mxu0 0.0
      %1735 = vmatprep.subr.mxu0 0.0
      %1736 = vmatpush1.xpose.msra.mxu0 0.0
      %1737 = vmatprep.subr.mxu0 0.0
      %1738 = vmatpush1.xpose.msra.mxu0 0.0
      %1739 = vmatprep.subr.mxu0 0.0
      %1740 = vmatpush1.xpose.msra.mxu0 0.0
      %1741 = vmatprep.subr.mxu0 0.0
      %1742 = vmatpush1.xpose.msra.mxu0 0.0
      %1743 = vmatprep.subr.mxu0 0.0
      %1744 = vmatpush1.xpose.msra.mxu0 0.0
      %1745 = vmatprep.subr.mxu0 0.0
      %1746 = vmatpush1.xpose.msra.mxu0 0.0
      %1747 = vmatprep.subr.mxu0 0.0
      %1748 = vmatpush1.xpose.msra.mxu0 0.0
      %1749 = vmatprep.subr.mxu0 0.0
      %1750 = vmatpush1.xpose.msra.mxu0 0.0
      %1751 = vmatprep.mubr.f32.mxu0 0.0
      %1752 = vmatmul.mubr.f32.gmra.mrb[0].mxu0 %v1679
      %v1753 = vpop.f32.mrb[0].mxu0
      %v1754 = vadd.f32 %v1355, %v1753
      %v1755 = vpop.f32.mrb[0].mxu0
      %1756 = vmatprep.mubr.f32.mxu0 0.0
      %1757 = vmatmul.mubr.f32.gmra.mrb[0].mxu0 %v1681
      %v1758 = vpop.f32.mrb[0].mxu0
      %v1759 = vadd.f32 %v1356, %v1758
      %v1760 = vpop.f32.mrb[0].mxu0
      %1761 = vdwg.mxu0
      %1762 = vrot.lane.b32.xlu0 %v1199, 96
      %v1763 = vpop.permute.xlu0 %1762
      %1764 = vrot.lane.b32.xlu0 %v1204, 96
      %v1765 = vpop.permute.xlu0 %1764
      %v1766 = vsel %vm1417, %v1199, 0
      %v1768 = vsel %vm1417, %v1204, 0
      %v1770 = vsel %vm1417, %v1763, 0
      %v1772 = vsel %vm1417, %v1765, 0
      %1774 = vmatprep.subr.mxu0 0.0
      %1775 = vmatpush1.xpose.msra.mxu0 %v1770
      %1776 = vmatprep.subr.mxu0 0.0
      %1777 = vmatpush1.xpose.msra.mxu0 %v1772
      %1778 = vmatprep.subr.mxu0 0.0
      %1779 = vmatpush1.xpose.msra.mxu0 0.0
      %1780 = vmatprep.subr.mxu0 0.0
      %1781 = vmatpush1.xpose.msra.mxu0 0.0
      %1782 = vmatprep.subr.mxu0 0.0
      %1783 = vmatpush1.xpose.msra.mxu0 0.0
      %1784 = vmatprep.subr.mxu0 0.0
      %1785 = vmatpush1.xpose.msra.mxu0 0.0
      %1786 = vmatprep.subr.mxu0 0.0
      %1787 = vmatpush1.xpose.msra.mxu0 0.0
      %1788 = vmatprep.subr.mxu0 0.0
      %1789 = vmatpush1.xpose.msra.mxu0 0.0
      %1790 = vmatprep.subr.mxu0 0.0
      %1791 = vmatpush1.xpose.msra.mxu0 0.0
      %1792 = vmatprep.subr.mxu0 0.0
      %1793 = vmatpush1.xpose.msra.mxu0 0.0
      %1794 = vmatprep.subr.mxu0 0.0
      %1795 = vmatpush1.xpose.msra.mxu0 0.0
      %1796 = vmatprep.subr.mxu0 0.0
      %1797 = vmatpush1.xpose.msra.mxu0 0.0
      %1798 = vmatprep.subr.mxu0 0.0
      %1799 = vmatpush1.xpose.msra.mxu0 0.0
      %1800 = vmatprep.subr.mxu0 0.0
      %1801 = vmatpush1.xpose.msra.mxu0 0.0
      %1802 = vmatprep.subr.mxu0 0.0
      %1803 = vmatpush1.xpose.msra.mxu0 0.0
      %1804 = vmatprep.subr.mxu0 0.0
      %1805 = vmatpush1.xpose.msra.mxu0 0.0
      %1806 = vmatprep.subr.mxu0 0.0
      %1807 = vmatpush1.xpose.msra.mxu0 0.0
      %1808 = vmatprep.subr.mxu0 0.0
      %1809 = vmatpush1.xpose.msra.mxu0 0.0
      %1810 = vmatprep.subr.mxu0 0.0
      %1811 = vmatpush1.xpose.msra.mxu0 0.0
      %1812 = vmatprep.subr.mxu0 0.0
      %1813 = vmatpush1.xpose.msra.mxu0 0.0
      %1814 = vmatprep.subr.mxu0 0.0
      %1815 = vmatpush1.xpose.msra.mxu0 0.0
      %1816 = vmatprep.subr.mxu0 0.0
      %1817 = vmatpush1.xpose.msra.mxu0 0.0
      %1818 = vmatprep.subr.mxu0 0.0
      %1819 = vmatpush1.xpose.msra.mxu0 0.0
      %1820 = vmatprep.subr.mxu0 0.0
      %1821 = vmatpush1.xpose.msra.mxu0 0.0
      %1822 = vmatprep.subr.mxu0 0.0
      %1823 = vmatpush1.xpose.msra.mxu0 0.0
      %1824 = vmatprep.subr.mxu0 0.0
      %1825 = vmatpush1.xpose.msra.mxu0 0.0
      %1826 = vmatprep.subr.mxu0 0.0
      %1827 = vmatpush1.xpose.msra.mxu0 0.0
      %1828 = vmatprep.subr.mxu0 0.0
      %1829 = vmatpush1.xpose.msra.mxu0 0.0
      %1830 = vmatprep.subr.mxu0 0.0
      %1831 = vmatpush1.xpose.msra.mxu0 0.0
      %1832 = vmatprep.subr.mxu0 0.0
      %1833 = vmatpush1.xpose.msra.mxu0 0.0
      %1834 = vmatprep.subr.mxu0 0.0
      %1835 = vmatpush1.xpose.msra.mxu0 0.0
      %1836 = vmatprep.subr.mxu0 0.0
      %1837 = vmatpush1.xpose.msra.mxu0 0.0
      %1838 = vmatprep.mubr.f32.mxu0 0.0
      %1839 = vmatmul.mubr.f32.gmra.mrb[0].mxu0 %v1766
      %v1840 = vpop.f32.mrb[0].mxu0
      %v1841 = vadd.f32 %v1357, %v1840
      %v1842 = vpop.f32.mrb[0].mxu0
      %1843 = vmatprep.mubr.f32.mxu0 0.0
      %1844 = vmatmul.mubr.f32.gmra.mrb[0].mxu0 %v1768
      %v1845 = vpop.f32.mrb[0].mxu0
      %v1846 = vadd.f32 %v1358, %v1845
      %v1847 = vpop.f32.mrb[0].mxu0
      %1848 = vdwg.mxu0
      %1849 = vrot.lane.b32.xlu0 %v1209, 96
      %v1850 = vpop.permute.xlu0 %1849
      %1851 = vrot.lane.b32.xlu0 %v1214, 96
      %v1852 = vpop.permute.xlu0 %1851
      %v1853 = vsel %vm1417, %v1209, 0
      %v1855 = vsel %vm1417, %v1214, 0
      %v1857 = vsel %vm1417, %v1850, 0
      %v1859 = vsel %vm1417, %v1852, 0
      %1861 = vmatprep.subr.mxu0 0.0
      %1862 = vmatpush1.xpose.msra.mxu0 %v1857
      %1863 = vmatprep.subr.mxu0 0.0
      %1864 = vmatpush1.xpose.msra.mxu0 %v1859
      %1865 = vmatprep.subr.mxu0 0.0
      %1866 = vmatpush1.xpose.msra.mxu0 0.0
      %1867 = vmatprep.subr.mxu0 0.0
      %1868 = vmatpush1.xpose.msra.mxu0 0.0
      %1869 = vmatprep.subr.mxu0 0.0
      %1870 = vmatpush1.xpose.msra.mxu0 0.0
      %1871 = vmatprep.subr.mxu0 0.0
      %1872 = vmatpush1.xpose.msra.mxu0 0.0
      %1873 = vmatprep.subr.mxu0 0.0
      %1874 = vmatpush1.xpose.msra.mxu0 0.0
      %1875 = vmatprep.subr.mxu0 0.0
      %1876 = vmatpush1.xpose.msra.mxu0 0.0
      %1877 = vmatprep.subr.mxu0 0.0
      %1878 = vmatpush1.xpose.msra.mxu0 0.0
      %1879 = vmatprep.subr.mxu0 0.0
      %1880 = vmatpush1.xpose.msra.mxu0 0.0
      %1881 = vmatprep.subr.mxu0 0.0
      %1882 = vmatpush1.xpose.msra.mxu0 0.0
      %1883 = vmatprep.subr.mxu0 0.0
      %1884 = vmatpush1.xpose.msra.mxu0 0.0
      %1885 = vmatprep.subr.mxu0 0.0
      %1886 = vmatpush1.xpose.msra.mxu0 0.0
      %1887 = vmatprep.subr.mxu0 0.0
      %1888 = vmatpush1.xpose.msra.mxu0 0.0
      %1889 = vmatprep.subr.mxu0 0.0
      %1890 = vmatpush1.xpose.msra.mxu0 0.0
      %1891 = vmatprep.subr.mxu0 0.0
      %1892 = vmatpush1.xpose.msra.mxu0 0.0
      %1893 = vmatprep.subr.mxu0 0.0
      %1894 = vmatpush1.xpose.msra.mxu0 0.0
      %1895 = vmatprep.subr.mxu0 0.0
      %1896 = vmatpush1.xpose.msra.mxu0 0.0
      %1897 = vmatprep.subr.mxu0 0.0
      %1898 = vmatpush1.xpose.msra.mxu0 0.0
      %1899 = vmatprep.subr.mxu0 0.0
      %1900 = vmatpush1.xpose.msra.mxu0 0.0
      %1901 = vmatprep.subr.mxu0 0.0
      %1902 = vmatpush1.xpose.msra.mxu0 0.0
      %1903 = vmatprep.subr.mxu0 0.0
      %1904 = vmatpush1.xpose.msra.mxu0 0.0
      %1905 = vmatprep.subr.mxu0 0.0
      %1906 = vmatpush1.xpose.msra.mxu0 0.0
      %1907 = vmatprep.subr.mxu0 0.0
      %1908 = vmatpush1.xpose.msra.mxu0 0.0
      %1909 = vmatprep.subr.mxu0 0.0
      %1910 = vmatpush1.xpose.msra.mxu0 0.0
      %1911 = vmatprep.subr.mxu0 0.0
      %1912 = vmatpush1.xpose.msra.mxu0 0.0
      %1913 = vmatprep.subr.mxu0 0.0
      %1914 = vmatpush1.xpose.msra.mxu0 0.0
      %1915 = vmatprep.subr.mxu0 0.0
      %1916 = vmatpush1.xpose.msra.mxu0 0.0
      %1917 = vmatprep.subr.mxu0 0.0
      %1918 = vmatpush1.xpose.msra.mxu0 0.0
      %1919 = vmatprep.subr.mxu0 0.0
      %1920 = vmatpush1.xpose.msra.mxu0 0.0
      %1921 = vmatprep.subr.mxu0 0.0
      %1922 = vmatpush1.xpose.msra.mxu0 0.0
      %1923 = vmatprep.subr.mxu0 0.0
      %1924 = vmatpush1.xpose.msra.mxu0 0.0
      %1925 = vmatprep.mubr.f32.mxu0 0.0
      %1926 = vmatmul.mubr.f32.gmra.mrb[0].mxu0 %v1853
      %v1927 = vpop.f32.mrb[0].mxu0
      %v1928 = vadd.f32 %v1359, %v1927
      %v1929 = vpop.f32.mrb[0].mxu0
      %1930 = vmatprep.mubr.f32.mxu0 0.0
      %1931 = vmatmul.mubr.f32.gmra.mrb[0].mxu0 %v1855
      %v1932 = vpop.f32.mrb[0].mxu0
      %v1933 = vadd.f32 %v1360, %v1932
      %v1934 = vpop.f32.mrb[0].mxu0
      %1935 = vdwg.mxu0
      %1936 = vrot.lane.b32.xlu0 %v1219, 96
      %v1937 = vpop.permute.xlu0 %1936
      %1938 = vrot.lane.b32.xlu0 %v1224, 96
      %v1939 = vpop.permute.xlu0 %1938
      %v1940 = vsel %vm1417, %v1219, 0
      %v1942 = vsel %vm1417, %v1224, 0
      %v1944 = vsel %vm1417, %v1937, 0
      %v1946 = vsel %vm1417, %v1939, 0
      %1948 = vmatprep.subr.mxu0 0.0
      %1949 = vmatpush1.xpose.msra.mxu0 %v1944
      %1950 = vmatprep.subr.mxu0 0.0
      %1951 = vmatpush1.xpose.msra.mxu0 %v1946
      %1952 = vmatprep.subr.mxu0 0.0
      %1953 = vmatpush1.xpose.msra.mxu0 0.0
      %1954 = vmatprep.subr.mxu0 0.0
      %1955 = vmatpush1.xpose.msra.mxu0 0.0
      %1956 = vmatprep.subr.mxu0 0.0
      %1957 = vmatpush1.xpose.msra.mxu0 0.0
      %1958 = vmatprep.subr.mxu0 0.0
      %1959 = vmatpush1.xpose.msra.mxu0 0.0
      %1960 = vmatprep.subr.mxu0 0.0
      %1961 = vmatpush1.xpose.msra.mxu0 0.0
      %1962 = vmatprep.subr.mxu0 0.0
      %1963 = vmatpush1.xpose.msra.mxu0 0.0
      %1964 = vmatprep.subr.mxu0 0.0
      %1965 = vmatpush1.xpose.msra.mxu0 0.0
      %1966 = vmatprep.subr.mxu0 0.0
      %1967 = vmatpush1.xpose.msra.mxu0 0.0
      %1968 = vmatprep.subr.mxu0 0.0
      %1969 = vmatpush1.xpose.msra.mxu0 0.0
      %1970 = vmatprep.subr.mxu0 0.0
      %1971 = vmatpush1.xpose.msra.mxu0 0.0
      %1972 = vmatprep.subr.mxu0 0.0
      %1973 = vmatpush1.xpose.msra.mxu0 0.0
      %1974 = vmatprep.subr.mxu0 0.0
      %1975 = vmatpush1.xpose.msra.mxu0 0.0
      %1976 = vmatprep.subr.mxu0 0.0
      %1977 = vmatpush1.xpose.msra.mxu0 0.0
      %1978 = vmatprep.subr.mxu0 0.0
      %1979 = vmatpush1.xpose.msra.mxu0 0.0
      %1980 = vmatprep.subr.mxu0 0.0
      %1981 = vmatpush1.xpose.msra.mxu0 0.0
      %1982 = vmatprep.subr.mxu0 0.0
      %1983 = vmatpush1.xpose.msra.mxu0 0.0
      %1984 = vmatprep.subr.mxu0 0.0
      %1985 = vmatpush1.xpose.msra.mxu0 0.0
      %1986 = vmatprep.subr.mxu0 0.0
      %1987 = vmatpush1.xpose.msra.mxu0 0.0
      %1988 = vmatprep.subr.mxu0 0.0
      %1989 = vmatpush1.xpose.msra.mxu0 0.0
      %1990 = vmatprep.subr.mxu0 0.0
      %1991 = vmatpush1.xpose.msra.mxu0 0.0
      %1992 = vmatprep.subr.mxu0 0.0
      %1993 = vmatpush1.xpose.msra.mxu0 0.0
      %1994 = vmatprep.subr.mxu0 0.0
      %1995 = vmatpush1.xpose.msra.mxu0 0.0
      %1996 = vmatprep.subr.mxu0 0.0
      %1997 = vmatpush1.xpose.msra.mxu0 0.0
      %1998 = vmatprep.subr.mxu0 0.0
      %1999 = vmatpush1.xpose.msra.mxu0 0.0
      %2000 = vmatprep.subr.mxu0 0.0
      %2001 = vmatpush1.xpose.msra.mxu0 0.0
      %2002 = vmatprep.subr.mxu0 0.0
      %2003 = vmatpush1.xpose.msra.mxu0 0.0
      %2004 = vmatprep.subr.mxu0 0.0
      %2005 = vmatpush1.xpose.msra.mxu0 0.0
      %2006 = vmatprep.subr.mxu0 0.0
      %2007 = vmatpush1.xpose.msra.mxu0 0.0
      %2008 = vmatprep.subr.mxu0 0.0
      %2009 = vmatpush1.xpose.msra.mxu0 0.0
      %2010 = vmatprep.subr.mxu0 0.0
      %2011 = vmatpush1.xpose.msra.mxu0 0.0
      %2012 = vmatprep.mubr.f32.mxu0 0.0
      %2013 = vmatmul.mubr.f32.gmra.mrb[0].mxu0 %v1940
      %v2014 = vpop.f32.mrb[0].mxu0
      %v2015 = vadd.f32 %v1361, %v2014
      %v2016 = vpop.f32.mrb[0].mxu0
      %2017 = vmatprep.mubr.f32.mxu0 0.0
      %2018 = vmatmul.mubr.f32.gmra.mrb[0].mxu0 %v1942
      %v2019 = vpop.f32.mrb[0].mxu0
      %v2020 = vadd.f32 %v1362, %v2019
      %v2021 = vpop.f32.mrb[0].mxu0
      %2022 = vdwg.mxu0
      %2023 = vrot.lane.b32.xlu0 %v1229, 96
      %v2024 = vpop.permute.xlu0 %2023
      %2025 = vrot.lane.b32.xlu0 %v1234, 96
      %v2026 = vpop.permute.xlu0 %2025
      %v2027 = vsel %vm1417, %v1229, 0
      %v2029 = vsel %vm1417, %v1234, 0
      %v2031 = vsel %vm1417, %v2024, 0
      %v2033 = vsel %vm1417, %v2026, 0
      %2035 = vmatprep.subr.mxu0 0.0
      %2036 = vmatpush1.xpose.msra.mxu0 %v2031
      %2037 = vmatprep.subr.mxu0 0.0
      %2038 = vmatpush1.xpose.msra.mxu0 %v2033
      %2039 = vmatprep.subr.mxu0 0.0
      %2040 = vmatpush1.xpose.msra.mxu0 0.0
      %2041 = vmatprep.subr.mxu0 0.0
      %2042 = vmatpush1.xpose.msra.mxu0 0.0
      %2043 = vmatprep.subr.mxu0 0.0
      %2044 = vmatpush1.xpose.msra.mxu0 0.0
      %2045 = vmatprep.subr.mxu0 0.0
      %2046 = vmatpush1.xpose.msra.mxu0 0.0
      %2047 = vmatprep.subr.mxu0 0.0
      %2048 = vmatpush1.xpose.msra.mxu0 0.0
      %2049 = vmatprep.subr.mxu0 0.0
      %2050 = vmatpush1.xpose.msra.mxu0 0.0
      %2051 = vmatprep.subr.mxu0 0.0
      %2052 = vmatpush1.xpose.msra.mxu0 0.0
      %2053 = vmatprep.subr.mxu0 0.0
      %2054 = vmatpush1.xpose.msra.mxu0 0.0
      %2055 = vmatprep.subr.mxu0 0.0
      %2056 = vmatpush1.xpose.msra.mxu0 0.0
      %2057 = vmatprep.subr.mxu0 0.0
      %2058 = vmatpush1.xpose.msra.mxu0 0.0
      %2059 = vmatprep.subr.mxu0 0.0
      %2060 = vmatpush1.xpose.msra.mxu0 0.0
      %2061 = vmatprep.subr.mxu0 0.0
      %2062 = vmatpush1.xpose.msra.mxu0 0.0
      %2063 = vmatprep.subr.mxu0 0.0
      %2064 = vmatpush1.xpose.msra.mxu0 0.0
      %2065 = vmatprep.subr.mxu0 0.0
      %2066 = vmatpush1.xpose.msra.mxu0 0.0
      %2067 = vmatprep.subr.mxu0 0.0
      %2068 = vmatpush1.xpose.msra.mxu0 0.0
      %2069 = vmatprep.subr.mxu0 0.0
      %2070 = vmatpush1.xpose.msra.mxu0 0.0
      %2071 = vmatprep.subr.mxu0 0.0
      %2072 = vmatpush1.xpose.msra.mxu0 0.0
      %2073 = vmatprep.subr.mxu0 0.0
      %2074 = vmatpush1.xpose.msra.mxu0 0.0
      %2075 = vmatprep.subr.mxu0 0.0
      %2076 = vmatpush1.xpose.msra.mxu0 0.0
      %2077 = vmatprep.subr.mxu0 0.0
      %2078 = vmatpush1.xpose.msra.mxu0 0.0
      %2079 = vmatprep.subr.mxu0 0.0
      %2080 = vmatpush1.xpose.msra.mxu0 0.0
      %2081 = vmatprep.subr.mxu0 0.0
      %2082 = vmatpush1.xpose.msra.mxu0 0.0
      %2083 = vmatprep.subr.mxu0 0.0
      %2084 = vmatpush1.xpose.msra.mxu0 0.0
      %2085 = vmatprep.subr.mxu0 0.0
      %2086 = vmatpush1.xpose.msra.mxu0 0.0
      %2087 = vmatprep.subr.mxu0 0.0
      %2088 = vmatpush1.xpose.msra.mxu0 0.0
      %2089 = vmatprep.subr.mxu0 0.0
      %2090 = vmatpush1.xpose.msra.mxu0 0.0
      %2091 = vmatprep.subr.mxu0 0.0
      %2092 = vmatpush1.xpose.msra.mxu0 0.0
      %2093 = vmatprep.subr.mxu0 0.0
      %2094 = vmatpush1.xpose.msra.mxu0 0.0
      %2095 = vmatprep.subr.mxu0 0.0
      %2096 = vmatpush1.xpose.msra.mxu0 0.0
      %2097 = vmatprep.subr.mxu0 0.0
      %2098 = vmatpush1.xpose.msra.mxu0 0.0
      %2099 = vmatprep.mubr.f32.mxu0 0.0
      %2100 = vmatmul.mubr.f32.gmra.mrb[0].mxu0 %v2027
      %v2101 = vpop.f32.mrb[0].mxu0
      %v2102 = vadd.f32 %v1363, %v2101
      %v2103 = vpop.f32.mrb[0].mxu0
      %2104 = vmatprep.mubr.f32.mxu0 0.0
      %2105 = vmatmul.mubr.f32.gmra.mrb[0].mxu0 %v2029
      %v2106 = vpop.f32.mrb[0].mxu0
      %v2107 = vadd.f32 %v1364, %v2106
      %v2108 = vpop.f32.mrb[0].mxu0
      %2109 = vdwg.mxu0
      %2110 = vrot.lane.b32.xlu0 %v1254, 96
      %v2111 = vpop.permute.xlu0 %2110
      %2112 = vrot.lane.b32.xlu0 %v1256, 96
      %v2113 = vpop.permute.xlu0 %2112
      %v2114 = vsel %vm1417, %v1254, 0
      %v2116 = vsel %vm1417, %v1256, 0
      %v2118 = vsel %vm1417, %v2111, 0
      %v2120 = vsel %vm1417, %v2113, 0
      %2122 = vmatprep.subr.mxu0 0.0
      %2123 = vmatpush1.xpose.msra.mxu0 %v2118
      %2124 = vmatprep.subr.mxu0 0.0
      %2125 = vmatpush1.xpose.msra.mxu0 %v2120
      %2126 = vmatprep.subr.mxu0 0.0
      %2127 = vmatpush1.xpose.msra.mxu0 0.0
      %2128 = vmatprep.subr.mxu0 0.0
      %2129 = vmatpush1.xpose.msra.mxu0 0.0
      %2130 = vmatprep.subr.mxu0 0.0
      %2131 = vmatpush1.xpose.msra.mxu0 0.0
      %2132 = vmatprep.subr.mxu0 0.0
      %2133 = vmatpush1.xpose.msra.mxu0 0.0
      %2134 = vmatprep.subr.mxu0 0.0
      %2135 = vmatpush1.xpose.msra.mxu0 0.0
      %2136 = vmatprep.subr.mxu0 0.0
      %2137 = vmatpush1.xpose.msra.mxu0 0.0
      %2138 = vmatprep.subr.mxu0 0.0
      %2139 = vmatpush1.xpose.msra.mxu0 0.0
      %2140 = vmatprep.subr.mxu0 0.0
      %2141 = vmatpush1.xpose.msra.mxu0 0.0
      %2142 = vmatprep.subr.mxu0 0.0
      %2143 = vmatpush1.xpose.msra.mxu0 0.0
      %2144 = vmatprep.subr.mxu0 0.0
      %2145 = vmatpush1.xpose.msra.mxu0 0.0
      %2146 = vmatprep.subr.mxu0 0.0
      %2147 = vmatpush1.xpose.msra.mxu0 0.0
      %2148 = vmatprep.subr.mxu0 0.0
      %2149 = vmatpush1.xpose.msra.mxu0 0.0
      %2150 = vmatprep.subr.mxu0 0.0
      %2151 = vmatpush1.xpose.msra.mxu0 0.0
      %2152 = vmatprep.subr.mxu0 0.0
      %2153 = vmatpush1.xpose.msra.mxu0 0.0
      %2154 = vmatprep.subr.mxu0 0.0
      %2155 = vmatpush1.xpose.msra.mxu0 0.0
      %2156 = vmatprep.subr.mxu0 0.0
      %2157 = vmatpush1.xpose.msra.mxu0 0.0
      %2158 = vmatprep.subr.mxu0 0.0
      %2159 = vmatpush1.xpose.msra.mxu0 0.0
      %2160 = vmatprep.subr.mxu0 0.0
      %2161 = vmatpush1.xpose.msra.mxu0 0.0
      %2162 = vmatprep.subr.mxu0 0.0
      %2163 = vmatpush1.xpose.msra.mxu0 0.0
      %2164 = vmatprep.subr.mxu0 0.0
      %2165 = vmatpush1.xpose.msra.mxu0 0.0
      %2166 = vmatprep.subr.mxu0 0.0
      %2167 = vmatpush1.xpose.msra.mxu0 0.0
      %2168 = vmatprep.subr.mxu0 0.0
      %2169 = vmatpush1.xpose.msra.mxu0 0.0
      %2170 = vmatprep.subr.mxu0 0.0
      %2171 = vmatpush1.xpose.msra.mxu0 0.0
      %2172 = vmatprep.subr.mxu0 0.0
      %2173 = vmatpush1.xpose.msra.mxu0 0.0
      %2174 = vmatprep.subr.mxu0 0.0
      %2175 = vmatpush1.xpose.msra.mxu0 0.0
      %2176 = vmatprep.subr.mxu0 0.0
      %2177 = vmatpush1.xpose.msra.mxu0 0.0
      %2178 = vmatprep.subr.mxu0 0.0
      %2179 = vmatpush1.xpose.msra.mxu0 0.0
      %2180 = vmatprep.subr.mxu0 0.0
      %2181 = vmatpush1.xpose.msra.mxu0 0.0
      %2182 = vmatprep.subr.mxu0 0.0
      %2183 = vmatpush1.xpose.msra.mxu0 0.0
      %2184 = vmatprep.subr.mxu0 0.0
      %2185 = vmatpush1.xpose.msra.mxu0 0.0
      %2186 = vmatprep.mubr.f32.mxu0 0.0
      %2187 = vmatmul.mubr.f32.gmra.mrb[0].mxu0 %v2114
      %v2188 = vpop.f32.mrb[0].mxu0
      %v2189 = vadd.f32 %v1365, %v2188
      %v2190 = vpop.f32.mrb[0].mxu0
      %2191 = vmatprep.mubr.f32.mxu0 0.0
      %2192 = vmatmul.mubr.f32.gmra.mrb[0].mxu0 %v2116
      %v2193 = vpop.f32.mrb[0].mxu0
      %v2194 = vadd.f32 %v1366, %v2193
      %v2195 = vpop.f32.mrb[0].mxu0
      %2196 = vdwg.mxu0
      %2197 = vrot.lane.b32.xlu0 %v1258, 96
      %v2198 = vpop.permute.xlu0 %2197
      %2199 = vrot.lane.b32.xlu0 %v1260, 96
      %v2200 = vpop.permute.xlu0 %2199
      %v2201 = vsel %vm1417, %v1258, 0
      %v2203 = vsel %vm1417, %v1260, 0
      %v2205 = vsel %vm1417, %v2198, 0
      %v2207 = vsel %vm1417, %v2200, 0
      %2209 = vmatprep.subr.mxu0 0.0
      %2210 = vmatpush1.xpose.msra.mxu0 %v2205
      %2211 = vmatprep.subr.mxu0 0.0
      %2212 = vmatpush1.xpose.msra.mxu0 %v2207
      %2213 = vmatprep.subr.mxu0 0.0
      %2214 = vmatpush1.xpose.msra.mxu0 0.0
      %2215 = vmatprep.subr.mxu0 0.0
      %2216 = vmatpush1.xpose.msra.mxu0 0.0
      %2217 = vmatprep.subr.mxu0 0.0
      %2218 = vmatpush1.xpose.msra.mxu0 0.0
      %2219 = vmatprep.subr.mxu0 0.0
      %2220 = vmatpush1.xpose.msra.mxu0 0.0
      %2221 = vmatprep.subr.mxu0 0.0
      %2222 = vmatpush1.xpose.msra.mxu0 0.0
      %2223 = vmatprep.subr.mxu0 0.0
      %2224 = vmatpush1.xpose.msra.mxu0 0.0
      %2225 = vmatprep.subr.mxu0 0.0
      %2226 = vmatpush1.xpose.msra.mxu0 0.0
      %2227 = vmatprep.subr.mxu0 0.0
      %2228 = vmatpush1.xpose.msra.mxu0 0.0
      %2229 = vmatprep.subr.mxu0 0.0
      %2230 = vmatpush1.xpose.msra.mxu0 0.0
      %2231 = vmatprep.subr.mxu0 0.0
      %2232 = vmatpush1.xpose.msra.mxu0 0.0
      %2233 = vmatprep.subr.mxu0 0.0
      %2234 = vmatpush1.xpose.msra.mxu0 0.0
      %2235 = vmatprep.subr.mxu0 0.0
      %2236 = vmatpush1.xpose.msra.mxu0 0.0
      %2237 = vmatprep.subr.mxu0 0.0
      %2238 = vmatpush1.xpose.msra.mxu0 0.0
      %2239 = vmatprep.subr.mxu0 0.0
      %2240 = vmatpush1.xpose.msra.mxu0 0.0
      %2241 = vmatprep.subr.mxu0 0.0
      %2242 = vmatpush1.xpose.msra.mxu0 0.0
      %2243 = vmatprep.subr.mxu0 0.0
      %2244 = vmatpush1.xpose.msra.mxu0 0.0
      %2245 = vmatprep.subr.mxu0 0.0
      %2246 = vmatpush1.xpose.msra.mxu0 0.0
      %2247 = vmatprep.subr.mxu0 0.0
      %2248 = vmatpush1.xpose.msra.mxu0 0.0
      %2249 = vmatprep.subr.mxu0 0.0
      %2250 = vmatpush1.xpose.msra.mxu0 0.0
      %2251 = vmatprep.subr.mxu0 0.0
      %2252 = vmatpush1.xpose.msra.mxu0 0.0
      %2253 = vmatprep.subr.mxu0 0.0
      %2254 = vmatpush1.xpose.msra.mxu0 0.0
      %2255 = vmatprep.subr.mxu0 0.0
      %2256 = vmatpush1.xpose.msra.mxu0 0.0
      %2257 = vmatprep.subr.mxu0 0.0
      %2258 = vmatpush1.xpose.msra.mxu0 0.0
      %2259 = vmatprep.subr.mxu0 0.0
      %2260 = vmatpush1.xpose.msra.mxu0 0.0
      %2261 = vmatprep.subr.mxu0 0.0
      %2262 = vmatpush1.xpose.msra.mxu0 0.0
      %2263 = vmatprep.subr.mxu0 0.0
      %2264 = vmatpush1.xpose.msra.mxu0 0.0
      %2265 = vmatprep.subr.mxu0 0.0
      %2266 = vmatpush1.xpose.msra.mxu0 0.0
      %2267 = vmatprep.subr.mxu0 0.0
      %2268 = vmatpush1.xpose.msra.mxu0 0.0
      %2269 = vmatprep.subr.mxu0 0.0
      %2270 = vmatpush1.xpose.msra.mxu0 0.0
      %2271 = vmatprep.subr.mxu0 0.0
      %2272 = vmatpush1.xpose.msra.mxu0 0.0
      %2273 = vmatprep.mubr.f32.mxu0 0.0
      %2274 = vmatmul.mubr.f32.gmra.mrb[0].mxu0 %v2201
      %v2275 = vpop.f32.mrb[0].mxu0
      %v2276 = vadd.f32 %v1367, %v2275
      %v2277 = vpop.f32.mrb[0].mxu0
      %2278 = vmatprep.mubr.f32.mxu0 0.0
      %2279 = vmatmul.mubr.f32.gmra.mrb[0].mxu0 %v2203
      %v2280 = vpop.f32.mrb[0].mxu0
      %v2281 = vadd.f32 %v1368, %v2280
      %v2282 = vpop.f32.mrb[0].mxu0
      %2283 = vdwg.mxu0
      %2284 = vrot.lane.b32.xlu0 %v1262, 96
      %v2285 = vpop.permute.xlu0 %2284
      %2286 = vrot.lane.b32.xlu0 %v1264, 96
      %v2287 = vpop.permute.xlu0 %2286
      %v2288 = vsel %vm1417, %v1262, 0
      %v2290 = vsel %vm1417, %v1264, 0
      %v2292 = vsel %vm1417, %v2285, 0
      %v2294 = vsel %vm1417, %v2287, 0
      %2296 = vmatprep.subr.mxu0 0.0
      %2297 = vmatpush1.xpose.msra.mxu0 %v2292
      %2298 = vmatprep.subr.mxu0 0.0
      %2299 = vmatpush1.xpose.msra.mxu0 %v2294
      %2300 = vmatprep.subr.mxu0 0.0
      %2301 = vmatpush1.xpose.msra.mxu0 0.0
      %2302 = vmatprep.subr.mxu0 0.0
      %2303 = vmatpush1.xpose.msra.mxu0 0.0
      %2304 = vmatprep.subr.mxu0 0.0
      %2305 = vmatpush1.xpose.msra.mxu0 0.0
      %2306 = vmatprep.subr.mxu0 0.0
      %2307 = vmatpush1.xpose.msra.mxu0 0.0
      %2308 = vmatprep.subr.mxu0 0.0
      %2309 = vmatpush1.xpose.msra.mxu0 0.0
      %2310 = vmatprep.subr.mxu0 0.0
      %2311 = vmatpush1.xpose.msra.mxu0 0.0
      %2312 = vmatprep.subr.mxu0 0.0
      %2313 = vmatpush1.xpose.msra.mxu0 0.0
      %2314 = vmatprep.subr.mxu0 0.0
      %2315 = vmatpush1.xpose.msra.mxu0 0.0
      %2316 = vmatprep.subr.mxu0 0.0
      %2317 = vmatpush1.xpose.msra.mxu0 0.0
      %2318 = vmatprep.subr.mxu0 0.0
      %2319 = vmatpush1.xpose.msra.mxu0 0.0
      %2320 = vmatprep.subr.mxu0 0.0
      %2321 = vmatpush1.xpose.msra.mxu0 0.0
      %2322 = vmatprep.subr.mxu0 0.0
      %2323 = vmatpush1.xpose.msra.mxu0 0.0
      %2324 = vmatprep.subr.mxu0 0.0
      %2325 = vmatpush1.xpose.msra.mxu0 0.0
      %2326 = vmatprep.subr.mxu0 0.0
      %2327 = vmatpush1.xpose.msra.mxu0 0.0
      %2328 = vmatprep.subr.mxu0 0.0
      %2329 = vmatpush1.xpose.msra.mxu0 0.0
      %2330 = vmatprep.subr.mxu0 0.0
      %2331 = vmatpush1.xpose.msra.mxu0 0.0
      %2332 = vmatprep.subr.mxu0 0.0
      %2333 = vmatpush1.xpose.msra.mxu0 0.0
      %2334 = vmatprep.subr.mxu0 0.0
      %2335 = vmatpush1.xpose.msra.mxu0 0.0
      %2336 = vmatprep.subr.mxu0 0.0
      %2337 = vmatpush1.xpose.msra.mxu0 0.0
      %2338 = vmatprep.subr.mxu0 0.0
      %2339 = vmatpush1.xpose.msra.mxu0 0.0
      %2340 = vmatprep.subr.mxu0 0.0
      %2341 = vmatpush1.xpose.msra.mxu0 0.0
      %2342 = vmatprep.subr.mxu0 0.0
      %2343 = vmatpush1.xpose.msra.mxu0 0.0
      %2344 = vmatprep.subr.mxu0 0.0
      %2345 = vmatpush1.xpose.msra.mxu0 0.0
      %2346 = vmatprep.subr.mxu0 0.0
      %2347 = vmatpush1.xpose.msra.mxu0 0.0
      %2348 = vmatprep.subr.mxu0 0.0
      %2349 = vmatpush1.xpose.msra.mxu0 0.0
      %2350 = vmatprep.subr.mxu0 0.0
      %2351 = vmatpush1.xpose.msra.mxu0 0.0
      %2352 = vmatprep.subr.mxu0 0.0
      %2353 = vmatpush1.xpose.msra.mxu0 0.0
      %2354 = vmatprep.subr.mxu0 0.0
      %2355 = vmatpush1.xpose.msra.mxu0 0.0
      %2356 = vmatprep.subr.mxu0 0.0
      %2357 = vmatpush1.xpose.msra.mxu0 0.0
      %2358 = vmatprep.subr.mxu0 0.0
      %2359 = vmatpush1.xpose.msra.mxu0 0.0
      %2360 = vmatprep.mubr.f32.mxu0 0.0
      %2361 = vmatmul.mubr.f32.gmra.mrb[0].mxu0 %v2288
      %v2362 = vpop.f32.mrb[0].mxu0
      %v2363 = vadd.f32 %v1369, %v2362
      %v2364 = vpop.f32.mrb[0].mxu0
      %2365 = vmatprep.mubr.f32.mxu0 0.0
      %2366 = vmatmul.mubr.f32.gmra.mrb[0].mxu0 %v2290
      %v2367 = vpop.f32.mrb[0].mxu0
      %v2368 = vadd.f32 %v1370, %v2367
      %v2369 = vpop.f32.mrb[0].mxu0
      %2370 = vdwg.mxu0
      %2371 = vrot.lane.b32.xlu0 %v1266, 96
      %v2372 = vpop.permute.xlu0 %2371
      %2373 = vrot.lane.b32.xlu0 %v1268, 96
      %v2374 = vpop.permute.xlu0 %2373
      %v2375 = vsel %vm1417, %v1266, 0
      %v2377 = vsel %vm1417, %v1268, 0
      %v2379 = vsel %vm1417, %v2372, 0
      %v2381 = vsel %vm1417, %v2374, 0
      %2383 = vmatprep.subr.mxu0 0.0
      %2384 = vmatpush1.xpose.msra.mxu0 %v2379
      %2385 = vmatprep.subr.mxu0 0.0
      %2386 = vmatpush1.xpose.msra.mxu0 %v2381
      %2387 = vmatprep.subr.mxu0 0.0
      %2388 = vmatpush1.xpose.msra.mxu0 0.0
      %2389 = vmatprep.subr.mxu0 0.0
      %2390 = vmatpush1.xpose.msra.mxu0 0.0
      %2391 = vmatprep.subr.mxu0 0.0
      %2392 = vmatpush1.xpose.msra.mxu0 0.0
      %2393 = vmatprep.subr.mxu0 0.0
      %2394 = vmatpush1.xpose.msra.mxu0 0.0
      %2395 = vmatprep.subr.mxu0 0.0
      %2396 = vmatpush1.xpose.msra.mxu0 0.0
      %2397 = vmatprep.subr.mxu0 0.0
      %2398 = vmatpush1.xpose.msra.mxu0 0.0
      %2399 = vmatprep.subr.mxu0 0.0
      %2400 = vmatpush1.xpose.msra.mxu0 0.0
      %2401 = vmatprep.subr.mxu0 0.0
      %2402 = vmatpush1.xpose.msra.mxu0 0.0
      %2403 = vmatprep.subr.mxu0 0.0
      %2404 = vmatpush1.xpose.msra.mxu0 0.0
      %2405 = vmatprep.subr.mxu0 0.0
      %2406 = vmatpush1.xpose.msra.mxu0 0.0
      %2407 = vmatprep.subr.mxu0 0.0
      %2408 = vmatpush1.xpose.msra.mxu0 0.0
      %2409 = vmatprep.subr.mxu0 0.0
      %2410 = vmatpush1.xpose.msra.mxu0 0.0
      %2411 = vmatprep.subr.mxu0 0.0
      %2412 = vmatpush1.xpose.msra.mxu0 0.0
      %2413 = vmatprep.subr.mxu0 0.0
      %2414 = vmatpush1.xpose.msra.mxu0 0.0
      %2415 = vmatprep.subr.mxu0 0.0
      %2416 = vmatpush1.xpose.msra.mxu0 0.0
      %2417 = vmatprep.subr.mxu0 0.0
      %2418 = vmatpush1.xpose.msra.mxu0 0.0
      %2419 = vmatprep.subr.mxu0 0.0
      %2420 = vmatpush1.xpose.msra.mxu0 0.0
      %2421 = vmatprep.subr.mxu0 0.0
      %2422 = vmatpush1.xpose.msra.mxu0 0.0
      %2423 = vmatprep.subr.mxu0 0.0
      %2424 = vmatpush1.xpose.msra.mxu0 0.0
      %2425 = vmatprep.subr.mxu0 0.0
      %2426 = vmatpush1.xpose.msra.mxu0 0.0
      %2427 = vmatprep.subr.mxu0 0.0
      %2428 = vmatpush1.xpose.msra.mxu0 0.0
      %2429 = vmatprep.subr.mxu0 0.0
      %2430 = vmatpush1.xpose.msra.mxu0 0.0
      %2431 = vmatprep.subr.mxu0 0.0
      %2432 = vmatpush1.xpose.msra.mxu0 0.0
      %2433 = vmatprep.subr.mxu0 0.0
      %2434 = vmatpush1.xpose.msra.mxu0 0.0
      %2435 = vmatprep.subr.mxu0 0.0
      %2436 = vmatpush1.xpose.msra.mxu0 0.0
      %2437 = vmatprep.subr.mxu0 0.0
      %2438 = vmatpush1.xpose.msra.mxu0 0.0
      %2439 = vmatprep.subr.mxu0 0.0
      %2440 = vmatpush1.xpose.msra.mxu0 0.0
      %2441 = vmatprep.subr.mxu0 0.0
      %2442 = vmatpush1.xpose.msra.mxu0 0.0
      %2443 = vmatprep.subr.mxu0 0.0
      %2444 = vmatpush1.xpose.msra.mxu0 0.0
      %2445 = vmatprep.subr.mxu0 0.0
      %2446 = vmatpush1.xpose.msra.mxu0 0.0
      %2447 = vmatprep.mubr.f32.mxu0 0.0
      %2448 = vmatmul.mubr.f32.gmra.mrb[0].mxu0 %v2375
      %v2449 = vpop.f32.mrb[0].mxu0
      %v2450 = vadd.f32 %v1371, %v2449
      %v2451 = vpop.f32.mrb[0].mxu0
      %2452 = vmatprep.mubr.f32.mxu0 0.0
      %2453 = vmatmul.mubr.f32.gmra.mrb[0].mxu0 %v2377
      %v2454 = vpop.f32.mrb[0].mxu0
      %v2455 = vadd.f32 %v1372, %v2454
      %v2456 = vpop.f32.mrb[0].mxu0
      %2457 = vdwg.mxu0
      %2458 = vrot.lane.b32.xlu0 %v1270, 96
      %v2459 = vpop.permute.xlu0 %2458
      %2460 = vrot.lane.b32.xlu0 %v1272, 96
      %v2461 = vpop.permute.xlu0 %2460
      %v2462 = vsel %vm1417, %v1270, 0
      %v2464 = vsel %vm1417, %v1272, 0
      %v2466 = vsel %vm1417, %v2459, 0
      %v2468 = vsel %vm1417, %v2461, 0
      %2470 = vmatprep.subr.mxu0 0.0
      %2471 = vmatpush1.xpose.msra.mxu0 %v2466
      %2472 = vmatprep.subr.mxu0 0.0
      %2473 = vmatpush1.xpose.msra.mxu0 %v2468
      %2474 = vmatprep.subr.mxu0 0.0
      %2475 = vmatpush1.xpose.msra.mxu0 0.0
      %2476 = vmatprep.subr.mxu0 0.0
      %2477 = vmatpush1.xpose.msra.mxu0 0.0
      %2478 = vmatprep.subr.mxu0 0.0
      %2479 = vmatpush1.xpose.msra.mxu0 0.0
      %2480 = vmatprep.subr.mxu0 0.0
      %2481 = vmatpush1.xpose.msra.mxu0 0.0
      %2482 = vmatprep.subr.mxu0 0.0
      %2483 = vmatpush1.xpose.msra.mxu0 0.0
      %2484 = vmatprep.subr.mxu0 0.0
      %2485 = vmatpush1.xpose.msra.mxu0 0.0
      %2486 = vmatprep.subr.mxu0 0.0
      %2487 = vmatpush1.xpose.msra.mxu0 0.0
      %2488 = vmatprep.subr.mxu0 0.0
      %2489 = vmatpush1.xpose.msra.mxu0 0.0
      %2490 = vmatprep.subr.mxu0 0.0
      %2491 = vmatpush1.xpose.msra.mxu0 0.0
      %2492 = vmatprep.subr.mxu0 0.0
      %2493 = vmatpush1.xpose.msra.mxu0 0.0
      %2494 = vmatprep.subr.mxu0 0.0
      %2495 = vmatpush1.xpose.msra.mxu0 0.0
      %2496 = vmatprep.subr.mxu0 0.0
      %2497 = vmatpush1.xpose.msra.mxu0 0.0
      %2498 = vmatprep.subr.mxu0 0.0
      %2499 = vmatpush1.xpose.msra.mxu0 0.0
      %2500 = vmatprep.subr.mxu0 0.0
      %2501 = vmatpush1.xpose.msra.mxu0 0.0
      %2502 = vmatprep.subr.mxu0 0.0
      %2503 = vmatpush1.xpose.msra.mxu0 0.0
      %2504 = vmatprep.subr.mxu0 0.0
      %2505 = vmatpush1.xpose.msra.mxu0 0.0
      %2506 = vmatprep.subr.mxu0 0.0
      %2507 = vmatpush1.xpose.msra.mxu0 0.0
      %2508 = vmatprep.subr.mxu0 0.0
      %2509 = vmatpush1.xpose.msra.mxu0 0.0
      %2510 = vmatprep.subr.mxu0 0.0
      %2511 = vmatpush1.xpose.msra.mxu0 0.0
      %2512 = vmatprep.subr.mxu0 0.0
      %2513 = vmatpush1.xpose.msra.mxu0 0.0
      %2514 = vmatprep.subr.mxu0 0.0
      %2515 = vmatpush1.xpose.msra.mxu0 0.0
      %2516 = vmatprep.subr.mxu0 0.0
      %2517 = vmatpush1.xpose.msra.mxu0 0.0
      %2518 = vmatprep.subr.mxu0 0.0
      %2519 = vmatpush1.xpose.msra.mxu0 0.0
      %2520 = vmatprep.subr.mxu0 0.0
      %2521 = vmatpush1.xpose.msra.mxu0 0.0
      %2522 = vmatprep.subr.mxu0 0.0
      %2523 = vmatpush1.xpose.msra.mxu0 0.0
      %2524 = vmatprep.subr.mxu0 0.0
      %2525 = vmatpush1.xpose.msra.mxu0 0.0
      %2526 = vmatprep.subr.mxu0 0.0
      %2527 = vmatpush1.xpose.msra.mxu0 0.0
      %2528 = vmatprep.subr.mxu0 0.0
      %2529 = vmatpush1.xpose.msra.mxu0 0.0
      %2530 = vmatprep.subr.mxu0 0.0
      %2531 = vmatpush1.xpose.msra.mxu0 0.0
      %2532 = vmatprep.subr.mxu0 0.0
      %2533 = vmatpush1.xpose.msra.mxu0 0.0
      %2534 = vmatprep.mubr.f32.mxu0 0.0
      %2535 = vmatmul.mubr.f32.gmra.mrb[0].mxu0 %v2462
      %v2536 = vpop.f32.mrb[0].mxu0
      %v2537 = vadd.f32 %v1373, %v2536
      %v2538 = vpop.f32.mrb[0].mxu0
      %2539 = vmatprep.mubr.f32.mxu0 0.0
      %2540 = vmatmul.mubr.f32.gmra.mrb[0].mxu0 %v2464
      %v2541 = vpop.f32.mrb[0].mxu0
      %v2542 = vadd.f32 %v1374, %v2541
      %v2543 = vpop.f32.mrb[0].mxu0
      %2544 = vdwg.mxu0
      %2545 = vrot.lane.b32.xlu0 %v1274, 96
      %v2546 = vpop.permute.xlu0 %2545
      %2547 = vrot.lane.b32.xlu0 %v1276, 96
      %v2548 = vpop.permute.xlu0 %2547
      %v2549 = vsel %vm1417, %v1274, 0
      %v2551 = vsel %vm1417, %v1276, 0
      %v2553 = vsel %vm1417, %v2546, 0
      %v2555 = vsel %vm1417, %v2548, 0
      %2557 = vmatprep.subr.mxu0 0.0
      %2558 = vmatpush1.xpose.msra.mxu0 %v2553
      %2559 = vmatprep.subr.mxu0 0.0
      %2560 = vmatpush1.xpose.msra.mxu0 %v2555
      %2561 = vmatprep.subr.mxu0 0.0
      %2562 = vmatpush1.xpose.msra.mxu0 0.0
      %2563 = vmatprep.subr.mxu0 0.0
      %2564 = vmatpush1.xpose.msra.mxu0 0.0
      %2565 = vmatprep.subr.mxu0 0.0
      %2566 = vmatpush1.xpose.msra.mxu0 0.0
      %2567 = vmatprep.subr.mxu0 0.0
      %2568 = vmatpush1.xpose.msra.mxu0 0.0
      %2569 = vmatprep.subr.mxu0 0.0
      %2570 = vmatpush1.xpose.msra.mxu0 0.0
      %2571 = vmatprep.subr.mxu0 0.0
      %2572 = vmatpush1.xpose.msra.mxu0 0.0
      %2573 = vmatprep.subr.mxu0 0.0
      %2574 = vmatpush1.xpose.msra.mxu0 0.0
      %2575 = vmatprep.subr.mxu0 0.0
      %2576 = vmatpush1.xpose.msra.mxu0 0.0
      %2577 = vmatprep.subr.mxu0 0.0
      %2578 = vmatpush1.xpose.msra.mxu0 0.0
      %2579 = vmatprep.subr.mxu0 0.0
      %2580 = vmatpush1.xpose.msra.mxu0 0.0
      %2581 = vmatprep.subr.mxu0 0.0
      %2582 = vmatpush1.xpose.msra.mxu0 0.0
      %2583 = vmatprep.subr.mxu0 0.0
      %2584 = vmatpush1.xpose.msra.mxu0 0.0
      %2585 = vmatprep.subr.mxu0 0.0
      %2586 = vmatpush1.xpose.msra.mxu0 0.0
      %2587 = vmatprep.subr.mxu0 0.0
      %2588 = vmatpush1.xpose.msra.mxu0 0.0
      %2589 = vmatprep.subr.mxu0 0.0
      %2590 = vmatpush1.xpose.msra.mxu0 0.0
      %2591 = vmatprep.subr.mxu0 0.0
      %2592 = vmatpush1.xpose.msra.mxu0 0.0
      %2593 = vmatprep.subr.mxu0 0.0
      %2594 = vmatpush1.xpose.msra.mxu0 0.0
      %2595 = vmatprep.subr.mxu0 0.0
      %2596 = vmatpush1.xpose.msra.mxu0 0.0
      %2597 = vmatprep.subr.mxu0 0.0
      %2598 = vmatpush1.xpose.msra.mxu0 0.0
      %2599 = vmatprep.subr.mxu0 0.0
      %2600 = vmatpush1.xpose.msra.mxu0 0.0
      %2601 = vmatprep.subr.mxu0 0.0
      %2602 = vmatpush1.xpose.msra.mxu0 0.0
      %2603 = vmatprep.subr.mxu0 0.0
      %2604 = vmatpush1.xpose.msra.mxu0 0.0
      %2605 = vmatprep.subr.mxu0 0.0
      %2606 = vmatpush1.xpose.msra.mxu0 0.0
      %2607 = vmatprep.subr.mxu0 0.0
      %2608 = vmatpush1.xpose.msra.mxu0 0.0
      %2609 = vmatprep.subr.mxu0 0.0
      %2610 = vmatpush1.xpose.msra.mxu0 0.0
      %2611 = vmatprep.subr.mxu0 0.0
      %2612 = vmatpush1.xpose.msra.mxu0 0.0
      %2613 = vmatprep.subr.mxu0 0.0
      %2614 = vmatpush1.xpose.msra.mxu0 0.0
      %2615 = vmatprep.subr.mxu0 0.0
      %2616 = vmatpush1.xpose.msra.mxu0 0.0
      %2617 = vmatprep.subr.mxu0 0.0
      %2618 = vmatpush1.xpose.msra.mxu0 0.0
      %2619 = vmatprep.subr.mxu0 0.0
      %2620 = vmatpush1.xpose.msra.mxu0 0.0
      %2621 = vmatprep.mubr.f32.mxu0 0.0
      %2622 = vmatmul.mubr.f32.gmra.mrb[0].mxu0 %v2549
      %v2623 = vpop.f32.mrb[0].mxu0
      %v2624 = vadd.f32 %v1375, %v2623
      %v2625 = vpop.f32.mrb[0].mxu0
      %2626 = vmatprep.mubr.f32.mxu0 0.0
      %2627 = vmatmul.mubr.f32.gmra.mrb[0].mxu0 %v2551
      %v2628 = vpop.f32.mrb[0].mxu0
      %v2629 = vadd.f32 %v1376, %v2628
      %v2630 = vpop.f32.mrb[0].mxu0
      %2631 = vdwg.mxu0
      %2632 = vrot.lane.b32.xlu0 %v1278, 96
      %v2633 = vpop.permute.xlu0 %2632
      %2634 = vrot.lane.b32.xlu0 %v1280, 96
      %v2635 = vpop.permute.xlu0 %2634
      %v2636 = vsel %vm1417, %v1278, 0
      %v2638 = vsel %vm1417, %v1280, 0
      %v2640 = vsel %vm1417, %v2633, 0
      %v2642 = vsel %vm1417, %v2635, 0
      %2644 = vmatprep.subr.mxu0 0.0
      %2645 = vmatpush1.xpose.msra.mxu0 %v2640
      %2646 = vmatprep.subr.mxu0 0.0
      %2647 = vmatpush1.xpose.msra.mxu0 %v2642
      %2648 = vmatprep.subr.mxu0 0.0
      %2649 = vmatpush1.xpose.msra.mxu0 0.0
      %2650 = vmatprep.subr.mxu0 0.0
      %2651 = vmatpush1.xpose.msra.mxu0 0.0
      %2652 = vmatprep.subr.mxu0 0.0
      %2653 = vmatpush1.xpose.msra.mxu0 0.0
      %2654 = vmatprep.subr.mxu0 0.0
      %2655 = vmatpush1.xpose.msra.mxu0 0.0
      %2656 = vmatprep.subr.mxu0 0.0
      %2657 = vmatpush1.xpose.msra.mxu0 0.0
      %2658 = vmatprep.subr.mxu0 0.0
      %2659 = vmatpush1.xpose.msra.mxu0 0.0
      %2660 = vmatprep.subr.mxu0 0.0
      %2661 = vmatpush1.xpose.msra.mxu0 0.0
      %2662 = vmatprep.subr.mxu0 0.0
      %2663 = vmatpush1.xpose.msra.mxu0 0.0
      %2664 = vmatprep.subr.mxu0 0.0
      %2665 = vmatpush1.xpose.msra.mxu0 0.0
      %2666 = vmatprep.subr.mxu0 0.0
      %2667 = vmatpush1.xpose.msra.mxu0 0.0
      %2668 = vmatprep.subr.mxu0 0.0
      %2669 = vmatpush1.xpose.msra.mxu0 0.0
      %2670 = vmatprep.subr.mxu0 0.0
      %2671 = vmatpush1.xpose.msra.mxu0 0.0
      %2672 = vmatprep.subr.mxu0 0.0
      %2673 = vmatpush1.xpose.msra.mxu0 0.0
      %2674 = vmatprep.subr.mxu0 0.0
      %2675 = vmatpush1.xpose.msra.mxu0 0.0
      %2676 = vmatprep.subr.mxu0 0.0
      %2677 = vmatpush1.xpose.msra.mxu0 0.0
      %2678 = vmatprep.subr.mxu0 0.0
      %2679 = vmatpush1.xpose.msra.mxu0 0.0
      %2680 = vmatprep.subr.mxu0 0.0
      %2681 = vmatpush1.xpose.msra.mxu0 0.0
      %2682 = vmatprep.subr.mxu0 0.0
      %2683 = vmatpush1.xpose.msra.mxu0 0.0
      %2684 = vmatprep.subr.mxu0 0.0
      %2685 = vmatpush1.xpose.msra.mxu0 0.0
      %2686 = vmatprep.subr.mxu0 0.0
      %2687 = vmatpush1.xpose.msra.mxu0 0.0
      %2688 = vmatprep.subr.mxu0 0.0
      %2689 = vmatpush1.xpose.msra.mxu0 0.0
      %2690 = vmatprep.subr.mxu0 0.0
      %2691 = vmatpush1.xpose.msra.mxu0 0.0
      %2692 = vmatprep.subr.mxu0 0.0
      %2693 = vmatpush1.xpose.msra.mxu0 0.0
      %2694 = vmatprep.subr.mxu0 0.0
      %2695 = vmatpush1.xpose.msra.mxu0 0.0
      %2696 = vmatprep.subr.mxu0 0.0
      %2697 = vmatpush1.xpose.msra.mxu0 0.0
      %2698 = vmatprep.subr.mxu0 0.0
      %2699 = vmatpush1.xpose.msra.mxu0 0.0
      %2700 = vmatprep.subr.mxu0 0.0
      %2701 = vmatpush1.xpose.msra.mxu0 0.0
      %2702 = vmatprep.subr.mxu0 0.0
      %2703 = vmatpush1.xpose.msra.mxu0 0.0
      %2704 = vmatprep.subr.mxu0 0.0
      %2705 = vmatpush1.xpose.msra.mxu0 0.0
      %2706 = vmatprep.subr.mxu0 0.0
      %2707 = vmatpush1.xpose.msra.mxu0 0.0
      %2708 = vmatprep.mubr.f32.mxu0 0.0
      %2709 = vmatmul.mubr.f32.gmra.mrb[0].mxu0 %v2636
      %v2710 = vpop.f32.mrb[0].mxu0
      %v2711 = vadd.f32 %v1377, %v2710
      %v2712 = vpop.f32.mrb[0].mxu0
      %2713 = vmatprep.mubr.f32.mxu0 0.0
      %2714 = vmatmul.mubr.f32.gmra.mrb[0].mxu0 %v2638
      %v2715 = vpop.f32.mrb[0].mxu0
      %v2716 = vadd.f32 %v1378, %v2715
      %v2717 = vpop.f32.mrb[0].mxu0
      %2718 = vdwg.mxu0
      %2719 = vrot.lane.b32.xlu0 %v1282, 96
      %v2720 = vpop.permute.xlu0 %2719
      %2721 = vrot.lane.b32.xlu0 %v1284, 96
      %v2722 = vpop.permute.xlu0 %2721
      %v2723 = vsel %vm1417, %v1282, 0
      %v2725 = vsel %vm1417, %v1284, 0
      %v2727 = vsel %vm1417, %v2720, 0
      %v2729 = vsel %vm1417, %v2722, 0
      %2731 = vmatprep.subr.mxu0 0.0
      %2732 = vmatpush1.xpose.msra.mxu0 %v2727
      %2733 = vmatprep.subr.mxu0 0.0
      %2734 = vmatpush1.xpose.msra.mxu0 %v2729
      %2735 = vmatprep.subr.mxu0 0.0
      %2736 = vmatpush1.xpose.msra.mxu0 0.0
      %2737 = vmatprep.subr.mxu0 0.0
      %2738 = vmatpush1.xpose.msra.mxu0 0.0
      %2739 = vmatprep.subr.mxu0 0.0
      %2740 = vmatpush1.xpose.msra.mxu0 0.0
      %2741 = vmatprep.subr.mxu0 0.0
      %2742 = vmatpush1.xpose.msra.mxu0 0.0
      %2743 = vmatprep.subr.mxu0 0.0
      %2744 = vmatpush1.xpose.msra.mxu0 0.0
      %2745 = vmatprep.subr.mxu0 0.0
      %2746 = vmatpush1.xpose.msra.mxu0 0.0
      %2747 = vmatprep.subr.mxu0 0.0
      %2748 = vmatpush1.xpose.msra.mxu0 0.0
      %2749 = vmatprep.subr.mxu0 0.0
      %2750 = vmatpush1.xpose.msra.mxu0 0.0
      %2751 = vmatprep.subr.mxu0 0.0
      %2752 = vmatpush1.xpose.msra.mxu0 0.0
      %2753 = vmatprep.subr.mxu0 0.0
      %2754 = vmatpush1.xpose.msra.mxu0 0.0
      %2755 = vmatprep.subr.mxu0 0.0
      %2756 = vmatpush1.xpose.msra.mxu0 0.0
      %2757 = vmatprep.subr.mxu0 0.0
      %2758 = vmatpush1.xpose.msra.mxu0 0.0
      %2759 = vmatprep.subr.mxu0 0.0
      %2760 = vmatpush1.xpose.msra.mxu0 0.0
      %2761 = vmatprep.subr.mxu0 0.0
      %2762 = vmatpush1.xpose.msra.mxu0 0.0
      %2763 = vmatprep.subr.mxu0 0.0
      %2764 = vmatpush1.xpose.msra.mxu0 0.0
      %2765 = vmatprep.subr.mxu0 0.0
      %2766 = vmatpush1.xpose.msra.mxu0 0.0
      %2767 = vmatprep.subr.mxu0 0.0
      %2768 = vmatpush1.xpose.msra.mxu0 0.0
      %2769 = vmatprep.subr.mxu0 0.0
      %2770 = vmatpush1.xpose.msra.mxu0 0.0
      %2771 = vmatprep.subr.mxu0 0.0
      %2772 = vmatpush1.xpose.msra.mxu0 0.0
      %2773 = vmatprep.subr.mxu0 0.0
      %2774 = vmatpush1.xpose.msra.mxu0 0.0
      %2775 = vmatprep.subr.mxu0 0.0
      %2776 = vmatpush1.xpose.msra.mxu0 0.0
      %2777 = vmatprep.subr.mxu0 0.0
      %2778 = vmatpush1.xpose.msra.mxu0 0.0
      %2779 = vmatprep.subr.mxu0 0.0
      %2780 = vmatpush1.xpose.msra.mxu0 0.0
      %2781 = vmatprep.subr.mxu0 0.0
      %2782 = vmatpush1.xpose.msra.mxu0 0.0
      %2783 = vmatprep.subr.mxu0 0.0
      %2784 = vmatpush1.xpose.msra.mxu0 0.0
      %2785 = vmatprep.subr.mxu0 0.0
      %2786 = vmatpush1.xpose.msra.mxu0 0.0
      %2787 = vmatprep.subr.mxu0 0.0
      %2788 = vmatpush1.xpose.msra.mxu0 0.0
      %2789 = vmatprep.subr.mxu0 0.0
      %2790 = vmatpush1.xpose.msra.mxu0 0.0
      %2791 = vmatprep.subr.mxu0 0.0
      %2792 = vmatpush1.xpose.msra.mxu0 0.0
      %2793 = vmatprep.subr.mxu0 0.0
      %2794 = vmatpush1.xpose.msra.mxu0 0.0
      %2795 = vmatprep.mubr.f32.mxu0 0.0
      %2796 = vmatmul.mubr.f32.gmra.mrb[0].mxu0 %v2723
      %v2797 = vpop.f32.mrb[0].mxu0
      %v2798 = vadd.f32 %v1379, %v2797
      %v2799 = vpop.f32.mrb[0].mxu0
      %2800 = vmatprep.mubr.f32.mxu0 0.0
      %2801 = vmatmul.mubr.f32.gmra.mrb[0].mxu0 %v2725
      %v2802 = vpop.f32.mrb[0].mxu0
      %v2803 = vadd.f32 %v1380, %v2802
      %v2804 = vpop.f32.mrb[0].mxu0
      %2805 = vdwg.mxu0
      %2806 = vrot.lane.b32.xlu0 %v1286, 96
      %v2807 = vpop.permute.xlu0 %2806
      %2808 = vrot.lane.b32.xlu0 %v1288, 96
      %v2809 = vpop.permute.xlu0 %2808
      %v2810 = vsel %vm1417, %v1286, 0
      %v2812 = vsel %vm1417, %v1288, 0
      %v2814 = vsel %vm1417, %v2807, 0
      %v2816 = vsel %vm1417, %v2809, 0
      %2818 = vmatprep.subr.mxu0 0.0
      %2819 = vmatpush1.xpose.msra.mxu0 %v2814
      %2820 = vmatprep.subr.mxu0 0.0
      %2821 = vmatpush1.xpose.msra.mxu0 %v2816
      %2822 = vmatprep.subr.mxu0 0.0
      %2823 = vmatpush1.xpose.msra.mxu0 0.0
      %2824 = vmatprep.subr.mxu0 0.0
      %2825 = vmatpush1.xpose.msra.mxu0 0.0
      %2826 = vmatprep.subr.mxu0 0.0
      %2827 = vmatpush1.xpose.msra.mxu0 0.0
      %2828 = vmatprep.subr.mxu0 0.0
      %2829 = vmatpush1.xpose.msra.mxu0 0.0
      %2830 = vmatprep.subr.mxu0 0.0
      %2831 = vmatpush1.xpose.msra.mxu0 0.0
      %2832 = vmatprep.subr.mxu0 0.0
      %2833 = vmatpush1.xpose.msra.mxu0 0.0
      %2834 = vmatprep.subr.mxu0 0.0
      %2835 = vmatpush1.xpose.msra.mxu0 0.0
      %2836 = vmatprep.subr.mxu0 0.0
      %2837 = vmatpush1.xpose.msra.mxu0 0.0
      %2838 = vmatprep.subr.mxu0 0.0
      %2839 = vmatpush1.xpose.msra.mxu0 0.0
      %2840 = vmatprep.subr.mxu0 0.0
      %2841 = vmatpush1.xpose.msra.mxu0 0.0
      %2842 = vmatprep.subr.mxu0 0.0
      %2843 = vmatpush1.xpose.msra.mxu0 0.0
      %2844 = vmatprep.subr.mxu0 0.0
      %2845 = vmatpush1.xpose.msra.mxu0 0.0
      %2846 = vmatprep.subr.mxu0 0.0
      %2847 = vmatpush1.xpose.msra.mxu0 0.0
      %2848 = vmatprep.subr.mxu0 0.0
      %2849 = vmatpush1.xpose.msra.mxu0 0.0
      %2850 = vmatprep.subr.mxu0 0.0
      %2851 = vmatpush1.xpose.msra.mxu0 0.0
      %2852 = vmatprep.subr.mxu0 0.0
      %2853 = vmatpush1.xpose.msra.mxu0 0.0
      %2854 = vmatprep.subr.mxu0 0.0
      %2855 = vmatpush1.xpose.msra.mxu0 0.0
      %2856 = vmatprep.subr.mxu0 0.0
      %2857 = vmatpush1.xpose.msra.mxu0 0.0
      %2858 = vmatprep.subr.mxu0 0.0
      %2859 = vmatpush1.xpose.msra.mxu0 0.0
      %2860 = vmatprep.subr.mxu0 0.0
      %2861 = vmatpush1.xpose.msra.mxu0 0.0
      %2862 = vmatprep.subr.mxu0 0.0
      %2863 = vmatpush1.xpose.msra.mxu0 0.0
      %2864 = vmatprep.subr.mxu0 0.0
      %2865 = vmatpush1.xpose.msra.mxu0 0.0
      %2866 = vmatprep.subr.mxu0 0.0
      %2867 = vmatpush1.xpose.msra.mxu0 0.0
      %2868 = vmatprep.subr.mxu0 0.0
      %2869 = vmatpush1.xpose.msra.mxu0 0.0
      %2870 = vmatprep.subr.mxu0 0.0
      %2871 = vmatpush1.xpose.msra.mxu0 0.0
      %2872 = vmatprep.subr.mxu0 0.0
      %2873 = vmatpush1.xpose.msra.mxu0 0.0
      %2874 = vmatprep.subr.mxu0 0.0
      %2875 = vmatpush1.xpose.msra.mxu0 0.0
      %2876 = vmatprep.subr.mxu0 0.0
      %2877 = vmatpush1.xpose.msra.mxu0 0.0
      %2878 = vmatprep.subr.mxu0 0.0
      %2879 = vmatpush1.xpose.msra.mxu0 0.0
      %2880 = vmatprep.subr.mxu0 0.0
      %2881 = vmatpush1.xpose.msra.mxu0 0.0
      %2882 = vmatprep.mubr.f32.mxu0 0.0
      %2883 = vmatmul.mubr.f32.gmra.mrb[0].mxu0 %v2810
      %v2884 = vpop.f32.mrb[0].mxu0
      %v2885 = vadd.f32 %v1381, %v2884
      %v2886 = vpop.f32.mrb[0].mxu0
      %2887 = vmatprep.mubr.f32.mxu0 0.0
      %2888 = vmatmul.mubr.f32.gmra.mrb[0].mxu0 %v2812
      %v2889 = vpop.f32.mrb[0].mxu0
      %v2890 = vadd.f32 %v1382, %v2889
      %v2891 = vpop.f32.mrb[0].mxu0
      %2892 = vdwg.mxu0
      %2893 = vrot.lane.b32.xlu0 %v1290, 96
      %v2894 = vpop.permute.xlu0 %2893
      %2895 = vrot.lane.b32.xlu0 %v1292, 96
      %v2896 = vpop.permute.xlu0 %2895
      %v2897 = vsel %vm1417, %v1290, 0
      %v2899 = vsel %vm1417, %v1292, 0
      %v2901 = vsel %vm1417, %v2894, 0
      %v2903 = vsel %vm1417, %v2896, 0
      %2905 = vmatprep.subr.mxu0 0.0
      %2906 = vmatpush1.xpose.msra.mxu0 %v2901
      %2907 = vmatprep.subr.mxu0 0.0
      %2908 = vmatpush1.xpose.msra.mxu0 %v2903
      %2909 = vmatprep.subr.mxu0 0.0
      %2910 = vmatpush1.xpose.msra.mxu0 0.0
      %2911 = vmatprep.subr.mxu0 0.0
      %2912 = vmatpush1.xpose.msra.mxu0 0.0
      %2913 = vmatprep.subr.mxu0 0.0
      %2914 = vmatpush1.xpose.msra.mxu0 0.0
      %2915 = vmatprep.subr.mxu0 0.0
      %2916 = vmatpush1.xpose.msra.mxu0 0.0
      %2917 = vmatprep.subr.mxu0 0.0
      %2918 = vmatpush1.xpose.msra.mxu0 0.0
      %2919 = vmatprep.subr.mxu0 0.0
      %2920 = vmatpush1.xpose.msra.mxu0 0.0
      %2921 = vmatprep.subr.mxu0 0.0
      %2922 = vmatpush1.xpose.msra.mxu0 0.0
      %2923 = vmatprep.subr.mxu0 0.0
      %2924 = vmatpush1.xpose.msra.mxu0 0.0
      %2925 = vmatprep.subr.mxu0 0.0
      %2926 = vmatpush1.xpose.msra.mxu0 0.0
      %2927 = vmatprep.subr.mxu0 0.0
      %2928 = vmatpush1.xpose.msra.mxu0 0.0
      %2929 = vmatprep.subr.mxu0 0.0
      %2930 = vmatpush1.xpose.msra.mxu0 0.0
      %2931 = vmatprep.subr.mxu0 0.0
      %2932 = vmatpush1.xpose.msra.mxu0 0.0
      %2933 = vmatprep.subr.mxu0 0.0
      %2934 = vmatpush1.xpose.msra.mxu0 0.0
      %2935 = vmatprep.subr.mxu0 0.0
      %2936 = vmatpush1.xpose.msra.mxu0 0.0
      %2937 = vmatprep.subr.mxu0 0.0
      %2938 = vmatpush1.xpose.msra.mxu0 0.0
      %2939 = vmatprep.subr.mxu0 0.0
      %2940 = vmatpush1.xpose.msra.mxu0 0.0
      %2941 = vmatprep.subr.mxu0 0.0
      %2942 = vmatpush1.xpose.msra.mxu0 0.0
      %2943 = vmatprep.subr.mxu0 0.0
      %2944 = vmatpush1.xpose.msra.mxu0 0.0
      %2945 = vmatprep.subr.mxu0 0.0
      %2946 = vmatpush1.xpose.msra.mxu0 0.0
      %2947 = vmatprep.subr.mxu0 0.0
      %2948 = vmatpush1.xpose.msra.mxu0 0.0
      %2949 = vmatprep.subr.mxu0 0.0
      %2950 = vmatpush1.xpose.msra.mxu0 0.0
      %2951 = vmatprep.subr.mxu0 0.0
      %2952 = vmatpush1.xpose.msra.mxu0 0.0
      %2953 = vmatprep.subr.mxu0 0.0
      %2954 = vmatpush1.xpose.msra.mxu0 0.0
      %2955 = vmatprep.subr.mxu0 0.0
      %2956 = vmatpush1.xpose.msra.mxu0 0.0
      %2957 = vmatprep.subr.mxu0 0.0
      %2958 = vmatpush1.xpose.msra.mxu0 0.0
      %2959 = vmatprep.subr.mxu0 0.0
      %2960 = vmatpush1.xpose.msra.mxu0 0.0
      %2961 = vmatprep.subr.mxu0 0.0
      %2962 = vmatpush1.xpose.msra.mxu0 0.0
      %2963 = vmatprep.subr.mxu0 0.0
      %2964 = vmatpush1.xpose.msra.mxu0 0.0
      %2965 = vmatprep.subr.mxu0 0.0
      %2966 = vmatpush1.xpose.msra.mxu0 0.0
      %2967 = vmatprep.subr.mxu0 0.0
      %2968 = vmatpush1.xpose.msra.mxu0 0.0
      %2969 = vmatprep.mubr.f32.mxu0 0.0
      %2970 = vmatmul.mubr.f32.gmra.mrb[0].mxu0 %v2897
      %v2971 = vpop.f32.mrb[0].mxu0
      %v2972 = vadd.f32 %v1383, %v2971
      %v2973 = vpop.f32.mrb[0].mxu0
      %2974 = vmatprep.mubr.f32.mxu0 0.0
      %2975 = vmatmul.mubr.f32.gmra.mrb[0].mxu0 %v2899
      %v2976 = vpop.f32.mrb[0].mxu0
      %v2977 = vadd.f32 %v1384, %v2976
      %v2978 = vpop.f32.mrb[0].mxu0
      %2979 = vdwg.mxu0
      %2980 = vrot.lane.b32.xlu0 %v1294, 96
      %v2981 = vpop.permute.xlu0 %2980
      %2982 = vrot.lane.b32.xlu0 %v1296, 96
      %v2983 = vpop.permute.xlu0 %2982
      %v2984 = vsel %vm1417, %v1294, 0
      %v2986 = vsel %vm1417, %v1296, 0
      %v2988 = vsel %vm1417, %v2981, 0
      %v2990 = vsel %vm1417, %v2983, 0
      %2992 = vmatprep.subr.mxu0 0.0
      %2993 = vmatpush1.xpose.msra.mxu0 %v2988
      %2994 = vmatprep.subr.mxu0 0.0
      %2995 = vmatpush1.xpose.msra.mxu0 %v2990
      %2996 = vmatprep.subr.mxu0 0.0
      %2997 = vmatpush1.xpose.msra.mxu0 0.0
      %2998 = vmatprep.subr.mxu0 0.0
      %2999 = vmatpush1.xpose.msra.mxu0 0.0
      %3000 = vmatprep.subr.mxu0 0.0
      %3001 = vmatpush1.xpose.msra.mxu0 0.0
      %3002 = vmatprep.subr.mxu0 0.0
      %3003 = vmatpush1.xpose.msra.mxu0 0.0
      %3004 = vmatprep.subr.mxu0 0.0
      %3005 = vmatpush1.xpose.msra.mxu0 0.0
      %3006 = vmatprep.subr.mxu0 0.0
      %3007 = vmatpush1.xpose.msra.mxu0 0.0
      %3008 = vmatprep.subr.mxu0 0.0
      %3009 = vmatpush1.xpose.msra.mxu0 0.0
      %3010 = vmatprep.subr.mxu0 0.0
      %3011 = vmatpush1.xpose.msra.mxu0 0.0
      %3012 = vmatprep.subr.mxu0 0.0
      %3013 = vmatpush1.xpose.msra.mxu0 0.0
      %3014 = vmatprep.subr.mxu0 0.0
      %3015 = vmatpush1.xpose.msra.mxu0 0.0
      %3016 = vmatprep.subr.mxu0 0.0
      %3017 = vmatpush1.xpose.msra.mxu0 0.0
      %3018 = vmatprep.subr.mxu0 0.0
      %3019 = vmatpush1.xpose.msra.mxu0 0.0
      %3020 = vmatprep.subr.mxu0 0.0
      %3021 = vmatpush1.xpose.msra.mxu0 0.0
      %3022 = vmatprep.subr.mxu0 0.0
      %3023 = vmatpush1.xpose.msra.mxu0 0.0
      %3024 = vmatprep.subr.mxu0 0.0
      %3025 = vmatpush1.xpose.msra.mxu0 0.0
      %3026 = vmatprep.subr.mxu0 0.0
      %3027 = vmatpush1.xpose.msra.mxu0 0.0
      %3028 = vmatprep.subr.mxu0 0.0
      %3029 = vmatpush1.xpose.msra.mxu0 0.0
      %3030 = vmatprep.subr.mxu0 0.0
      %3031 = vmatpush1.xpose.msra.mxu0 0.0
      %3032 = vmatprep.subr.mxu0 0.0
      %3033 = vmatpush1.xpose.msra.mxu0 0.0
      %3034 = vmatprep.subr.mxu0 0.0
      %3035 = vmatpush1.xpose.msra.mxu0 0.0
      %3036 = vmatprep.subr.mxu0 0.0
      %3037 = vmatpush1.xpose.msra.mxu0 0.0
      %3038 = vmatprep.subr.mxu0 0.0
      %3039 = vmatpush1.xpose.msra.mxu0 0.0
      %3040 = vmatprep.subr.mxu0 0.0
      %3041 = vmatpush1.xpose.msra.mxu0 0.0
      %3042 = vmatprep.subr.mxu0 0.0
      %3043 = vmatpush1.xpose.msra.mxu0 0.0
      %3044 = vmatprep.subr.mxu0 0.0
      %3045 = vmatpush1.xpose.msra.mxu0 0.0
      %3046 = vmatprep.subr.mxu0 0.0
      %3047 = vmatpush1.xpose.msra.mxu0 0.0
      %3048 = vmatprep.subr.mxu0 0.0
      %3049 = vmatpush1.xpose.msra.mxu0 0.0
      %3050 = vmatprep.subr.mxu0 0.0
      %3051 = vmatpush1.xpose.msra.mxu0 0.0
      %3052 = vmatprep.subr.mxu0 0.0
      %3053 = vmatpush1.xpose.msra.mxu0 0.0
      %3054 = vmatprep.subr.mxu0 0.0
      %3055 = vmatpush1.xpose.msra.mxu0 0.0
      %3056 = vmatprep.mubr.f32.mxu0 0.0
      %3057 = vmatmul.mubr.f32.gmra.mrb[0].mxu0 %v2984
      %v3058 = vpop.f32.mrb[0].mxu0
      %v3059 = vadd.f32 %v1385, %v3058
      %v3060 = vpop.f32.mrb[0].mxu0
      %3061 = vmatprep.mubr.f32.mxu0 0.0
      %3062 = vmatmul.mubr.f32.gmra.mrb[0].mxu0 %v2986
      %v3063 = vpop.f32.mrb[0].mxu0
      %v3064 = vadd.f32 %v1386, %v3063
      %v3065 = vpop.f32.mrb[0].mxu0
      %3066 = vdwg.mxu0
      %3067 = vrot.lane.b32.xlu0 %v1298, 96
      %v3068 = vpop.permute.xlu0 %3067
      %3069 = vrot.lane.b32.xlu0 %v1300, 96
      %v3070 = vpop.permute.xlu0 %3069
      %v3071 = vsel %vm1417, %v1298, 0
      %v3073 = vsel %vm1417, %v1300, 0
      %v3075 = vsel %vm1417, %v3068, 0
      %v3077 = vsel %vm1417, %v3070, 0
      %3079 = vmatprep.subr.mxu0 0.0
      %3080 = vmatpush1.xpose.msra.mxu0 %v3075
      %3081 = vmatprep.subr.mxu0 0.0
      %3082 = vmatpush1.xpose.msra.mxu0 %v3077
      %3083 = vmatprep.subr.mxu0 0.0
      %3084 = vmatpush1.xpose.msra.mxu0 0.0
      %3085 = vmatprep.subr.mxu0 0.0
      %3086 = vmatpush1.xpose.msra.mxu0 0.0
      %3087 = vmatprep.subr.mxu0 0.0
      %3088 = vmatpush1.xpose.msra.mxu0 0.0
      %3089 = vmatprep.subr.mxu0 0.0
      %3090 = vmatpush1.xpose.msra.mxu0 0.0
      %3091 = vmatprep.subr.mxu0 0.0
      %3092 = vmatpush1.xpose.msra.mxu0 0.0
      %3093 = vmatprep.subr.mxu0 0.0
      %3094 = vmatpush1.xpose.msra.mxu0 0.0
      %3095 = vmatprep.subr.mxu0 0.0
      %3096 = vmatpush1.xpose.msra.mxu0 0.0
      %3097 = vmatprep.subr.mxu0 0.0
      %3098 = vmatpush1.xpose.msra.mxu0 0.0
      %3099 = vmatprep.subr.mxu0 0.0
      %3100 = vmatpush1.xpose.msra.mxu0 0.0
      %3101 = vmatprep.subr.mxu0 0.0
      %3102 = vmatpush1.xpose.msra.mxu0 0.0
      %3103 = vmatprep.subr.mxu0 0.0
      %3104 = vmatpush1.xpose.msra.mxu0 0.0
      %3105 = vmatprep.subr.mxu0 0.0
      %3106 = vmatpush1.xpose.msra.mxu0 0.0
      %3107 = vmatprep.subr.mxu0 0.0
      %3108 = vmatpush1.xpose.msra.mxu0 0.0
      %3109 = vmatprep.subr.mxu0 0.0
      %3110 = vmatpush1.xpose.msra.mxu0 0.0
      %3111 = vmatprep.subr.mxu0 0.0
      %3112 = vmatpush1.xpose.msra.mxu0 0.0
      %3113 = vmatprep.subr.mxu0 0.0
      %3114 = vmatpush1.xpose.msra.mxu0 0.0
      %3115 = vmatprep.subr.mxu0 0.0
      %3116 = vmatpush1.xpose.msra.mxu0 0.0
      %3117 = vmatprep.subr.mxu0 0.0
      %3118 = vmatpush1.xpose.msra.mxu0 0.0
      %3119 = vmatprep.subr.mxu0 0.0
      %3120 = vmatpush1.xpose.msra.mxu0 0.0
      %3121 = vmatprep.subr.mxu0 0.0
      %3122 = vmatpush1.xpose.msra.mxu0 0.0
      %3123 = vmatprep.subr.mxu0 0.0
      %3124 = vmatpush1.xpose.msra.mxu0 0.0
      %3125 = vmatprep.subr.mxu0 0.0
      %3126 = vmatpush1.xpose.msra.mxu0 0.0
      %3127 = vmatprep.subr.mxu0 0.0
      %3128 = vmatpush1.xpose.msra.mxu0 0.0
      %3129 = vmatprep.subr.mxu0 0.0
      %3130 = vmatpush1.xpose.msra.mxu0 0.0
      %3131 = vmatprep.subr.mxu0 0.0
      %3132 = vmatpush1.xpose.msra.mxu0 0.0
      %3133 = vmatprep.subr.mxu0 0.0
      %3134 = vmatpush1.xpose.msra.mxu0 0.0
      %3135 = vmatprep.subr.mxu0 0.0
      %3136 = vmatpush1.xpose.msra.mxu0 0.0
      %3137 = vmatprep.subr.mxu0 0.0
      %3138 = vmatpush1.xpose.msra.mxu0 0.0
      %3139 = vmatprep.subr.mxu0 0.0
      %3140 = vmatpush1.xpose.msra.mxu0 0.0
      %3141 = vmatprep.subr.mxu0 0.0
      %3142 = vmatpush1.xpose.msra.mxu0 0.0
      %3143 = vmatprep.mubr.f32.mxu0 0.0
      %3144 = vmatmul.mubr.f32.gmra.mrb[0].mxu0 %v3071
      %v3145 = vpop.f32.mrb[0].mxu0
      %v3146 = vadd.f32 %v1387, %v3145
      %v3147 = vpop.f32.mrb[0].mxu0
      %3148 = vmatprep.mubr.f32.mxu0 0.0
      %3149 = vmatmul.mubr.f32.gmra.mrb[0].mxu0 %v3073
      %v3150 = vpop.f32.mrb[0].mxu0
      %v3151 = vadd.f32 %v1388, %v3150
      %v3152 = vpop.f32.mrb[0].mxu0
      %3153 = vdwg.mxu0
      %3154 = vrot.lane.b32.xlu0 %v1302, 96
      %v3155 = vpop.permute.xlu0 %3154
      %3156 = vrot.lane.b32.xlu0 %v1304, 96
      %v3157 = vpop.permute.xlu0 %3156
      %v3158 = vsel %vm1417, %v1302, 0
      %v3160 = vsel %vm1417, %v1304, 0
      %v3162 = vsel %vm1417, %v3155, 0
      %v3164 = vsel %vm1417, %v3157, 0
      %3166 = vmatprep.subr.mxu0 0.0
      %3167 = vmatpush1.xpose.msra.mxu0 %v3162
      %3168 = vmatprep.subr.mxu0 0.0
      %3169 = vmatpush1.xpose.msra.mxu0 %v3164
      %3170 = vmatprep.subr.mxu0 0.0
      %3171 = vmatpush1.xpose.msra.mxu0 0.0
      %3172 = vmatprep.subr.mxu0 0.0
      %3173 = vmatpush1.xpose.msra.mxu0 0.0
      %3174 = vmatprep.subr.mxu0 0.0
      %3175 = vmatpush1.xpose.msra.mxu0 0.0
      %3176 = vmatprep.subr.mxu0 0.0
      %3177 = vmatpush1.xpose.msra.mxu0 0.0
      %3178 = vmatprep.subr.mxu0 0.0
      %3179 = vmatpush1.xpose.msra.mxu0 0.0
      %3180 = vmatprep.subr.mxu0 0.0
      %3181 = vmatpush1.xpose.msra.mxu0 0.0
      %3182 = vmatprep.subr.mxu0 0.0
      %3183 = vmatpush1.xpose.msra.mxu0 0.0
      %3184 = vmatprep.subr.mxu0 0.0
      %3185 = vmatpush1.xpose.msra.mxu0 0.0
      %3186 = vmatprep.subr.mxu0 0.0
      %3187 = vmatpush1.xpose.msra.mxu0 0.0
      %3188 = vmatprep.subr.mxu0 0.0
      %3189 = vmatpush1.xpose.msra.mxu0 0.0
      %3190 = vmatprep.subr.mxu0 0.0
      %3191 = vmatpush1.xpose.msra.mxu0 0.0
      %3192 = vmatprep.subr.mxu0 0.0
      %3193 = vmatpush1.xpose.msra.mxu0 0.0
      %3194 = vmatprep.subr.mxu0 0.0
      %3195 = vmatpush1.xpose.msra.mxu0 0.0
      %3196 = vmatprep.subr.mxu0 0.0
      %3197 = vmatpush1.xpose.msra.mxu0 0.0
      %3198 = vmatprep.subr.mxu0 0.0
      %3199 = vmatpush1.xpose.msra.mxu0 0.0
      %3200 = vmatprep.subr.mxu0 0.0
      %3201 = vmatpush1.xpose.msra.mxu0 0.0
      %3202 = vmatprep.subr.mxu0 0.0
      %3203 = vmatpush1.xpose.msra.mxu0 0.0
      %3204 = vmatprep.subr.mxu0 0.0
      %3205 = vmatpush1.xpose.msra.mxu0 0.0
      %3206 = vmatprep.subr.mxu0 0.0
      %3207 = vmatpush1.xpose.msra.mxu0 0.0
      %3208 = vmatprep.subr.mxu0 0.0
      %3209 = vmatpush1.xpose.msra.mxu0 0.0
      %3210 = vmatprep.subr.mxu0 0.0
      %3211 = vmatpush1.xpose.msra.mxu0 0.0
      %3212 = vmatprep.subr.mxu0 0.0
      %3213 = vmatpush1.xpose.msra.mxu0 0.0
      %3214 = vmatprep.subr.mxu0 0.0
      %3215 = vmatpush1.xpose.msra.mxu0 0.0
      %3216 = vmatprep.subr.mxu0 0.0
      %3217 = vmatpush1.xpose.msra.mxu0 0.0
      %3218 = vmatprep.subr.mxu0 0.0
      %3219 = vmatpush1.xpose.msra.mxu0 0.0
      %3220 = vmatprep.subr.mxu0 0.0
      %3221 = vmatpush1.xpose.msra.mxu0 0.0
      %3222 = vmatprep.subr.mxu0 0.0
      %3223 = vmatpush1.xpose.msra.mxu0 0.0
      %3224 = vmatprep.subr.mxu0 0.0
      %3225 = vmatpush1.xpose.msra.mxu0 0.0
      %3226 = vmatprep.subr.mxu0 0.0
      %3227 = vmatpush1.xpose.msra.mxu0 0.0
      %3228 = vmatprep.subr.mxu0 0.0
      %3229 = vmatpush1.xpose.msra.mxu0 0.0
      %3230 = vmatprep.mubr.f32.mxu0 0.0
      %3231 = vmatmul.mubr.f32.gmra.mrb[0].mxu0 %v3158
      %v3232 = vpop.f32.mrb[0].mxu0
      %v3233 = vadd.f32 %v1389, %v3232
      %v3234 = vpop.f32.mrb[0].mxu0
      %3235 = vmatprep.mubr.f32.mxu0 0.0
      %3236 = vmatmul.mubr.f32.gmra.mrb[0].mxu0 %v3160
      %v3237 = vpop.f32.mrb[0].mxu0
      %v3238 = vadd.f32 %v1390, %v3237
      %v3239 = vpop.f32.mrb[0].mxu0
      %3240 = vdwg.mxu0
      %3241 = vrot.lane.b32.xlu0 %v1306, 96
      %v3242 = vpop.permute.xlu0 %3241
      %3243 = vrot.lane.b32.xlu0 %v1308, 96
      %v3244 = vpop.permute.xlu0 %3243
      %v3245 = vsel %vm1417, %v1306, 0
      %v3247 = vsel %vm1417, %v1308, 0
      %v3249 = vsel %vm1417, %v3242, 0
      %v3251 = vsel %vm1417, %v3244, 0
      %3253 = vmatprep.subr.mxu0 0.0
      %3254 = vmatpush1.xpose.msra.mxu0 %v3249
      %3255 = vmatprep.subr.mxu0 0.0
      %3256 = vmatpush1.xpose.msra.mxu0 %v3251
      %3257 = vmatprep.subr.mxu0 0.0
      %3258 = vmatpush1.xpose.msra.mxu0 0.0
      %3259 = vmatprep.subr.mxu0 0.0
      %3260 = vmatpush1.xpose.msra.mxu0 0.0
      %3261 = vmatprep.subr.mxu0 0.0
      %3262 = vmatpush1.xpose.msra.mxu0 0.0
      %3263 = vmatprep.subr.mxu0 0.0
      %3264 = vmatpush1.xpose.msra.mxu0 0.0
      %3265 = vmatprep.subr.mxu0 0.0
      %3266 = vmatpush1.xpose.msra.mxu0 0.0
      %3267 = vmatprep.subr.mxu0 0.0
      %3268 = vmatpush1.xpose.msra.mxu0 0.0
      %3269 = vmatprep.subr.mxu0 0.0
      %3270 = vmatpush1.xpose.msra.mxu0 0.0
      %3271 = vmatprep.subr.mxu0 0.0
      %3272 = vmatpush1.xpose.msra.mxu0 0.0
      %3273 = vmatprep.subr.mxu0 0.0
      %3274 = vmatpush1.xpose.msra.mxu0 0.0
      %3275 = vmatprep.subr.mxu0 0.0
      %3276 = vmatpush1.xpose.msra.mxu0 0.0
      %3277 = vmatprep.subr.mxu0 0.0
      %3278 = vmatpush1.xpose.msra.mxu0 0.0
      %3279 = vmatprep.subr.mxu0 0.0
      %3280 = vmatpush1.xpose.msra.mxu0 0.0
      %3281 = vmatprep.subr.mxu0 0.0
      %3282 = vmatpush1.xpose.msra.mxu0 0.0
      %3283 = vmatprep.subr.mxu0 0.0
      %3284 = vmatpush1.xpose.msra.mxu0 0.0
      %3285 = vmatprep.subr.mxu0 0.0
      %3286 = vmatpush1.xpose.msra.mxu0 0.0
      %3287 = vmatprep.subr.mxu0 0.0
      %3288 = vmatpush1.xpose.msra.mxu0 0.0
      %3289 = vmatprep.subr.mxu0 0.0
      %3290 = vmatpush1.xpose.msra.mxu0 0.0
      %3291 = vmatprep.subr.mxu0 0.0
      %3292 = vmatpush1.xpose.msra.mxu0 0.0
      %3293 = vmatprep.subr.mxu0 0.0
      %3294 = vmatpush1.xpose.msra.mxu0 0.0
      %3295 = vmatprep.subr.mxu0 0.0
      %3296 = vmatpush1.xpose.msra.mxu0 0.0
      %3297 = vmatprep.subr.mxu0 0.0
      %3298 = vmatpush1.xpose.msra.mxu0 0.0
      %3299 = vmatprep.subr.mxu0 0.0
      %3300 = vmatpush1.xpose.msra.mxu0 0.0
      %3301 = vmatprep.subr.mxu0 0.0
      %3302 = vmatpush1.xpose.msra.mxu0 0.0
      %3303 = vmatprep.subr.mxu0 0.0
      %3304 = vmatpush1.xpose.msra.mxu0 0.0
      %3305 = vmatprep.subr.mxu0 0.0
      %3306 = vmatpush1.xpose.msra.mxu0 0.0
      %3307 = vmatprep.subr.mxu0 0.0
      %3308 = vmatpush1.xpose.msra.mxu0 0.0
      %3309 = vmatprep.subr.mxu0 0.0
      %3310 = vmatpush1.xpose.msra.mxu0 0.0
      %3311 = vmatprep.subr.mxu0 0.0
      %3312 = vmatpush1.xpose.msra.mxu0 0.0
      %3313 = vmatprep.subr.mxu0 0.0
      %3314 = vmatpush1.xpose.msra.mxu0 0.0
      %3315 = vmatprep.subr.mxu0 0.0
      %3316 = vmatpush1.xpose.msra.mxu0 0.0
      %3317 = vmatprep.mubr.f32.mxu0 0.0
      %3318 = vmatmul.mubr.f32.gmra.mrb[0].mxu0 %v3245
      %v3319 = vpop.f32.mrb[0].mxu0
      %v3320 = vadd.f32 %v1391, %v3319
      %v3321 = vpop.f32.mrb[0].mxu0
      %3322 = vmatprep.mubr.f32.mxu0 0.0
      %3323 = vmatmul.mubr.f32.gmra.mrb[0].mxu0 %v3247
      %v3324 = vpop.f32.mrb[0].mxu0
      %v3325 = vadd.f32 %v1392, %v3324
      %v3326 = vpop.f32.mrb[0].mxu0
      %3327 = vdwg.mxu0
      %3328 = vrot.lane.b32.xlu0 %v1310, 96
      %v3329 = vpop.permute.xlu0 %3328
      %3330 = vrot.lane.b32.xlu0 %v1312, 96
      %v3331 = vpop.permute.xlu0 %3330
      %v3332 = vsel %vm1417, %v1310, 0
      %v3334 = vsel %vm1417, %v1312, 0
      %v3336 = vsel %vm1417, %v3329, 0
      %v3338 = vsel %vm1417, %v3331, 0
      %3340 = vmatprep.subr.mxu0 0.0
      %3341 = vmatpush1.xpose.msra.mxu0 %v3336
      %3342 = vmatprep.subr.mxu0 0.0
      %3343 = vmatpush1.xpose.msra.mxu0 %v3338
      %3344 = vmatprep.subr.mxu0 0.0
      %3345 = vmatpush1.xpose.msra.mxu0 0.0
      %3346 = vmatprep.subr.mxu0 0.0
      %3347 = vmatpush1.xpose.msra.mxu0 0.0
      %3348 = vmatprep.subr.mxu0 0.0
      %3349 = vmatpush1.xpose.msra.mxu0 0.0
      %3350 = vmatprep.subr.mxu0 0.0
      %3351 = vmatpush1.xpose.msra.mxu0 0.0
      %3352 = vmatprep.subr.mxu0 0.0
      %3353 = vmatpush1.xpose.msra.mxu0 0.0
      %3354 = vmatprep.subr.mxu0 0.0
      %3355 = vmatpush1.xpose.msra.mxu0 0.0
      %3356 = vmatprep.subr.mxu0 0.0
      %3357 = vmatpush1.xpose.msra.mxu0 0.0
      %3358 = vmatprep.subr.mxu0 0.0
      %3359 = vmatpush1.xpose.msra.mxu0 0.0
      %3360 = vmatprep.subr.mxu0 0.0
      %3361 = vmatpush1.xpose.msra.mxu0 0.0
      %3362 = vmatprep.subr.mxu0 0.0
      %3363 = vmatpush1.xpose.msra.mxu0 0.0
      %3364 = vmatprep.subr.mxu0 0.0
      %3365 = vmatpush1.xpose.msra.mxu0 0.0
      %3366 = vmatprep.subr.mxu0 0.0
      %3367 = vmatpush1.xpose.msra.mxu0 0.0
      %3368 = vmatprep.subr.mxu0 0.0
      %3369 = vmatpush1.xpose.msra.mxu0 0.0
      %3370 = vmatprep.subr.mxu0 0.0
      %3371 = vmatpush1.xpose.msra.mxu0 0.0
      %3372 = vmatprep.subr.mxu0 0.0
      %3373 = vmatpush1.xpose.msra.mxu0 0.0
      %3374 = vmatprep.subr.mxu0 0.0
      %3375 = vmatpush1.xpose.msra.mxu0 0.0
      %3376 = vmatprep.subr.mxu0 0.0
      %3377 = vmatpush1.xpose.msra.mxu0 0.0
      %3378 = vmatprep.subr.mxu0 0.0
      %3379 = vmatpush1.xpose.msra.mxu0 0.0
      %3380 = vmatprep.subr.mxu0 0.0
      %3381 = vmatpush1.xpose.msra.mxu0 0.0
      %3382 = vmatprep.subr.mxu0 0.0
      %3383 = vmatpush1.xpose.msra.mxu0 0.0
      %3384 = vmatprep.subr.mxu0 0.0
      %3385 = vmatpush1.xpose.msra.mxu0 0.0
      %3386 = vmatprep.subr.mxu0 0.0
      %3387 = vmatpush1.xpose.msra.mxu0 0.0
      %3388 = vmatprep.subr.mxu0 0.0
      %3389 = vmatpush1.xpose.msra.mxu0 0.0
      %3390 = vmatprep.subr.mxu0 0.0
      %3391 = vmatpush1.xpose.msra.mxu0 0.0
      %3392 = vmatprep.subr.mxu0 0.0
      %3393 = vmatpush1.xpose.msra.mxu0 0.0
      %3394 = vmatprep.subr.mxu0 0.0
      %3395 = vmatpush1.xpose.msra.mxu0 0.0
      %3396 = vmatprep.subr.mxu0 0.0
      %3397 = vmatpush1.xpose.msra.mxu0 0.0
      %3398 = vmatprep.subr.mxu0 0.0
      %3399 = vmatpush1.xpose.msra.mxu0 0.0
      %3400 = vmatprep.subr.mxu0 0.0
      %3401 = vmatpush1.xpose.msra.mxu0 0.0
      %3402 = vmatprep.subr.mxu0 0.0
      %3403 = vmatpush1.xpose.msra.mxu0 0.0
      %3404 = vmatprep.mubr.f32.mxu0 0.0
      %3405 = vmatmul.mubr.f32.gmra.mrb[0].mxu0 %v3332
      %v3406 = vpop.f32.mrb[0].mxu0
      %v3407 = vadd.f32 %v1393, %v3406
      %v3408 = vpop.f32.mrb[0].mxu0
      %3409 = vmatprep.mubr.f32.mxu0 0.0
      %3410 = vmatmul.mubr.f32.gmra.mrb[0].mxu0 %v3334
      %v3411 = vpop.f32.mrb[0].mxu0
      %v3412 = vadd.f32 %v1394, %v3411
      %v3413 = vpop.f32.mrb[0].mxu0
      %3414 = vdwg.mxu0
      %3415 = vrot.lane.b32.xlu0 %v1314, 96
      %v3416 = vpop.permute.xlu0 %3415
      %3417 = vrot.lane.b32.xlu0 %v1316, 96
      %v3418 = vpop.permute.xlu0 %3417
      %v3419 = vsel %vm1417, %v1314, 0
      %v3421 = vsel %vm1417, %v1316, 0
      %v3423 = vsel %vm1417, %v3416, 0
      %v3425 = vsel %vm1417, %v3418, 0
      %3427 = vmatprep.subr.mxu0 0.0
      %3428 = vmatpush1.xpose.msra.mxu0 %v3423
      %3429 = vmatprep.subr.mxu0 0.0
      %3430 = vmatpush1.xpose.msra.mxu0 %v3425
      %3431 = vmatprep.subr.mxu0 0.0
      %3432 = vmatpush1.xpose.msra.mxu0 0.0
      %3433 = vmatprep.subr.mxu0 0.0
      %3434 = vmatpush1.xpose.msra.mxu0 0.0
      %3435 = vmatprep.subr.mxu0 0.0
      %3436 = vmatpush1.xpose.msra.mxu0 0.0
      %3437 = vmatprep.subr.mxu0 0.0
      %3438 = vmatpush1.xpose.msra.mxu0 0.0
      %3439 = vmatprep.subr.mxu0 0.0
      %3440 = vmatpush1.xpose.msra.mxu0 0.0
      %3441 = vmatprep.subr.mxu0 0.0
      %3442 = vmatpush1.xpose.msra.mxu0 0.0
      %3443 = vmatprep.subr.mxu0 0.0
      %3444 = vmatpush1.xpose.msra.mxu0 0.0
      %3445 = vmatprep.subr.mxu0 0.0
      %3446 = vmatpush1.xpose.msra.mxu0 0.0
      %3447 = vmatprep.subr.mxu0 0.0
      %3448 = vmatpush1.xpose.msra.mxu0 0.0
      %3449 = vmatprep.subr.mxu0 0.0
      %3450 = vmatpush1.xpose.msra.mxu0 0.0
      %3451 = vmatprep.subr.mxu0 0.0
      %3452 = vmatpush1.xpose.msra.mxu0 0.0
      %3453 = vmatprep.subr.mxu0 0.0
      %3454 = vmatpush1.xpose.msra.mxu0 0.0
      %3455 = vmatprep.subr.mxu0 0.0
      %3456 = vmatpush1.xpose.msra.mxu0 0.0
      %3457 = vmatprep.subr.mxu0 0.0
      %3458 = vmatpush1.xpose.msra.mxu0 0.0
      %3459 = vmatprep.subr.mxu0 0.0
      %3460 = vmatpush1.xpose.msra.mxu0 0.0
      %3461 = vmatprep.subr.mxu0 0.0
      %3462 = vmatpush1.xpose.msra.mxu0 0.0
      %3463 = vmatprep.subr.mxu0 0.0
      %3464 = vmatpush1.xpose.msra.mxu0 0.0
      %3465 = vmatprep.subr.mxu0 0.0
      %3466 = vmatpush1.xpose.msra.mxu0 0.0
      %3467 = vmatprep.subr.mxu0 0.0
      %3468 = vmatpush1.xpose.msra.mxu0 0.0
      %3469 = vmatprep.subr.mxu0 0.0
      %3470 = vmatpush1.xpose.msra.mxu0 0.0
      %3471 = vmatprep.subr.mxu0 0.0
      %3472 = vmatpush1.xpose.msra.mxu0 0.0
      %3473 = vmatprep.subr.mxu0 0.0
      %3474 = vmatpush1.xpose.msra.mxu0 0.0
      %3475 = vmatprep.subr.mxu0 0.0
      %3476 = vmatpush1.xpose.msra.mxu0 0.0
      %3477 = vmatprep.subr.mxu0 0.0
      %3478 = vmatpush1.xpose.msra.mxu0 0.0
      %3479 = vmatprep.subr.mxu0 0.0
      %3480 = vmatpush1.xpose.msra.mxu0 0.0
      %3481 = vmatprep.subr.mxu0 0.0
      %3482 = vmatpush1.xpose.msra.mxu0 0.0
      %3483 = vmatprep.subr.mxu0 0.0
      %3484 = vmatpush1.xpose.msra.mxu0 0.0
      %3485 = vmatprep.subr.mxu0 0.0
      %3486 = vmatpush1.xpose.msra.mxu0 0.0
      %3487 = vmatprep.subr.mxu0 0.0
      %3488 = vmatpush1.xpose.msra.mxu0 0.0
      %3489 = vmatprep.subr.mxu0 0.0
      %3490 = vmatpush1.xpose.msra.mxu0 0.0
      %3491 = vmatprep.mubr.f32.mxu0 0.0
      %3492 = vmatmul.mubr.f32.gmra.mrb[0].mxu0 %v3419
      %v3493 = vpop.f32.mrb[0].mxu0
      %v3494 = vadd.f32 %v1395, %v3493
      %v3495 = vpop.f32.mrb[0].mxu0
      %3496 = vmatprep.mubr.f32.mxu0 0.0
      %3497 = vmatmul.mubr.f32.gmra.mrb[0].mxu0 %v3421
      %v3498 = vpop.f32.mrb[0].mxu0
      %v3499 = vadd.f32 %v1396, %v3498
      %v3500 = vpop.f32.mrb[0].mxu0
      %3501 = vdwg.mxu0
      %3502 = vrot.lane.b32.xlu0 %v1318, 96
      %v3503 = vpop.permute.xlu0 %3502
      %3504 = vrot.lane.b32.xlu0 %v1320, 96
      %v3505 = vpop.permute.xlu0 %3504
      %v3506 = vsel %vm1417, %v1318, 0
      %v3508 = vsel %vm1417, %v1320, 0
      %v3510 = vsel %vm1417, %v3503, 0
      %v3512 = vsel %vm1417, %v3505, 0
      %3514 = vmatprep.subr.mxu0 0.0
      %3515 = vmatpush1.xpose.msra.mxu0 %v3510
      %3516 = vmatprep.subr.mxu0 0.0
      %3517 = vmatpush1.xpose.msra.mxu0 %v3512
      %3518 = vmatprep.subr.mxu0 0.0
      %3519 = vmatpush1.xpose.msra.mxu0 0.0
      %3520 = vmatprep.subr.mxu0 0.0
      %3521 = vmatpush1.xpose.msra.mxu0 0.0
      %3522 = vmatprep.subr.mxu0 0.0
      %3523 = vmatpush1.xpose.msra.mxu0 0.0
      %3524 = vmatprep.subr.mxu0 0.0
      %3525 = vmatpush1.xpose.msra.mxu0 0.0
      %3526 = vmatprep.subr.mxu0 0.0
      %3527 = vmatpush1.xpose.msra.mxu0 0.0
      %3528 = vmatprep.subr.mxu0 0.0
      %3529 = vmatpush1.xpose.msra.mxu0 0.0
      %3530 = vmatprep.subr.mxu0 0.0
      %3531 = vmatpush1.xpose.msra.mxu0 0.0
      %3532 = vmatprep.subr.mxu0 0.0
      %3533 = vmatpush1.xpose.msra.mxu0 0.0
      %3534 = vmatprep.subr.mxu0 0.0
      %3535 = vmatpush1.xpose.msra.mxu0 0.0
      %3536 = vmatprep.subr.mxu0 0.0
      %3537 = vmatpush1.xpose.msra.mxu0 0.0
      %3538 = vmatprep.subr.mxu0 0.0
      %3539 = vmatpush1.xpose.msra.mxu0 0.0
      %3540 = vmatprep.subr.mxu0 0.0
      %3541 = vmatpush1.xpose.msra.mxu0 0.0
      %3542 = vmatprep.subr.mxu0 0.0
      %3543 = vmatpush1.xpose.msra.mxu0 0.0
      %3544 = vmatprep.subr.mxu0 0.0
      %3545 = vmatpush1.xpose.msra.mxu0 0.0
      %3546 = vmatprep.subr.mxu0 0.0
      %3547 = vmatpush1.xpose.msra.mxu0 0.0
      %3548 = vmatprep.subr.mxu0 0.0
      %3549 = vmatpush1.xpose.msra.mxu0 0.0
      %3550 = vmatprep.subr.mxu0 0.0
      %3551 = vmatpush1.xpose.msra.mxu0 0.0
      %3552 = vmatprep.subr.mxu0 0.0
      %3553 = vmatpush1.xpose.msra.mxu0 0.0
      %3554 = vmatprep.subr.mxu0 0.0
      %3555 = vmatpush1.xpose.msra.mxu0 0.0
      %3556 = vmatprep.subr.mxu0 0.0
      %3557 = vmatpush1.xpose.msra.mxu0 0.0
      %3558 = vmatprep.subr.mxu0 0.0
      %3559 = vmatpush1.xpose.msra.mxu0 0.0
      %3560 = vmatprep.subr.mxu0 0.0
      %3561 = vmatpush1.xpose.msra.mxu0 0.0
      %3562 = vmatprep.subr.mxu0 0.0
      %3563 = vmatpush1.xpose.msra.mxu0 0.0
      %3564 = vmatprep.subr.mxu0 0.0
      %3565 = vmatpush1.xpose.msra.mxu0 0.0
      %3566 = vmatprep.subr.mxu0 0.0
      %3567 = vmatpush1.xpose.msra.mxu0 0.0
      %3568 = vmatprep.subr.mxu0 0.0
      %3569 = vmatpush1.xpose.msra.mxu0 0.0
      %3570 = vmatprep.subr.mxu0 0.0
      %3571 = vmatpush1.xpose.msra.mxu0 0.0
      %3572 = vmatprep.subr.mxu0 0.0
      %3573 = vmatpush1.xpose.msra.mxu0 0.0
      %3574 = vmatprep.subr.mxu0 0.0
      %3575 = vmatpush1.xpose.msra.mxu0 0.0
      %3576 = vmatprep.subr.mxu0 0.0
      %3577 = vmatpush1.xpose.msra.mxu0 0.0
      %3578 = vmatprep.mubr.f32.mxu0 0.0
      %3579 = vmatmul.mubr.f32.gmra.mrb[0].mxu0 %v3506
      %v3580 = vpop.f32.mrb[0].mxu0
      %v3581 = vadd.f32 %v1397, %v3580
      %v3582 = vpop.f32.mrb[0].mxu0
      %3583 = vmatprep.mubr.f32.mxu0 0.0
      %3584 = vmatmul.mubr.f32.gmra.mrb[0].mxu0 %v3508
      %v3585 = vpop.f32.mrb[0].mxu0
      %v3586 = vadd.f32 %v1398, %v3585
      %v3587 = vpop.f32.mrb[0].mxu0
      %3588 = vdwg.mxu0
      %3589 = vrot.lane.b32.xlu0 %v1322, 96
      %v3590 = vpop.permute.xlu0 %3589
      %3591 = vrot.lane.b32.xlu0 %v1324, 96
      %v3592 = vpop.permute.xlu0 %3591
      %v3593 = vsel %vm1417, %v1322, 0
      %v3595 = vsel %vm1417, %v1324, 0
      %v3597 = vsel %vm1417, %v3590, 0
      %v3599 = vsel %vm1417, %v3592, 0
      %3601 = vmatprep.subr.mxu0 0.0
      %3602 = vmatpush1.xpose.msra.mxu0 %v3597
      %3603 = vmatprep.subr.mxu0 0.0
      %3604 = vmatpush1.xpose.msra.mxu0 %v3599
      %3605 = vmatprep.subr.mxu0 0.0
      %3606 = vmatpush1.xpose.msra.mxu0 0.0
      %3607 = vmatprep.subr.mxu0 0.0
      %3608 = vmatpush1.xpose.msra.mxu0 0.0
      %3609 = vmatprep.subr.mxu0 0.0
      %3610 = vmatpush1.xpose.msra.mxu0 0.0
      %3611 = vmatprep.subr.mxu0 0.0
      %3612 = vmatpush1.xpose.msra.mxu0 0.0
      %3613 = vmatprep.subr.mxu0 0.0
      %3614 = vmatpush1.xpose.msra.mxu0 0.0
      %3615 = vmatprep.subr.mxu0 0.0
      %3616 = vmatpush1.xpose.msra.mxu0 0.0
      %3617 = vmatprep.subr.mxu0 0.0
      %3618 = vmatpush1.xpose.msra.mxu0 0.0
      %3619 = vmatprep.subr.mxu0 0.0
      %3620 = vmatpush1.xpose.msra.mxu0 0.0
      %3621 = vmatprep.subr.mxu0 0.0
      %3622 = vmatpush1.xpose.msra.mxu0 0.0
      %3623 = vmatprep.subr.mxu0 0.0
      %3624 = vmatpush1.xpose.msra.mxu0 0.0
      %3625 = vmatprep.subr.mxu0 0.0
      %3626 = vmatpush1.xpose.msra.mxu0 0.0
      %3627 = vmatprep.subr.mxu0 0.0
      %3628 = vmatpush1.xpose.msra.mxu0 0.0
      %3629 = vmatprep.subr.mxu0 0.0
      %3630 = vmatpush1.xpose.msra.mxu0 0.0
      %3631 = vmatprep.subr.mxu0 0.0
      %3632 = vmatpush1.xpose.msra.mxu0 0.0
      %3633 = vmatprep.subr.mxu0 0.0
      %3634 = vmatpush1.xpose.msra.mxu0 0.0
      %3635 = vmatprep.subr.mxu0 0.0
      %3636 = vmatpush1.xpose.msra.mxu0 0.0
      %3637 = vmatprep.subr.mxu0 0.0
      %3638 = vmatpush1.xpose.msra.mxu0 0.0
      %3639 = vmatprep.subr.mxu0 0.0
      %3640 = vmatpush1.xpose.msra.mxu0 0.0
      %3641 = vmatprep.subr.mxu0 0.0
      %3642 = vmatpush1.xpose.msra.mxu0 0.0
      %3643 = vmatprep.subr.mxu0 0.0
      %3644 = vmatpush1.xpose.msra.mxu0 0.0
      %3645 = vmatprep.subr.mxu0 0.0
      %3646 = vmatpush1.xpose.msra.mxu0 0.0
      %3647 = vmatprep.subr.mxu0 0.0
      %3648 = vmatpush1.xpose.msra.mxu0 0.0
      %3649 = vmatprep.subr.mxu0 0.0
      %3650 = vmatpush1.xpose.msra.mxu0 0.0
      %3651 = vmatprep.subr.mxu0 0.0
      %3652 = vmatpush1.xpose.msra.mxu0 0.0
      %3653 = vmatprep.subr.mxu0 0.0
      %3654 = vmatpush1.xpose.msra.mxu0 0.0
      %3655 = vmatprep.subr.mxu0 0.0
      %3656 = vmatpush1.xpose.msra.mxu0 0.0
      %3657 = vmatprep.subr.mxu0 0.0
      %3658 = vmatpush1.xpose.msra.mxu0 0.0
      %3659 = vmatprep.subr.mxu0 0.0
      %3660 = vmatpush1.xpose.msra.mxu0 0.0
      %3661 = vmatprep.subr.mxu0 0.0
      %3662 = vmatpush1.xpose.msra.mxu0 0.0
      %3663 = vmatprep.subr.mxu0 0.0
      %3664 = vmatpush1.xpose.msra.mxu0 0.0
      %3665 = vmatprep.mubr.f32.mxu0 0.0
      %3666 = vmatmul.mubr.f32.gmra.mrb[0].mxu0 %v3593
      %v3667 = vpop.f32.mrb[0].mxu0
      %v3668 = vadd.f32 %v1399, %v3667
      %v3669 = vpop.f32.mrb[0].mxu0
      %3670 = vmatprep.mubr.f32.mxu0 0.0
      %3671 = vmatmul.mubr.f32.gmra.mrb[0].mxu0 %v3595
      %v3672 = vpop.f32.mrb[0].mxu0
      %v3673 = vadd.f32 %v1400, %v3672
      %v3674 = vpop.f32.mrb[0].mxu0
      %3675 = vdwg.mxu0
      %3676 = vrot.lane.b32.xlu0 %v1326, 96
      %v3677 = vpop.permute.xlu0 %3676
      %3678 = vrot.lane.b32.xlu0 %v1328, 96
      %v3679 = vpop.permute.xlu0 %3678
      %v3680 = vsel %vm1417, %v1326, 0
      %v3682 = vsel %vm1417, %v1328, 0
      %v3684 = vsel %vm1417, %v3677, 0
      %v3686 = vsel %vm1417, %v3679, 0
      %3688 = vmatprep.subr.mxu0 0.0
      %3689 = vmatpush1.xpose.msra.mxu0 %v3684
      %3690 = vmatprep.subr.mxu0 0.0
      %3691 = vmatpush1.xpose.msra.mxu0 %v3686
      %3692 = vmatprep.subr.mxu0 0.0
      %3693 = vmatpush1.xpose.msra.mxu0 0.0
      %3694 = vmatprep.subr.mxu0 0.0
      %3695 = vmatpush1.xpose.msra.mxu0 0.0
      %3696 = vmatprep.subr.mxu0 0.0
      %3697 = vmatpush1.xpose.msra.mxu0 0.0
      %3698 = vmatprep.subr.mxu0 0.0
      %3699 = vmatpush1.xpose.msra.mxu0 0.0
      %3700 = vmatprep.subr.mxu0 0.0
      %3701 = vmatpush1.xpose.msra.mxu0 0.0
      %3702 = vmatprep.subr.mxu0 0.0
      %3703 = vmatpush1.xpose.msra.mxu0 0.0
      %3704 = vmatprep.subr.mxu0 0.0
      %3705 = vmatpush1.xpose.msra.mxu0 0.0
      %3706 = vmatprep.subr.mxu0 0.0
      %3707 = vmatpush1.xpose.msra.mxu0 0.0
      %3708 = vmatprep.subr.mxu0 0.0
      %3709 = vmatpush1.xpose.msra.mxu0 0.0
      %3710 = vmatprep.subr.mxu0 0.0
      %3711 = vmatpush1.xpose.msra.mxu0 0.0
      %3712 = vmatprep.subr.mxu0 0.0
      %3713 = vmatpush1.xpose.msra.mxu0 0.0
      %3714 = vmatprep.subr.mxu0 0.0
      %3715 = vmatpush1.xpose.msra.mxu0 0.0
      %3716 = vmatprep.subr.mxu0 0.0
      %3717 = vmatpush1.xpose.msra.mxu0 0.0
      %3718 = vmatprep.subr.mxu0 0.0
      %3719 = vmatpush1.xpose.msra.mxu0 0.0
      %3720 = vmatprep.subr.mxu0 0.0
      %3721 = vmatpush1.xpose.msra.mxu0 0.0
      %3722 = vmatprep.subr.mxu0 0.0
      %3723 = vmatpush1.xpose.msra.mxu0 0.0
      %3724 = vmatprep.subr.mxu0 0.0
      %3725 = vmatpush1.xpose.msra.mxu0 0.0
      %3726 = vmatprep.subr.mxu0 0.0
      %3727 = vmatpush1.xpose.msra.mxu0 0.0
      %3728 = vmatprep.subr.mxu0 0.0
      %3729 = vmatpush1.xpose.msra.mxu0 0.0
      %3730 = vmatprep.subr.mxu0 0.0
      %3731 = vmatpush1.xpose.msra.mxu0 0.0
      %3732 = vmatprep.subr.mxu0 0.0
      %3733 = vmatpush1.xpose.msra.mxu0 0.0
      %3734 = vmatprep.subr.mxu0 0.0
      %3735 = vmatpush1.xpose.msra.mxu0 0.0
      %3736 = vmatprep.subr.mxu0 0.0
      %3737 = vmatpush1.xpose.msra.mxu0 0.0
      %3738 = vmatprep.subr.mxu0 0.0
      %3739 = vmatpush1.xpose.msra.mxu0 0.0
      %3740 = vmatprep.subr.mxu0 0.0
      %3741 = vmatpush1.xpose.msra.mxu0 0.0
      %3742 = vmatprep.subr.mxu0 0.0
      %3743 = vmatpush1.xpose.msra.mxu0 0.0
      %3744 = vmatprep.subr.mxu0 0.0
      %3745 = vmatpush1.xpose.msra.mxu0 0.0
      %3746 = vmatprep.subr.mxu0 0.0
      %3747 = vmatpush1.xpose.msra.mxu0 0.0
      %3748 = vmatprep.subr.mxu0 0.0
      %3749 = vmatpush1.xpose.msra.mxu0 0.0
      %3750 = vmatprep.subr.mxu0 0.0
      %3751 = vmatpush1.xpose.msra.mxu0 0.0
      %3752 = vmatprep.mubr.f32.mxu0 0.0
      %3753 = vmatmul.mubr.f32.gmra.mrb[0].mxu0 %v3680
      %v3754 = vpop.f32.mrb[0].mxu0
      %v3755 = vadd.f32 %v1401, %v3754
      %v3756 = vpop.f32.mrb[0].mxu0
      %3757 = vmatprep.mubr.f32.mxu0 0.0
      %3758 = vmatmul.mubr.f32.gmra.mrb[0].mxu0 %v3682
      %v3759 = vpop.f32.mrb[0].mxu0
      %v3760 = vadd.f32 %v1402, %v3759
      %v3761 = vpop.f32.mrb[0].mxu0
      %3762 = vdwg.mxu0
      %3763 = vrot.lane.b32.xlu0 %v1330, 96
      %v3764 = vpop.permute.xlu0 %3763
      %3765 = vrot.lane.b32.xlu0 %v1332, 96
      %v3766 = vpop.permute.xlu0 %3765
      %v3767 = vsel %vm1417, %v1330, 0
      %v3769 = vsel %vm1417, %v1332, 0
      %v3771 = vsel %vm1417, %v3764, 0
      %v3773 = vsel %vm1417, %v3766, 0
      %3775 = vmatprep.subr.mxu0 0.0
      %3776 = vmatpush1.xpose.msra.mxu0 %v3771
      %3777 = vmatprep.subr.mxu0 0.0
      %3778 = vmatpush1.xpose.msra.mxu0 %v3773
      %3779 = vmatprep.subr.mxu0 0.0
      %3780 = vmatpush1.xpose.msra.mxu0 0.0
      %3781 = vmatprep.subr.mxu0 0.0
      %3782 = vmatpush1.xpose.msra.mxu0 0.0
      %3783 = vmatprep.subr.mxu0 0.0
      %3784 = vmatpush1.xpose.msra.mxu0 0.0
      %3785 = vmatprep.subr.mxu0 0.0
      %3786 = vmatpush1.xpose.msra.mxu0 0.0
      %3787 = vmatprep.subr.mxu0 0.0
      %3788 = vmatpush1.xpose.msra.mxu0 0.0
      %3789 = vmatprep.subr.mxu0 0.0
      %3790 = vmatpush1.xpose.msra.mxu0 0.0
      %3791 = vmatprep.subr.mxu0 0.0
      %3792 = vmatpush1.xpose.msra.mxu0 0.0
      %3793 = vmatprep.subr.mxu0 0.0
      %3794 = vmatpush1.xpose.msra.mxu0 0.0
      %3795 = vmatprep.subr.mxu0 0.0
      %3796 = vmatpush1.xpose.msra.mxu0 0.0
      %3797 = vmatprep.subr.mxu0 0.0
      %3798 = vmatpush1.xpose.msra.mxu0 0.0
      %3799 = vmatprep.subr.mxu0 0.0
      %3800 = vmatpush1.xpose.msra.mxu0 0.0
      %3801 = vmatprep.subr.mxu0 0.0
      %3802 = vmatpush1.xpose.msra.mxu0 0.0
      %3803 = vmatprep.subr.mxu0 0.0
      %3804 = vmatpush1.xpose.msra.mxu0 0.0
      %3805 = vmatprep.subr.mxu0 0.0
      %3806 = vmatpush1.xpose.msra.mxu0 0.0
      %3807 = vmatprep.subr.mxu0 0.0
      %3808 = vmatpush1.xpose.msra.mxu0 0.0
      %3809 = vmatprep.subr.mxu0 0.0
      %3810 = vmatpush1.xpose.msra.mxu0 0.0
      %3811 = vmatprep.subr.mxu0 0.0
      %3812 = vmatpush1.xpose.msra.mxu0 0.0
      %3813 = vmatprep.subr.mxu0 0.0
      %3814 = vmatpush1.xpose.msra.mxu0 0.0
      %3815 = vmatprep.subr.mxu0 0.0
      %3816 = vmatpush1.xpose.msra.mxu0 0.0
      %3817 = vmatprep.subr.mxu0 0.0
      %3818 = vmatpush1.xpose.msra.mxu0 0.0
      %3819 = vmatprep.subr.mxu0 0.0
      %3820 = vmatpush1.xpose.msra.mxu0 0.0
      %3821 = vmatprep.subr.mxu0 0.0
      %3822 = vmatpush1.xpose.msra.mxu0 0.0
      %3823 = vmatprep.subr.mxu0 0.0
      %3824 = vmatpush1.xpose.msra.mxu0 0.0
      %3825 = vmatprep.subr.mxu0 0.0
      %3826 = vmatpush1.xpose.msra.mxu0 0.0
      %3827 = vmatprep.subr.mxu0 0.0
      %3828 = vmatpush1.xpose.msra.mxu0 0.0
      %3829 = vmatprep.subr.mxu0 0.0
      %3830 = vmatpush1.xpose.msra.mxu0 0.0
      %3831 = vmatprep.subr.mxu0 0.0
      %3832 = vmatpush1.xpose.msra.mxu0 0.0
      %3833 = vmatprep.subr.mxu0 0.0
      %3834 = vmatpush1.xpose.msra.mxu0 0.0
      %3835 = vmatprep.subr.mxu0 0.0
      %3836 = vmatpush1.xpose.msra.mxu0 0.0
      %3837 = vmatprep.subr.mxu0 0.0
      %3838 = vmatpush1.xpose.msra.mxu0 0.0
      %3839 = vmatprep.mubr.f32.mxu0 0.0
      %3840 = vmatmul.mubr.f32.gmra.mrb[0].mxu0 %v3767
      %v3841 = vpop.f32.mrb[0].mxu0
      %v3842 = vadd.f32 %v1403, %v3841
      %v3843 = vpop.f32.mrb[0].mxu0
      %3844 = vmatprep.mubr.f32.mxu0 0.0
      %3845 = vmatmul.mubr.f32.gmra.mrb[0].mxu0 %v3769
      %v3846 = vpop.f32.mrb[0].mxu0
      %v3847 = vadd.f32 %v1404, %v3846
      %v3848 = vpop.f32.mrb[0].mxu0
      %3849 = vdwg.mxu0
      %3850 = vrot.lane.b32.xlu0 %v1334, 96
      %v3851 = vpop.permute.xlu0 %3850
      %3852 = vrot.lane.b32.xlu0 %v1336, 96
      %v3853 = vpop.permute.xlu0 %3852
      %v3854 = vsel %vm1417, %v1334, 0
      %v3856 = vsel %vm1417, %v1336, 0
      %v3858 = vsel %vm1417, %v3851, 0
      %v3860 = vsel %vm1417, %v3853, 0
      %3862 = vmatprep.subr.mxu0 0.0
      %3863 = vmatpush1.xpose.msra.mxu0 %v3858
      %3864 = vmatprep.subr.mxu0 0.0
      %3865 = vmatpush1.xpose.msra.mxu0 %v3860
      %3866 = vmatprep.subr.mxu0 0.0
      %3867 = vmatpush1.xpose.msra.mxu0 0.0
      %3868 = vmatprep.subr.mxu0 0.0
      %3869 = vmatpush1.xpose.msra.mxu0 0.0
      %3870 = vmatprep.subr.mxu0 0.0
      %3871 = vmatpush1.xpose.msra.mxu0 0.0
      %3872 = vmatprep.subr.mxu0 0.0
      %3873 = vmatpush1.xpose.msra.mxu0 0.0
      %3874 = vmatprep.subr.mxu0 0.0
      %3875 = vmatpush1.xpose.msra.mxu0 0.0
      %3876 = vmatprep.subr.mxu0 0.0
      %3877 = vmatpush1.xpose.msra.mxu0 0.0
      %3878 = vmatprep.subr.mxu0 0.0
      %3879 = vmatpush1.xpose.msra.mxu0 0.0
      %3880 = vmatprep.subr.mxu0 0.0
      %3881 = vmatpush1.xpose.msra.mxu0 0.0
      %3882 = vmatprep.subr.mxu0 0.0
      %3883 = vmatpush1.xpose.msra.mxu0 0.0
      %3884 = vmatprep.subr.mxu0 0.0
      %3885 = vmatpush1.xpose.msra.mxu0 0.0
      %3886 = vmatprep.subr.mxu0 0.0
      %3887 = vmatpush1.xpose.msra.mxu0 0.0
      %3888 = vmatprep.subr.mxu0 0.0
      %3889 = vmatpush1.xpose.msra.mxu0 0.0
      %3890 = vmatprep.subr.mxu0 0.0
      %3891 = vmatpush1.xpose.msra.mxu0 0.0
      %3892 = vmatprep.subr.mxu0 0.0
      %3893 = vmatpush1.xpose.msra.mxu0 0.0
      %3894 = vmatprep.subr.mxu0 0.0
      %3895 = vmatpush1.xpose.msra.mxu0 0.0
      %3896 = vmatprep.subr.mxu0 0.0
      %3897 = vmatpush1.xpose.msra.mxu0 0.0
      %3898 = vmatprep.subr.mxu0 0.0
      %3899 = vmatpush1.xpose.msra.mxu0 0.0
      %3900 = vmatprep.subr.mxu0 0.0
      %3901 = vmatpush1.xpose.msra.mxu0 0.0
      %3902 = vmatprep.subr.mxu0 0.0
      %3903 = vmatpush1.xpose.msra.mxu0 0.0
      %3904 = vmatprep.subr.mxu0 0.0
      %3905 = vmatpush1.xpose.msra.mxu0 0.0
      %3906 = vmatprep.subr.mxu0 0.0
      %3907 = vmatpush1.xpose.msra.mxu0 0.0
      %3908 = vmatprep.subr.mxu0 0.0
      %3909 = vmatpush1.xpose.msra.mxu0 0.0
      %3910 = vmatprep.subr.mxu0 0.0
      %3911 = vmatpush1.xpose.msra.mxu0 0.0
      %3912 = vmatprep.subr.mxu0 0.0
      %3913 = vmatpush1.xpose.msra.mxu0 0.0
      %3914 = vmatprep.subr.mxu0 0.0
      %3915 = vmatpush1.xpose.msra.mxu0 0.0
      %3916 = vmatprep.subr.mxu0 0.0
      %3917 = vmatpush1.xpose.msra.mxu0 0.0
      %3918 = vmatprep.subr.mxu0 0.0
      %3919 = vmatpush1.xpose.msra.mxu0 0.0
      %3920 = vmatprep.subr.mxu0 0.0
      %3921 = vmatpush1.xpose.msra.mxu0 0.0
      %3922 = vmatprep.subr.mxu0 0.0
      %3923 = vmatpush1.xpose.msra.mxu0 0.0
      %3924 = vmatprep.subr.mxu0 0.0
      %3925 = vmatpush1.xpose.msra.mxu0 0.0
      %3926 = vmatprep.mubr.f32.mxu0 0.0
      %3927 = vmatmul.mubr.f32.gmra.mrb[0].mxu0 %v3854
      %v3928 = vpop.f32.mrb[0].mxu0
      %v3929 = vadd.f32 %v1405, %v3928
      %v3930 = vpop.f32.mrb[0].mxu0
      %3931 = vmatprep.mubr.f32.mxu0 0.0
      %3932 = vmatmul.mubr.f32.gmra.mrb[0].mxu0 %v3856
      %v3933 = vpop.f32.mrb[0].mxu0
      %v3934 = vadd.f32 %v1406, %v3933
      %v3935 = vpop.f32.mrb[0].mxu0
      %3936 = vdwg.mxu0
      %3937 = vrot.lane.b32.xlu0 %v1338, 96
      %v3938 = vpop.permute.xlu0 %3937
      %3939 = vrot.lane.b32.xlu0 %v1340, 96
      %v3940 = vpop.permute.xlu0 %3939
      %v3941 = vsel %vm1417, %v1338, 0
      %v3943 = vsel %vm1417, %v1340, 0
      %v3945 = vsel %vm1417, %v3938, 0
      %v3947 = vsel %vm1417, %v3940, 0
      %3949 = vmatprep.subr.mxu0 0.0
      %3950 = vmatpush1.xpose.msra.mxu0 %v3945
      %3951 = vmatprep.subr.mxu0 0.0
      %3952 = vmatpush1.xpose.msra.mxu0 %v3947
      %3953 = vmatprep.subr.mxu0 0.0
      %3954 = vmatpush1.xpose.msra.mxu0 0.0
      %3955 = vmatprep.subr.mxu0 0.0
      %3956 = vmatpush1.xpose.msra.mxu0 0.0
      %3957 = vmatprep.subr.mxu0 0.0
      %3958 = vmatpush1.xpose.msra.mxu0 0.0
      %3959 = vmatprep.subr.mxu0 0.0
      %3960 = vmatpush1.xpose.msra.mxu0 0.0
      %3961 = vmatprep.subr.mxu0 0.0
      %3962 = vmatpush1.xpose.msra.mxu0 0.0
      %3963 = vmatprep.subr.mxu0 0.0
      %3964 = vmatpush1.xpose.msra.mxu0 0.0
      %3965 = vmatprep.subr.mxu0 0.0
      %3966 = vmatpush1.xpose.msra.mxu0 0.0
      %3967 = vmatprep.subr.mxu0 0.0
      %3968 = vmatpush1.xpose.msra.mxu0 0.0
      %3969 = vmatprep.subr.mxu0 0.0
      %3970 = vmatpush1.xpose.msra.mxu0 0.0
      %3971 = vmatprep.subr.mxu0 0.0
      %3972 = vmatpush1.xpose.msra.mxu0 0.0
      %3973 = vmatprep.subr.mxu0 0.0
      %3974 = vmatpush1.xpose.msra.mxu0 0.0
      %3975 = vmatprep.subr.mxu0 0.0
      %3976 = vmatpush1.xpose.msra.mxu0 0.0
      %3977 = vmatprep.subr.mxu0 0.0
      %3978 = vmatpush1.xpose.msra.mxu0 0.0
      %3979 = vmatprep.subr.mxu0 0.0
      %3980 = vmatpush1.xpose.msra.mxu0 0.0
      %3981 = vmatprep.subr.mxu0 0.0
      %3982 = vmatpush1.xpose.msra.mxu0 0.0
      %3983 = vmatprep.subr.mxu0 0.0
      %3984 = vmatpush1.xpose.msra.mxu0 0.0
      %3985 = vmatprep.subr.mxu0 0.0
      %3986 = vmatpush1.xpose.msra.mxu0 0.0
      %3987 = vmatprep.subr.mxu0 0.0
      %3988 = vmatpush1.xpose.msra.mxu0 0.0
      %3989 = vmatprep.subr.mxu0 0.0
      %3990 = vmatpush1.xpose.msra.mxu0 0.0
      %3991 = vmatprep.subr.mxu0 0.0
      %3992 = vmatpush1.xpose.msra.mxu0 0.0
      %3993 = vmatprep.subr.mxu0 0.0
      %3994 = vmatpush1.xpose.msra.mxu0 0.0
      %3995 = vmatprep.subr.mxu0 0.0
      %3996 = vmatpush1.xpose.msra.mxu0 0.0
      %3997 = vmatprep.subr.mxu0 0.0
      %3998 = vmatpush1.xpose.msra.mxu0 0.0
      %3999 = vmatprep.subr.mxu0 0.0
      %4000 = vmatpush1.xpose.msra.mxu0 0.0
      %4001 = vmatprep.subr.mxu0 0.0
      %4002 = vmatpush1.xpose.msra.mxu0 0.0
      %4003 = vmatprep.subr.mxu0 0.0
      %4004 = vmatpush1.xpose.msra.mxu0 0.0
      %4005 = vmatprep.subr.mxu0 0.0
      %4006 = vmatpush1.xpose.msra.mxu0 0.0
      %4007 = vmatprep.subr.mxu0 0.0
      %4008 = vmatpush1.xpose.msra.mxu0 0.0
      %4009 = vmatprep.subr.mxu0 0.0
      %4010 = vmatpush1.xpose.msra.mxu0 0.0
      %4011 = vmatprep.subr.mxu0 0.0
      %4012 = vmatpush1.xpose.msra.mxu0 0.0
      %4013 = vmatprep.mubr.f32.mxu0 0.0
      %4014 = vmatmul.mubr.f32.gmra.mrb[0].mxu0 %v3941
      %v4015 = vpop.f32.mrb[0].mxu0
      %v4016 = vadd.f32 %v1407, %v4015
      %v4017 = vpop.f32.mrb[0].mxu0
      %4018 = vmatprep.mubr.f32.mxu0 0.0
      %4019 = vmatmul.mubr.f32.gmra.mrb[0].mxu0 %v3943
      %v4020 = vpop.f32.mrb[0].mxu0
      %v4021 = vadd.f32 %v1408, %v4020
      %v4022 = vpop.f32.mrb[0].mxu0
      %4023 = vdwg.mxu0
      %4024 = vrot.lane.b32.xlu0 %v1342, 96
      %v4025 = vpop.permute.xlu0 %4024
      %4026 = vrot.lane.b32.xlu0 %v1344, 96
      %v4027 = vpop.permute.xlu0 %4026
      %v4028 = vsel %vm1417, %v1342, 0
      %v4030 = vsel %vm1417, %v1344, 0
      %v4032 = vsel %vm1417, %v4025, 0
      %v4034 = vsel %vm1417, %v4027, 0
      %4036 = vmatprep.subr.mxu0 0.0
      %4037 = vmatpush1.xpose.msra.mxu0 %v4032
      %4038 = vmatprep.subr.mxu0 0.0
      %4039 = vmatpush1.xpose.msra.mxu0 %v4034
      %4040 = vmatprep.subr.mxu0 0.0
      %4041 = vmatpush1.xpose.msra.mxu0 0.0
      %4042 = vmatprep.subr.mxu0 0.0
      %4043 = vmatpush1.xpose.msra.mxu0 0.0
      %4044 = vmatprep.subr.mxu0 0.0
      %4045 = vmatpush1.xpose.msra.mxu0 0.0
      %4046 = vmatprep.subr.mxu0 0.0
      %4047 = vmatpush1.xpose.msra.mxu0 0.0
      %4048 = vmatprep.subr.mxu0 0.0
      %4049 = vmatpush1.xpose.msra.mxu0 0.0
      %4050 = vmatprep.subr.mxu0 0.0
      %4051 = vmatpush1.xpose.msra.mxu0 0.0
      %4052 = vmatprep.subr.mxu0 0.0
      %4053 = vmatpush1.xpose.msra.mxu0 0.0
      %4054 = vmatprep.subr.mxu0 0.0
      %4055 = vmatpush1.xpose.msra.mxu0 0.0
      %4056 = vmatprep.subr.mxu0 0.0
      %4057 = vmatpush1.xpose.msra.mxu0 0.0
      %4058 = vmatprep.subr.mxu0 0.0
      %4059 = vmatpush1.xpose.msra.mxu0 0.0
      %4060 = vmatprep.subr.mxu0 0.0
      %4061 = vmatpush1.xpose.msra.mxu0 0.0
      %4062 = vmatprep.subr.mxu0 0.0
      %4063 = vmatpush1.xpose.msra.mxu0 0.0
      %4064 = vmatprep.subr.mxu0 0.0
      %4065 = vmatpush1.xpose.msra.mxu0 0.0
      %4066 = vmatprep.subr.mxu0 0.0
      %4067 = vmatpush1.xpose.msra.mxu0 0.0
      %4068 = vmatprep.subr.mxu0 0.0
      %4069 = vmatpush1.xpose.msra.mxu0 0.0
      %4070 = vmatprep.subr.mxu0 0.0
      %4071 = vmatpush1.xpose.msra.mxu0 0.0
      %4072 = vmatprep.subr.mxu0 0.0
      %4073 = vmatpush1.xpose.msra.mxu0 0.0
      %4074 = vmatprep.subr.mxu0 0.0
      %4075 = vmatpush1.xpose.msra.mxu0 0.0
      %4076 = vmatprep.subr.mxu0 0.0
      %4077 = vmatpush1.xpose.msra.mxu0 0.0
      %4078 = vmatprep.subr.mxu0 0.0
      %4079 = vmatpush1.xpose.msra.mxu0 0.0
      %4080 = vmatprep.subr.mxu0 0.0
      %4081 = vmatpush1.xpose.msra.mxu0 0.0
      %4082 = vmatprep.subr.mxu0 0.0
      %4083 = vmatpush1.xpose.msra.mxu0 0.0
      %4084 = vmatprep.subr.mxu0 0.0
      %4085 = vmatpush1.xpose.msra.mxu0 0.0
      %4086 = vmatprep.subr.mxu0 0.0
      %4087 = vmatpush1.xpose.msra.mxu0 0.0
      %4088 = vmatprep.subr.mxu0 0.0
      %4089 = vmatpush1.xpose.msra.mxu0 0.0
      %4090 = vmatprep.subr.mxu0 0.0
      %4091 = vmatpush1.xpose.msra.mxu0 0.0
      %4092 = vmatprep.subr.mxu0 0.0
      %4093 = vmatpush1.xpose.msra.mxu0 0.0
      %4094 = vmatprep.subr.mxu0 0.0
      %4095 = vmatpush1.xpose.msra.mxu0 0.0
      %4096 = vmatprep.subr.mxu0 0.0
      %4097 = vmatpush1.xpose.msra.mxu0 0.0
      %4098 = vmatprep.subr.mxu0 0.0
      %4099 = vmatpush1.xpose.msra.mxu0 0.0
      %4100 = vmatprep.mubr.f32.mxu0 0.0
      %4101 = vmatmul.mubr.f32.gmra.mrb[0].mxu0 %v4028
      %v4102 = vpop.f32.mrb[0].mxu0
      %v4103 = vadd.f32 %v1409, %v4102
      %v4104 = vpop.f32.mrb[0].mxu0
      %4105 = vmatprep.mubr.f32.mxu0 0.0
      %4106 = vmatmul.mubr.f32.gmra.mrb[0].mxu0 %v4030
      %v4107 = vpop.f32.mrb[0].mxu0
      %v4108 = vadd.f32 %v1410, %v4107
      %v4109 = vpop.f32.mrb[0].mxu0
      %4110 = vdwg.mxu0
      %4111 = vrot.lane.b32.xlu0 %v1346, 96
      %v4112 = vpop.permute.xlu0 %4111
      %4113 = vrot.lane.b32.xlu0 %v1348, 96
      %v4114 = vpop.permute.xlu0 %4113
      %v4115 = vsel %vm1417, %v1346, 0
      %v4117 = vsel %vm1417, %v1348, 0
      %v4119 = vsel %vm1417, %v4112, 0
      %v4121 = vsel %vm1417, %v4114, 0
      %4123 = vmatprep.subr.mxu0 0.0
      %4124 = vmatpush1.xpose.msra.mxu0 %v4119
      %4125 = vmatprep.subr.mxu0 0.0
      %4126 = vmatpush1.xpose.msra.mxu0 %v4121
      %4127 = vmatprep.subr.mxu0 0.0
      %4128 = vmatpush1.xpose.msra.mxu0 0.0
      %4129 = vmatprep.subr.mxu0 0.0
      %4130 = vmatpush1.xpose.msra.mxu0 0.0
      %4131 = vmatprep.subr.mxu0 0.0
      %4132 = vmatpush1.xpose.msra.mxu0 0.0
      %4133 = vmatprep.subr.mxu0 0.0
      %4134 = vmatpush1.xpose.msra.mxu0 0.0
      %4135 = vmatprep.subr.mxu0 0.0
      %4136 = vmatpush1.xpose.msra.mxu0 0.0
      %4137 = vmatprep.subr.mxu0 0.0
      %4138 = vmatpush1.xpose.msra.mxu0 0.0
      %4139 = vmatprep.subr.mxu0 0.0
      %4140 = vmatpush1.xpose.msra.mxu0 0.0
      %4141 = vmatprep.subr.mxu0 0.0
      %4142 = vmatpush1.xpose.msra.mxu0 0.0
      %4143 = vmatprep.subr.mxu0 0.0
      %4144 = vmatpush1.xpose.msra.mxu0 0.0
      %4145 = vmatprep.subr.mxu0 0.0
      %4146 = vmatpush1.xpose.msra.mxu0 0.0
      %4147 = vmatprep.subr.mxu0 0.0
      %4148 = vmatpush1.xpose.msra.mxu0 0.0
      %4149 = vmatprep.subr.mxu0 0.0
      %4150 = vmatpush1.xpose.msra.mxu0 0.0
      %4151 = vmatprep.subr.mxu0 0.0
      %4152 = vmatpush1.xpose.msra.mxu0 0.0
      %4153 = vmatprep.subr.mxu0 0.0
      %4154 = vmatpush1.xpose.msra.mxu0 0.0
      %4155 = vmatprep.subr.mxu0 0.0
      %4156 = vmatpush1.xpose.msra.mxu0 0.0
      %4157 = vmatprep.subr.mxu0 0.0
      %4158 = vmatpush1.xpose.msra.mxu0 0.0
      %4159 = vmatprep.subr.mxu0 0.0
      %4160 = vmatpush1.xpose.msra.mxu0 0.0
      %4161 = vmatprep.subr.mxu0 0.0
      %4162 = vmatpush1.xpose.msra.mxu0 0.0
      %4163 = vmatprep.subr.mxu0 0.0
      %4164 = vmatpush1.xpose.msra.mxu0 0.0
      %4165 = vmatprep.subr.mxu0 0.0
      %4166 = vmatpush1.xpose.msra.mxu0 0.0
      %4167 = vmatprep.subr.mxu0 0.0
      %4168 = vmatpush1.xpose.msra.mxu0 0.0
      %4169 = vmatprep.subr.mxu0 0.0
      %4170 = vmatpush1.xpose.msra.mxu0 0.0
      %4171 = vmatprep.subr.mxu0 0.0
      %4172 = vmatpush1.xpose.msra.mxu0 0.0
      %4173 = vmatprep.subr.mxu0 0.0
      %4174 = vmatpush1.xpose.msra.mxu0 0.0
      %4175 = vmatprep.subr.mxu0 0.0
      %4176 = vmatpush1.xpose.msra.mxu0 0.0
      %4177 = vmatprep.subr.mxu0 0.0
      %4178 = vmatpush1.xpose.msra.mxu0 0.0
      %4179 = vmatprep.subr.mxu0 0.0
      %4180 = vmatpush1.xpose.msra.mxu0 0.0
      %4181 = vmatprep.subr.mxu0 0.0
      %4182 = vmatpush1.xpose.msra.mxu0 0.0
      %4183 = vmatprep.subr.mxu0 0.0
      %4184 = vmatpush1.xpose.msra.mxu0 0.0
      %4185 = vmatprep.subr.mxu0 0.0
      %4186 = vmatpush1.xpose.msra.mxu0 0.0
      %4187 = vmatprep.mubr.f32.mxu0 0.0
      %4188 = vmatmul.mubr.f32.gmra.mrb[0].mxu0 %v4115
      %v4189 = vpop.f32.mrb[0].mxu0
      %v4190 = vadd.f32 %v1411, %v4189
      %v4191 = vpop.f32.mrb[0].mxu0
      %4192 = vmatprep.mubr.f32.mxu0 0.0
      %4193 = vmatmul.mubr.f32.gmra.mrb[0].mxu0 %v4117
      %v4194 = vpop.f32.mrb[0].mxu0
      %v4195 = vadd.f32 %v1412, %v4194
      %v4196 = vpop.f32.mrb[0].mxu0
      %4197 = vdwg.mxu0
      %vm4198 = vcmask 130048
      %v4199 = vsel %vm4198, %v1493, -inf
      %4200 = vmax.xlane.f32.xlu0 %v4199
      %v4201 = vpop.xlane.xlu0 %4200
      %v4202 = vsel %vm4198, %v1498, -inf
      %4203 = vmax.xlane.f32.xlu0 %v4202
      %v4204 = vpop.xlane.xlu0 %4203
      %v4205 = vsel %vm4198, %v1580, -inf
      %4206 = vmax.xlane.f32.xlu0 %v4205
      %v4207 = vpop.xlane.xlu0 %4206
      %v4208 = vsel %vm4198, %v1585, -inf
      %4209 = vmax.xlane.f32.xlu0 %v4208
      %v4210 = vpop.xlane.xlu0 %4209
      %v4211 = vsel %vm4198, %v1667, -inf
      %4212 = vmax.xlane.f32.xlu0 %v4211
      %v4213 = vpop.xlane.xlu0 %4212
      %v4214 = vsel %vm4198, %v1672, -inf
      %4215 = vmax.xlane.f32.xlu0 %v4214
      %v4216 = vpop.xlane.xlu0 %4215
      %v4217 = vsel %vm4198, %v1754, -inf
      %4218 = vmax.xlane.f32.xlu0 %v4217
      %v4219 = vpop.xlane.xlu0 %4218
      %v4220 = vsel %vm4198, %v1759, -inf
      %4221 = vmax.xlane.f32.xlu0 %v4220
      %v4222 = vpop.xlane.xlu0 %4221
      %v4223 = vsel %vm4198, %v1841, -inf
      %4224 = vmax.xlane.f32.xlu0 %v4223
      %v4225 = vpop.xlane.xlu0 %4224
      %v4226 = vsel %vm4198, %v1846, -inf
      %4227 = vmax.xlane.f32.xlu0 %v4226
      %v4228 = vpop.xlane.xlu0 %4227
      %v4229 = vsel %vm4198, %v1928, -inf
      %4230 = vmax.xlane.f32.xlu0 %v4229
      %v4231 = vpop.xlane.xlu0 %4230
      %v4232 = vsel %vm4198, %v1933, -inf
      %4233 = vmax.xlane.f32.xlu0 %v4232
      %v4234 = vpop.xlane.xlu0 %4233
      %v4235 = vsel %vm4198, %v2015, -inf
      %4236 = vmax.xlane.f32.xlu0 %v4235
      %v4237 = vpop.xlane.xlu0 %4236
      %v4238 = vsel %vm4198, %v2020, -inf
      %4239 = vmax.xlane.f32.xlu0 %v4238
      %v4240 = vpop.xlane.xlu0 %4239
      %v4241 = vsel %vm4198, %v2102, -inf
      %4242 = vmax.xlane.f32.xlu0 %v4241
      %v4243 = vpop.xlane.xlu0 %4242
      %v4244 = vsel %vm4198, %v2107, -inf
      %4245 = vmax.xlane.f32.xlu0 %v4244
      %v4246 = vpop.xlane.xlu0 %4245
      %v4247 = vsel %vm4198, %v2189, -inf
      %4248 = vmax.xlane.f32.xlu0 %v4247
      %v4249 = vpop.xlane.xlu0 %4248
      %v4250 = vsel %vm4198, %v2194, -inf
      %4251 = vmax.xlane.f32.xlu0 %v4250
      %v4252 = vpop.xlane.xlu0 %4251
      %v4253 = vsel %vm4198, %v2276, -inf
      %4254 = vmax.xlane.f32.xlu0 %v4253
      %v4255 = vpop.xlane.xlu0 %4254
      %v4256 = vsel %vm4198, %v2281, -inf
      %4257 = vmax.xlane.f32.xlu0 %v4256
      %v4258 = vpop.xlane.xlu0 %4257
      %v4259 = vsel %vm4198, %v2363, -inf
      %4260 = vmax.xlane.f32.xlu0 %v4259
      %v4261 = vpop.xlane.xlu0 %4260
      %v4262 = vsel %vm4198, %v2368, -inf
      %4263 = vmax.xlane.f32.xlu0 %v4262
      %v4264 = vpop.xlane.xlu0 %4263
      %v4265 = vsel %vm4198, %v2450, -inf
      %4266 = vmax.xlane.f32.xlu0 %v4265
      %v4267 = vpop.xlane.xlu0 %4266
      %v4268 = vsel %vm4198, %v2455, -inf
      %4269 = vmax.xlane.f32.xlu0 %v4268
      %v4270 = vpop.xlane.xlu0 %4269
      %v4271 = vsel %vm4198, %v2537, -inf
      %4272 = vmax.xlane.f32.xlu0 %v4271
      %v4273 = vpop.xlane.xlu0 %4272
      %v4274 = vsel %vm4198, %v2542, -inf
      %4275 = vmax.xlane.f32.xlu0 %v4274
      %v4276 = vpop.xlane.xlu0 %4275
      %v4277 = vsel %vm4198, %v2624, -inf
      %4278 = vmax.xlane.f32.xlu0 %v4277
      %v4279 = vpop.xlane.xlu0 %4278
      %v4280 = vsel %vm4198, %v2629, -inf
      %4281 = vmax.xlane.f32.xlu0 %v4280
      %v4282 = vpop.xlane.xlu0 %4281
      %v4283 = vsel %vm4198, %v2711, -inf
      %4284 = vmax.xlane.f32.xlu0 %v4283
      %v4285 = vpop.xlane.xlu0 %4284
      %v4286 = vsel %vm4198, %v2716, -inf
      %4287 = vmax.xlane.f32.xlu0 %v4286
      %v4288 = vpop.xlane.xlu0 %4287
      %v4289 = vsel %vm4198, %v2798, -inf
      %4290 = vmax.xlane.f32.xlu0 %v4289
      %v4291 = vpop.xlane.xlu0 %4290
      %v4292 = vsel %vm4198, %v2803, -inf
      %4293 = vmax.xlane.f32.xlu0 %v4292
      %v4294 = vpop.xlane.xlu0 %4293
      %v4295 = vsel %vm4198, %v2885, -inf
      %4296 = vmax.xlane.f32.xlu0 %v4295
      %v4297 = vpop.xlane.xlu0 %4296
      %v4298 = vsel %vm4198, %v2890, -inf
      %4299 = vmax.xlane.f32.xlu0 %v4298
      %v4300 = vpop.xlane.xlu0 %4299
      %v4301 = vsel %vm4198, %v2972, -inf
      %4302 = vmax.xlane.f32.xlu0 %v4301
      %v4303 = vpop.xlane.xlu0 %4302
      %v4304 = vsel %vm4198, %v2977, -inf
      %4305 = vmax.xlane.f32.xlu0 %v4304
      %v4306 = vpop.xlane.xlu0 %4305
      %v4307 = vsel %vm4198, %v3059, -inf
      %4308 = vmax.xlane.f32.xlu0 %v4307
      %v4309 = vpop.xlane.xlu0 %4308
      %v4310 = vsel %vm4198, %v3064, -inf
      %4311 = vmax.xlane.f32.xlu0 %v4310
      %v4312 = vpop.xlane.xlu0 %4311
      %v4313 = vsel %vm4198, %v3146, -inf
      %4314 = vmax.xlane.f32.xlu0 %v4313
      %v4315 = vpop.xlane.xlu0 %4314
      %v4316 = vsel %vm4198, %v3151, -inf
      %4317 = vmax.xlane.f32.xlu0 %v4316
      %v4318 = vpop.xlane.xlu0 %4317
      %v4319 = vsel %vm4198, %v3233, -inf
      %4320 = vmax.xlane.f32.xlu0 %v4319
      %v4321 = vpop.xlane.xlu0 %4320
      %v4322 = vsel %vm4198, %v3238, -inf
      %4323 = vmax.xlane.f32.xlu0 %v4322
      %v4324 = vpop.xlane.xlu0 %4323
      %v4325 = vsel %vm4198, %v3320, -inf
      %4326 = vmax.xlane.f32.xlu0 %v4325
      %v4327 = vpop.xlane.xlu0 %4326
      %v4328 = vsel %vm4198, %v3325, -inf
      %4329 = vmax.xlane.f32.xlu0 %v4328
      %v4330 = vpop.xlane.xlu0 %4329
      %v4331 = vsel %vm4198, %v3407, -inf
      %4332 = vmax.xlane.f32.xlu0 %v4331
      %v4333 = vpop.xlane.xlu0 %4332
      %v4334 = vsel %vm4198, %v3412, -inf
      %4335 = vmax.xlane.f32.xlu0 %v4334
      %v4336 = vpop.xlane.xlu0 %4335
      %v4337 = vsel %vm4198, %v3494, -inf
      %4338 = vmax.xlane.f32.xlu0 %v4337
      %v4339 = vpop.xlane.xlu0 %4338
      %v4340 = vsel %vm4198, %v3499, -inf
      %4341 = vmax.xlane.f32.xlu0 %v4340
      %v4342 = vpop.xlane.xlu0 %4341
      %v4343 = vsel %vm4198, %v3581, -inf
      %4344 = vmax.xlane.f32.xlu0 %v4343
      %v4345 = vpop.xlane.xlu0 %4344
      %v4346 = vsel %vm4198, %v3586, -inf
      %4347 = vmax.xlane.f32.xlu0 %v4346
      %v4348 = vpop.xlane.xlu0 %4347
      %v4349 = vsel %vm4198, %v3668, -inf
      %4350 = vmax.xlane.f32.xlu0 %v4349
      %v4351 = vpop.xlane.xlu0 %4350
      %v4352 = vsel %vm4198, %v3673, -inf
      %4353 = vmax.xlane.f32.xlu0 %v4352
      %v4354 = vpop.xlane.xlu0 %4353
      %v4355 = vsel %vm4198, %v3755, -inf
      %4356 = vmax.xlane.f32.xlu0 %v4355
      %v4357 = vpop.xlane.xlu0 %4356
      %v4358 = vsel %vm4198, %v3760, -inf
      %4359 = vmax.xlane.f32.xlu0 %v4358
      %v4360 = vpop.xlane.xlu0 %4359
      %v4361 = vsel %vm4198, %v3842, -inf
      %4362 = vmax.xlane.f32.xlu0 %v4361
      %v4363 = vpop.xlane.xlu0 %4362
      %v4364 = vsel %vm4198, %v3847, -inf
      %4365 = vmax.xlane.f32.xlu0 %v4364
      %v4366 = vpop.xlane.xlu0 %4365
      %v4367 = vsel %vm4198, %v3929, -inf
      %4368 = vmax.xlane.f32.xlu0 %v4367
      %v4369 = vpop.xlane.xlu0 %4368
      %v4370 = vsel %vm4198, %v3934, -inf
      %4371 = vmax.xlane.f32.xlu0 %v4370
      %v4372 = vpop.xlane.xlu0 %4371
      %v4373 = vsel %vm4198, %v4016, -inf
      %4374 = vmax.xlane.f32.xlu0 %v4373
      %v4375 = vpop.xlane.xlu0 %4374
      %v4376 = vsel %vm4198, %v4021, -inf
      %4377 = vmax.xlane.f32.xlu0 %v4376
      %v4378 = vpop.xlane.xlu0 %4377
      %v4379 = vsel %vm4198, %v4103, -inf
      %4380 = vmax.xlane.f32.xlu0 %v4379
      %v4381 = vpop.xlane.xlu0 %4380
      %v4382 = vsel %vm4198, %v4108, -inf
      %4383 = vmax.xlane.f32.xlu0 %v4382
      %v4384 = vpop.xlane.xlu0 %4383
      %v4385 = vsel %vm4198, %v4190, -inf
      %4386 = vmax.xlane.f32.xlu0 %v4385
      %v4387 = vpop.xlane.xlu0 %4386
      %v4388 = vsel %vm4198, %v4195, -inf
      %4389 = vmax.xlane.f32.xlu0 %v4388
      %v4390 = vpop.xlane.xlu0 %4389
      %v4391 = vsub.f32 %v1493, %v4201
      %v4392 = vsub.f32 %v1498, %v4204
      %v4393 = vsub.f32 %v1580, %v4207
      %v4394 = vsub.f32 %v1585, %v4210
      %v4395 = vsub.f32 %v1667, %v4213
      %v4396 = vsub.f32 %v1672, %v4216
      %v4397 = vsub.f32 %v1754, %v4219
      %v4398 = vsub.f32 %v1759, %v4222
      %v4399 = vsub.f32 %v1841, %v4225
      %v4400 = vsub.f32 %v1846, %v4228
      %v4401 = vsub.f32 %v1928, %v4231
      %v4402 = vsub.f32 %v1933, %v4234
      %v4403 = vsub.f32 %v2015, %v4237
      %v4404 = vsub.f32 %v2020, %v4240
      %v4405 = vsub.f32 %v2102, %v4243
      %v4406 = vsub.f32 %v2107, %v4246
      %v4407 = vsub.f32 %v2189, %v4249
      %v4408 = vsub.f32 %v2194, %v4252
      %v4409 = vsub.f32 %v2276, %v4255
      %v4410 = vsub.f32 %v2281, %v4258
      %v4411 = vsub.f32 %v2363, %v4261
      %v4412 = vsub.f32 %v2368, %v4264
      %v4413 = vsub.f32 %v2450, %v4267
      %v4414 = vsub.f32 %v2455, %v4270
      %v4415 = vsub.f32 %v2537, %v4273
      %v4416 = vsub.f32 %v2542, %v4276
      %v4417 = vsub.f32 %v2624, %v4279
      %v4418 = vsub.f32 %v2629, %v4282
      %v4419 = vsub.f32 %v2711, %v4285
      %v4420 = vsub.f32 %v2716, %v4288
      %v4421 = vsub.f32 %v2798, %v4291
      %v4422 = vsub.f32 %v2803, %v4294
      %v4423 = vsub.f32 %v2885, %v4297
      %v4424 = vsub.f32 %v2890, %v4300
      %v4425 = vsub.f32 %v2972, %v4303
      %v4426 = vsub.f32 %v2977, %v4306
      %v4427 = vsub.f32 %v3059, %v4309
      %v4428 = vsub.f32 %v3064, %v4312
      %v4429 = vsub.f32 %v3146, %v4315
      %v4430 = vsub.f32 %v3151, %v4318
      %v4431 = vsub.f32 %v3233, %v4321
      %v4432 = vsub.f32 %v3238, %v4324
      %v4433 = vsub.f32 %v3320, %v4327
      %v4434 = vsub.f32 %v3325, %v4330
      %v4435 = vsub.f32 %v3407, %v4333
      %v4436 = vsub.f32 %v3412, %v4336
      %v4437 = vsub.f32 %v3494, %v4339
      %v4438 = vsub.f32 %v3499, %v4342
      %v4439 = vsub.f32 %v3581, %v4345
      %v4440 = vsub.f32 %v3586, %v4348
      %v4441 = vsub.f32 %v3668, %v4351
      %v4442 = vsub.f32 %v3673, %v4354
      %v4443 = vsub.f32 %v3755, %v4357
      %v4444 = vsub.f32 %v3760, %v4360
      %v4445 = vsub.f32 %v3842, %v4363
      %v4446 = vsub.f32 %v3847, %v4366
      %v4447 = vsub.f32 %v3929, %v4369
      %v4448 = vsub.f32 %v3934, %v4372
      %v4449 = vsub.f32 %v4016, %v4375
      %v4450 = vsub.f32 %v4021, %v4378
      %v4451 = vsub.f32 %v4103, %v4381
      %v4452 = vsub.f32 %v4108, %v4384
      %v4453 = vsub.f32 %v4190, %v4387
      %v4454 = vsub.f32 %v4195, %v4390
      %v4455 = vmul.f32 %v4391, 1.442695
      %v4456 = vpow.pop %v4455
      %v4457 = vmul.f32 %v4392, 1.442695
      %v4458 = vpow.pop %v4457
      %v4459 = vmul.f32 %v4393, 1.442695
      %v4460 = vpow.pop %v4459
      %v4461 = vmul.f32 %v4394, 1.442695
      %v4462 = vpow.pop %v4461
      %v4463 = vmul.f32 %v4395, 1.442695
      %v4464 = vpow.pop %v4463
      %v4465 = vmul.f32 %v4396, 1.442695
      %v4466 = vpow.pop %v4465
      %v4467 = vmul.f32 %v4397, 1.442695
      %v4468 = vpow.pop %v4467
      %v4469 = vmul.f32 %v4398, 1.442695
      %v4470 = vpow.pop %v4469
      %v4471 = vmul.f32 %v4399, 1.442695
      %v4472 = vpow.pop %v4471
      %v4473 = vmul.f32 %v4400, 1.442695
      %v4474 = vpow.pop %v4473
      %v4475 = vmul.f32 %v4401, 1.442695
      %v4476 = vpow.pop %v4475
      %v4477 = vmul.f32 %v4402, 1.442695
      %v4478 = vpow.pop %v4477
      %v4479 = vmul.f32 %v4403, 1.442695
      %v4480 = vpow.pop %v4479
      %v4481 = vmul.f32 %v4404, 1.442695
      %v4482 = vpow.pop %v4481
      %v4483 = vmul.f32 %v4405, 1.442695
      %v4484 = vpow.pop %v4483
      %v4485 = vmul.f32 %v4406, 1.442695
      %v4486 = vpow.pop %v4485
      %v4487 = vmul.f32 %v4407, 1.442695
      %v4488 = vpow.pop %v4487
      %v4489 = vmul.f32 %v4408, 1.442695
      %v4490 = vpow.pop %v4489
      %v4491 = vmul.f32 %v4409, 1.442695
      %v4492 = vpow.pop %v4491
      %v4493 = vmul.f32 %v4410, 1.442695
      %v4494 = vpow.pop %v4493
      %v4495 = vmul.f32 %v4411, 1.442695
      %v4496 = vpow.pop %v4495
      %v4497 = vmul.f32 %v4412, 1.442695
      %v4498 = vpow.pop %v4497
      %v4499 = vmul.f32 %v4413, 1.442695
      %v4500 = vpow.pop %v4499
      %v4501 = vmul.f32 %v4414, 1.442695
      %v4502 = vpow.pop %v4501
      %v4503 = vmul.f32 %v4415, 1.442695
      %v4504 = vpow.pop %v4503
      %v4505 = vmul.f32 %v4416, 1.442695
      %v4506 = vpow.pop %v4505
      %v4507 = vmul.f32 %v4417, 1.442695
      %v4508 = vpow.pop %v4507
      %v4509 = vmul.f32 %v4418, 1.442695
      %v4510 = vpow.pop %v4509
      %v4511 = vmul.f32 %v4419, 1.442695
      %v4512 = vpow.pop %v4511
      %v4513 = vmul.f32 %v4420, 1.442695
      %v4514 = vpow.pop %v4513
      %v4515 = vmul.f32 %v4421, 1.442695
      %v4516 = vpow.pop %v4515
      %v4517 = vmul.f32 %v4422, 1.442695
      %v4518 = vpow.pop %v4517
      %v4519 = vmul.f32 %v4423, 1.442695
      %v4520 = vpow.pop %v4519
      %v4521 = vmul.f32 %v4424, 1.442695
      %v4522 = vpow.pop %v4521
      %v4523 = vmul.f32 %v4425, 1.442695
      %v4524 = vpow.pop %v4523
      %v4525 = vmul.f32 %v4426, 1.442695
      %v4526 = vpow.pop %v4525
      %v4527 = vmul.f32 %v4427, 1.442695
      %v4528 = vpow.pop %v4527
      %v4529 = vmul.f32 %v4428, 1.442695
      %v4530 = vpow.pop %v4529
      %v4531 = vmul.f32 %v4429, 1.442695
      %v4532 = vpow.pop %v4531
      %v4533 = vmul.f32 %v4430, 1.442695
      %v4534 = vpow.pop %v4533
      %v4535 = vmul.f32 %v4431, 1.442695
      %v4536 = vpow.pop %v4535
      %v4537 = vmul.f32 %v4432, 1.442695
      %v4538 = vpow.pop %v4537
      %v4539 = vmul.f32 %v4433, 1.442695
      %v4540 = vpow.pop %v4539
      %v4541 = vmul.f32 %v4434, 1.442695
      %v4542 = vpow.pop %v4541
      %v4543 = vmul.f32 %v4435, 1.442695
      %v4544 = vpow.pop %v4543
      %v4545 = vmul.f32 %v4436, 1.442695
      %v4546 = vpow.pop %v4545
      %v4547 = vmul.f32 %v4437, 1.442695
      %v4548 = vpow.pop %v4547
      %v4549 = vmul.f32 %v4438, 1.442695
      %v4550 = vpow.pop %v4549
      %v4551 = vmul.f32 %v4439, 1.442695
      %v4552 = vpow.pop %v4551
      %v4553 = vmul.f32 %v4440, 1.442695
      %v4554 = vpow.pop %v4553
      %v4555 = vmul.f32 %v4441, 1.442695
      %v4556 = vpow.pop %v4555
      %v4557 = vmul.f32 %v4442, 1.442695
      %v4558 = vpow.pop %v4557
      %v4559 = vmul.f32 %v4443, 1.442695
      %v4560 = vpow.pop %v4559
      %v4561 = vmul.f32 %v4444, 1.442695
      %v4562 = vpow.pop %v4561
      %v4563 = vmul.f32 %v4445, 1.442695
      %v4564 = vpow.pop %v4563
      %v4565 = vmul.f32 %v4446, 1.442695
      %v4566 = vpow.pop %v4565
      %v4567 = vmul.f32 %v4447, 1.442695
      %v4568 = vpow.pop %v4567
      %v4569 = vmul.f32 %v4448, 1.442695
      %v4570 = vpow.pop %v4569
      %v4571 = vmul.f32 %v4449, 1.442695
      %v4572 = vpow.pop %v4571
      %v4573 = vmul.f32 %v4450, 1.442695
      %v4574 = vpow.pop %v4573
      %v4575 = vmul.f32 %v4451, 1.442695
      %v4576 = vpow.pop %v4575
      %v4577 = vmul.f32 %v4452, 1.442695
      %v4578 = vpow.pop %v4577
      %v4579 = vmul.f32 %v4453, 1.442695
      %v4580 = vpow.pop %v4579
      %v4581 = vmul.f32 %v4454, 1.442695
      %v4582 = vpow.pop %v4581
      %v4583 = vsel %vm4198, %v4456, 0.0
      %4584 = vadd.xlane.f32.xlu0 %v4583
      %v4585 = vpop.xlane.xlu0 %4584
      %v4586 = vsel %vm4198, %v4458, 0.0
      %4587 = vadd.xlane.f32.xlu0 %v4586
      %v4588 = vpop.xlane.xlu0 %4587
      %v4589 = vsel %vm4198, %v4460, 0.0
      %4590 = vadd.xlane.f32.xlu0 %v4589
      %v4591 = vpop.xlane.xlu0 %4590
      %v4592 = vsel %vm4198, %v4462, 0.0
      %4593 = vadd.xlane.f32.xlu0 %v4592
      %v4594 = vpop.xlane.xlu0 %4593
      %v4595 = vsel %vm4198, %v4464, 0.0
      %4596 = vadd.xlane.f32.xlu0 %v4595
      %v4597 = vpop.xlane.xlu0 %4596
      %v4598 = vsel %vm4198, %v4466, 0.0
      %4599 = vadd.xlane.f32.xlu0 %v4598
      %v4600 = vpop.xlane.xlu0 %4599
      %v4601 = vsel %vm4198, %v4468, 0.0
      %4602 = vadd.xlane.f32.xlu0 %v4601
      %v4603 = vpop.xlane.xlu0 %4602
      %v4604 = vsel %vm4198, %v4470, 0.0
      %4605 = vadd.xlane.f32.xlu0 %v4604
      %v4606 = vpop.xlane.xlu0 %4605
      %v4607 = vsel %vm4198, %v4472, 0.0
      %4608 = vadd.xlane.f32.xlu0 %v4607
      %v4609 = vpop.xlane.xlu0 %4608
      %v4610 = vsel %vm4198, %v4474, 0.0
      %4611 = vadd.xlane.f32.xlu0 %v4610
      %v4612 = vpop.xlane.xlu0 %4611
      %v4613 = vsel %vm4198, %v4476, 0.0
      %4614 = vadd.xlane.f32.xlu0 %v4613
      %v4615 = vpop.xlane.xlu0 %4614
      %v4616 = vsel %vm4198, %v4478, 0.0
      %4617 = vadd.xlane.f32.xlu0 %v4616
      %v4618 = vpop.xlane.xlu0 %4617
      %v4619 = vsel %vm4198, %v4480, 0.0
      %4620 = vadd.xlane.f32.xlu0 %v4619
      %v4621 = vpop.xlane.xlu0 %4620
      %v4622 = vsel %vm4198, %v4482, 0.0
      %4623 = vadd.xlane.f32.xlu0 %v4622
      %v4624 = vpop.xlane.xlu0 %4623
      %v4625 = vsel %vm4198, %v4484, 0.0
      %4626 = vadd.xlane.f32.xlu0 %v4625
      %v4627 = vpop.xlane.xlu0 %4626
      %v4628 = vsel %vm4198, %v4486, 0.0
      %4629 = vadd.xlane.f32.xlu0 %v4628
      %v4630 = vpop.xlane.xlu0 %4629
      %v4631 = vsel %vm4198, %v4488, 0.0
      %4632 = vadd.xlane.f32.xlu0 %v4631
      %v4633 = vpop.xlane.xlu0 %4632
      %v4634 = vsel %vm4198, %v4490, 0.0
      %4635 = vadd.xlane.f32.xlu0 %v4634
      %v4636 = vpop.xlane.xlu0 %4635
      %v4637 = vsel %vm4198, %v4492, 0.0
      %4638 = vadd.xlane.f32.xlu0 %v4637
      %v4639 = vpop.xlane.xlu0 %4638
      %v4640 = vsel %vm4198, %v4494, 0.0
      %4641 = vadd.xlane.f32.xlu0 %v4640
      %v4642 = vpop.xlane.xlu0 %4641
      %v4643 = vsel %vm4198, %v4496, 0.0
      %4644 = vadd.xlane.f32.xlu0 %v4643
      %v4645 = vpop.xlane.xlu0 %4644
      %v4646 = vsel %vm4198, %v4498, 0.0
      %4647 = vadd.xlane.f32.xlu0 %v4646
      %v4648 = vpop.xlane.xlu0 %4647
      %v4649 = vsel %vm4198, %v4500, 0.0
      %4650 = vadd.xlane.f32.xlu0 %v4649
      %v4651 = vpop.xlane.xlu0 %4650
      %v4652 = vsel %vm4198, %v4502, 0.0
      %4653 = vadd.xlane.f32.xlu0 %v4652
      %v4654 = vpop.xlane.xlu0 %4653
      %v4655 = vsel %vm4198, %v4504, 0.0
      %4656 = vadd.xlane.f32.xlu0 %v4655
      %v4657 = vpop.xlane.xlu0 %4656
      %v4658 = vsel %vm4198, %v4506, 0.0
      %4659 = vadd.xlane.f32.xlu0 %v4658
      %v4660 = vpop.xlane.xlu0 %4659
      %v4661 = vsel %vm4198, %v4508, 0.0
      %4662 = vadd.xlane.f32.xlu0 %v4661
      %v4663 = vpop.xlane.xlu0 %4662
      %v4664 = vsel %vm4198, %v4510, 0.0
      %4665 = vadd.xlane.f32.xlu0 %v4664
      %v4666 = vpop.xlane.xlu0 %4665
      %v4667 = vsel %vm4198, %v4512, 0.0
      %4668 = vadd.xlane.f32.xlu0 %v4667
      %v4669 = vpop.xlane.xlu0 %4668
      %v4670 = vsel %vm4198, %v4514, 0.0
      %4671 = vadd.xlane.f32.xlu0 %v4670
      %v4672 = vpop.xlane.xlu0 %4671
      %v4673 = vsel %vm4198, %v4516, 0.0
      %4674 = vadd.xlane.f32.xlu0 %v4673
      %v4675 = vpop.xlane.xlu0 %4674
      %v4676 = vsel %vm4198, %v4518, 0.0
      %4677 = vadd.xlane.f32.xlu0 %v4676
      %v4678 = vpop.xlane.xlu0 %4677
      %v4679 = vsel %vm4198, %v4520, 0.0
      %4680 = vadd.xlane.f32.xlu0 %v4679
      %v4681 = vpop.xlane.xlu0 %4680
      %v4682 = vsel %vm4198, %v4522, 0.0
      %4683 = vadd.xlane.f32.xlu0 %v4682
      %v4684 = vpop.xlane.xlu0 %4683
      %v4685 = vsel %vm4198, %v4524, 0.0
      %4686 = vadd.xlane.f32.xlu0 %v4685
      %v4687 = vpop.xlane.xlu0 %4686
      %v4688 = vsel %vm4198, %v4526, 0.0
      %4689 = vadd.xlane.f32.xlu0 %v4688
      %v4690 = vpop.xlane.xlu0 %4689
      %v4691 = vsel %vm4198, %v4528, 0.0
      %4692 = vadd.xlane.f32.xlu0 %v4691
      %v4693 = vpop.xlane.xlu0 %4692
      %v4694 = vsel %vm4198, %v4530, 0.0
      %4695 = vadd.xlane.f32.xlu0 %v4694
      %v4696 = vpop.xlane.xlu0 %4695
      %v4697 = vsel %vm4198, %v4532, 0.0
      %4698 = vadd.xlane.f32.xlu0 %v4697
      %v4699 = vpop.xlane.xlu0 %4698
      %v4700 = vsel %vm4198, %v4534, 0.0
      %4701 = vadd.xlane.f32.xlu0 %v4700
      %v4702 = vpop.xlane.xlu0 %4701
      %v4703 = vsel %vm4198, %v4536, 0.0
      %4704 = vadd.xlane.f32.xlu0 %v4703
      %v4705 = vpop.xlane.xlu0 %4704
      %v4706 = vsel %vm4198, %v4538, 0.0
      %4707 = vadd.xlane.f32.xlu0 %v4706
      %v4708 = vpop.xlane.xlu0 %4707
      %v4709 = vsel %vm4198, %v4540, 0.0
      %4710 = vadd.xlane.f32.xlu0 %v4709
      %v4711 = vpop.xlane.xlu0 %4710
      %v4712 = vsel %vm4198, %v4542, 0.0
      %4713 = vadd.xlane.f32.xlu0 %v4712
      %v4714 = vpop.xlane.xlu0 %4713
      %v4715 = vsel %vm4198, %v4544, 0.0
      %4716 = vadd.xlane.f32.xlu0 %v4715
      %v4717 = vpop.xlane.xlu0 %4716
      %v4718 = vsel %vm4198, %v4546, 0.0
      %4719 = vadd.xlane.f32.xlu0 %v4718
      %v4720 = vpop.xlane.xlu0 %4719
      %v4721 = vsel %vm4198, %v4548, 0.0
      %4722 = vadd.xlane.f32.xlu0 %v4721
      %v4723 = vpop.xlane.xlu0 %4722
      %v4724 = vsel %vm4198, %v4550, 0.0
      %4725 = vadd.xlane.f32.xlu0 %v4724
      %v4726 = vpop.xlane.xlu0 %4725
      %v4727 = vsel %vm4198, %v4552, 0.0
      %4728 = vadd.xlane.f32.xlu0 %v4727
      %v4729 = vpop.xlane.xlu0 %4728
      %v4730 = vsel %vm4198, %v4554, 0.0
      %4731 = vadd.xlane.f32.xlu0 %v4730
      %v4732 = vpop.xlane.xlu0 %4731
      %v4733 = vsel %vm4198, %v4556, 0.0
      %4734 = vadd.xlane.f32.xlu0 %v4733
      %v4735 = vpop.xlane.xlu0 %4734
      %v4736 = vsel %vm4198, %v4558, 0.0
      %4737 = vadd.xlane.f32.xlu0 %v4736
      %v4738 = vpop.xlane.xlu0 %4737
      %v4739 = vsel %vm4198, %v4560, 0.0
      %4740 = vadd.xlane.f32.xlu0 %v4739
      %v4741 = vpop.xlane.xlu0 %4740
      %v4742 = vsel %vm4198, %v4562, 0.0
      %4743 = vadd.xlane.f32.xlu0 %v4742
      %v4744 = vpop.xlane.xlu0 %4743
      %v4745 = vsel %vm4198, %v4564, 0.0
      %4746 = vadd.xlane.f32.xlu0 %v4745
      %v4747 = vpop.xlane.xlu0 %4746
      %v4748 = vsel %vm4198, %v4566, 0.0
      %4749 = vadd.xlane.f32.xlu0 %v4748
      %v4750 = vpop.xlane.xlu0 %4749
      %v4751 = vsel %vm4198, %v4568, 0.0
      %4752 = vadd.xlane.f32.xlu0 %v4751
      %v4753 = vpop.xlane.xlu0 %4752
      %v4754 = vsel %vm4198, %v4570, 0.0
      %4755 = vadd.xlane.f32.xlu0 %v4754
      %v4756 = vpop.xlane.xlu0 %4755
      %v4757 = vsel %vm4198, %v4572, 0.0
      %4758 = vadd.xlane.f32.xlu0 %v4757
      %v4759 = vpop.xlane.xlu0 %4758
      %v4760 = vsel %vm4198, %v4574, 0.0
      %4761 = vadd.xlane.f32.xlu0 %v4760
      %v4762 = vpop.xlane.xlu0 %4761
      %v4763 = vsel %vm4198, %v4576, 0.0
      %4764 = vadd.xlane.f32.xlu0 %v4763
      %v4765 = vpop.xlane.xlu0 %4764
      %v4766 = vsel %vm4198, %v4578, 0.0
      %4767 = vadd.xlane.f32.xlu0 %v4766
      %v4768 = vpop.xlane.xlu0 %4767
      %v4769 = vsel %vm4198, %v4580, 0.0
      %4770 = vadd.xlane.f32.xlu0 %v4769
      %v4771 = vpop.xlane.xlu0 %4770
      %v4772 = vsel %vm4198, %v4582, 0.0
      %4773 = vadd.xlane.f32.xlu0 %v4772
      %v4774 = vpop.xlane.xlu0 %4773
      %v4775 = vrcp.pop %v4585
      %v4776 = vrcp.pop %v4588
      %v4777 = vrcp.pop %v4591
      %v4778 = vrcp.pop %v4594
      %v4779 = vrcp.pop %v4597
      %v4780 = vrcp.pop %v4600
      %v4781 = vrcp.pop %v4603
      %v4782 = vrcp.pop %v4606
      %v4783 = vrcp.pop %v4609
      %v4784 = vrcp.pop %v4612
      %v4785 = vrcp.pop %v4615
      %v4786 = vrcp.pop %v4618
      %v4787 = vrcp.pop %v4621
      %v4788 = vrcp.pop %v4624
      %v4789 = vrcp.pop %v4627
      %v4790 = vrcp.pop %v4630
      %v4791 = vrcp.pop %v4633
      %v4792 = vrcp.pop %v4636
      %v4793 = vrcp.pop %v4639
      %v4794 = vrcp.pop %v4642
      %v4795 = vrcp.pop %v4645
      %v4796 = vrcp.pop %v4648
      %v4797 = vrcp.pop %v4651
      %v4798 = vrcp.pop %v4654
      %v4799 = vrcp.pop %v4657
      %v4800 = vrcp.pop %v4660
      %v4801 = vrcp.pop %v4663
      %v4802 = vrcp.pop %v4666
      %v4803 = vrcp.pop %v4669
      %v4804 = vrcp.pop %v4672
      %v4805 = vrcp.pop %v4675
      %v4806 = vrcp.pop %v4678
      %v4807 = vrcp.pop %v4681
      %v4808 = vrcp.pop %v4684
      %v4809 = vrcp.pop %v4687
      %v4810 = vrcp.pop %v4690
      %v4811 = vrcp.pop %v4693
      %v4812 = vrcp.pop %v4696
      %v4813 = vrcp.pop %v4699
      %v4814 = vrcp.pop %v4702
      %v4815 = vrcp.pop %v4705
      %v4816 = vrcp.pop %v4708
      %v4817 = vrcp.pop %v4711
      %v4818 = vrcp.pop %v4714
      %v4819 = vrcp.pop %v4717
      %v4820 = vrcp.pop %v4720
      %v4821 = vrcp.pop %v4723
      %v4822 = vrcp.pop %v4726
      %v4823 = vrcp.pop %v4729
      %v4824 = vrcp.pop %v4732
      %v4825 = vrcp.pop %v4735
      %v4826 = vrcp.pop %v4738
      %v4827 = vrcp.pop %v4741
      %v4828 = vrcp.pop %v4744
      %v4829 = vrcp.pop %v4747
      %v4830 = vrcp.pop %v4750
      %v4831 = vrcp.pop %v4753
      %v4832 = vrcp.pop %v4756
      %v4833 = vrcp.pop %v4759
      %v4834 = vrcp.pop %v4762
      %v4835 = vrcp.pop %v4765
      %v4836 = vrcp.pop %v4768
      %v4837 = vrcp.pop %v4771
      %v4838 = vrcp.pop %v4774
      %v4839 = vmul.f32 %v4456, %v4775
      %v4840 = vmul.f32 %v4458, %v4776
      %v4841 = vmul.f32 %v4460, %v4777
      %v4842 = vmul.f32 %v4462, %v4778
      %v4843 = vmul.f32 %v4464, %v4779
      %v4844 = vmul.f32 %v4466, %v4780
      %v4845 = vmul.f32 %v4468, %v4781
      %v4846 = vmul.f32 %v4470, %v4782
      %v4847 = vmul.f32 %v4472, %v4783
      %v4848 = vmul.f32 %v4474, %v4784
      %v4849 = vmul.f32 %v4476, %v4785
      %v4850 = vmul.f32 %v4478, %v4786
      %v4851 = vmul.f32 %v4480, %v4787
      %v4852 = vmul.f32 %v4482, %v4788
      %v4853 = vmul.f32 %v4484, %v4789
      %v4854 = vmul.f32 %v4486, %v4790
      %v4855 = vmul.f32 %v4488, %v4791
      %v4856 = vmul.f32 %v4490, %v4792
      %v4857 = vmul.f32 %v4492, %v4793
      %v4858 = vmul.f32 %v4494, %v4794
      %v4859 = vmul.f32 %v4496, %v4795
      %v4860 = vmul.f32 %v4498, %v4796
      %v4861 = vmul.f32 %v4500, %v4797
      %v4862 = vmul.f32 %v4502, %v4798
      %v4863 = vmul.f32 %v4504, %v4799
      %v4864 = vmul.f32 %v4506, %v4800
      %v4865 = vmul.f32 %v4508, %v4801
      %v4866 = vmul.f32 %v4510, %v4802
      %v4867 = vmul.f32 %v4512, %v4803
      %v4868 = vmul.f32 %v4514, %v4804
      %v4869 = vmul.f32 %v4516, %v4805
      %v4870 = vmul.f32 %v4518, %v4806
      %v4871 = vmul.f32 %v4520, %v4807
      %v4872 = vmul.f32 %v4522, %v4808
      %v4873 = vmul.f32 %v4524, %v4809
      %v4874 = vmul.f32 %v4526, %v4810
      %v4875 = vmul.f32 %v4528, %v4811
      %v4876 = vmul.f32 %v4530, %v4812
      %v4877 = vmul.f32 %v4532, %v4813
      %v4878 = vmul.f32 %v4534, %v4814
      %v4879 = vmul.f32 %v4536, %v4815
      %v4880 = vmul.f32 %v4538, %v4816
      %v4881 = vmul.f32 %v4540, %v4817
      %v4882 = vmul.f32 %v4542, %v4818
      %v4883 = vmul.f32 %v4544, %v4819
      %v4884 = vmul.f32 %v4546, %v4820
      %v4885 = vmul.f32 %v4548, %v4821
      %v4886 = vmul.f32 %v4550, %v4822
      %v4887 = vmul.f32 %v4552, %v4823
      %v4888 = vmul.f32 %v4554, %v4824
      %v4889 = vmul.f32 %v4556, %v4825
      %v4890 = vmul.f32 %v4558, %v4826
      %v4891 = vmul.f32 %v4560, %v4827
      %v4892 = vmul.f32 %v4562, %v4828
      %v4893 = vmul.f32 %v4564, %v4829
      %v4894 = vmul.f32 %v4566, %v4830
      %v4895 = vmul.f32 %v4568, %v4831
      %v4896 = vmul.f32 %v4570, %v4832
      %v4897 = vmul.f32 %v4572, %v4833
      %v4898 = vmul.f32 %v4574, %v4834
      %v4899 = vmul.f32 %v4576, %v4835
      %v4900 = vmul.f32 %v4578, %v4836
      %v4901 = vmul.f32 %v4580, %v4837
      %v4902 = vmul.f32 %v4582, %v4838
      %4903 = vrot.lane.b32.xlu0 %v1159, 64
      %v4904 = vpop.permute.xlu0 %4903
      %4905 = vrot.lane.b32.xlu0 %v1164, 64
      %v4906 = vpop.permute.xlu0 %4905
      %v4910 = vsel %vm4198, %v4839, 0
      %v4913 = vsel %vm4198, %v4840, 0
      %4915 = vmatprep.subr.mxu0 0.0
      %4916 = vmatpush1.msra.mxu0 %v4904
      %4917 = vmatprep.subr.mxu0 0.0
      %4918 = vmatpush1.msra.mxu0 %v4906
      %4919 = vmatprep.subr.mxu0 0.0
      %4920 = vmatpush1.msra.mxu0 0.0
      %4921 = vmatprep.subr.mxu0 0.0
      %4922 = vmatpush1.msra.mxu0 0.0
      %4923 = vmatprep.subr.mxu0 0.0
      %4924 = vmatpush1.msra.mxu0 0.0
      %4925 = vmatprep.subr.mxu0 0.0
      %4926 = vmatpush1.msra.mxu0 0.0
      %4927 = vmatprep.subr.mxu0 0.0
      %4928 = vmatpush1.msra.mxu0 0.0
      %4929 = vmatprep.subr.mxu0 0.0
      %4930 = vmatpush1.msra.mxu0 0.0
      %4931 = vmatprep.subr.mxu0 0.0
      %4932 = vmatpush1.msra.mxu0 0.0
      %4933 = vmatprep.subr.mxu0 0.0
      %4934 = vmatpush1.msra.mxu0 0.0
      %4935 = vmatprep.subr.mxu0 0.0
      %4936 = vmatpush1.msra.mxu0 0.0
      %4937 = vmatprep.subr.mxu0 0.0
      %4938 = vmatpush1.msra.mxu0 0.0
      %4939 = vmatprep.subr.mxu0 0.0
      %4940 = vmatpush1.msra.mxu0 0.0
      %4941 = vmatprep.subr.mxu0 0.0
      %4942 = vmatpush1.msra.mxu0 0.0
      %4943 = vmatprep.subr.mxu0 0.0
      %4944 = vmatpush1.msra.mxu0 0.0
      %4945 = vmatprep.subr.mxu0 0.0
      %4946 = vmatpush1.msra.mxu0 0.0
      %4947 = vmatprep.subr.mxu0 0.0
      %4948 = vmatpush1.msra.mxu0 0.0
      %4949 = vmatprep.subr.mxu0 0.0
      %4950 = vmatpush1.msra.mxu0 0.0
      %4951 = vmatprep.subr.mxu0 0.0
      %4952 = vmatpush1.msra.mxu0 0.0
      %4953 = vmatprep.subr.mxu0 0.0
      %4954 = vmatpush1.msra.mxu0 0.0
      %4955 = vmatprep.subr.mxu0 0.0
      %4956 = vmatpush1.msra.mxu0 0.0
      %4957 = vmatprep.subr.mxu0 0.0
      %4958 = vmatpush1.msra.mxu0 0.0
      %4959 = vmatprep.subr.mxu0 0.0
      %4960 = vmatpush1.msra.mxu0 0.0
      %4961 = vmatprep.subr.mxu0 0.0
      %4962 = vmatpush1.msra.mxu0 0.0
      %4963 = vmatprep.subr.mxu0 0.0
      %4964 = vmatpush1.msra.mxu0 0.0
      %4965 = vmatprep.subr.mxu0 0.0
      %4966 = vmatpush1.msra.mxu0 0.0
      %4967 = vmatprep.subr.mxu0 0.0
      %4968 = vmatpush1.msra.mxu0 0.0
      %4969 = vmatprep.subr.mxu0 0.0
      %4970 = vmatpush1.msra.mxu0 0.0
      %4971 = vmatprep.subr.mxu0 0.0
      %4972 = vmatpush1.msra.mxu0 0.0
      %4973 = vmatprep.subr.mxu0 0.0
      %4974 = vmatpush1.msra.mxu0 0.0
      %4975 = vmatprep.subr.mxu0 0.0
      %4976 = vmatpush1.msra.mxu0 0.0
      %4977 = vmatprep.subr.mxu0 0.0
      %4978 = vmatpush1.msra.mxu0 0.0
      %4979 = vmatprep.mubr.f32.mxu0 0.0
      %4980 = vmatmul.mubr.f32.gmra.mrb[0].mxu0 %v4910
      %v4981 = vpop.f32.mrb[0].mxu0
      %v4982 = vadd.f32 0.0, %v4981
      %v4983 = vpop.f32.mrb[0].mxu0
      %4984 = vmatprep.mubr.f32.mxu0 0.0
      %4985 = vmatmul.mubr.f32.gmra.mrb[0].mxu0 %v4913
      %v4986 = vpop.f32.mrb[0].mxu0
      %v4987 = vadd.f32 0.0, %v4986
      %v4988 = vpop.f32.mrb[0].mxu0
      %4989 = vdwg.mxu0
      %4990 = vrot.lane.b32.xlu0 %v1169, 64
      %v4991 = vpop.permute.xlu0 %4990
      %4992 = vrot.lane.b32.xlu0 %v1174, 64
      %v4993 = vpop.permute.xlu0 %4992
      %v4997 = vsel %vm4198, %v4841, 0
      %v5000 = vsel %vm4198, %v4842, 0
      %5002 = vmatprep.subr.mxu0 0.0
      %5003 = vmatpush1.msra.mxu0 %v4991
      %5004 = vmatprep.subr.mxu0 0.0
      %5005 = vmatpush1.msra.mxu0 %v4993
      %5006 = vmatprep.subr.mxu0 0.0
      %5007 = vmatpush1.msra.mxu0 0.0
      %5008 = vmatprep.subr.mxu0 0.0
      %5009 = vmatpush1.msra.mxu0 0.0
      %5010 = vmatprep.subr.mxu0 0.0
      %5011 = vmatpush1.msra.mxu0 0.0
      %5012 = vmatprep.subr.mxu0 0.0
      %5013 = vmatpush1.msra.mxu0 0.0
      %5014 = vmatprep.subr.mxu0 0.0
      %5015 = vmatpush1.msra.mxu0 0.0
      %5016 = vmatprep.subr.mxu0 0.0
      %5017 = vmatpush1.msra.mxu0 0.0
      %5018 = vmatprep.subr.mxu0 0.0
      %5019 = vmatpush1.msra.mxu0 0.0
      %5020 = vmatprep.subr.mxu0 0.0
      %5021 = vmatpush1.msra.mxu0 0.0
      %5022 = vmatprep.subr.mxu0 0.0
      %5023 = vmatpush1.msra.mxu0 0.0
      %5024 = vmatprep.subr.mxu0 0.0
      %5025 = vmatpush1.msra.mxu0 0.0
      %5026 = vmatprep.subr.mxu0 0.0
      %5027 = vmatpush1.msra.mxu0 0.0
      %5028 = vmatprep.subr.mxu0 0.0
      %5029 = vmatpush1.msra.mxu0 0.0
      %5030 = vmatprep.subr.mxu0 0.0
      %5031 = vmatpush1.msra.mxu0 0.0
      %5032 = vmatprep.subr.mxu0 0.0
      %5033 = vmatpush1.msra.mxu0 0.0
      %5034 = vmatprep.subr.mxu0 0.0
      %5035 = vmatpush1.msra.mxu0 0.0
      %5036 = vmatprep.subr.mxu0 0.0
      %5037 = vmatpush1.msra.mxu0 0.0
      %5038 = vmatprep.subr.mxu0 0.0
      %5039 = vmatpush1.msra.mxu0 0.0
      %5040 = vmatprep.subr.mxu0 0.0
      %5041 = vmatpush1.msra.mxu0 0.0
      %5042 = vmatprep.subr.mxu0 0.0
      %5043 = vmatpush1.msra.mxu0 0.0
      %5044 = vmatprep.subr.mxu0 0.0
      %5045 = vmatpush1.msra.mxu0 0.0
      %5046 = vmatprep.subr.mxu0 0.0
      %5047 = vmatpush1.msra.mxu0 0.0
      %5048 = vmatprep.subr.mxu0 0.0
      %5049 = vmatpush1.msra.mxu0 0.0
      %5050 = vmatprep.subr.mxu0 0.0
      %5051 = vmatpush1.msra.mxu0 0.0
      %5052 = vmatprep.subr.mxu0 0.0
      %5053 = vmatpush1.msra.mxu0 0.0
      %5054 = vmatprep.subr.mxu0 0.0
      %5055 = vmatpush1.msra.mxu0 0.0
      %5056 = vmatprep.subr.mxu0 0.0
      %5057 = vmatpush1.msra.mxu0 0.0
      %5058 = vmatprep.subr.mxu0 0.0
      %5059 = vmatpush1.msra.mxu0 0.0
      %5060 = vmatprep.subr.mxu0 0.0
      %5061 = vmatpush1.msra.mxu0 0.0
      %5062 = vmatprep.subr.mxu0 0.0
      %5063 = vmatpush1.msra.mxu0 0.0
      %5064 = vmatprep.subr.mxu0 0.0
      %5065 = vmatpush1.msra.mxu0 0.0
      %5066 = vmatprep.mubr.f32.mxu0 0.0
      %5067 = vmatmul.mubr.f32.gmra.mrb[0].mxu0 %v4997
      %v5068 = vpop.f32.mrb[0].mxu0
      %v5069 = vadd.f32 0.0, %v5068
      %v5070 = vpop.f32.mrb[0].mxu0
      %5071 = vmatprep.mubr.f32.mxu0 0.0
      %5072 = vmatmul.mubr.f32.gmra.mrb[0].mxu0 %v5000
      %v5073 = vpop.f32.mrb[0].mxu0
      %v5074 = vadd.f32 0.0, %v5073
      %v5075 = vpop.f32.mrb[0].mxu0
      %5076 = vdwg.mxu0
      %5077 = vrot.lane.b32.xlu0 %v1179, 64
      %v5078 = vpop.permute.xlu0 %5077
      %5079 = vrot.lane.b32.xlu0 %v1184, 64
      %v5080 = vpop.permute.xlu0 %5079
      %v5084 = vsel %vm4198, %v4843, 0
      %v5087 = vsel %vm4198, %v4844, 0
      %5089 = vmatprep.subr.mxu0 0.0
      %5090 = vmatpush1.msra.mxu0 %v5078
      %5091 = vmatprep.subr.mxu0 0.0
      %5092 = vmatpush1.msra.mxu0 %v5080
      %5093 = vmatprep.subr.mxu0 0.0
      %5094 = vmatpush1.msra.mxu0 0.0
      %5095 = vmatprep.subr.mxu0 0.0
      %5096 = vmatpush1.msra.mxu0 0.0
      %5097 = vmatprep.subr.mxu0 0.0
      %5098 = vmatpush1.msra.mxu0 0.0
      %5099 = vmatprep.subr.mxu0 0.0
      %5100 = vmatpush1.msra.mxu0 0.0
      %5101 = vmatprep.subr.mxu0 0.0
      %5102 = vmatpush1.msra.mxu0 0.0
      %5103 = vmatprep.subr.mxu0 0.0
      %5104 = vmatpush1.msra.mxu0 0.0
      %5105 = vmatprep.subr.mxu0 0.0
      %5106 = vmatpush1.msra.mxu0 0.0
      %5107 = vmatprep.subr.mxu0 0.0
      %5108 = vmatpush1.msra.mxu0 0.0
      %5109 = vmatprep.subr.mxu0 0.0
      %5110 = vmatpush1.msra.mxu0 0.0
      %5111 = vmatprep.subr.mxu0 0.0
      %5112 = vmatpush1.msra.mxu0 0.0
      %5113 = vmatprep.subr.mxu0 0.0
      %5114 = vmatpush1.msra.mxu0 0.0
      %5115 = vmatprep.subr.mxu0 0.0
      %5116 = vmatpush1.msra.mxu0 0.0
      %5117 = vmatprep.subr.mxu0 0.0
      %5118 = vmatpush1.msra.mxu0 0.0
      %5119 = vmatprep.subr.mxu0 0.0
      %5120 = vmatpush1.msra.mxu0 0.0
      %5121 = vmatprep.subr.mxu0 0.0
      %5122 = vmatpush1.msra.mxu0 0.0
      %5123 = vmatprep.subr.mxu0 0.0
      %5124 = vmatpush1.msra.mxu0 0.0
      %5125 = vmatprep.subr.mxu0 0.0
      %5126 = vmatpush1.msra.mxu0 0.0
      %5127 = vmatprep.subr.mxu0 0.0
      %5128 = vmatpush1.msra.mxu0 0.0
      %5129 = vmatprep.subr.mxu0 0.0
      %5130 = vmatpush1.msra.mxu0 0.0
      %5131 = vmatprep.subr.mxu0 0.0
      %5132 = vmatpush1.msra.mxu0 0.0
      %5133 = vmatprep.subr.mxu0 0.0
      %5134 = vmatpush1.msra.mxu0 0.0
      %5135 = vmatprep.subr.mxu0 0.0
      %5136 = vmatpush1.msra.mxu0 0.0
      %5137 = vmatprep.subr.mxu0 0.0
      %5138 = vmatpush1.msra.mxu0 0.0
      %5139 = vmatprep.subr.mxu0 0.0
      %5140 = vmatpush1.msra.mxu0 0.0
      %5141 = vmatprep.subr.mxu0 0.0
      %5142 = vmatpush1.msra.mxu0 0.0
      %5143 = vmatprep.subr.mxu0 0.0
      %5144 = vmatpush1.msra.mxu0 0.0
      %5145 = vmatprep.subr.mxu0 0.0
      %5146 = vmatpush1.msra.mxu0 0.0
      %5147 = vmatprep.subr.mxu0 0.0
      %5148 = vmatpush1.msra.mxu0 0.0
      %5149 = vmatprep.subr.mxu0 0.0
      %5150 = vmatpush1.msra.mxu0 0.0
      %5151 = vmatprep.subr.mxu0 0.0
      %5152 = vmatpush1.msra.mxu0 0.0
      %5153 = vmatprep.mubr.f32.mxu0 0.0
      %5154 = vmatmul.mubr.f32.gmra.mrb[0].mxu0 %v5084
      %v5155 = vpop.f32.mrb[0].mxu0
      %v5156 = vadd.f32 0.0, %v5155
      %v5157 = vpop.f32.mrb[0].mxu0
      %5158 = vmatprep.mubr.f32.mxu0 0.0
      %5159 = vmatmul.mubr.f32.gmra.mrb[0].mxu0 %v5087
      %v5160 = vpop.f32.mrb[0].mxu0
      %v5161 = vadd.f32 0.0, %v5160
      %v5162 = vpop.f32.mrb[0].mxu0
      %5163 = vdwg.mxu0
      %5164 = vrot.lane.b32.xlu0 %v1189, 64
      %v5165 = vpop.permute.xlu0 %5164
      %5166 = vrot.lane.b32.xlu0 %v1194, 64
      %v5167 = vpop.permute.xlu0 %5166
      %v5171 = vsel %vm4198, %v4845, 0
      %v5174 = vsel %vm4198, %v4846, 0
      %5176 = vmatprep.subr.mxu0 0.0
      %5177 = vmatpush1.msra.mxu0 %v5165
      %5178 = vmatprep.subr.mxu0 0.0
      %5179 = vmatpush1.msra.mxu0 %v5167
      %5180 = vmatprep.subr.mxu0 0.0
      %5181 = vmatpush1.msra.mxu0 0.0
      %5182 = vmatprep.subr.mxu0 0.0
      %5183 = vmatpush1.msra.mxu0 0.0
      %5184 = vmatprep.subr.mxu0 0.0
      %5185 = vmatpush1.msra.mxu0 0.0
      %5186 = vmatprep.subr.mxu0 0.0
      %5187 = vmatpush1.msra.mxu0 0.0
      %5188 = vmatprep.subr.mxu0 0.0
      %5189 = vmatpush1.msra.mxu0 0.0
      %5190 = vmatprep.subr.mxu0 0.0
      %5191 = vmatpush1.msra.mxu0 0.0
      %5192 = vmatprep.subr.mxu0 0.0
      %5193 = vmatpush1.msra.mxu0 0.0
      %5194 = vmatprep.subr.mxu0 0.0
      %5195 = vmatpush1.msra.mxu0 0.0
      %5196 = vmatprep.subr.mxu0 0.0
      %5197 = vmatpush1.msra.mxu0 0.0
      %5198 = vmatprep.subr.mxu0 0.0
      %5199 = vmatpush1.msra.mxu0 0.0
      %5200 = vmatprep.subr.mxu0 0.0
      %5201 = vmatpush1.msra.mxu0 0.0
      %5202 = vmatprep.subr.mxu0 0.0
      %5203 = vmatpush1.msra.mxu0 0.0
      %5204 = vmatprep.subr.mxu0 0.0
      %5205 = vmatpush1.msra.mxu0 0.0
      %5206 = vmatprep.subr.mxu0 0.0
      %5207 = vmatpush1.msra.mxu0 0.0
      %5208 = vmatprep.subr.mxu0 0.0
      %5209 = vmatpush1.msra.mxu0 0.0
      %5210 = vmatprep.subr.mxu0 0.0
      %5211 = vmatpush1.msra.mxu0 0.0
      %5212 = vmatprep.subr.mxu0 0.0
      %5213 = vmatpush1.msra.mxu0 0.0
      %5214 = vmatprep.subr.mxu0 0.0
      %5215 = vmatpush1.msra.mxu0 0.0
      %5216 = vmatprep.subr.mxu0 0.0
      %5217 = vmatpush1.msra.mxu0 0.0
      %5218 = vmatprep.subr.mxu0 0.0
      %5219 = vmatpush1.msra.mxu0 0.0
      %5220 = vmatprep.subr.mxu0 0.0
      %5221 = vmatpush1.msra.mxu0 0.0
      %5222 = vmatprep.subr.mxu0 0.0
      %5223 = vmatpush1.msra.mxu0 0.0
      %5224 = vmatprep.subr.mxu0 0.0
      %5225 = vmatpush1.msra.mxu0 0.0
      %5226 = vmatprep.subr.mxu0 0.0
      %5227 = vmatpush1.msra.mxu0 0.0
      %5228 = vmatprep.subr.mxu0 0.0
      %5229 = vmatpush1.msra.mxu0 0.0
      %5230 = vmatprep.subr.mxu0 0.0
      %5231 = vmatpush1.msra.mxu0 0.0
      %5232 = vmatprep.subr.mxu0 0.0
      %5233 = vmatpush1.msra.mxu0 0.0
      %5234 = vmatprep.subr.mxu0 0.0
      %5235 = vmatpush1.msra.mxu0 0.0
      %5236 = vmatprep.subr.mxu0 0.0
      %5237 = vmatpush1.msra.mxu0 0.0
      %5238 = vmatprep.subr.mxu0 0.0
      %5239 = vmatpush1.msra.mxu0 0.0
      %5240 = vmatprep.mubr.f32.mxu0 0.0
      %5241 = vmatmul.mubr.f32.gmra.mrb[0].mxu0 %v5171
      %v5242 = vpop.f32.mrb[0].mxu0
      %v5243 = vadd.f32 0.0, %v5242
      %v5244 = vpop.f32.mrb[0].mxu0
      %5245 = vmatprep.mubr.f32.mxu0 0.0
      %5246 = vmatmul.mubr.f32.gmra.mrb[0].mxu0 %v5174
      %v5247 = vpop.f32.mrb[0].mxu0
      %v5248 = vadd.f32 0.0, %v5247
      %v5249 = vpop.f32.mrb[0].mxu0
      %5250 = vdwg.mxu0
      %5251 = vrot.lane.b32.xlu0 %v1199, 64
      %v5252 = vpop.permute.xlu0 %5251
      %5253 = vrot.lane.b32.xlu0 %v1204, 64
      %v5254 = vpop.permute.xlu0 %5253
      %v5258 = vsel %vm4198, %v4847, 0
      %v5261 = vsel %vm4198, %v4848, 0
      %5263 = vmatprep.subr.mxu0 0.0
      %5264 = vmatpush1.msra.mxu0 %v5252
      %5265 = vmatprep.subr.mxu0 0.0
      %5266 = vmatpush1.msra.mxu0 %v5254
      %5267 = vmatprep.subr.mxu0 0.0
      %5268 = vmatpush1.msra.mxu0 0.0
      %5269 = vmatprep.subr.mxu0 0.0
      %5270 = vmatpush1.msra.mxu0 0.0
      %5271 = vmatprep.subr.mxu0 0.0
      %5272 = vmatpush1.msra.mxu0 0.0
      %5273 = vmatprep.subr.mxu0 0.0
      %5274 = vmatpush1.msra.mxu0 0.0
      %5275 = vmatprep.subr.mxu0 0.0
      %5276 = vmatpush1.msra.mxu0 0.0
      %5277 = vmatprep.subr.mxu0 0.0
      %5278 = vmatpush1.msra.mxu0 0.0
      %5279 = vmatprep.subr.mxu0 0.0
      %5280 = vmatpush1.msra.mxu0 0.0
      %5281 = vmatprep.subr.mxu0 0.0
      %5282 = vmatpush1.msra.mxu0 0.0
      %5283 = vmatprep.subr.mxu0 0.0
      %5284 = vmatpush1.msra.mxu0 0.0
      %5285 = vmatprep.subr.mxu0 0.0
      %5286 = vmatpush1.msra.mxu0 0.0
      %5287 = vmatprep.subr.mxu0 0.0
      %5288 = vmatpush1.msra.mxu0 0.0
      %5289 = vmatprep.subr.mxu0 0.0
      %5290 = vmatpush1.msra.mxu0 0.0
      %5291 = vmatprep.subr.mxu0 0.0
      %5292 = vmatpush1.msra.mxu0 0.0
      %5293 = vmatprep.subr.mxu0 0.0
      %5294 = vmatpush1.msra.mxu0 0.0
      %5295 = vmatprep.subr.mxu0 0.0
      %5296 = vmatpush1.msra.mxu0 0.0
      %5297 = vmatprep.subr.mxu0 0.0
      %5298 = vmatpush1.msra.mxu0 0.0
      %5299 = vmatprep.subr.mxu0 0.0
      %5300 = vmatpush1.msra.mxu0 0.0
      %5301 = vmatprep.subr.mxu0 0.0
      %5302 = vmatpush1.msra.mxu0 0.0
      %5303 = vmatprep.subr.mxu0 0.0
      %5304 = vmatpush1.msra.mxu0 0.0
      %5305 = vmatprep.subr.mxu0 0.0
      %5306 = vmatpush1.msra.mxu0 0.0
      %5307 = vmatprep.subr.mxu0 0.0
      %5308 = vmatpush1.msra.mxu0 0.0
      %5309 = vmatprep.subr.mxu0 0.0
      %5310 = vmatpush1.msra.mxu0 0.0
      %5311 = vmatprep.subr.mxu0 0.0
      %5312 = vmatpush1.msra.mxu0 0.0
      %5313 = vmatprep.subr.mxu0 0.0
      %5314 = vmatpush1.msra.mxu0 0.0
      %5315 = vmatprep.subr.mxu0 0.0
      %5316 = vmatpush1.msra.mxu0 0.0
      %5317 = vmatprep.subr.mxu0 0.0
      %5318 = vmatpush1.msra.mxu0 0.0
      %5319 = vmatprep.subr.mxu0 0.0
      %5320 = vmatpush1.msra.mxu0 0.0
      %5321 = vmatprep.subr.mxu0 0.0
      %5322 = vmatpush1.msra.mxu0 0.0
      %5323 = vmatprep.subr.mxu0 0.0
      %5324 = vmatpush1.msra.mxu0 0.0
      %5325 = vmatprep.subr.mxu0 0.0
      %5326 = vmatpush1.msra.mxu0 0.0
      %5327 = vmatprep.mubr.f32.mxu0 0.0
      %5328 = vmatmul.mubr.f32.gmra.mrb[0].mxu0 %v5258
      %v5329 = vpop.f32.mrb[0].mxu0
      %v5330 = vadd.f32 0.0, %v5329
      %v5331 = vpop.f32.mrb[0].mxu0
      %5332 = vmatprep.mubr.f32.mxu0 0.0
      %5333 = vmatmul.mubr.f32.gmra.mrb[0].mxu0 %v5261
      %v5334 = vpop.f32.mrb[0].mxu0
      %v5335 = vadd.f32 0.0, %v5334
      %v5336 = vpop.f32.mrb[0].mxu0
      %5337 = vdwg.mxu0
      %5338 = vrot.lane.b32.xlu0 %v1209, 64
      %v5339 = vpop.permute.xlu0 %5338
      %5340 = vrot.lane.b32.xlu0 %v1214, 64
      %v5341 = vpop.permute.xlu0 %5340
      %v5345 = vsel %vm4198, %v4849, 0
      %v5348 = vsel %vm4198, %v4850, 0
      %5350 = vmatprep.subr.mxu0 0.0
      %5351 = vmatpush1.msra.mxu0 %v5339
      %5352 = vmatprep.subr.mxu0 0.0
      %5353 = vmatpush1.msra.mxu0 %v5341
      %5354 = vmatprep.subr.mxu0 0.0
      %5355 = vmatpush1.msra.mxu0 0.0
      %5356 = vmatprep.subr.mxu0 0.0
      %5357 = vmatpush1.msra.mxu0 0.0
      %5358 = vmatprep.subr.mxu0 0.0
      %5359 = vmatpush1.msra.mxu0 0.0
      %5360 = vmatprep.subr.mxu0 0.0
      %5361 = vmatpush1.msra.mxu0 0.0
      %5362 = vmatprep.subr.mxu0 0.0
      %5363 = vmatpush1.msra.mxu0 0.0
      %5364 = vmatprep.subr.mxu0 0.0
      %5365 = vmatpush1.msra.mxu0 0.0
      %5366 = vmatprep.subr.mxu0 0.0
      %5367 = vmatpush1.msra.mxu0 0.0
      %5368 = vmatprep.subr.mxu0 0.0
      %5369 = vmatpush1.msra.mxu0 0.0
      %5370 = vmatprep.subr.mxu0 0.0
      %5371 = vmatpush1.msra.mxu0 0.0
      %5372 = vmatprep.subr.mxu0 0.0
      %5373 = vmatpush1.msra.mxu0 0.0
      %5374 = vmatprep.subr.mxu0 0.0
      %5375 = vmatpush1.msra.mxu0 0.0
      %5376 = vmatprep.subr.mxu0 0.0
      %5377 = vmatpush1.msra.mxu0 0.0
      %5378 = vmatprep.subr.mxu0 0.0
      %5379 = vmatpush1.msra.mxu0 0.0
      %5380 = vmatprep.subr.mxu0 0.0
      %5381 = vmatpush1.msra.mxu0 0.0
      %5382 = vmatprep.subr.mxu0 0.0
      %5383 = vmatpush1.msra.mxu0 0.0
      %5384 = vmatprep.subr.mxu0 0.0
      %5385 = vmatpush1.msra.mxu0 0.0
      %5386 = vmatprep.subr.mxu0 0.0
      %5387 = vmatpush1.msra.mxu0 0.0
      %5388 = vmatprep.subr.mxu0 0.0
      %5389 = vmatpush1.msra.mxu0 0.0
      %5390 = vmatprep.subr.mxu0 0.0
      %5391 = vmatpush1.msra.mxu0 0.0
      %5392 = vmatprep.subr.mxu0 0.0
      %5393 = vmatpush1.msra.mxu0 0.0
      %5394 = vmatprep.subr.mxu0 0.0
      %5395 = vmatpush1.msra.mxu0 0.0
      %5396 = vmatprep.subr.mxu0 0.0
      %5397 = vmatpush1.msra.mxu0 0.0
      %5398 = vmatprep.subr.mxu0 0.0
      %5399 = vmatpush1.msra.mxu0 0.0
      %5400 = vmatprep.subr.mxu0 0.0
      %5401 = vmatpush1.msra.mxu0 0.0
      %5402 = vmatprep.subr.mxu0 0.0
      %5403 = vmatpush1.msra.mxu0 0.0
      %5404 = vmatprep.subr.mxu0 0.0
      %5405 = vmatpush1.msra.mxu0 0.0
      %5406 = vmatprep.subr.mxu0 0.0
      %5407 = vmatpush1.msra.mxu0 0.0
      %5408 = vmatprep.subr.mxu0 0.0
      %5409 = vmatpush1.msra.mxu0 0.0
      %5410 = vmatprep.subr.mxu0 0.0
      %5411 = vmatpush1.msra.mxu0 0.0
      %5412 = vmatprep.subr.mxu0 0.0
      %5413 = vmatpush1.msra.mxu0 0.0
      %5414 = vmatprep.mubr.f32.mxu0 0.0
      %5415 = vmatmul.mubr.f32.gmra.mrb[0].mxu0 %v5345
      %v5416 = vpop.f32.mrb[0].mxu0
      %v5417 = vadd.f32 0.0, %v5416
      %v5418 = vpop.f32.mrb[0].mxu0
      %5419 = vmatprep.mubr.f32.mxu0 0.0
      %5420 = vmatmul.mubr.f32.gmra.mrb[0].mxu0 %v5348
      %v5421 = vpop.f32.mrb[0].mxu0
      %v5422 = vadd.f32 0.0, %v5421
      %v5423 = vpop.f32.mrb[0].mxu0
      %5424 = vdwg.mxu0
      %5425 = vrot.lane.b32.xlu0 %v1219, 64
      %v5426 = vpop.permute.xlu0 %5425
      %5427 = vrot.lane.b32.xlu0 %v1224, 64
      %v5428 = vpop.permute.xlu0 %5427
      %v5432 = vsel %vm4198, %v4851, 0
      %v5435 = vsel %vm4198, %v4852, 0
      %5437 = vmatprep.subr.mxu0 0.0
      %5438 = vmatpush1.msra.mxu0 %v5426
      %5439 = vmatprep.subr.mxu0 0.0
      %5440 = vmatpush1.msra.mxu0 %v5428
      %5441 = vmatprep.subr.mxu0 0.0
      %5442 = vmatpush1.msra.mxu0 0.0
      %5443 = vmatprep.subr.mxu0 0.0
      %5444 = vmatpush1.msra.mxu0 0.0
      %5445 = vmatprep.subr.mxu0 0.0
      %5446 = vmatpush1.msra.mxu0 0.0
      %5447 = vmatprep.subr.mxu0 0.0
      %5448 = vmatpush1.msra.mxu0 0.0
      %5449 = vmatprep.subr.mxu0 0.0
      %5450 = vmatpush1.msra.mxu0 0.0
      %5451 = vmatprep.subr.mxu0 0.0
      %5452 = vmatpush1.msra.mxu0 0.0
      %5453 = vmatprep.subr.mxu0 0.0
      %5454 = vmatpush1.msra.mxu0 0.0
      %5455 = vmatprep.subr.mxu0 0.0
      %5456 = vmatpush1.msra.mxu0 0.0
      %5457 = vmatprep.subr.mxu0 0.0
      %5458 = vmatpush1.msra.mxu0 0.0
      %5459 = vmatprep.subr.mxu0 0.0
      %5460 = vmatpush1.msra.mxu0 0.0
      %5461 = vmatprep.subr.mxu0 0.0
      %5462 = vmatpush1.msra.mxu0 0.0
      %5463 = vmatprep.subr.mxu0 0.0
      %5464 = vmatpush1.msra.mxu0 0.0
      %5465 = vmatprep.subr.mxu0 0.0
      %5466 = vmatpush1.msra.mxu0 0.0
      %5467 = vmatprep.subr.mxu0 0.0
      %5468 = vmatpush1.msra.mxu0 0.0
      %5469 = vmatprep.subr.mxu0 0.0
      %5470 = vmatpush1.msra.mxu0 0.0
      %5471 = vmatprep.subr.mxu0 0.0
      %5472 = vmatpush1.msra.mxu0 0.0
      %5473 = vmatprep.subr.mxu0 0.0
      %5474 = vmatpush1.msra.mxu0 0.0
      %5475 = vmatprep.subr.mxu0 0.0
      %5476 = vmatpush1.msra.mxu0 0.0
      %5477 = vmatprep.subr.mxu0 0.0
      %5478 = vmatpush1.msra.mxu0 0.0
      %5479 = vmatprep.subr.mxu0 0.0
      %5480 = vmatpush1.msra.mxu0 0.0
      %5481 = vmatprep.subr.mxu0 0.0
      %5482 = vmatpush1.msra.mxu0 0.0
      %5483 = vmatprep.subr.mxu0 0.0
      %5484 = vmatpush1.msra.mxu0 0.0
      %5485 = vmatprep.subr.mxu0 0.0
      %5486 = vmatpush1.msra.mxu0 0.0
      %5487 = vmatprep.subr.mxu0 0.0
      %5488 = vmatpush1.msra.mxu0 0.0
      %5489 = vmatprep.subr.mxu0 0.0
      %5490 = vmatpush1.msra.mxu0 0.0
      %5491 = vmatprep.subr.mxu0 0.0
      %5492 = vmatpush1.msra.mxu0 0.0
      %5493 = vmatprep.subr.mxu0 0.0
      %5494 = vmatpush1.msra.mxu0 0.0
      %5495 = vmatprep.subr.mxu0 0.0
      %5496 = vmatpush1.msra.mxu0 0.0
      %5497 = vmatprep.subr.mxu0 0.0
      %5498 = vmatpush1.msra.mxu0 0.0
      %5499 = vmatprep.subr.mxu0 0.0
      %5500 = vmatpush1.msra.mxu0 0.0
      %5501 = vmatprep.mubr.f32.mxu0 0.0
      %5502 = vmatmul.mubr.f32.gmra.mrb[0].mxu0 %v5432
      %v5503 = vpop.f32.mrb[0].mxu0
      %v5504 = vadd.f32 0.0, %v5503
      %v5505 = vpop.f32.mrb[0].mxu0
      %5506 = vmatprep.mubr.f32.mxu0 0.0
      %5507 = vmatmul.mubr.f32.gmra.mrb[0].mxu0 %v5435
      %v5508 = vpop.f32.mrb[0].mxu0
      %v5509 = vadd.f32 0.0, %v5508
      %v5510 = vpop.f32.mrb[0].mxu0
      %5511 = vdwg.mxu0
      %5512 = vrot.lane.b32.xlu0 %v1229, 64
      %v5513 = vpop.permute.xlu0 %5512
      %5514 = vrot.lane.b32.xlu0 %v1234, 64
      %v5515 = vpop.permute.xlu0 %5514
      %v5519 = vsel %vm4198, %v4853, 0
      %v5522 = vsel %vm4198, %v4854, 0
      %5524 = vmatprep.subr.mxu0 0.0
      %5525 = vmatpush1.msra.mxu0 %v5513
      %5526 = vmatprep.subr.mxu0 0.0
      %5527 = vmatpush1.msra.mxu0 %v5515
      %5528 = vmatprep.subr.mxu0 0.0
      %5529 = vmatpush1.msra.mxu0 0.0
      %5530 = vmatprep.subr.mxu0 0.0
      %5531 = vmatpush1.msra.mxu0 0.0
      %5532 = vmatprep.subr.mxu0 0.0
      %5533 = vmatpush1.msra.mxu0 0.0
      %5534 = vmatprep.subr.mxu0 0.0
      %5535 = vmatpush1.msra.mxu0 0.0
      %5536 = vmatprep.subr.mxu0 0.0
      %5537 = vmatpush1.msra.mxu0 0.0
      %5538 = vmatprep.subr.mxu0 0.0
      %5539 = vmatpush1.msra.mxu0 0.0
      %5540 = vmatprep.subr.mxu0 0.0
      %5541 = vmatpush1.msra.mxu0 0.0
      %5542 = vmatprep.subr.mxu0 0.0
      %5543 = vmatpush1.msra.mxu0 0.0
      %5544 = vmatprep.subr.mxu0 0.0
      %5545 = vmatpush1.msra.mxu0 0.0
      %5546 = vmatprep.subr.mxu0 0.0
      %5547 = vmatpush1.msra.mxu0 0.0
      %5548 = vmatprep.subr.mxu0 0.0
      %5549 = vmatpush1.msra.mxu0 0.0
      %5550 = vmatprep.subr.mxu0 0.0
      %5551 = vmatpush1.msra.mxu0 0.0
      %5552 = vmatprep.subr.mxu0 0.0
      %5553 = vmatpush1.msra.mxu0 0.0
      %5554 = vmatprep.subr.mxu0 0.0
      %5555 = vmatpush1.msra.mxu0 0.0
      %5556 = vmatprep.subr.mxu0 0.0
      %5557 = vmatpush1.msra.mxu0 0.0
      %5558 = vmatprep.subr.mxu0 0.0
      %5559 = vmatpush1.msra.mxu0 0.0
      %5560 = vmatprep.subr.mxu0 0.0
      %5561 = vmatpush1.msra.mxu0 0.0
      %5562 = vmatprep.subr.mxu0 0.0
      %5563 = vmatpush1.msra.mxu0 0.0
      %5564 = vmatprep.subr.mxu0 0.0
      %5565 = vmatpush1.msra.mxu0 0.0
      %5566 = vmatprep.subr.mxu0 0.0
      %5567 = vmatpush1.msra.mxu0 0.0
      %5568 = vmatprep.subr.mxu0 0.0
      %5569 = vmatpush1.msra.mxu0 0.0
      %5570 = vmatprep.subr.mxu0 0.0
      %5571 = vmatpush1.msra.mxu0 0.0
      %5572 = vmatprep.subr.mxu0 0.0
      %5573 = vmatpush1.msra.mxu0 0.0
      %5574 = vmatprep.subr.mxu0 0.0
      %5575 = vmatpush1.msra.mxu0 0.0
      %5576 = vmatprep.subr.mxu0 0.0
      %5577 = vmatpush1.msra.mxu0 0.0
      %5578 = vmatprep.subr.mxu0 0.0
      %5579 = vmatpush1.msra.mxu0 0.0
      %5580 = vmatprep.subr.mxu0 0.0
      %5581 = vmatpush1.msra.mxu0 0.0
      %5582 = vmatprep.subr.mxu0 0.0
      %5583 = vmatpush1.msra.mxu0 0.0
      %5584 = vmatprep.subr.mxu0 0.0
      %5585 = vmatpush1.msra.mxu0 0.0
      %5586 = vmatprep.subr.mxu0 0.0
      %5587 = vmatpush1.msra.mxu0 0.0
      %5588 = vmatprep.mubr.f32.mxu0 0.0
      %5589 = vmatmul.mubr.f32.gmra.mrb[0].mxu0 %v5519
      %v5590 = vpop.f32.mrb[0].mxu0
      %v5591 = vadd.f32 0.0, %v5590
      %v5592 = vpop.f32.mrb[0].mxu0
      %5593 = vmatprep.mubr.f32.mxu0 0.0
      %5594 = vmatmul.mubr.f32.gmra.mrb[0].mxu0 %v5522
      %v5595 = vpop.f32.mrb[0].mxu0
      %v5596 = vadd.f32 0.0, %v5595
      %v5597 = vpop.f32.mrb[0].mxu0
      %5598 = vdwg.mxu0
      %5599 = vrot.lane.b32.xlu0 %v1254, 64
      %v5600 = vpop.permute.xlu0 %5599
      %5601 = vrot.lane.b32.xlu0 %v1256, 64
      %v5602 = vpop.permute.xlu0 %5601
      %v5606 = vsel %vm4198, %v4855, 0
      %v5609 = vsel %vm4198, %v4856, 0
      %5611 = vmatprep.subr.mxu0 0.0
      %5612 = vmatpush1.msra.mxu0 %v5600
      %5613 = vmatprep.subr.mxu0 0.0
      %5614 = vmatpush1.msra.mxu0 %v5602
      %5615 = vmatprep.subr.mxu0 0.0
      %5616 = vmatpush1.msra.mxu0 0.0
      %5617 = vmatprep.subr.mxu0 0.0
      %5618 = vmatpush1.msra.mxu0 0.0
      %5619 = vmatprep.subr.mxu0 0.0
      %5620 = vmatpush1.msra.mxu0 0.0
      %5621 = vmatprep.subr.mxu0 0.0
      %5622 = vmatpush1.msra.mxu0 0.0
      %5623 = vmatprep.subr.mxu0 0.0
      %5624 = vmatpush1.msra.mxu0 0.0
      %5625 = vmatprep.subr.mxu0 0.0
      %5626 = vmatpush1.msra.mxu0 0.0
      %5627 = vmatprep.subr.mxu0 0.0
      %5628 = vmatpush1.msra.mxu0 0.0
      %5629 = vmatprep.subr.mxu0 0.0
      %5630 = vmatpush1.msra.mxu0 0.0
      %5631 = vmatprep.subr.mxu0 0.0
      %5632 = vmatpush1.msra.mxu0 0.0
      %5633 = vmatprep.subr.mxu0 0.0
      %5634 = vmatpush1.msra.mxu0 0.0
      %5635 = vmatprep.subr.mxu0 0.0
      %5636 = vmatpush1.msra.mxu0 0.0
      %5637 = vmatprep.subr.mxu0 0.0
      %5638 = vmatpush1.msra.mxu0 0.0
      %5639 = vmatprep.subr.mxu0 0.0
      %5640 = vmatpush1.msra.mxu0 0.0
      %5641 = vmatprep.subr.mxu0 0.0
      %5642 = vmatpush1.msra.mxu0 0.0
      %5643 = vmatprep.subr.mxu0 0.0
      %5644 = vmatpush1.msra.mxu0 0.0
      %5645 = vmatprep.subr.mxu0 0.0
      %5646 = vmatpush1.msra.mxu0 0.0
      %5647 = vmatprep.subr.mxu0 0.0
      %5648 = vmatpush1.msra.mxu0 0.0
      %5649 = vmatprep.subr.mxu0 0.0
      %5650 = vmatpush1.msra.mxu0 0.0
      %5651 = vmatprep.subr.mxu0 0.0
      %5652 = vmatpush1.msra.mxu0 0.0
      %5653 = vmatprep.subr.mxu0 0.0
      %5654 = vmatpush1.msra.mxu0 0.0
      %5655 = vmatprep.subr.mxu0 0.0
      %5656 = vmatpush1.msra.mxu0 0.0
      %5657 = vmatprep.subr.mxu0 0.0
      %5658 = vmatpush1.msra.mxu0 0.0
      %5659 = vmatprep.subr.mxu0 0.0
      %5660 = vmatpush1.msra.mxu0 0.0
      %5661 = vmatprep.subr.mxu0 0.0
      %5662 = vmatpush1.msra.mxu0 0.0
      %5663 = vmatprep.subr.mxu0 0.0
      %5664 = vmatpush1.msra.mxu0 0.0
      %5665 = vmatprep.subr.mxu0 0.0
      %5666 = vmatpush1.msra.mxu0 0.0
      %5667 = vmatprep.subr.mxu0 0.0
      %5668 = vmatpush1.msra.mxu0 0.0
      %5669 = vmatprep.subr.mxu0 0.0
      %5670 = vmatpush1.msra.mxu0 0.0
      %5671 = vmatprep.subr.mxu0 0.0
      %5672 = vmatpush1.msra.mxu0 0.0
      %5673 = vmatprep.subr.mxu0 0.0
      %5674 = vmatpush1.msra.mxu0 0.0
      %5675 = vmatprep.mubr.f32.mxu0 0.0
      %5676 = vmatmul.mubr.f32.gmra.mrb[0].mxu0 %v5606
      %v5677 = vpop.f32.mrb[0].mxu0
      %v5678 = vadd.f32 0.0, %v5677
      %v5679 = vpop.f32.mrb[0].mxu0
      %5680 = vmatprep.mubr.f32.mxu0 0.0
      %5681 = vmatmul.mubr.f32.gmra.mrb[0].mxu0 %v5609
      %v5682 = vpop.f32.mrb[0].mxu0
      %v5683 = vadd.f32 0.0, %v5682
      %v5684 = vpop.f32.mrb[0].mxu0
      %5685 = vdwg.mxu0
      %5686 = vrot.lane.b32.xlu0 %v1258, 64
      %v5687 = vpop.permute.xlu0 %5686
      %5688 = vrot.lane.b32.xlu0 %v1260, 64
      %v5689 = vpop.permute.xlu0 %5688
      %v5693 = vsel %vm4198, %v4857, 0
      %v5696 = vsel %vm4198, %v4858, 0
      %5698 = vmatprep.subr.mxu0 0.0
      %5699 = vmatpush1.msra.mxu0 %v5687
      %5700 = vmatprep.subr.mxu0 0.0
      %5701 = vmatpush1.msra.mxu0 %v5689
      %5702 = vmatprep.subr.mxu0 0.0
      %5703 = vmatpush1.msra.mxu0 0.0
      %5704 = vmatprep.subr.mxu0 0.0
      %5705 = vmatpush1.msra.mxu0 0.0
      %5706 = vmatprep.subr.mxu0 0.0
      %5707 = vmatpush1.msra.mxu0 0.0
      %5708 = vmatprep.subr.mxu0 0.0
      %5709 = vmatpush1.msra.mxu0 0.0
      %5710 = vmatprep.subr.mxu0 0.0
      %5711 = vmatpush1.msra.mxu0 0.0
      %5712 = vmatprep.subr.mxu0 0.0
      %5713 = vmatpush1.msra.mxu0 0.0
      %5714 = vmatprep.subr.mxu0 0.0
      %5715 = vmatpush1.msra.mxu0 0.0
      %5716 = vmatprep.subr.mxu0 0.0
      %5717 = vmatpush1.msra.mxu0 0.0
      %5718 = vmatprep.subr.mxu0 0.0
      %5719 = vmatpush1.msra.mxu0 0.0
      %5720 = vmatprep.subr.mxu0 0.0
      %5721 = vmatpush1.msra.mxu0 0.0
      %5722 = vmatprep.subr.mxu0 0.0
      %5723 = vmatpush1.msra.mxu0 0.0
      %5724 = vmatprep.subr.mxu0 0.0
      %5725 = vmatpush1.msra.mxu0 0.0
      %5726 = vmatprep.subr.mxu0 0.0
      %5727 = vmatpush1.msra.mxu0 0.0
      %5728 = vmatprep.subr.mxu0 0.0
      %5729 = vmatpush1.msra.mxu0 0.0
      %5730 = vmatprep.subr.mxu0 0.0
      %5731 = vmatpush1.msra.mxu0 0.0
      %5732 = vmatprep.subr.mxu0 0.0
      %5733 = vmatpush1.msra.mxu0 0.0
      %5734 = vmatprep.subr.mxu0 0.0
      %5735 = vmatpush1.msra.mxu0 0.0
      %5736 = vmatprep.subr.mxu0 0.0
      %5737 = vmatpush1.msra.mxu0 0.0
      %5738 = vmatprep.subr.mxu0 0.0
      %5739 = vmatpush1.msra.mxu0 0.0
      %5740 = vmatprep.subr.mxu0 0.0
      %5741 = vmatpush1.msra.mxu0 0.0
      %5742 = vmatprep.subr.mxu0 0.0
      %5743 = vmatpush1.msra.mxu0 0.0
      %5744 = vmatprep.subr.mxu0 0.0
      %5745 = vmatpush1.msra.mxu0 0.0
      %5746 = vmatprep.subr.mxu0 0.0
      %5747 = vmatpush1.msra.mxu0 0.0
      %5748 = vmatprep.subr.mxu0 0.0
      %5749 = vmatpush1.msra.mxu0 0.0
      %5750 = vmatprep.subr.mxu0 0.0
      %5751 = vmatpush1.msra.mxu0 0.0
      %5752 = vmatprep.subr.mxu0 0.0
      %5753 = vmatpush1.msra.mxu0 0.0
      %5754 = vmatprep.subr.mxu0 0.0
      %5755 = vmatpush1.msra.mxu0 0.0
      %5756 = vmatprep.subr.mxu0 0.0
      %5757 = vmatpush1.msra.mxu0 0.0
      %5758 = vmatprep.subr.mxu0 0.0
      %5759 = vmatpush1.msra.mxu0 0.0
      %5760 = vmatprep.subr.mxu0 0.0
      %5761 = vmatpush1.msra.mxu0 0.0
      %5762 = vmatprep.mubr.f32.mxu0 0.0
      %5763 = vmatmul.mubr.f32.gmra.mrb[0].mxu0 %v5693
      %v5764 = vpop.f32.mrb[0].mxu0
      %v5765 = vadd.f32 0.0, %v5764
      %v5766 = vpop.f32.mrb[0].mxu0
      %5767 = vmatprep.mubr.f32.mxu0 0.0
      %5768 = vmatmul.mubr.f32.gmra.mrb[0].mxu0 %v5696
      %v5769 = vpop.f32.mrb[0].mxu0
      %v5770 = vadd.f32 0.0, %v5769
      %v5771 = vpop.f32.mrb[0].mxu0
      %5772 = vdwg.mxu0
      %5773 = vrot.lane.b32.xlu0 %v1262, 64
      %v5774 = vpop.permute.xlu0 %5773
      %5775 = vrot.lane.b32.xlu0 %v1264, 64
      %v5776 = vpop.permute.xlu0 %5775
      %v5780 = vsel %vm4198, %v4859, 0
      %v5783 = vsel %vm4198, %v4860, 0
      %5785 = vmatprep.subr.mxu0 0.0
      %5786 = vmatpush1.msra.mxu0 %v5774
      %5787 = vmatprep.subr.mxu0 0.0
      %5788 = vmatpush1.msra.mxu0 %v5776
      %5789 = vmatprep.subr.mxu0 0.0
      %5790 = vmatpush1.msra.mxu0 0.0
      %5791 = vmatprep.subr.mxu0 0.0
      %5792 = vmatpush1.msra.mxu0 0.0
      %5793 = vmatprep.subr.mxu0 0.0
      %5794 = vmatpush1.msra.mxu0 0.0
      %5795 = vmatprep.subr.mxu0 0.0
      %5796 = vmatpush1.msra.mxu0 0.0
      %5797 = vmatprep.subr.mxu0 0.0
      %5798 = vmatpush1.msra.mxu0 0.0
      %5799 = vmatprep.subr.mxu0 0.0
      %5800 = vmatpush1.msra.mxu0 0.0
      %5801 = vmatprep.subr.mxu0 0.0
      %5802 = vmatpush1.msra.mxu0 0.0
      %5803 = vmatprep.subr.mxu0 0.0
      %5804 = vmatpush1.msra.mxu0 0.0
      %5805 = vmatprep.subr.mxu0 0.0
      %5806 = vmatpush1.msra.mxu0 0.0
      %5807 = vmatprep.subr.mxu0 0.0
      %5808 = vmatpush1.msra.mxu0 0.0
      %5809 = vmatprep.subr.mxu0 0.0
      %5810 = vmatpush1.msra.mxu0 0.0
      %5811 = vmatprep.subr.mxu0 0.0
      %5812 = vmatpush1.msra.mxu0 0.0
      %5813 = vmatprep.subr.mxu0 0.0
      %5814 = vmatpush1.msra.mxu0 0.0
      %5815 = vmatprep.subr.mxu0 0.0
      %5816 = vmatpush1.msra.mxu0 0.0
      %5817 = vmatprep.subr.mxu0 0.0
      %5818 = vmatpush1.msra.mxu0 0.0
      %5819 = vmatprep.subr.mxu0 0.0
      %5820 = vmatpush1.msra.mxu0 0.0
      %5821 = vmatprep.subr.mxu0 0.0
      %5822 = vmatpush1.msra.mxu0 0.0
      %5823 = vmatprep.subr.mxu0 0.0
      %5824 = vmatpush1.msra.mxu0 0.0
      %5825 = vmatprep.subr.mxu0 0.0
      %5826 = vmatpush1.msra.mxu0 0.0
      %5827 = vmatprep.subr.mxu0 0.0
      %5828 = vmatpush1.msra.mxu0 0.0
      %5829 = vmatprep.subr.mxu0 0.0
      %5830 = vmatpush1.msra.mxu0 0.0
      %5831 = vmatprep.subr.mxu0 0.0
      %5832 = vmatpush1.msra.mxu0 0.0
      %5833 = vmatprep.subr.mxu0 0.0
      %5834 = vmatpush1.msra.mxu0 0.0
      %5835 = vmatprep.subr.mxu0 0.0
      %5836 = vmatpush1.msra.mxu0 0.0
      %5837 = vmatprep.subr.mxu0 0.0
      %5838 = vmatpush1.msra.mxu0 0.0
      %5839 = vmatprep.subr.mxu0 0.0
      %5840 = vmatpush1.msra.mxu0 0.0
      %5841 = vmatprep.subr.mxu0 0.0
      %5842 = vmatpush1.msra.mxu0 0.0
      %5843 = vmatprep.subr.mxu0 0.0
      %5844 = vmatpush1.msra.mxu0 0.0
      %5845 = vmatprep.subr.mxu0 0.0
      %5846 = vmatpush1.msra.mxu0 0.0
      %5847 = vmatprep.subr.mxu0 0.0
      %5848 = vmatpush1.msra.mxu0 0.0
      %5849 = vmatprep.mubr.f32.mxu0 0.0
      %5850 = vmatmul.mubr.f32.gmra.mrb[0].mxu0 %v5780
      %v5851 = vpop.f32.mrb[0].mxu0
      %v5852 = vadd.f32 0.0, %v5851
      %v5853 = vpop.f32.mrb[0].mxu0
      %5854 = vmatprep.mubr.f32.mxu0 0.0
      %5855 = vmatmul.mubr.f32.gmra.mrb[0].mxu0 %v5783
      %v5856 = vpop.f32.mrb[0].mxu0
      %v5857 = vadd.f32 0.0, %v5856
      %v5858 = vpop.f32.mrb[0].mxu0
      %5859 = vdwg.mxu0
      %5860 = vrot.lane.b32.xlu0 %v1266, 64
      %v5861 = vpop.permute.xlu0 %5860
      %5862 = vrot.lane.b32.xlu0 %v1268, 64
      %v5863 = vpop.permute.xlu0 %5862
      %v5867 = vsel %vm4198, %v4861, 0
      %v5870 = vsel %vm4198, %v4862, 0
      %5872 = vmatprep.subr.mxu0 0.0
      %5873 = vmatpush1.msra.mxu0 %v5861
      %5874 = vmatprep.subr.mxu0 0.0
      %5875 = vmatpush1.msra.mxu0 %v5863
      %5876 = vmatprep.subr.mxu0 0.0
      %5877 = vmatpush1.msra.mxu0 0.0
      %5878 = vmatprep.subr.mxu0 0.0
      %5879 = vmatpush1.msra.mxu0 0.0
      %5880 = vmatprep.subr.mxu0 0.0
      %5881 = vmatpush1.msra.mxu0 0.0
      %5882 = vmatprep.subr.mxu0 0.0
      %5883 = vmatpush1.msra.mxu0 0.0
      %5884 = vmatprep.subr.mxu0 0.0
      %5885 = vmatpush1.msra.mxu0 0.0
      %5886 = vmatprep.subr.mxu0 0.0
      %5887 = vmatpush1.msra.mxu0 0.0
      %5888 = vmatprep.subr.mxu0 0.0
      %5889 = vmatpush1.msra.mxu0 0.0
      %5890 = vmatprep.subr.mxu0 0.0
      %5891 = vmatpush1.msra.mxu0 0.0
      %5892 = vmatprep.subr.mxu0 0.0
      %5893 = vmatpush1.msra.mxu0 0.0
      %5894 = vmatprep.subr.mxu0 0.0
      %5895 = vmatpush1.msra.mxu0 0.0
      %5896 = vmatprep.subr.mxu0 0.0
      %5897 = vmatpush1.msra.mxu0 0.0
      %5898 = vmatprep.subr.mxu0 0.0
      %5899 = vmatpush1.msra.mxu0 0.0
      %5900 = vmatprep.subr.mxu0 0.0
      %5901 = vmatpush1.msra.mxu0 0.0
      %5902 = vmatprep.subr.mxu0 0.0
      %5903 = vmatpush1.msra.mxu0 0.0
      %5904 = vmatprep.subr.mxu0 0.0
      %5905 = vmatpush1.msra.mxu0 0.0
      %5906 = vmatprep.subr.mxu0 0.0
      %5907 = vmatpush1.msra.mxu0 0.0
      %5908 = vmatprep.subr.mxu0 0.0
      %5909 = vmatpush1.msra.mxu0 0.0
      %5910 = vmatprep.subr.mxu0 0.0
      %5911 = vmatpush1.msra.mxu0 0.0
      %5912 = vmatprep.subr.mxu0 0.0
      %5913 = vmatpush1.msra.mxu0 0.0
      %5914 = vmatprep.subr.mxu0 0.0
      %5915 = vmatpush1.msra.mxu0 0.0
      %5916 = vmatprep.subr.mxu0 0.0
      %5917 = vmatpush1.msra.mxu0 0.0
      %5918 = vmatprep.subr.mxu0 0.0
      %5919 = vmatpush1.msra.mxu0 0.0
      %5920 = vmatprep.subr.mxu0 0.0
      %5921 = vmatpush1.msra.mxu0 0.0
      %5922 = vmatprep.subr.mxu0 0.0
      %5923 = vmatpush1.msra.mxu0 0.0
      %5924 = vmatprep.subr.mxu0 0.0
      %5925 = vmatpush1.msra.mxu0 0.0
      %5926 = vmatprep.subr.mxu0 0.0
      %5927 = vmatpush1.msra.mxu0 0.0
      %5928 = vmatprep.subr.mxu0 0.0
      %5929 = vmatpush1.msra.mxu0 0.0
      %5930 = vmatprep.subr.mxu0 0.0
      %5931 = vmatpush1.msra.mxu0 0.0
      %5932 = vmatprep.subr.mxu0 0.0
      %5933 = vmatpush1.msra.mxu0 0.0
      %5934 = vmatprep.subr.mxu0 0.0
      %5935 = vmatpush1.msra.mxu0 0.0
      %5936 = vmatprep.mubr.f32.mxu0 0.0
      %5937 = vmatmul.mubr.f32.gmra.mrb[0].mxu0 %v5867
      %v5938 = vpop.f32.mrb[0].mxu0
      %v5939 = vadd.f32 0.0, %v5938
      %v5940 = vpop.f32.mrb[0].mxu0
      %5941 = vmatprep.mubr.f32.mxu0 0.0
      %5942 = vmatmul.mubr.f32.gmra.mrb[0].mxu0 %v5870
      %v5943 = vpop.f32.mrb[0].mxu0
      %v5944 = vadd.f32 0.0, %v5943
      %v5945 = vpop.f32.mrb[0].mxu0
      %5946 = vdwg.mxu0
      %5947 = vrot.lane.b32.xlu0 %v1270, 64
      %v5948 = vpop.permute.xlu0 %5947
      %5949 = vrot.lane.b32.xlu0 %v1272, 64
      %v5950 = vpop.permute.xlu0 %5949
      %v5954 = vsel %vm4198, %v4863, 0
      %v5957 = vsel %vm4198, %v4864, 0
      %5959 = vmatprep.subr.mxu0 0.0
      %5960 = vmatpush1.msra.mxu0 %v5948
      %5961 = vmatprep.subr.mxu0 0.0
      %5962 = vmatpush1.msra.mxu0 %v5950
      %5963 = vmatprep.subr.mxu0 0.0
      %5964 = vmatpush1.msra.mxu0 0.0
      %5965 = vmatprep.subr.mxu0 0.0
      %5966 = vmatpush1.msra.mxu0 0.0
      %5967 = vmatprep.subr.mxu0 0.0
      %5968 = vmatpush1.msra.mxu0 0.0
      %5969 = vmatprep.subr.mxu0 0.0
      %5970 = vmatpush1.msra.mxu0 0.0
      %5971 = vmatprep.subr.mxu0 0.0
      %5972 = vmatpush1.msra.mxu0 0.0
      %5973 = vmatprep.subr.mxu0 0.0
      %5974 = vmatpush1.msra.mxu0 0.0
      %5975 = vmatprep.subr.mxu0 0.0
      %5976 = vmatpush1.msra.mxu0 0.0
      %5977 = vmatprep.subr.mxu0 0.0
      %5978 = vmatpush1.msra.mxu0 0.0
      %5979 = vmatprep.subr.mxu0 0.0
      %5980 = vmatpush1.msra.mxu0 0.0
      %5981 = vmatprep.subr.mxu0 0.0
      %5982 = vmatpush1.msra.mxu0 0.0
      %5983 = vmatprep.subr.mxu0 0.0
      %5984 = vmatpush1.msra.mxu0 0.0
      %5985 = vmatprep.subr.mxu0 0.0
      %5986 = vmatpush1.msra.mxu0 0.0
      %5987 = vmatprep.subr.mxu0 0.0
      %5988 = vmatpush1.msra.mxu0 0.0
      %5989 = vmatprep.subr.mxu0 0.0
      %5990 = vmatpush1.msra.mxu0 0.0
      %5991 = vmatprep.subr.mxu0 0.0
      %5992 = vmatpush1.msra.mxu0 0.0
      %5993 = vmatprep.subr.mxu0 0.0
      %5994 = vmatpush1.msra.mxu0 0.0
      %5995 = vmatprep.subr.mxu0 0.0
      %5996 = vmatpush1.msra.mxu0 0.0
      %5997 = vmatprep.subr.mxu0 0.0
      %5998 = vmatpush1.msra.mxu0 0.0
      %5999 = vmatprep.subr.mxu0 0.0
      %6000 = vmatpush1.msra.mxu0 0.0
      %6001 = vmatprep.subr.mxu0 0.0
      %6002 = vmatpush1.msra.mxu0 0.0
      %6003 = vmatprep.subr.mxu0 0.0
      %6004 = vmatpush1.msra.mxu0 0.0
      %6005 = vmatprep.subr.mxu0 0.0
      %6006 = vmatpush1.msra.mxu0 0.0
      %6007 = vmatprep.subr.mxu0 0.0
      %6008 = vmatpush1.msra.mxu0 0.0
      %6009 = vmatprep.subr.mxu0 0.0
      %6010 = vmatpush1.msra.mxu0 0.0
      %6011 = vmatprep.subr.mxu0 0.0
      %6012 = vmatpush1.msra.mxu0 0.0
      %6013 = vmatprep.subr.mxu0 0.0
      %6014 = vmatpush1.msra.mxu0 0.0
      %6015 = vmatprep.subr.mxu0 0.0
      %6016 = vmatpush1.msra.mxu0 0.0
      %6017 = vmatprep.subr.mxu0 0.0
      %6018 = vmatpush1.msra.mxu0 0.0
      %6019 = vmatprep.subr.mxu0 0.0
      %6020 = vmatpush1.msra.mxu0 0.0
      %6021 = vmatprep.subr.mxu0 0.0
      %6022 = vmatpush1.msra.mxu0 0.0
      %6023 = vmatprep.mubr.f32.mxu0 0.0
      %6024 = vmatmul.mubr.f32.gmra.mrb[0].mxu0 %v5954
      %v6025 = vpop.f32.mrb[0].mxu0
      %v6026 = vadd.f32 0.0, %v6025
      %v6027 = vpop.f32.mrb[0].mxu0
      %6028 = vmatprep.mubr.f32.mxu0 0.0
      %6029 = vmatmul.mubr.f32.gmra.mrb[0].mxu0 %v5957
      %v6030 = vpop.f32.mrb[0].mxu0
      %v6031 = vadd.f32 0.0, %v6030
      %v6032 = vpop.f32.mrb[0].mxu0
      %6033 = vdwg.mxu0
      %6034 = vrot.lane.b32.xlu0 %v1274, 64
      %v6035 = vpop.permute.xlu0 %6034
      %6036 = vrot.lane.b32.xlu0 %v1276, 64
      %v6037 = vpop.permute.xlu0 %6036
      %v6041 = vsel %vm4198, %v4865, 0
      %v6044 = vsel %vm4198, %v4866, 0
      %6046 = vmatprep.subr.mxu0 0.0
      %6047 = vmatpush1.msra.mxu0 %v6035
      %6048 = vmatprep.subr.mxu0 0.0
      %6049 = vmatpush1.msra.mxu0 %v6037
      %6050 = vmatprep.subr.mxu0 0.0
      %6051 = vmatpush1.msra.mxu0 0.0
      %6052 = vmatprep.subr.mxu0 0.0
      %6053 = vmatpush1.msra.mxu0 0.0
      %6054 = vmatprep.subr.mxu0 0.0
      %6055 = vmatpush1.msra.mxu0 0.0
      %6056 = vmatprep.subr.mxu0 0.0
      %6057 = vmatpush1.msra.mxu0 0.0
      %6058 = vmatprep.subr.mxu0 0.0
      %6059 = vmatpush1.msra.mxu0 0.0
      %6060 = vmatprep.subr.mxu0 0.0
      %6061 = vmatpush1.msra.mxu0 0.0
      %6062 = vmatprep.subr.mxu0 0.0
      %6063 = vmatpush1.msra.mxu0 0.0
      %6064 = vmatprep.subr.mxu0 0.0
      %6065 = vmatpush1.msra.mxu0 0.0
      %6066 = vmatprep.subr.mxu0 0.0
      %6067 = vmatpush1.msra.mxu0 0.0
      %6068 = vmatprep.subr.mxu0 0.0
      %6069 = vmatpush1.msra.mxu0 0.0
      %6070 = vmatprep.subr.mxu0 0.0
      %6071 = vmatpush1.msra.mxu0 0.0
      %6072 = vmatprep.subr.mxu0 0.0
      %6073 = vmatpush1.msra.mxu0 0.0
      %6074 = vmatprep.subr.mxu0 0.0
      %6075 = vmatpush1.msra.mxu0 0.0
      %6076 = vmatprep.subr.mxu0 0.0
      %6077 = vmatpush1.msra.mxu0 0.0
      %6078 = vmatprep.subr.mxu0 0.0
      %6079 = vmatpush1.msra.mxu0 0.0
      %6080 = vmatprep.subr.mxu0 0.0
      %6081 = vmatpush1.msra.mxu0 0.0
      %6082 = vmatprep.subr.mxu0 0.0
      %6083 = vmatpush1.msra.mxu0 0.0
      %6084 = vmatprep.subr.mxu0 0.0
      %6085 = vmatpush1.msra.mxu0 0.0
      %6086 = vmatprep.subr.mxu0 0.0
      %6087 = vmatpush1.msra.mxu0 0.0
      %6088 = vmatprep.subr.mxu0 0.0
      %6089 = vmatpush1.msra.mxu0 0.0
      %6090 = vmatprep.subr.mxu0 0.0
      %6091 = vmatpush1.msra.mxu0 0.0
      %6092 = vmatprep.subr.mxu0 0.0
      %6093 = vmatpush1.msra.mxu0 0.0
      %6094 = vmatprep.subr.mxu0 0.0
      %6095 = vmatpush1.msra.mxu0 0.0
      %6096 = vmatprep.subr.mxu0 0.0
      %6097 = vmatpush1.msra.mxu0 0.0
      %6098 = vmatprep.subr.mxu0 0.0
      %6099 = vmatpush1.msra.mxu0 0.0
      %6100 = vmatprep.subr.mxu0 0.0
      %6101 = vmatpush1.msra.mxu0 0.0
      %6102 = vmatprep.subr.mxu0 0.0
      %6103 = vmatpush1.msra.mxu0 0.0
      %6104 = vmatprep.subr.mxu0 0.0
      %6105 = vmatpush1.msra.mxu0 0.0
      %6106 = vmatprep.subr.mxu0 0.0
      %6107 = vmatpush1.msra.mxu0 0.0
      %6108 = vmatprep.subr.mxu0 0.0
      %6109 = vmatpush1.msra.mxu0 0.0
      %6110 = vmatprep.mubr.f32.mxu0 0.0
      %6111 = vmatmul.mubr.f32.gmra.mrb[0].mxu0 %v6041
      %v6112 = vpop.f32.mrb[0].mxu0
      %v6113 = vadd.f32 0.0, %v6112
      %v6114 = vpop.f32.mrb[0].mxu0
      %6115 = vmatprep.mubr.f32.mxu0 0.0
      %6116 = vmatmul.mubr.f32.gmra.mrb[0].mxu0 %v6044
      %v6117 = vpop.f32.mrb[0].mxu0
      %v6118 = vadd.f32 0.0, %v6117
      %v6119 = vpop.f32.mrb[0].mxu0
      %6120 = vdwg.mxu0
      %6121 = vrot.lane.b32.xlu0 %v1278, 64
      %v6122 = vpop.permute.xlu0 %6121
      %6123 = vrot.lane.b32.xlu0 %v1280, 64
      %v6124 = vpop.permute.xlu0 %6123
      %v6128 = vsel %vm4198, %v4867, 0
      %v6131 = vsel %vm4198, %v4868, 0
      %6133 = vmatprep.subr.mxu0 0.0
      %6134 = vmatpush1.msra.mxu0 %v6122
      %6135 = vmatprep.subr.mxu0 0.0
      %6136 = vmatpush1.msra.mxu0 %v6124
      %6137 = vmatprep.subr.mxu0 0.0
      %6138 = vmatpush1.msra.mxu0 0.0
      %6139 = vmatprep.subr.mxu0 0.0
      %6140 = vmatpush1.msra.mxu0 0.0
      %6141 = vmatprep.subr.mxu0 0.0
      %6142 = vmatpush1.msra.mxu0 0.0
      %6143 = vmatprep.subr.mxu0 0.0
      %6144 = vmatpush1.msra.mxu0 0.0
      %6145 = vmatprep.subr.mxu0 0.0
      %6146 = vmatpush1.msra.mxu0 0.0
      %6147 = vmatprep.subr.mxu0 0.0
      %6148 = vmatpush1.msra.mxu0 0.0
      %6149 = vmatprep.subr.mxu0 0.0
      %6150 = vmatpush1.msra.mxu0 0.0
      %6151 = vmatprep.subr.mxu0 0.0
      %6152 = vmatpush1.msra.mxu0 0.0
      %6153 = vmatprep.subr.mxu0 0.0
      %6154 = vmatpush1.msra.mxu0 0.0
      %6155 = vmatprep.subr.mxu0 0.0
      %6156 = vmatpush1.msra.mxu0 0.0
      %6157 = vmatprep.subr.mxu0 0.0
      %6158 = vmatpush1.msra.mxu0 0.0
      %6159 = vmatprep.subr.mxu0 0.0
      %6160 = vmatpush1.msra.mxu0 0.0
      %6161 = vmatprep.subr.mxu0 0.0
      %6162 = vmatpush1.msra.mxu0 0.0
      %6163 = vmatprep.subr.mxu0 0.0
      %6164 = vmatpush1.msra.mxu0 0.0
      %6165 = vmatprep.subr.mxu0 0.0
      %6166 = vmatpush1.msra.mxu0 0.0
      %6167 = vmatprep.subr.mxu0 0.0
      %6168 = vmatpush1.msra.mxu0 0.0
      %6169 = vmatprep.subr.mxu0 0.0
      %6170 = vmatpush1.msra.mxu0 0.0
      %6171 = vmatprep.subr.mxu0 0.0
      %6172 = vmatpush1.msra.mxu0 0.0
      %6173 = vmatprep.subr.mxu0 0.0
      %6174 = vmatpush1.msra.mxu0 0.0
      %6175 = vmatprep.subr.mxu0 0.0
      %6176 = vmatpush1.msra.mxu0 0.0
      %6177 = vmatprep.subr.mxu0 0.0
      %6178 = vmatpush1.msra.mxu0 0.0
      %6179 = vmatprep.subr.mxu0 0.0
      %6180 = vmatpush1.msra.mxu0 0.0
      %6181 = vmatprep.subr.mxu0 0.0
      %6182 = vmatpush1.msra.mxu0 0.0
      %6183 = vmatprep.subr.mxu0 0.0
      %6184 = vmatpush1.msra.mxu0 0.0
      %6185 = vmatprep.subr.mxu0 0.0
      %6186 = vmatpush1.msra.mxu0 0.0
      %6187 = vmatprep.subr.mxu0 0.0
      %6188 = vmatpush1.msra.mxu0 0.0
      %6189 = vmatprep.subr.mxu0 0.0
      %6190 = vmatpush1.msra.mxu0 0.0
      %6191 = vmatprep.subr.mxu0 0.0
      %6192 = vmatpush1.msra.mxu0 0.0
      %6193 = vmatprep.subr.mxu0 0.0
      %6194 = vmatpush1.msra.mxu0 0.0
      %6195 = vmatprep.subr.mxu0 0.0
      %6196 = vmatpush1.msra.mxu0 0.0
      %6197 = vmatprep.mubr.f32.mxu0 0.0
      %6198 = vmatmul.mubr.f32.gmra.mrb[0].mxu0 %v6128
      %v6199 = vpop.f32.mrb[0].mxu0
      %v6200 = vadd.f32 0.0, %v6199
      %v6201 = vpop.f32.mrb[0].mxu0
      %6202 = vmatprep.mubr.f32.mxu0 0.0
      %6203 = vmatmul.mubr.f32.gmra.mrb[0].mxu0 %v6131
      %v6204 = vpop.f32.mrb[0].mxu0
      %v6205 = vadd.f32 0.0, %v6204
      %v6206 = vpop.f32.mrb[0].mxu0
      %6207 = vdwg.mxu0
      %6208 = vrot.lane.b32.xlu0 %v1282, 64
      %v6209 = vpop.permute.xlu0 %6208
      %6210 = vrot.lane.b32.xlu0 %v1284, 64
      %v6211 = vpop.permute.xlu0 %6210
      %v6215 = vsel %vm4198, %v4869, 0
      %v6218 = vsel %vm4198, %v4870, 0
      %6220 = vmatprep.subr.mxu0 0.0
      %6221 = vmatpush1.msra.mxu0 %v6209
      %6222 = vmatprep.subr.mxu0 0.0
      %6223 = vmatpush1.msra.mxu0 %v6211
      %6224 = vmatprep.subr.mxu0 0.0
      %6225 = vmatpush1.msra.mxu0 0.0
      %6226 = vmatprep.subr.mxu0 0.0
      %6227 = vmatpush1.msra.mxu0 0.0
      %6228 = vmatprep.subr.mxu0 0.0
      %6229 = vmatpush1.msra.mxu0 0.0
      %6230 = vmatprep.subr.mxu0 0.0
      %6231 = vmatpush1.msra.mxu0 0.0
      %6232 = vmatprep.subr.mxu0 0.0
      %6233 = vmatpush1.msra.mxu0 0.0
      %6234 = vmatprep.subr.mxu0 0.0
      %6235 = vmatpush1.msra.mxu0 0.0
      %6236 = vmatprep.subr.mxu0 0.0
      %6237 = vmatpush1.msra.mxu0 0.0
      %6238 = vmatprep.subr.mxu0 0.0
      %6239 = vmatpush1.msra.mxu0 0.0
      %6240 = vmatprep.subr.mxu0 0.0
      %6241 = vmatpush1.msra.mxu0 0.0
      %6242 = vmatprep.subr.mxu0 0.0
      %6243 = vmatpush1.msra.mxu0 0.0
      %6244 = vmatprep.subr.mxu0 0.0
      %6245 = vmatpush1.msra.mxu0 0.0
      %6246 = vmatprep.subr.mxu0 0.0
      %6247 = vmatpush1.msra.mxu0 0.0
      %6248 = vmatprep.subr.mxu0 0.0
      %6249 = vmatpush1.msra.mxu0 0.0
      %6250 = vmatprep.subr.mxu0 0.0
      %6251 = vmatpush1.msra.mxu0 0.0
      %6252 = vmatprep.subr.mxu0 0.0
      %6253 = vmatpush1.msra.mxu0 0.0
      %6254 = vmatprep.subr.mxu0 0.0
      %6255 = vmatpush1.msra.mxu0 0.0
      %6256 = vmatprep.subr.mxu0 0.0
      %6257 = vmatpush1.msra.mxu0 0.0
      %6258 = vmatprep.subr.mxu0 0.0
      %6259 = vmatpush1.msra.mxu0 0.0
      %6260 = vmatprep.subr.mxu0 0.0
      %6261 = vmatpush1.msra.mxu0 0.0
      %6262 = vmatprep.subr.mxu0 0.0
      %6263 = vmatpush1.msra.mxu0 0.0
      %6264 = vmatprep.subr.mxu0 0.0
      %6265 = vmatpush1.msra.mxu0 0.0
      %6266 = vmatprep.subr.mxu0 0.0
      %6267 = vmatpush1.msra.mxu0 0.0
      %6268 = vmatprep.subr.mxu0 0.0
      %6269 = vmatpush1.msra.mxu0 0.0
      %6270 = vmatprep.subr.mxu0 0.0
      %6271 = vmatpush1.msra.mxu0 0.0
      %6272 = vmatprep.subr.mxu0 0.0
      %6273 = vmatpush1.msra.mxu0 0.0
      %6274 = vmatprep.subr.mxu0 0.0
      %6275 = vmatpush1.msra.mxu0 0.0
      %6276 = vmatprep.subr.mxu0 0.0
      %6277 = vmatpush1.msra.mxu0 0.0
      %6278 = vmatprep.subr.mxu0 0.0
      %6279 = vmatpush1.msra.mxu0 0.0
      %6280 = vmatprep.subr.mxu0 0.0
      %6281 = vmatpush1.msra.mxu0 0.0
      %6282 = vmatprep.subr.mxu0 0.0
      %6283 = vmatpush1.msra.mxu0 0.0
      %6284 = vmatprep.mubr.f32.mxu0 0.0
      %6285 = vmatmul.mubr.f32.gmra.mrb[0].mxu0 %v6215
      %v6286 = vpop.f32.mrb[0].mxu0
      %v6287 = vadd.f32 0.0, %v6286
      %v6288 = vpop.f32.mrb[0].mxu0
      %6289 = vmatprep.mubr.f32.mxu0 0.0
      %6290 = vmatmul.mubr.f32.gmra.mrb[0].mxu0 %v6218
      %v6291 = vpop.f32.mrb[0].mxu0
      %v6292 = vadd.f32 0.0, %v6291
      %v6293 = vpop.f32.mrb[0].mxu0
      %6294 = vdwg.mxu0
      %6295 = vrot.lane.b32.xlu0 %v1286, 64
      %v6296 = vpop.permute.xlu0 %6295
      %6297 = vrot.lane.b32.xlu0 %v1288, 64
      %v6298 = vpop.permute.xlu0 %6297
      %v6302 = vsel %vm4198, %v4871, 0
      %v6305 = vsel %vm4198, %v4872, 0
      %6307 = vmatprep.subr.mxu0 0.0
      %6308 = vmatpush1.msra.mxu0 %v6296
      %6309 = vmatprep.subr.mxu0 0.0
      %6310 = vmatpush1.msra.mxu0 %v6298
      %6311 = vmatprep.subr.mxu0 0.0
      %6312 = vmatpush1.msra.mxu0 0.0
      %6313 = vmatprep.subr.mxu0 0.0
      %6314 = vmatpush1.msra.mxu0 0.0
      %6315 = vmatprep.subr.mxu0 0.0
      %6316 = vmatpush1.msra.mxu0 0.0
      %6317 = vmatprep.subr.mxu0 0.0
      %6318 = vmatpush1.msra.mxu0 0.0
      %6319 = vmatprep.subr.mxu0 0.0
      %6320 = vmatpush1.msra.mxu0 0.0
      %6321 = vmatprep.subr.mxu0 0.0
      %6322 = vmatpush1.msra.mxu0 0.0
      %6323 = vmatprep.subr.mxu0 0.0
      %6324 = vmatpush1.msra.mxu0 0.0
      %6325 = vmatprep.subr.mxu0 0.0
      %6326 = vmatpush1.msra.mxu0 0.0
      %6327 = vmatprep.subr.mxu0 0.0
      %6328 = vmatpush1.msra.mxu0 0.0
      %6329 = vmatprep.subr.mxu0 0.0
      %6330 = vmatpush1.msra.mxu0 0.0
      %6331 = vmatprep.subr.mxu0 0.0
      %6332 = vmatpush1.msra.mxu0 0.0
      %6333 = vmatprep.subr.mxu0 0.0
      %6334 = vmatpush1.msra.mxu0 0.0
      %6335 = vmatprep.subr.mxu0 0.0
      %6336 = vmatpush1.msra.mxu0 0.0
      %6337 = vmatprep.subr.mxu0 0.0
      %6338 = vmatpush1.msra.mxu0 0.0
      %6339 = vmatprep.subr.mxu0 0.0
      %6340 = vmatpush1.msra.mxu0 0.0
      %6341 = vmatprep.subr.mxu0 0.0
      %6342 = vmatpush1.msra.mxu0 0.0
      %6343 = vmatprep.subr.mxu0 0.0
      %6344 = vmatpush1.msra.mxu0 0.0
      %6345 = vmatprep.subr.mxu0 0.0
      %6346 = vmatpush1.msra.mxu0 0.0
      %6347 = vmatprep.subr.mxu0 0.0
      %6348 = vmatpush1.msra.mxu0 0.0
      %6349 = vmatprep.subr.mxu0 0.0
      %6350 = vmatpush1.msra.mxu0 0.0
      %6351 = vmatprep.subr.mxu0 0.0
      %6352 = vmatpush1.msra.mxu0 0.0
      %6353 = vmatprep.subr.mxu0 0.0
      %6354 = vmatpush1.msra.mxu0 0.0
      %6355 = vmatprep.subr.mxu0 0.0
      %6356 = vmatpush1.msra.mxu0 0.0
      %6357 = vmatprep.subr.mxu0 0.0
      %6358 = vmatpush1.msra.mxu0 0.0
      %6359 = vmatprep.subr.mxu0 0.0
      %6360 = vmatpush1.msra.mxu0 0.0
      %6361 = vmatprep.subr.mxu0 0.0
      %6362 = vmatpush1.msra.mxu0 0.0
      %6363 = vmatprep.subr.mxu0 0.0
      %6364 = vmatpush1.msra.mxu0 0.0
      %6365 = vmatprep.subr.mxu0 0.0
      %6366 = vmatpush1.msra.mxu0 0.0
      %6367 = vmatprep.subr.mxu0 0.0
      %6368 = vmatpush1.msra.mxu0 0.0
      %6369 = vmatprep.subr.mxu0 0.0
      %6370 = vmatpush1.msra.mxu0 0.0
      %6371 = vmatprep.mubr.f32.mxu0 0.0
      %6372 = vmatmul.mubr.f32.gmra.mrb[0].mxu0 %v6302
      %v6373 = vpop.f32.mrb[0].mxu0
      %v6374 = vadd.f32 0.0, %v6373
      %v6375 = vpop.f32.mrb[0].mxu0
      %6376 = vmatprep.mubr.f32.mxu0 0.0
      %6377 = vmatmul.mubr.f32.gmra.mrb[0].mxu0 %v6305
      %v6378 = vpop.f32.mrb[0].mxu0
      %v6379 = vadd.f32 0.0, %v6378
      %v6380 = vpop.f32.mrb[0].mxu0
      %6381 = vdwg.mxu0
      %6382 = vrot.lane.b32.xlu0 %v1290, 64
      %v6383 = vpop.permute.xlu0 %6382
      %6384 = vrot.lane.b32.xlu0 %v1292, 64
      %v6385 = vpop.permute.xlu0 %6384
      %v6389 = vsel %vm4198, %v4873, 0
      %v6392 = vsel %vm4198, %v4874, 0
      %6394 = vmatprep.subr.mxu0 0.0
      %6395 = vmatpush1.msra.mxu0 %v6383
      %6396 = vmatprep.subr.mxu0 0.0
      %6397 = vmatpush1.msra.mxu0 %v6385
      %6398 = vmatprep.subr.mxu0 0.0
      %6399 = vmatpush1.msra.mxu0 0.0
      %6400 = vmatprep.subr.mxu0 0.0
      %6401 = vmatpush1.msra.mxu0 0.0
      %6402 = vmatprep.subr.mxu0 0.0
      %6403 = vmatpush1.msra.mxu0 0.0
      %6404 = vmatprep.subr.mxu0 0.0
      %6405 = vmatpush1.msra.mxu0 0.0
      %6406 = vmatprep.subr.mxu0 0.0
      %6407 = vmatpush1.msra.mxu0 0.0
      %6408 = vmatprep.subr.mxu0 0.0
      %6409 = vmatpush1.msra.mxu0 0.0
      %6410 = vmatprep.subr.mxu0 0.0
      %6411 = vmatpush1.msra.mxu0 0.0
      %6412 = vmatprep.subr.mxu0 0.0
      %6413 = vmatpush1.msra.mxu0 0.0
      %6414 = vmatprep.subr.mxu0 0.0
      %6415 = vmatpush1.msra.mxu0 0.0
      %6416 = vmatprep.subr.mxu0 0.0
      %6417 = vmatpush1.msra.mxu0 0.0
      %6418 = vmatprep.subr.mxu0 0.0
      %6419 = vmatpush1.msra.mxu0 0.0
      %6420 = vmatprep.subr.mxu0 0.0
      %6421 = vmatpush1.msra.mxu0 0.0
      %6422 = vmatprep.subr.mxu0 0.0
      %6423 = vmatpush1.msra.mxu0 0.0
      %6424 = vmatprep.subr.mxu0 0.0
      %6425 = vmatpush1.msra.mxu0 0.0
      %6426 = vmatprep.subr.mxu0 0.0
      %6427 = vmatpush1.msra.mxu0 0.0
      %6428 = vmatprep.subr.mxu0 0.0
      %6429 = vmatpush1.msra.mxu0 0.0
      %6430 = vmatprep.subr.mxu0 0.0
      %6431 = vmatpush1.msra.mxu0 0.0
      %6432 = vmatprep.subr.mxu0 0.0
      %6433 = vmatpush1.msra.mxu0 0.0
      %6434 = vmatprep.subr.mxu0 0.0
      %6435 = vmatpush1.msra.mxu0 0.0
      %6436 = vmatprep.subr.mxu0 0.0
      %6437 = vmatpush1.msra.mxu0 0.0
      %6438 = vmatprep.subr.mxu0 0.0
      %6439 = vmatpush1.msra.mxu0 0.0
      %6440 = vmatprep.subr.mxu0 0.0
      %6441 = vmatpush1.msra.mxu0 0.0
      %6442 = vmatprep.subr.mxu0 0.0
      %6443 = vmatpush1.msra.mxu0 0.0
      %6444 = vmatprep.subr.mxu0 0.0
      %6445 = vmatpush1.msra.mxu0 0.0
      %6446 = vmatprep.subr.mxu0 0.0
      %6447 = vmatpush1.msra.mxu0 0.0
      %6448 = vmatprep.subr.mxu0 0.0
      %6449 = vmatpush1.msra.mxu0 0.0
      %6450 = vmatprep.subr.mxu0 0.0
      %6451 = vmatpush1.msra.mxu0 0.0
      %6452 = vmatprep.subr.mxu0 0.0
      %6453 = vmatpush1.msra.mxu0 0.0
      %6454 = vmatprep.subr.mxu0 0.0
      %6455 = vmatpush1.msra.mxu0 0.0
      %6456 = vmatprep.subr.mxu0 0.0
      %6457 = vmatpush1.msra.mxu0 0.0
      %6458 = vmatprep.mubr.f32.mxu0 0.0
      %6459 = vmatmul.mubr.f32.gmra.mrb[0].mxu0 %v6389
      %v6460 = vpop.f32.mrb[0].mxu0
      %v6461 = vadd.f32 0.0, %v6460
      %v6462 = vpop.f32.mrb[0].mxu0
      %6463 = vmatprep.mubr.f32.mxu0 0.0
      %6464 = vmatmul.mubr.f32.gmra.mrb[0].mxu0 %v6392
      %v6465 = vpop.f32.mrb[0].mxu0
      %v6466 = vadd.f32 0.0, %v6465
      %v6467 = vpop.f32.mrb[0].mxu0
      %6468 = vdwg.mxu0
      %6469 = vrot.lane.b32.xlu0 %v1294, 64
      %v6470 = vpop.permute.xlu0 %6469
      %6471 = vrot.lane.b32.xlu0 %v1296, 64
      %v6472 = vpop.permute.xlu0 %6471
      %v6476 = vsel %vm4198, %v4875, 0
      %v6479 = vsel %vm4198, %v4876, 0
      %6481 = vmatprep.subr.mxu0 0.0
      %6482 = vmatpush1.msra.mxu0 %v6470
      %6483 = vmatprep.subr.mxu0 0.0
      %6484 = vmatpush1.msra.mxu0 %v6472
      %6485 = vmatprep.subr.mxu0 0.0
      %6486 = vmatpush1.msra.mxu0 0.0
      %6487 = vmatprep.subr.mxu0 0.0
      %6488 = vmatpush1.msra.mxu0 0.0
      %6489 = vmatprep.subr.mxu0 0.0
      %6490 = vmatpush1.msra.mxu0 0.0
      %6491 = vmatprep.subr.mxu0 0.0
      %6492 = vmatpush1.msra.mxu0 0.0
      %6493 = vmatprep.subr.mxu0 0.0
      %6494 = vmatpush1.msra.mxu0 0.0
      %6495 = vmatprep.subr.mxu0 0.0
      %6496 = vmatpush1.msra.mxu0 0.0
      %6497 = vmatprep.subr.mxu0 0.0
      %6498 = vmatpush1.msra.mxu0 0.0
      %6499 = vmatprep.subr.mxu0 0.0
      %6500 = vmatpush1.msra.mxu0 0.0
      %6501 = vmatprep.subr.mxu0 0.0
      %6502 = vmatpush1.msra.mxu0 0.0
      %6503 = vmatprep.subr.mxu0 0.0
      %6504 = vmatpush1.msra.mxu0 0.0
      %6505 = vmatprep.subr.mxu0 0.0
      %6506 = vmatpush1.msra.mxu0 0.0
      %6507 = vmatprep.subr.mxu0 0.0
      %6508 = vmatpush1.msra.mxu0 0.0
      %6509 = vmatprep.subr.mxu0 0.0
      %6510 = vmatpush1.msra.mxu0 0.0
      %6511 = vmatprep.subr.mxu0 0.0
      %6512 = vmatpush1.msra.mxu0 0.0
      %6513 = vmatprep.subr.mxu0 0.0
      %6514 = vmatpush1.msra.mxu0 0.0
      %6515 = vmatprep.subr.mxu0 0.0
      %6516 = vmatpush1.msra.mxu0 0.0
      %6517 = vmatprep.subr.mxu0 0.0
      %6518 = vmatpush1.msra.mxu0 0.0
      %6519 = vmatprep.subr.mxu0 0.0
      %6520 = vmatpush1.msra.mxu0 0.0
      %6521 = vmatprep.subr.mxu0 0.0
      %6522 = vmatpush1.msra.mxu0 0.0
      %6523 = vmatprep.subr.mxu0 0.0
      %6524 = vmatpush1.msra.mxu0 0.0
      %6525 = vmatprep.subr.mxu0 0.0
      %6526 = vmatpush1.msra.mxu0 0.0
      %6527 = vmatprep.subr.mxu0 0.0
      %6528 = vmatpush1.msra.mxu0 0.0
      %6529 = vmatprep.subr.mxu0 0.0
      %6530 = vmatpush1.msra.mxu0 0.0
      %6531 = vmatprep.subr.mxu0 0.0
      %6532 = vmatpush1.msra.mxu0 0.0
      %6533 = vmatprep.subr.mxu0 0.0
      %6534 = vmatpush1.msra.mxu0 0.0
      %6535 = vmatprep.subr.mxu0 0.0
      %6536 = vmatpush1.msra.mxu0 0.0
      %6537 = vmatprep.subr.mxu0 0.0
      %6538 = vmatpush1.msra.mxu0 0.0
      %6539 = vmatprep.subr.mxu0 0.0
      %6540 = vmatpush1.msra.mxu0 0.0
      %6541 = vmatprep.subr.mxu0 0.0
      %6542 = vmatpush1.msra.mxu0 0.0
      %6543 = vmatprep.subr.mxu0 0.0
      %6544 = vmatpush1.msra.mxu0 0.0
      %6545 = vmatprep.mubr.f32.mxu0 0.0
      %6546 = vmatmul.mubr.f32.gmra.mrb[0].mxu0 %v6476
      %v6547 = vpop.f32.mrb[0].mxu0
      %v6548 = vadd.f32 0.0, %v6547
      %v6549 = vpop.f32.mrb[0].mxu0
      %6550 = vmatprep.mubr.f32.mxu0 0.0
      %6551 = vmatmul.mubr.f32.gmra.mrb[0].mxu0 %v6479
      %v6552 = vpop.f32.mrb[0].mxu0
      %v6553 = vadd.f32 0.0, %v6552
      %v6554 = vpop.f32.mrb[0].mxu0
      %6555 = vdwg.mxu0
      %6556 = vrot.lane.b32.xlu0 %v1298, 64
      %v6557 = vpop.permute.xlu0 %6556
      %6558 = vrot.lane.b32.xlu0 %v1300, 64
      %v6559 = vpop.permute.xlu0 %6558
      %v6563 = vsel %vm4198, %v4877, 0
      %v6566 = vsel %vm4198, %v4878, 0
      %6568 = vmatprep.subr.mxu0 0.0
      %6569 = vmatpush1.msra.mxu0 %v6557
      %6570 = vmatprep.subr.mxu0 0.0
      %6571 = vmatpush1.msra.mxu0 %v6559
      %6572 = vmatprep.subr.mxu0 0.0
      %6573 = vmatpush1.msra.mxu0 0.0
      %6574 = vmatprep.subr.mxu0 0.0
      %6575 = vmatpush1.msra.mxu0 0.0
      %6576 = vmatprep.subr.mxu0 0.0
      %6577 = vmatpush1.msra.mxu0 0.0
      %6578 = vmatprep.subr.mxu0 0.0
      %6579 = vmatpush1.msra.mxu0 0.0
      %6580 = vmatprep.subr.mxu0 0.0
      %6581 = vmatpush1.msra.mxu0 0.0
      %6582 = vmatprep.subr.mxu0 0.0
      %6583 = vmatpush1.msra.mxu0 0.0
      %6584 = vmatprep.subr.mxu0 0.0
      %6585 = vmatpush1.msra.mxu0 0.0
      %6586 = vmatprep.subr.mxu0 0.0
      %6587 = vmatpush1.msra.mxu0 0.0
      %6588 = vmatprep.subr.mxu0 0.0
      %6589 = vmatpush1.msra.mxu0 0.0
      %6590 = vmatprep.subr.mxu0 0.0
      %6591 = vmatpush1.msra.mxu0 0.0
      %6592 = vmatprep.subr.mxu0 0.0
      %6593 = vmatpush1.msra.mxu0 0.0
      %6594 = vmatprep.subr.mxu0 0.0
      %6595 = vmatpush1.msra.mxu0 0.0
      %6596 = vmatprep.subr.mxu0 0.0
      %6597 = vmatpush1.msra.mxu0 0.0
      %6598 = vmatprep.subr.mxu0 0.0
      %6599 = vmatpush1.msra.mxu0 0.0
      %6600 = vmatprep.subr.mxu0 0.0
      %6601 = vmatpush1.msra.mxu0 0.0
      %6602 = vmatprep.subr.mxu0 0.0
      %6603 = vmatpush1.msra.mxu0 0.0
      %6604 = vmatprep.subr.mxu0 0.0
      %6605 = vmatpush1.msra.mxu0 0.0
      %6606 = vmatprep.subr.mxu0 0.0
      %6607 = vmatpush1.msra.mxu0 0.0
      %6608 = vmatprep.subr.mxu0 0.0
      %6609 = vmatpush1.msra.mxu0 0.0
      %6610 = vmatprep.subr.mxu0 0.0
      %6611 = vmatpush1.msra.mxu0 0.0
      %6612 = vmatprep.subr.mxu0 0.0
      %6613 = vmatpush1.msra.mxu0 0.0
      %6614 = vmatprep.subr.mxu0 0.0
      %6615 = vmatpush1.msra.mxu0 0.0
      %6616 = vmatprep.subr.mxu0 0.0
      %6617 = vmatpush1.msra.mxu0 0.0
      %6618 = vmatprep.subr.mxu0 0.0
      %6619 = vmatpush1.msra.mxu0 0.0
      %6620 = vmatprep.subr.mxu0 0.0
      %6621 = vmatpush1.msra.mxu0 0.0
      %6622 = vmatprep.subr.mxu0 0.0
      %6623 = vmatpush1.msra.mxu0 0.0
      %6624 = vmatprep.subr.mxu0 0.0
      %6625 = vmatpush1.msra.mxu0 0.0
      %6626 = vmatprep.subr.mxu0 0.0
      %6627 = vmatpush1.msra.mxu0 0.0
      %6628 = vmatprep.subr.mxu0 0.0
      %6629 = vmatpush1.msra.mxu0 0.0
      %6630 = vmatprep.subr.mxu0 0.0
      %6631 = vmatpush1.msra.mxu0 0.0
      %6632 = vmatprep.mubr.f32.mxu0 0.0
      %6633 = vmatmul.mubr.f32.gmra.mrb[0].mxu0 %v6563
      %v6634 = vpop.f32.mrb[0].mxu0
      %v6635 = vadd.f32 0.0, %v6634
      %v6636 = vpop.f32.mrb[0].mxu0
      %6637 = vmatprep.mubr.f32.mxu0 0.0
      %6638 = vmatmul.mubr.f32.gmra.mrb[0].mxu0 %v6566
      %v6639 = vpop.f32.mrb[0].mxu0
      %v6640 = vadd.f32 0.0, %v6639
      %v6641 = vpop.f32.mrb[0].mxu0
      %6642 = vdwg.mxu0
      %6643 = vrot.lane.b32.xlu0 %v1302, 64
      %v6644 = vpop.permute.xlu0 %6643
      %6645 = vrot.lane.b32.xlu0 %v1304, 64
      %v6646 = vpop.permute.xlu0 %6645
      %v6650 = vsel %vm4198, %v4879, 0
      %v6653 = vsel %vm4198, %v4880, 0
      %6655 = vmatprep.subr.mxu0 0.0
      %6656 = vmatpush1.msra.mxu0 %v6644
      %6657 = vmatprep.subr.mxu0 0.0
      %6658 = vmatpush1.msra.mxu0 %v6646
      %6659 = vmatprep.subr.mxu0 0.0
      %6660 = vmatpush1.msra.mxu0 0.0
      %6661 = vmatprep.subr.mxu0 0.0
      %6662 = vmatpush1.msra.mxu0 0.0
      %6663 = vmatprep.subr.mxu0 0.0
      %6664 = vmatpush1.msra.mxu0 0.0
      %6665 = vmatprep.subr.mxu0 0.0
      %6666 = vmatpush1.msra.mxu0 0.0
      %6667 = vmatprep.subr.mxu0 0.0
      %6668 = vmatpush1.msra.mxu0 0.0
      %6669 = vmatprep.subr.mxu0 0.0
      %6670 = vmatpush1.msra.mxu0 0.0
      %6671 = vmatprep.subr.mxu0 0.0
      %6672 = vmatpush1.msra.mxu0 0.0
      %6673 = vmatprep.subr.mxu0 0.0
      %6674 = vmatpush1.msra.mxu0 0.0
      %6675 = vmatprep.subr.mxu0 0.0
      %6676 = vmatpush1.msra.mxu0 0.0
      %6677 = vmatprep.subr.mxu0 0.0
      %6678 = vmatpush1.msra.mxu0 0.0
      %6679 = vmatprep.subr.mxu0 0.0
      %6680 = vmatpush1.msra.mxu0 0.0
      %6681 = vmatprep.subr.mxu0 0.0
      %6682 = vmatpush1.msra.mxu0 0.0
      %6683 = vmatprep.subr.mxu0 0.0
      %6684 = vmatpush1.msra.mxu0 0.0
      %6685 = vmatprep.subr.mxu0 0.0
      %6686 = vmatpush1.msra.mxu0 0.0
      %6687 = vmatprep.subr.mxu0 0.0
      %6688 = vmatpush1.msra.mxu0 0.0
      %6689 = vmatprep.subr.mxu0 0.0
      %6690 = vmatpush1.msra.mxu0 0.0
      %6691 = vmatprep.subr.mxu0 0.0
      %6692 = vmatpush1.msra.mxu0 0.0
      %6693 = vmatprep.subr.mxu0 0.0
      %6694 = vmatpush1.msra.mxu0 0.0
      %6695 = vmatprep.subr.mxu0 0.0
      %6696 = vmatpush1.msra.mxu0 0.0
      %6697 = vmatprep.subr.mxu0 0.0
      %6698 = vmatpush1.msra.mxu0 0.0
      %6699 = vmatprep.subr.mxu0 0.0
      %6700 = vmatpush1.msra.mxu0 0.0
      %6701 = vmatprep.subr.mxu0 0.0
      %6702 = vmatpush1.msra.mxu0 0.0
      %6703 = vmatprep.subr.mxu0 0.0
      %6704 = vmatpush1.msra.mxu0 0.0
      %6705 = vmatprep.subr.mxu0 0.0
      %6706 = vmatpush1.msra.mxu0 0.0
      %6707 = vmatprep.subr.mxu0 0.0
      %6708 = vmatpush1.msra.mxu0 0.0
      %6709 = vmatprep.subr.mxu0 0.0
      %6710 = vmatpush1.msra.mxu0 0.0
      %6711 = vmatprep.subr.mxu0 0.0
      %6712 = vmatpush1.msra.mxu0 0.0
      %6713 = vmatprep.subr.mxu0 0.0
      %6714 = vmatpush1.msra.mxu0 0.0
      %6715 = vmatprep.subr.mxu0 0.0
      %6716 = vmatpush1.msra.mxu0 0.0
      %6717 = vmatprep.subr.mxu0 0.0
      %6718 = vmatpush1.msra.mxu0 0.0
      %6719 = vmatprep.mubr.f32.mxu0 0.0
      %6720 = vmatmul.mubr.f32.gmra.mrb[0].mxu0 %v6650
      %v6721 = vpop.f32.mrb[0].mxu0
      %v6722 = vadd.f32 0.0, %v6721
      %v6723 = vpop.f32.mrb[0].mxu0
      %6724 = vmatprep.mubr.f32.mxu0 0.0
      %6725 = vmatmul.mubr.f32.gmra.mrb[0].mxu0 %v6653
      %v6726 = vpop.f32.mrb[0].mxu0
      %v6727 = vadd.f32 0.0, %v6726
      %v6728 = vpop.f32.mrb[0].mxu0
      %6729 = vdwg.mxu0
      %6730 = vrot.lane.b32.xlu0 %v1306, 64
      %v6731 = vpop.permute.xlu0 %6730
      %6732 = vrot.lane.b32.xlu0 %v1308, 64
      %v6733 = vpop.permute.xlu0 %6732
      %v6737 = vsel %vm4198, %v4881, 0
      %v6740 = vsel %vm4198, %v4882, 0
      %6742 = vmatprep.subr.mxu0 0.0
      %6743 = vmatpush1.msra.mxu0 %v6731
      %6744 = vmatprep.subr.mxu0 0.0
      %6745 = vmatpush1.msra.mxu0 %v6733
      %6746 = vmatprep.subr.mxu0 0.0
      %6747 = vmatpush1.msra.mxu0 0.0
      %6748 = vmatprep.subr.mxu0 0.0
      %6749 = vmatpush1.msra.mxu0 0.0
      %6750 = vmatprep.subr.mxu0 0.0
      %6751 = vmatpush1.msra.mxu0 0.0
      %6752 = vmatprep.subr.mxu0 0.0
      %6753 = vmatpush1.msra.mxu0 0.0
      %6754 = vmatprep.subr.mxu0 0.0
      %6755 = vmatpush1.msra.mxu0 0.0
      %6756 = vmatprep.subr.mxu0 0.0
      %6757 = vmatpush1.msra.mxu0 0.0
      %6758 = vmatprep.subr.mxu0 0.0
      %6759 = vmatpush1.msra.mxu0 0.0
      %6760 = vmatprep.subr.mxu0 0.0
      %6761 = vmatpush1.msra.mxu0 0.0
      %6762 = vmatprep.subr.mxu0 0.0
      %6763 = vmatpush1.msra.mxu0 0.0
      %6764 = vmatprep.subr.mxu0 0.0
      %6765 = vmatpush1.msra.mxu0 0.0
      %6766 = vmatprep.subr.mxu0 0.0
      %6767 = vmatpush1.msra.mxu0 0.0
      %6768 = vmatprep.subr.mxu0 0.0
      %6769 = vmatpush1.msra.mxu0 0.0
      %6770 = vmatprep.subr.mxu0 0.0
      %6771 = vmatpush1.msra.mxu0 0.0
      %6772 = vmatprep.subr.mxu0 0.0
      %6773 = vmatpush1.msra.mxu0 0.0
      %6774 = vmatprep.subr.mxu0 0.0
      %6775 = vmatpush1.msra.mxu0 0.0
      %6776 = vmatprep.subr.mxu0 0.0
      %6777 = vmatpush1.msra.mxu0 0.0
      %6778 = vmatprep.subr.mxu0 0.0
      %6779 = vmatpush1.msra.mxu0 0.0
      %6780 = vmatprep.subr.mxu0 0.0
      %6781 = vmatpush1.msra.mxu0 0.0
      %6782 = vmatprep.subr.mxu0 0.0
      %6783 = vmatpush1.msra.mxu0 0.0
      %6784 = vmatprep.subr.mxu0 0.0
      %6785 = vmatpush1.msra.mxu0 0.0
      %6786 = vmatprep.subr.mxu0 0.0
      %6787 = vmatpush1.msra.mxu0 0.0
      %6788 = vmatprep.subr.mxu0 0.0
      %6789 = vmatpush1.msra.mxu0 0.0
      %6790 = vmatprep.subr.mxu0 0.0
      %6791 = vmatpush1.msra.mxu0 0.0
      %6792 = vmatprep.subr.mxu0 0.0
      %6793 = vmatpush1.msra.mxu0 0.0
      %6794 = vmatprep.subr.mxu0 0.0
      %6795 = vmatpush1.msra.mxu0 0.0
      %6796 = vmatprep.subr.mxu0 0.0
      %6797 = vmatpush1.msra.mxu0 0.0
      %6798 = vmatprep.subr.mxu0 0.0
      %6799 = vmatpush1.msra.mxu0 0.0
      %6800 = vmatprep.subr.mxu0 0.0
      %6801 = vmatpush1.msra.mxu0 0.0
      %6802 = vmatprep.subr.mxu0 0.0
      %6803 = vmatpush1.msra.mxu0 0.0
      %6804 = vmatprep.subr.mxu0 0.0
      %6805 = vmatpush1.msra.mxu0 0.0
      %6806 = vmatprep.mubr.f32.mxu0 0.0
      %6807 = vmatmul.mubr.f32.gmra.mrb[0].mxu0 %v6737
      %v6808 = vpop.f32.mrb[0].mxu0
      %v6809 = vadd.f32 0.0, %v6808
      %v6810 = vpop.f32.mrb[0].mxu0
      %6811 = vmatprep.mubr.f32.mxu0 0.0
      %6812 = vmatmul.mubr.f32.gmra.mrb[0].mxu0 %v6740
      %v6813 = vpop.f32.mrb[0].mxu0
      %v6814 = vadd.f32 0.0, %v6813
      %v6815 = vpop.f32.mrb[0].mxu0
      %6816 = vdwg.mxu0
      %6817 = vrot.lane.b32.xlu0 %v1310, 64
      %v6818 = vpop.permute.xlu0 %6817
      %6819 = vrot.lane.b32.xlu0 %v1312, 64
      %v6820 = vpop.permute.xlu0 %6819
      %v6824 = vsel %vm4198, %v4883, 0
      %v6827 = vsel %vm4198, %v4884, 0
      %6829 = vmatprep.subr.mxu0 0.0
      %6830 = vmatpush1.msra.mxu0 %v6818
      %6831 = vmatprep.subr.mxu0 0.0
      %6832 = vmatpush1.msra.mxu0 %v6820
      %6833 = vmatprep.subr.mxu0 0.0
      %6834 = vmatpush1.msra.mxu0 0.0
      %6835 = vmatprep.subr.mxu0 0.0
      %6836 = vmatpush1.msra.mxu0 0.0
      %6837 = vmatprep.subr.mxu0 0.0
      %6838 = vmatpush1.msra.mxu0 0.0
      %6839 = vmatprep.subr.mxu0 0.0
      %6840 = vmatpush1.msra.mxu0 0.0
      %6841 = vmatprep.subr.mxu0 0.0
      %6842 = vmatpush1.msra.mxu0 0.0
      %6843 = vmatprep.subr.mxu0 0.0
      %6844 = vmatpush1.msra.mxu0 0.0
      %6845 = vmatprep.subr.mxu0 0.0
      %6846 = vmatpush1.msra.mxu0 0.0
      %6847 = vmatprep.subr.mxu0 0.0
      %6848 = vmatpush1.msra.mxu0 0.0
      %6849 = vmatprep.subr.mxu0 0.0
      %6850 = vmatpush1.msra.mxu0 0.0
      %6851 = vmatprep.subr.mxu0 0.0
      %6852 = vmatpush1.msra.mxu0 0.0
      %6853 = vmatprep.subr.mxu0 0.0
      %6854 = vmatpush1.msra.mxu0 0.0
      %6855 = vmatprep.subr.mxu0 0.0
      %6856 = vmatpush1.msra.mxu0 0.0
      %6857 = vmatprep.subr.mxu0 0.0
      %6858 = vmatpush1.msra.mxu0 0.0
      %6859 = vmatprep.subr.mxu0 0.0
      %6860 = vmatpush1.msra.mxu0 0.0
      %6861 = vmatprep.subr.mxu0 0.0
      %6862 = vmatpush1.msra.mxu0 0.0
      %6863 = vmatprep.subr.mxu0 0.0
      %6864 = vmatpush1.msra.mxu0 0.0
      %6865 = vmatprep.subr.mxu0 0.0
      %6866 = vmatpush1.msra.mxu0 0.0
      %6867 = vmatprep.subr.mxu0 0.0
      %6868 = vmatpush1.msra.mxu0 0.0
      %6869 = vmatprep.subr.mxu0 0.0
      %6870 = vmatpush1.msra.mxu0 0.0
      %6871 = vmatprep.subr.mxu0 0.0
      %6872 = vmatpush1.msra.mxu0 0.0
      %6873 = vmatprep.subr.mxu0 0.0
      %6874 = vmatpush1.msra.mxu0 0.0
      %6875 = vmatprep.subr.mxu0 0.0
      %6876 = vmatpush1.msra.mxu0 0.0
      %6877 = vmatprep.subr.mxu0 0.0
      %6878 = vmatpush1.msra.mxu0 0.0
      %6879 = vmatprep.subr.mxu0 0.0
      %6880 = vmatpush1.msra.mxu0 0.0
      %6881 = vmatprep.subr.mxu0 0.0
      %6882 = vmatpush1.msra.mxu0 0.0
      %6883 = vmatprep.subr.mxu0 0.0
      %6884 = vmatpush1.msra.mxu0 0.0
      %6885 = vmatprep.subr.mxu0 0.0
      %6886 = vmatpush1.msra.mxu0 0.0
      %6887 = vmatprep.subr.mxu0 0.0
      %6888 = vmatpush1.msra.mxu0 0.0
      %6889 = vmatprep.subr.mxu0 0.0
      %6890 = vmatpush1.msra.mxu0 0.0
      %6891 = vmatprep.subr.mxu0 0.0
      %6892 = vmatpush1.msra.mxu0 0.0
      %6893 = vmatprep.mubr.f32.mxu0 0.0
      %6894 = vmatmul.mubr.f32.gmra.mrb[0].mxu0 %v6824
      %v6895 = vpop.f32.mrb[0].mxu0
      %v6896 = vadd.f32 0.0, %v6895
      %v6897 = vpop.f32.mrb[0].mxu0
      %6898 = vmatprep.mubr.f32.mxu0 0.0
      %6899 = vmatmul.mubr.f32.gmra.mrb[0].mxu0 %v6827
      %v6900 = vpop.f32.mrb[0].mxu0
      %v6901 = vadd.f32 0.0, %v6900
      %v6902 = vpop.f32.mrb[0].mxu0
      %6903 = vdwg.mxu0
      %6904 = vrot.lane.b32.xlu0 %v1314, 64
      %v6905 = vpop.permute.xlu0 %6904
      %6906 = vrot.lane.b32.xlu0 %v1316, 64
      %v6907 = vpop.permute.xlu0 %6906
      %v6911 = vsel %vm4198, %v4885, 0
      %v6914 = vsel %vm4198, %v4886, 0
      %6916 = vmatprep.subr.mxu0 0.0
      %6917 = vmatpush1.msra.mxu0 %v6905
      %6918 = vmatprep.subr.mxu0 0.0
      %6919 = vmatpush1.msra.mxu0 %v6907
      %6920 = vmatprep.subr.mxu0 0.0
      %6921 = vmatpush1.msra.mxu0 0.0
      %6922 = vmatprep.subr.mxu0 0.0
      %6923 = vmatpush1.msra.mxu0 0.0
      %6924 = vmatprep.subr.mxu0 0.0
      %6925 = vmatpush1.msra.mxu0 0.0
      %6926 = vmatprep.subr.mxu0 0.0
      %6927 = vmatpush1.msra.mxu0 0.0
      %6928 = vmatprep.subr.mxu0 0.0
      %6929 = vmatpush1.msra.mxu0 0.0
      %6930 = vmatprep.subr.mxu0 0.0
      %6931 = vmatpush1.msra.mxu0 0.0
      %6932 = vmatprep.subr.mxu0 0.0
      %6933 = vmatpush1.msra.mxu0 0.0
      %6934 = vmatprep.subr.mxu0 0.0
      %6935 = vmatpush1.msra.mxu0 0.0
      %6936 = vmatprep.subr.mxu0 0.0
      %6937 = vmatpush1.msra.mxu0 0.0
      %6938 = vmatprep.subr.mxu0 0.0
      %6939 = vmatpush1.msra.mxu0 0.0
      %6940 = vmatprep.subr.mxu0 0.0
      %6941 = vmatpush1.msra.mxu0 0.0
      %6942 = vmatprep.subr.mxu0 0.0
      %6943 = vmatpush1.msra.mxu0 0.0
      %6944 = vmatprep.subr.mxu0 0.0
      %6945 = vmatpush1.msra.mxu0 0.0
      %6946 = vmatprep.subr.mxu0 0.0
      %6947 = vmatpush1.msra.mxu0 0.0
      %6948 = vmatprep.subr.mxu0 0.0
      %6949 = vmatpush1.msra.mxu0 0.0
      %6950 = vmatprep.subr.mxu0 0.0
      %6951 = vmatpush1.msra.mxu0 0.0
      %6952 = vmatprep.subr.mxu0 0.0
      %6953 = vmatpush1.msra.mxu0 0.0
      %6954 = vmatprep.subr.mxu0 0.0
      %6955 = vmatpush1.msra.mxu0 0.0
      %6956 = vmatprep.subr.mxu0 0.0
      %6957 = vmatpush1.msra.mxu0 0.0
      %6958 = vmatprep.subr.mxu0 0.0
      %6959 = vmatpush1.msra.mxu0 0.0
      %6960 = vmatprep.subr.mxu0 0.0
      %6961 = vmatpush1.msra.mxu0 0.0
      %6962 = vmatprep.subr.mxu0 0.0
      %6963 = vmatpush1.msra.mxu0 0.0
      %6964 = vmatprep.subr.mxu0 0.0
      %6965 = vmatpush1.msra.mxu0 0.0
      %6966 = vmatprep.subr.mxu0 0.0
      %6967 = vmatpush1.msra.mxu0 0.0
      %6968 = vmatprep.subr.mxu0 0.0
      %6969 = vmatpush1.msra.mxu0 0.0
      %6970 = vmatprep.subr.mxu0 0.0
      %6971 = vmatpush1.msra.mxu0 0.0
      %6972 = vmatprep.subr.mxu0 0.0
      %6973 = vmatpush1.msra.mxu0 0.0
      %6974 = vmatprep.subr.mxu0 0.0
      %6975 = vmatpush1.msra.mxu0 0.0
      %6976 = vmatprep.subr.mxu0 0.0
      %6977 = vmatpush1.msra.mxu0 0.0
      %6978 = vmatprep.subr.mxu0 0.0
      %6979 = vmatpush1.msra.mxu0 0.0
      %6980 = vmatprep.mubr.f32.mxu0 0.0
      %6981 = vmatmul.mubr.f32.gmra.mrb[0].mxu0 %v6911
      %v6982 = vpop.f32.mrb[0].mxu0
      %v6983 = vadd.f32 0.0, %v6982
      %v6984 = vpop.f32.mrb[0].mxu0
      %6985 = vmatprep.mubr.f32.mxu0 0.0
      %6986 = vmatmul.mubr.f32.gmra.mrb[0].mxu0 %v6914
      %v6987 = vpop.f32.mrb[0].mxu0
      %v6988 = vadd.f32 0.0, %v6987
      %v6989 = vpop.f32.mrb[0].mxu0
      %6990 = vdwg.mxu0
      %6991 = vrot.lane.b32.xlu0 %v1318, 64
      %v6992 = vpop.permute.xlu0 %6991
      %6993 = vrot.lane.b32.xlu0 %v1320, 64
      %v6994 = vpop.permute.xlu0 %6993
      %v6998 = vsel %vm4198, %v4887, 0
      %v7001 = vsel %vm4198, %v4888, 0
      %7003 = vmatprep.subr.mxu0 0.0
      %7004 = vmatpush1.msra.mxu0 %v6992
      %7005 = vmatprep.subr.mxu0 0.0
      %7006 = vmatpush1.msra.mxu0 %v6994
      %7007 = vmatprep.subr.mxu0 0.0
      %7008 = vmatpush1.msra.mxu0 0.0
      %7009 = vmatprep.subr.mxu0 0.0
      %7010 = vmatpush1.msra.mxu0 0.0
      %7011 = vmatprep.subr.mxu0 0.0
      %7012 = vmatpush1.msra.mxu0 0.0
      %7013 = vmatprep.subr.mxu0 0.0
      %7014 = vmatpush1.msra.mxu0 0.0
      %7015 = vmatprep.subr.mxu0 0.0
      %7016 = vmatpush1.msra.mxu0 0.0
      %7017 = vmatprep.subr.mxu0 0.0
      %7018 = vmatpush1.msra.mxu0 0.0
      %7019 = vmatprep.subr.mxu0 0.0
      %7020 = vmatpush1.msra.mxu0 0.0
      %7021 = vmatprep.subr.mxu0 0.0
      %7022 = vmatpush1.msra.mxu0 0.0
      %7023 = vmatprep.subr.mxu0 0.0
      %7024 = vmatpush1.msra.mxu0 0.0
      %7025 = vmatprep.subr.mxu0 0.0
      %7026 = vmatpush1.msra.mxu0 0.0
      %7027 = vmatprep.subr.mxu0 0.0
      %7028 = vmatpush1.msra.mxu0 0.0
      %7029 = vmatprep.subr.mxu0 0.0
      %7030 = vmatpush1.msra.mxu0 0.0
      %7031 = vmatprep.subr.mxu0 0.0
      %7032 = vmatpush1.msra.mxu0 0.0
      %7033 = vmatprep.subr.mxu0 0.0
      %7034 = vmatpush1.msra.mxu0 0.0
      %7035 = vmatprep.subr.mxu0 0.0
      %7036 = vmatpush1.msra.mxu0 0.0
      %7037 = vmatprep.subr.mxu0 0.0
      %7038 = vmatpush1.msra.mxu0 0.0
      %7039 = vmatprep.subr.mxu0 0.0
      %7040 = vmatpush1.msra.mxu0 0.0
      %7041 = vmatprep.subr.mxu0 0.0
      %7042 = vmatpush1.msra.mxu0 0.0
      %7043 = vmatprep.subr.mxu0 0.0
      %7044 = vmatpush1.msra.mxu0 0.0
      %7045 = vmatprep.subr.mxu0 0.0
      %7046 = vmatpush1.msra.mxu0 0.0
      %7047 = vmatprep.subr.mxu0 0.0
      %7048 = vmatpush1.msra.mxu0 0.0
      %7049 = vmatprep.subr.mxu0 0.0
      %7050 = vmatpush1.msra.mxu0 0.0
      %7051 = vmatprep.subr.mxu0 0.0
      %7052 = vmatpush1.msra.mxu0 0.0
      %7053 = vmatprep.subr.mxu0 0.0
      %7054 = vmatpush1.msra.mxu0 0.0
      %7055 = vmatprep.subr.mxu0 0.0
      %7056 = vmatpush1.msra.mxu0 0.0
      %7057 = vmatprep.subr.mxu0 0.0
      %7058 = vmatpush1.msra.mxu0 0.0
      %7059 = vmatprep.subr.mxu0 0.0
      %7060 = vmatpush1.msra.mxu0 0.0
      %7061 = vmatprep.subr.mxu0 0.0
      %7062 = vmatpush1.msra.mxu0 0.0
      %7063 = vmatprep.subr.mxu0 0.0
      %7064 = vmatpush1.msra.mxu0 0.0
      %7065 = vmatprep.subr.mxu0 0.0
      %7066 = vmatpush1.msra.mxu0 0.0
      %7067 = vmatprep.mubr.f32.mxu0 0.0
      %7068 = vmatmul.mubr.f32.gmra.mrb[0].mxu0 %v6998
      %v7069 = vpop.f32.mrb[0].mxu0
      %v7070 = vadd.f32 0.0, %v7069
      %v7071 = vpop.f32.mrb[0].mxu0
      %7072 = vmatprep.mubr.f32.mxu0 0.0
      %7073 = vmatmul.mubr.f32.gmra.mrb[0].mxu0 %v7001
      %v7074 = vpop.f32.mrb[0].mxu0
      %v7075 = vadd.f32 0.0, %v7074
      %v7076 = vpop.f32.mrb[0].mxu0
      %7077 = vdwg.mxu0
      %7078 = vrot.lane.b32.xlu0 %v1322, 64
      %v7079 = vpop.permute.xlu0 %7078
      %7080 = vrot.lane.b32.xlu0 %v1324, 64
      %v7081 = vpop.permute.xlu0 %7080
      %v7085 = vsel %vm4198, %v4889, 0
      %v7088 = vsel %vm4198, %v4890, 0
      %7090 = vmatprep.subr.mxu0 0.0
      %7091 = vmatpush1.msra.mxu0 %v7079
      %7092 = vmatprep.subr.mxu0 0.0
      %7093 = vmatpush1.msra.mxu0 %v7081
      %7094 = vmatprep.subr.mxu0 0.0
      %7095 = vmatpush1.msra.mxu0 0.0
      %7096 = vmatprep.subr.mxu0 0.0
      %7097 = vmatpush1.msra.mxu0 0.0
      %7098 = vmatprep.subr.mxu0 0.0
      %7099 = vmatpush1.msra.mxu0 0.0
      %7100 = vmatprep.subr.mxu0 0.0
      %7101 = vmatpush1.msra.mxu0 0.0
      %7102 = vmatprep.subr.mxu0 0.0
      %7103 = vmatpush1.msra.mxu0 0.0
      %7104 = vmatprep.subr.mxu0 0.0
      %7105 = vmatpush1.msra.mxu0 0.0
      %7106 = vmatprep.subr.mxu0 0.0
      %7107 = vmatpush1.msra.mxu0 0.0
      %7108 = vmatprep.subr.mxu0 0.0
      %7109 = vmatpush1.msra.mxu0 0.0
      %7110 = vmatprep.subr.mxu0 0.0
      %7111 = vmatpush1.msra.mxu0 0.0
      %7112 = vmatprep.subr.mxu0 0.0
      %7113 = vmatpush1.msra.mxu0 0.0
      %7114 = vmatprep.subr.mxu0 0.0
      %7115 = vmatpush1.msra.mxu0 0.0
      %7116 = vmatprep.subr.mxu0 0.0
      %7117 = vmatpush1.msra.mxu0 0.0
      %7118 = vmatprep.subr.mxu0 0.0
      %7119 = vmatpush1.msra.mxu0 0.0
      %7120 = vmatprep.subr.mxu0 0.0
      %7121 = vmatpush1.msra.mxu0 0.0
      %7122 = vmatprep.subr.mxu0 0.0
      %7123 = vmatpush1.msra.mxu0 0.0
      %7124 = vmatprep.subr.mxu0 0.0
      %7125 = vmatpush1.msra.mxu0 0.0
      %7126 = vmatprep.subr.mxu0 0.0
      %7127 = vmatpush1.msra.mxu0 0.0
      %7128 = vmatprep.subr.mxu0 0.0
      %7129 = vmatpush1.msra.mxu0 0.0
      %7130 = vmatprep.subr.mxu0 0.0
      %7131 = vmatpush1.msra.mxu0 0.0
      %7132 = vmatprep.subr.mxu0 0.0
      %7133 = vmatpush1.msra.mxu0 0.0
      %7134 = vmatprep.subr.mxu0 0.0
      %7135 = vmatpush1.msra.mxu0 0.0
      %7136 = vmatprep.subr.mxu0 0.0
      %7137 = vmatpush1.msra.mxu0 0.0
      %7138 = vmatprep.subr.mxu0 0.0
      %7139 = vmatpush1.msra.mxu0 0.0
      %7140 = vmatprep.subr.mxu0 0.0
      %7141 = vmatpush1.msra.mxu0 0.0
      %7142 = vmatprep.subr.mxu0 0.0
      %7143 = vmatpush1.msra.mxu0 0.0
      %7144 = vmatprep.subr.mxu0 0.0
      %7145 = vmatpush1.msra.mxu0 0.0
      %7146 = vmatprep.subr.mxu0 0.0
      %7147 = vmatpush1.msra.mxu0 0.0
      %7148 = vmatprep.subr.mxu0 0.0
      %7149 = vmatpush1.msra.mxu0 0.0
      %7150 = vmatprep.subr.mxu0 0.0
      %7151 = vmatpush1.msra.mxu0 0.0
      %7152 = vmatprep.subr.mxu0 0.0
      %7153 = vmatpush1.msra.mxu0 0.0
      %7154 = vmatprep.mubr.f32.mxu0 0.0
      %7155 = vmatmul.mubr.f32.gmra.mrb[0].mxu0 %v7085
      %v7156 = vpop.f32.mrb[0].mxu0
      %v7157 = vadd.f32 0.0, %v7156
      %v7158 = vpop.f32.mrb[0].mxu0
      %7159 = vmatprep.mubr.f32.mxu0 0.0
      %7160 = vmatmul.mubr.f32.gmra.mrb[0].mxu0 %v7088
      %v7161 = vpop.f32.mrb[0].mxu0
      %v7162 = vadd.f32 0.0, %v7161
      %v7163 = vpop.f32.mrb[0].mxu0
      %7164 = vdwg.mxu0
      %7165 = vrot.lane.b32.xlu0 %v1326, 64
      %v7166 = vpop.permute.xlu0 %7165
      %7167 = vrot.lane.b32.xlu0 %v1328, 64
      %v7168 = vpop.permute.xlu0 %7167
      %v7172 = vsel %vm4198, %v4891, 0
      %v7175 = vsel %vm4198, %v4892, 0
      %7177 = vmatprep.subr.mxu0 0.0
      %7178 = vmatpush1.msra.mxu0 %v7166
      %7179 = vmatprep.subr.mxu0 0.0
      %7180 = vmatpush1.msra.mxu0 %v7168
      %7181 = vmatprep.subr.mxu0 0.0
      %7182 = vmatpush1.msra.mxu0 0.0
      %7183 = vmatprep.subr.mxu0 0.0
      %7184 = vmatpush1.msra.mxu0 0.0
      %7185 = vmatprep.subr.mxu0 0.0
      %7186 = vmatpush1.msra.mxu0 0.0
      %7187 = vmatprep.subr.mxu0 0.0
      %7188 = vmatpush1.msra.mxu0 0.0
      %7189 = vmatprep.subr.mxu0 0.0
      %7190 = vmatpush1.msra.mxu0 0.0
      %7191 = vmatprep.subr.mxu0 0.0
      %7192 = vmatpush1.msra.mxu0 0.0
      %7193 = vmatprep.subr.mxu0 0.0
      %7194 = vmatpush1.msra.mxu0 0.0
      %7195 = vmatprep.subr.mxu0 0.0
      %7196 = vmatpush1.msra.mxu0 0.0
      %7197 = vmatprep.subr.mxu0 0.0
      %7198 = vmatpush1.msra.mxu0 0.0
      %7199 = vmatprep.subr.mxu0 0.0
      %7200 = vmatpush1.msra.mxu0 0.0
      %7201 = vmatprep.subr.mxu0 0.0
      %7202 = vmatpush1.msra.mxu0 0.0
      %7203 = vmatprep.subr.mxu0 0.0
      %7204 = vmatpush1.msra.mxu0 0.0
      %7205 = vmatprep.subr.mxu0 0.0
      %7206 = vmatpush1.msra.mxu0 0.0
      %7207 = vmatprep.subr.mxu0 0.0
      %7208 = vmatpush1.msra.mxu0 0.0
      %7209 = vmatprep.subr.mxu0 0.0
      %7210 = vmatpush1.msra.mxu0 0.0
      %7211 = vmatprep.subr.mxu0 0.0
      %7212 = vmatpush1.msra.mxu0 0.0
      %7213 = vmatprep.subr.mxu0 0.0
      %7214 = vmatpush1.msra.mxu0 0.0
      %7215 = vmatprep.subr.mxu0 0.0
      %7216 = vmatpush1.msra.mxu0 0.0
      %7217 = vmatprep.subr.mxu0 0.0
      %7218 = vmatpush1.msra.mxu0 0.0
      %7219 = vmatprep.subr.mxu0 0.0
      %7220 = vmatpush1.msra.mxu0 0.0
      %7221 = vmatprep.subr.mxu0 0.0
      %7222 = vmatpush1.msra.mxu0 0.0
      %7223 = vmatprep.subr.mxu0 0.0
      %7224 = vmatpush1.msra.mxu0 0.0
      %7225 = vmatprep.subr.mxu0 0.0
      %7226 = vmatpush1.msra.mxu0 0.0
      %7227 = vmatprep.subr.mxu0 0.0
      %7228 = vmatpush1.msra.mxu0 0.0
      %7229 = vmatprep.subr.mxu0 0.0
      %7230 = vmatpush1.msra.mxu0 0.0
      %7231 = vmatprep.subr.mxu0 0.0
      %7232 = vmatpush1.msra.mxu0 0.0
      %7233 = vmatprep.subr.mxu0 0.0
      %7234 = vmatpush1.msra.mxu0 0.0
      %7235 = vmatprep.subr.mxu0 0.0
      %7236 = vmatpush1.msra.mxu0 0.0
      %7237 = vmatprep.subr.mxu0 0.0
      %7238 = vmatpush1.msra.mxu0 0.0
      %7239 = vmatprep.subr.mxu0 0.0
      %7240 = vmatpush1.msra.mxu0 0.0
      %7241 = vmatprep.mubr.f32.mxu0 0.0
      %7242 = vmatmul.mubr.f32.gmra.mrb[0].mxu0 %v7172
      %v7243 = vpop.f32.mrb[0].mxu0
      %v7244 = vadd.f32 0.0, %v7243
      %v7245 = vpop.f32.mrb[0].mxu0
      %7246 = vmatprep.mubr.f32.mxu0 0.0
      %7247 = vmatmul.mubr.f32.gmra.mrb[0].mxu0 %v7175
      %v7248 = vpop.f32.mrb[0].mxu0
      %v7249 = vadd.f32 0.0, %v7248
      %v7250 = vpop.f32.mrb[0].mxu0
      %7251 = vdwg.mxu0
      %7252 = vrot.lane.b32.xlu0 %v1330, 64
      %v7253 = vpop.permute.xlu0 %7252
      %7254 = vrot.lane.b32.xlu0 %v1332, 64
      %v7255 = vpop.permute.xlu0 %7254
      %v7259 = vsel %vm4198, %v4893, 0
      %v7262 = vsel %vm4198, %v4894, 0
      %7264 = vmatprep.subr.mxu0 0.0
      %7265 = vmatpush1.msra.mxu0 %v7253
      %7266 = vmatprep.subr.mxu0 0.0
      %7267 = vmatpush1.msra.mxu0 %v7255
      %7268 = vmatprep.subr.mxu0 0.0
      %7269 = vmatpush1.msra.mxu0 0.0
      %7270 = vmatprep.subr.mxu0 0.0
      %7271 = vmatpush1.msra.mxu0 0.0
      %7272 = vmatprep.subr.mxu0 0.0
      %7273 = vmatpush1.msra.mxu0 0.0
      %7274 = vmatprep.subr.mxu0 0.0
      %7275 = vmatpush1.msra.mxu0 0.0
      %7276 = vmatprep.subr.mxu0 0.0
      %7277 = vmatpush1.msra.mxu0 0.0
      %7278 = vmatprep.subr.mxu0 0.0
      %7279 = vmatpush1.msra.mxu0 0.0
      %7280 = vmatprep.subr.mxu0 0.0
      %7281 = vmatpush1.msra.mxu0 0.0
      %7282 = vmatprep.subr.mxu0 0.0
      %7283 = vmatpush1.msra.mxu0 0.0
      %7284 = vmatprep.subr.mxu0 0.0
      %7285 = vmatpush1.msra.mxu0 0.0
      %7286 = vmatprep.subr.mxu0 0.0
      %7287 = vmatpush1.msra.mxu0 0.0
      %7288 = vmatprep.subr.mxu0 0.0
      %7289 = vmatpush1.msra.mxu0 0.0
      %7290 = vmatprep.subr.mxu0 0.0
      %7291 = vmatpush1.msra.mxu0 0.0
      %7292 = vmatprep.subr.mxu0 0.0
      %7293 = vmatpush1.msra.mxu0 0.0
      %7294 = vmatprep.subr.mxu0 0.0
      %7295 = vmatpush1.msra.mxu0 0.0
      %7296 = vmatprep.subr.mxu0 0.0
      %7297 = vmatpush1.msra.mxu0 0.0
      %7298 = vmatprep.subr.mxu0 0.0
      %7299 = vmatpush1.msra.mxu0 0.0
      %7300 = vmatprep.subr.mxu0 0.0
      %7301 = vmatpush1.msra.mxu0 0.0
      %7302 = vmatprep.subr.mxu0 0.0
      %7303 = vmatpush1.msra.mxu0 0.0
      %7304 = vmatprep.subr.mxu0 0.0
      %7305 = vmatpush1.msra.mxu0 0.0
      %7306 = vmatprep.subr.mxu0 0.0
      %7307 = vmatpush1.msra.mxu0 0.0
      %7308 = vmatprep.subr.mxu0 0.0
      %7309 = vmatpush1.msra.mxu0 0.0
      %7310 = vmatprep.subr.mxu0 0.0
      %7311 = vmatpush1.msra.mxu0 0.0
      %7312 = vmatprep.subr.mxu0 0.0
      %7313 = vmatpush1.msra.mxu0 0.0
      %7314 = vmatprep.subr.mxu0 0.0
      %7315 = vmatpush1.msra.mxu0 0.0
      %7316 = vmatprep.subr.mxu0 0.0
      %7317 = vmatpush1.msra.mxu0 0.0
      %7318 = vmatprep.subr.mxu0 0.0
      %7319 = vmatpush1.msra.mxu0 0.0
      %7320 = vmatprep.subr.mxu0 0.0
      %7321 = vmatpush1.msra.mxu0 0.0
      %7322 = vmatprep.subr.mxu0 0.0
      %7323 = vmatpush1.msra.mxu0 0.0
      %7324 = vmatprep.subr.mxu0 0.0
      %7325 = vmatpush1.msra.mxu0 0.0
      %7326 = vmatprep.subr.mxu0 0.0
      %7327 = vmatpush1.msra.mxu0 0.0
      %7328 = vmatprep.mubr.f32.mxu0 0.0
      %7329 = vmatmul.mubr.f32.gmra.mrb[0].mxu0 %v7259
      %v7330 = vpop.f32.mrb[0].mxu0
      %v7331 = vadd.f32 0.0, %v7330
      %v7332 = vpop.f32.mrb[0].mxu0
      %7333 = vmatprep.mubr.f32.mxu0 0.0
      %7334 = vmatmul.mubr.f32.gmra.mrb[0].mxu0 %v7262
      %v7335 = vpop.f32.mrb[0].mxu0
      %v7336 = vadd.f32 0.0, %v7335
      %v7337 = vpop.f32.mrb[0].mxu0
      %7338 = vdwg.mxu0
      %7339 = vrot.lane.b32.xlu0 %v1334, 64
      %v7340 = vpop.permute.xlu0 %7339
      %7341 = vrot.lane.b32.xlu0 %v1336, 64
      %v7342 = vpop.permute.xlu0 %7341
      %v7346 = vsel %vm4198, %v4895, 0
      %v7349 = vsel %vm4198, %v4896, 0
      %7351 = vmatprep.subr.mxu0 0.0
      %7352 = vmatpush1.msra.mxu0 %v7340
      %7353 = vmatprep.subr.mxu0 0.0
      %7354 = vmatpush1.msra.mxu0 %v7342
      %7355 = vmatprep.subr.mxu0 0.0
      %7356 = vmatpush1.msra.mxu0 0.0
      %7357 = vmatprep.subr.mxu0 0.0
      %7358 = vmatpush1.msra.mxu0 0.0
      %7359 = vmatprep.subr.mxu0 0.0
      %7360 = vmatpush1.msra.mxu0 0.0
      %7361 = vmatprep.subr.mxu0 0.0
      %7362 = vmatpush1.msra.mxu0 0.0
      %7363 = vmatprep.subr.mxu0 0.0
      %7364 = vmatpush1.msra.mxu0 0.0
      %7365 = vmatprep.subr.mxu0 0.0
      %7366 = vmatpush1.msra.mxu0 0.0
      %7367 = vmatprep.subr.mxu0 0.0
      %7368 = vmatpush1.msra.mxu0 0.0
      %7369 = vmatprep.subr.mxu0 0.0
      %7370 = vmatpush1.msra.mxu0 0.0
      %7371 = vmatprep.subr.mxu0 0.0
      %7372 = vmatpush1.msra.mxu0 0.0
      %7373 = vmatprep.subr.mxu0 0.0
      %7374 = vmatpush1.msra.mxu0 0.0
      %7375 = vmatprep.subr.mxu0 0.0
      %7376 = vmatpush1.msra.mxu0 0.0
      %7377 = vmatprep.subr.mxu0 0.0
      %7378 = vmatpush1.msra.mxu0 0.0
      %7379 = vmatprep.subr.mxu0 0.0
      %7380 = vmatpush1.msra.mxu0 0.0
      %7381 = vmatprep.subr.mxu0 0.0
      %7382 = vmatpush1.msra.mxu0 0.0
      %7383 = vmatprep.subr.mxu0 0.0
      %7384 = vmatpush1.msra.mxu0 0.0
      %7385 = vmatprep.subr.mxu0 0.0
      %7386 = vmatpush1.msra.mxu0 0.0
      %7387 = vmatprep.subr.mxu0 0.0
      %7388 = vmatpush1.msra.mxu0 0.0
      %7389 = vmatprep.subr.mxu0 0.0
      %7390 = vmatpush1.msra.mxu0 0.0
      %7391 = vmatprep.subr.mxu0 0.0
      %7392 = vmatpush1.msra.mxu0 0.0
      %7393 = vmatprep.subr.mxu0 0.0
      %7394 = vmatpush1.msra.mxu0 0.0
      %7395 = vmatprep.subr.mxu0 0.0
      %7396 = vmatpush1.msra.mxu0 0.0
      %7397 = vmatprep.subr.mxu0 0.0
      %7398 = vmatpush1.msra.mxu0 0.0
      %7399 = vmatprep.subr.mxu0 0.0
      %7400 = vmatpush1.msra.mxu0 0.0
      %7401 = vmatprep.subr.mxu0 0.0
      %7402 = vmatpush1.msra.mxu0 0.0
      %7403 = vmatprep.subr.mxu0 0.0
      %7404 = vmatpush1.msra.mxu0 0.0
      %7405 = vmatprep.subr.mxu0 0.0
      %7406 = vmatpush1.msra.mxu0 0.0
      %7407 = vmatprep.subr.mxu0 0.0
      %7408 = vmatpush1.msra.mxu0 0.0
      %7409 = vmatprep.subr.mxu0 0.0
      %7410 = vmatpush1.msra.mxu0 0.0
      %7411 = vmatprep.subr.mxu0 0.0
      %7412 = vmatpush1.msra.mxu0 0.0
      %7413 = vmatprep.subr.mxu0 0.0
      %7414 = vmatpush1.msra.mxu0 0.0
      %7415 = vmatprep.mubr.f32.mxu0 0.0
      %7416 = vmatmul.mubr.f32.gmra.mrb[0].mxu0 %v7346
      %v7417 = vpop.f32.mrb[0].mxu0
      %v7418 = vadd.f32 0.0, %v7417
      %v7419 = vpop.f32.mrb[0].mxu0
      %7420 = vmatprep.mubr.f32.mxu0 0.0
      %7421 = vmatmul.mubr.f32.gmra.mrb[0].mxu0 %v7349
      %v7422 = vpop.f32.mrb[0].mxu0
      %v7423 = vadd.f32 0.0, %v7422
      %v7424 = vpop.f32.mrb[0].mxu0
      %7425 = vdwg.mxu0
      %7426 = vrot.lane.b32.xlu0 %v1338, 64
      %v7427 = vpop.permute.xlu0 %7426
      %7428 = vrot.lane.b32.xlu0 %v1340, 64
      %v7429 = vpop.permute.xlu0 %7428
      %v7433 = vsel %vm4198, %v4897, 0
      %v7436 = vsel %vm4198, %v4898, 0
      %7438 = vmatprep.subr.mxu0 0.0
      %7439 = vmatpush1.msra.mxu0 %v7427
      %7440 = vmatprep.subr.mxu0 0.0
      %7441 = vmatpush1.msra.mxu0 %v7429
      %7442 = vmatprep.subr.mxu0 0.0
      %7443 = vmatpush1.msra.mxu0 0.0
      %7444 = vmatprep.subr.mxu0 0.0
      %7445 = vmatpush1.msra.mxu0 0.0
      %7446 = vmatprep.subr.mxu0 0.0
      %7447 = vmatpush1.msra.mxu0 0.0
      %7448 = vmatprep.subr.mxu0 0.0
      %7449 = vmatpush1.msra.mxu0 0.0
      %7450 = vmatprep.subr.mxu0 0.0
      %7451 = vmatpush1.msra.mxu0 0.0
      %7452 = vmatprep.subr.mxu0 0.0
      %7453 = vmatpush1.msra.mxu0 0.0
      %7454 = vmatprep.subr.mxu0 0.0
      %7455 = vmatpush1.msra.mxu0 0.0
      %7456 = vmatprep.subr.mxu0 0.0
      %7457 = vmatpush1.msra.mxu0 0.0
      %7458 = vmatprep.subr.mxu0 0.0
      %7459 = vmatpush1.msra.mxu0 0.0
      %7460 = vmatprep.subr.mxu0 0.0
      %7461 = vmatpush1.msra.mxu0 0.0
      %7462 = vmatprep.subr.mxu0 0.0
      %7463 = vmatpush1.msra.mxu0 0.0
      %7464 = vmatprep.subr.mxu0 0.0
      %7465 = vmatpush1.msra.mxu0 0.0
      %7466 = vmatprep.subr.mxu0 0.0
      %7467 = vmatpush1.msra.mxu0 0.0
      %7468 = vmatprep.subr.mxu0 0.0
      %7469 = vmatpush1.msra.mxu0 0.0
      %7470 = vmatprep.subr.mxu0 0.0
      %7471 = vmatpush1.msra.mxu0 0.0
      %7472 = vmatprep.subr.mxu0 0.0
      %7473 = vmatpush1.msra.mxu0 0.0
      %7474 = vmatprep.subr.mxu0 0.0
      %7475 = vmatpush1.msra.mxu0 0.0
      %7476 = vmatprep.subr.mxu0 0.0
      %7477 = vmatpush1.msra.mxu0 0.0
      %7478 = vmatprep.subr.mxu0 0.0
      %7479 = vmatpush1.msra.mxu0 0.0
      %7480 = vmatprep.subr.mxu0 0.0
      %7481 = vmatpush1.msra.mxu0 0.0
      %7482 = vmatprep.subr.mxu0 0.0
      %7483 = vmatpush1.msra.mxu0 0.0
      %7484 = vmatprep.subr.mxu0 0.0
      %7485 = vmatpush1.msra.mxu0 0.0
      %7486 = vmatprep.subr.mxu0 0.0
      %7487 = vmatpush1.msra.mxu0 0.0
      %7488 = vmatprep.subr.mxu0 0.0
      %7489 = vmatpush1.msra.mxu0 0.0
      %7490 = vmatprep.subr.mxu0 0.0
      %7491 = vmatpush1.msra.mxu0 0.0
      %7492 = vmatprep.subr.mxu0 0.0
      %7493 = vmatpush1.msra.mxu0 0.0
      %7494 = vmatprep.subr.mxu0 0.0
      %7495 = vmatpush1.msra.mxu0 0.0
      %7496 = vmatprep.subr.mxu0 0.0
      %7497 = vmatpush1.msra.mxu0 0.0
      %7498 = vmatprep.subr.mxu0 0.0
      %7499 = vmatpush1.msra.mxu0 0.0
      %7500 = vmatprep.subr.mxu0 0.0
      %7501 = vmatpush1.msra.mxu0 0.0
      %7502 = vmatprep.mubr.f32.mxu0 0.0
      %7503 = vmatmul.mubr.f32.gmra.mrb[0].mxu0 %v7433
      %v7504 = vpop.f32.mrb[0].mxu0
      %v7505 = vadd.f32 0.0, %v7504
      %v7506 = vpop.f32.mrb[0].mxu0
      %7507 = vmatprep.mubr.f32.mxu0 0.0
      %7508 = vmatmul.mubr.f32.gmra.mrb[0].mxu0 %v7436
      %v7509 = vpop.f32.mrb[0].mxu0
      %v7510 = vadd.f32 0.0, %v7509
      %v7511 = vpop.f32.mrb[0].mxu0
      %7512 = vdwg.mxu0
      %7513 = vrot.lane.b32.xlu0 %v1342, 64
      %v7514 = vpop.permute.xlu0 %7513
      %7515 = vrot.lane.b32.xlu0 %v1344, 64
      %v7516 = vpop.permute.xlu0 %7515
      %v7520 = vsel %vm4198, %v4899, 0
      %v7523 = vsel %vm4198, %v4900, 0
      %7525 = vmatprep.subr.mxu0 0.0
      %7526 = vmatpush1.msra.mxu0 %v7514
      %7527 = vmatprep.subr.mxu0 0.0
      %7528 = vmatpush1.msra.mxu0 %v7516
      %7529 = vmatprep.subr.mxu0 0.0
      %7530 = vmatpush1.msra.mxu0 0.0
      %7531 = vmatprep.subr.mxu0 0.0
      %7532 = vmatpush1.msra.mxu0 0.0
      %7533 = vmatprep.subr.mxu0 0.0
      %7534 = vmatpush1.msra.mxu0 0.0
      %7535 = vmatprep.subr.mxu0 0.0
      %7536 = vmatpush1.msra.mxu0 0.0
      %7537 = vmatprep.subr.mxu0 0.0
      %7538 = vmatpush1.msra.mxu0 0.0
      %7539 = vmatprep.subr.mxu0 0.0
      %7540 = vmatpush1.msra.mxu0 0.0
      %7541 = vmatprep.subr.mxu0 0.0
      %7542 = vmatpush1.msra.mxu0 0.0
      %7543 = vmatprep.subr.mxu0 0.0
      %7544 = vmatpush1.msra.mxu0 0.0
      %7545 = vmatprep.subr.mxu0 0.0
      %7546 = vmatpush1.msra.mxu0 0.0
      %7547 = vmatprep.subr.mxu0 0.0
      %7548 = vmatpush1.msra.mxu0 0.0
      %7549 = vmatprep.subr.mxu0 0.0
      %7550 = vmatpush1.msra.mxu0 0.0
      %7551 = vmatprep.subr.mxu0 0.0
      %7552 = vmatpush1.msra.mxu0 0.0
      %7553 = vmatprep.subr.mxu0 0.0
      %7554 = vmatpush1.msra.mxu0 0.0
      %7555 = vmatprep.subr.mxu0 0.0
      %7556 = vmatpush1.msra.mxu0 0.0
      %7557 = vmatprep.subr.mxu0 0.0
      %7558 = vmatpush1.msra.mxu0 0.0
      %7559 = vmatprep.subr.mxu0 0.0
      %7560 = vmatpush1.msra.mxu0 0.0
      %7561 = vmatprep.subr.mxu0 0.0
      %7562 = vmatpush1.msra.mxu0 0.0
      %7563 = vmatprep.subr.mxu0 0.0
      %7564 = vmatpush1.msra.mxu0 0.0
      %7565 = vmatprep.subr.mxu0 0.0
      %7566 = vmatpush1.msra.mxu0 0.0
      %7567 = vmatprep.subr.mxu0 0.0
      %7568 = vmatpush1.msra.mxu0 0.0
      %7569 = vmatprep.subr.mxu0 0.0
      %7570 = vmatpush1.msra.mxu0 0.0
      %7571 = vmatprep.subr.mxu0 0.0
      %7572 = vmatpush1.msra.mxu0 0.0
      %7573 = vmatprep.subr.mxu0 0.0
      %7574 = vmatpush1.msra.mxu0 0.0
      %7575 = vmatprep.subr.mxu0 0.0
      %7576 = vmatpush1.msra.mxu0 0.0
      %7577 = vmatprep.subr.mxu0 0.0
      %7578 = vmatpush1.msra.mxu0 0.0
      %7579 = vmatprep.subr.mxu0 0.0
      %7580 = vmatpush1.msra.mxu0 0.0
      %7581 = vmatprep.subr.mxu0 0.0
      %7582 = vmatpush1.msra.mxu0 0.0
      %7583 = vmatprep.subr.mxu0 0.0
      %7584 = vmatpush1.msra.mxu0 0.0
      %7585 = vmatprep.subr.mxu0 0.0
      %7586 = vmatpush1.msra.mxu0 0.0
      %7587 = vmatprep.subr.mxu0 0.0
      %7588 = vmatpush1.msra.mxu0 0.0
      %7589 = vmatprep.mubr.f32.mxu0 0.0
      %7590 = vmatmul.mubr.f32.gmra.mrb[0].mxu0 %v7520
      %v7591 = vpop.f32.mrb[0].mxu0
      %v7592 = vadd.f32 0.0, %v7591
      %v7593 = vpop.f32.mrb[0].mxu0
      %7594 = vmatprep.mubr.f32.mxu0 0.0
      %7595 = vmatmul.mubr.f32.gmra.mrb[0].mxu0 %v7523
      %v7596 = vpop.f32.mrb[0].mxu0
      %v7597 = vadd.f32 0.0, %v7596
      %v7598 = vpop.f32.mrb[0].mxu0
      %7599 = vdwg.mxu0
      %7600 = vrot.lane.b32.xlu0 %v1346, 64
      %v7601 = vpop.permute.xlu0 %7600
      %7602 = vrot.lane.b32.xlu0 %v1348, 64
      %v7603 = vpop.permute.xlu0 %7602
      %v7607 = vsel %vm4198, %v4901, 0
      %v7610 = vsel %vm4198, %v4902, 0
      %7612 = vmatprep.subr.mxu0 0.0
      %7613 = vmatpush1.msra.mxu0 %v7601
      %7614 = vmatprep.subr.mxu0 0.0
      %7615 = vmatpush1.msra.mxu0 %v7603
      %7616 = vmatprep.subr.mxu0 0.0
      %7617 = vmatpush1.msra.mxu0 0.0
      %7618 = vmatprep.subr.mxu0 0.0
      %7619 = vmatpush1.msra.mxu0 0.0
      %7620 = vmatprep.subr.mxu0 0.0
      %7621 = vmatpush1.msra.mxu0 0.0
      %7622 = vmatprep.subr.mxu0 0.0
      %7623 = vmatpush1.msra.mxu0 0.0
      %7624 = vmatprep.subr.mxu0 0.0
      %7625 = vmatpush1.msra.mxu0 0.0
      %7626 = vmatprep.subr.mxu0 0.0
      %7627 = vmatpush1.msra.mxu0 0.0
      %7628 = vmatprep.subr.mxu0 0.0
      %7629 = vmatpush1.msra.mxu0 0.0
      %7630 = vmatprep.subr.mxu0 0.0
      %7631 = vmatpush1.msra.mxu0 0.0
      %7632 = vmatprep.subr.mxu0 0.0
      %7633 = vmatpush1.msra.mxu0 0.0
      %7634 = vmatprep.subr.mxu0 0.0
      %7635 = vmatpush1.msra.mxu0 0.0
      %7636 = vmatprep.subr.mxu0 0.0
      %7637 = vmatpush1.msra.mxu0 0.0
      %7638 = vmatprep.subr.mxu0 0.0
      %7639 = vmatpush1.msra.mxu0 0.0
      %7640 = vmatprep.subr.mxu0 0.0
      %7641 = vmatpush1.msra.mxu0 0.0
      %7642 = vmatprep.subr.mxu0 0.0
      %7643 = vmatpush1.msra.mxu0 0.0
      %7644 = vmatprep.subr.mxu0 0.0
      %7645 = vmatpush1.msra.mxu0 0.0
      %7646 = vmatprep.subr.mxu0 0.0
      %7647 = vmatpush1.msra.mxu0 0.0
      %7648 = vmatprep.subr.mxu0 0.0
      %7649 = vmatpush1.msra.mxu0 0.0
      %7650 = vmatprep.subr.mxu0 0.0
      %7651 = vmatpush1.msra.mxu0 0.0
      %7652 = vmatprep.subr.mxu0 0.0
      %7653 = vmatpush1.msra.mxu0 0.0
      %7654 = vmatprep.subr.mxu0 0.0
      %7655 = vmatpush1.msra.mxu0 0.0
      %7656 = vmatprep.subr.mxu0 0.0
      %7657 = vmatpush1.msra.mxu0 0.0
      %7658 = vmatprep.subr.mxu0 0.0
      %7659 = vmatpush1.msra.mxu0 0.0
      %7660 = vmatprep.subr.mxu0 0.0
      %7661 = vmatpush1.msra.mxu0 0.0
      %7662 = vmatprep.subr.mxu0 0.0
      %7663 = vmatpush1.msra.mxu0 0.0
      %7664 = vmatprep.subr.mxu0 0.0
      %7665 = vmatpush1.msra.mxu0 0.0
      %7666 = vmatprep.subr.mxu0 0.0
      %7667 = vmatpush1.msra.mxu0 0.0
      %7668 = vmatprep.subr.mxu0 0.0
      %7669 = vmatpush1.msra.mxu0 0.0
      %7670 = vmatprep.subr.mxu0 0.0
      %7671 = vmatpush1.msra.mxu0 0.0
      %7672 = vmatprep.subr.mxu0 0.0
      %7673 = vmatpush1.msra.mxu0 0.0
      %7674 = vmatprep.subr.mxu0 0.0
      %7675 = vmatpush1.msra.mxu0 0.0
      %7676 = vmatprep.mubr.f32.mxu0 0.0
      %7677 = vmatmul.mubr.f32.gmra.mrb[0].mxu0 %v7607
      %v7678 = vpop.f32.mrb[0].mxu0
      %v7679 = vadd.f32 0.0, %v7678
      %v7680 = vpop.f32.mrb[0].mxu0
      %7681 = vmatprep.mubr.f32.mxu0 0.0
      %7682 = vmatmul.mubr.f32.gmra.mrb[0].mxu0 %v7610
      %v7683 = vpop.f32.mrb[0].mxu0
      %v7684 = vadd.f32 0.0, %v7683
      %v7685 = vpop.f32.mrb[0].mxu0
      %7686 = vdwg.mxu0
      %7703 = vrot.lane.b32.xlu0 %v5678, 8
      %v7704 = vpop.permute.xlu0 %7703
      %7705 = vrot.lane.b32.xlu0 %v5683, 8
      %v7706 = vpop.permute.xlu0 %7705
      %7707 = vrot.lane.b32.xlu0 %v5765, 8
      %v7708 = vpop.permute.xlu0 %7707
      %7709 = vrot.lane.b32.xlu0 %v5770, 8
      %v7710 = vpop.permute.xlu0 %7709
      %7711 = vrot.lane.b32.xlu0 %v5852, 8
      %v7712 = vpop.permute.xlu0 %7711
      %7713 = vrot.lane.b32.xlu0 %v5857, 8
      %v7714 = vpop.permute.xlu0 %7713
      %7715 = vrot.lane.b32.xlu0 %v5939, 8
      %v7716 = vpop.permute.xlu0 %7715
      %7717 = vrot.lane.b32.xlu0 %v5944, 8
      %v7718 = vpop.permute.xlu0 %7717
      %7719 = vrot.lane.b32.xlu0 %v6026, 8
      %v7720 = vpop.permute.xlu0 %7719
      %7721 = vrot.lane.b32.xlu0 %v6031, 8
      %v7722 = vpop.permute.xlu0 %7721
      %7723 = vrot.lane.b32.xlu0 %v6113, 8
      %v7724 = vpop.permute.xlu0 %7723
      %7725 = vrot.lane.b32.xlu0 %v6118, 8
      %v7726 = vpop.permute.xlu0 %7725
      %7727 = vrot.lane.b32.xlu0 %v6200, 8
      %v7728 = vpop.permute.xlu0 %7727
      %7729 = vrot.lane.b32.xlu0 %v6205, 8
      %v7730 = vpop.permute.xlu0 %7729
      %7731 = vrot.lane.b32.xlu0 %v6287, 8
      %v7732 = vpop.permute.xlu0 %7731
      %7733 = vrot.lane.b32.xlu0 %v6292, 8
      %v7734 = vpop.permute.xlu0 %7733
      %7767 = vrot.lane.b32.xlu0 %v6374, 16
      %v7768 = vpop.permute.xlu0 %7767
      %7769 = vrot.lane.b32.xlu0 %v6379, 16
      %v7770 = vpop.permute.xlu0 %7769
      %7771 = vrot.lane.b32.xlu0 %v6461, 16
      %v7772 = vpop.permute.xlu0 %7771
      %7773 = vrot.lane.b32.xlu0 %v6466, 16
      %v7774 = vpop.permute.xlu0 %7773
      %7775 = vrot.lane.b32.xlu0 %v6548, 16
      %v7776 = vpop.permute.xlu0 %7775
      %7777 = vrot.lane.b32.xlu0 %v6553, 16
      %v7778 = vpop.permute.xlu0 %7777
      %7779 = vrot.lane.b32.xlu0 %v6635, 16
      %v7780 = vpop.permute.xlu0 %7779
      %7781 = vrot.lane.b32.xlu0 %v6640, 16
      %v7782 = vpop.permute.xlu0 %7781
      %7783 = vrot.lane.b32.xlu0 %v6722, 16
      %v7784 = vpop.permute.xlu0 %7783
      %7785 = vrot.lane.b32.xlu0 %v6727, 16
      %v7786 = vpop.permute.xlu0 %7785
      %7787 = vrot.lane.b32.xlu0 %v6809, 16
      %v7788 = vpop.permute.xlu0 %7787
      %7789 = vrot.lane.b32.xlu0 %v6814, 16
      %v7790 = vpop.permute.xlu0 %7789
      %7791 = vrot.lane.b32.xlu0 %v6896, 16
      %v7792 = vpop.permute.xlu0 %7791
      %7793 = vrot.lane.b32.xlu0 %v6901, 16
      %v7794 = vpop.permute.xlu0 %7793
      %7795 = vrot.lane.b32.xlu0 %v6983, 16
      %v7796 = vpop.permute.xlu0 %7795
      %7797 = vrot.lane.b32.xlu0 %v6988, 16
      %v7798 = vpop.permute.xlu0 %7797
      %7831 = vrot.lane.b32.xlu0 %v7070, 24
      %v7832 = vpop.permute.xlu0 %7831
      %7833 = vrot.lane.b32.xlu0 %v7075, 24
      %v7834 = vpop.permute.xlu0 %7833
      %7835 = vrot.lane.b32.xlu0 %v7157, 24
      %v7836 = vpop.permute.xlu0 %7835
      %7837 = vrot.lane.b32.xlu0 %v7162, 24
      %v7838 = vpop.permute.xlu0 %7837
      %7839 = vrot.lane.b32.xlu0 %v7244, 24
      %v7840 = vpop.permute.xlu0 %7839
      %7841 = vrot.lane.b32.xlu0 %v7249, 24
      %v7842 = vpop.permute.xlu0 %7841
      %7843 = vrot.lane.b32.xlu0 %v7331, 24
      %v7844 = vpop.permute.xlu0 %7843
      %7845 = vrot.lane.b32.xlu0 %v7336, 24
      %v7846 = vpop.permute.xlu0 %7845
      %7847 = vrot.lane.b32.xlu0 %v7418, 24
      %v7848 = vpop.permute.xlu0 %7847
      %7849 = vrot.lane.b32.xlu0 %v7423, 24
      %v7850 = vpop.permute.xlu0 %7849
      %7851 = vrot.lane.b32.xlu0 %v7505, 24
      %v7852 = vpop.permute.xlu0 %7851
      %7853 = vrot.lane.b32.xlu0 %v7510, 24
      %v7854 = vpop.permute.xlu0 %7853
      %7855 = vrot.lane.b32.xlu0 %v7592, 24
      %v7856 = vpop.permute.xlu0 %7855
      %7857 = vrot.lane.b32.xlu0 %v7597, 24
      %v7858 = vpop.permute.xlu0 %7857
      %7859 = vrot.lane.b32.xlu0 %v7679, 24
      %v7860 = vpop.permute.xlu0 %7859
      %7861 = vrot.lane.b32.xlu0 %v7684, 24
      %v7862 = vpop.permute.xlu0 %7861
      %v7879 = vsel %vm1417, %v4982, %v7704
      %v7880 = vsel %vm1417, %v4987, %v7706
      %v7881 = vsel %vm1417, %v5069, %v7708
      %v7882 = vsel %vm1417, %v5074, %v7710
      %v7883 = vsel %vm1417, %v5156, %v7712
      %v7884 = vsel %vm1417, %v5161, %v7714
      %v7885 = vsel %vm1417, %v5243, %v7716
      %v7886 = vsel %vm1417, %v5248, %v7718
      %v7887 = vsel %vm1417, %v5330, %v7720
      %v7888 = vsel %vm1417, %v5335, %v7722
      %v7889 = vsel %vm1417, %v5417, %v7724
      %v7890 = vsel %vm1417, %v5422, %v7726
      %v7891 = vsel %vm1417, %v5504, %v7728
      %v7892 = vsel %vm1417, %v5509, %v7730
      %v7893 = vsel %vm1417, %v5591, %v7732
      %v7894 = vsel %vm1417, %v5596, %v7734
      %v7895 = vsel %vm4198, %v7879, %v7768
      %v7896 = vsel %vm4198, %v7880, %v7770
      %v7897 = vsel %vm4198, %v7881, %v7772
      %v7898 = vsel %vm4198, %v7882, %v7774
      %v7899 = vsel %vm4198, %v7883, %v7776
      %v7900 = vsel %vm4198, %v7884, %v7778
      %v7901 = vsel %vm4198, %v7885, %v7780
      %v7902 = vsel %vm4198, %v7886, %v7782
      %v7903 = vsel %vm4198, %v7887, %v7784
      %v7904 = vsel %vm4198, %v7888, %v7786
      %v7905 = vsel %vm4198, %v7889, %v7788
      %v7906 = vsel %vm4198, %v7890, %v7790
      %v7907 = vsel %vm4198, %v7891, %v7792
      %v7908 = vsel %vm4198, %v7892, %v7794
      %v7909 = vsel %vm4198, %v7893, %v7796
      %v7910 = vsel %vm4198, %v7894, %v7798
      %vm7911 = vcmask 195584
      %v7912 = vsel %vm7911, %v7895, %v7832
      %v7913 = vsel %vm7911, %v7896, %v7834
      %v7914 = vsel %vm7911, %v7897, %v7836
      %v7915 = vsel %vm7911, %v7898, %v7838
      %v7916 = vsel %vm7911, %v7899, %v7840
      %v7917 = vsel %vm7911, %v7900, %v7842
      %v7918 = vsel %vm7911, %v7901, %v7844
      %v7919 = vsel %vm7911, %v7902, %v7846
      %v7920 = vsel %vm7911, %v7903, %v7848
      %v7921 = vsel %vm7911, %v7904, %v7850
      %v7922 = vsel %vm7911, %v7905, %v7852
      %v7923 = vsel %vm7911, %v7906, %v7854
      %v7924 = vsel %vm7911, %v7907, %v7856
      %v7925 = vsel %vm7911, %v7908, %v7858
      %v7926 = vsel %vm7911, %v7909, %v7860
      %v7927 = vsel %vm7911, %v7910, %v7862
      %v7928 = vld [vmem:[%s725] sm:$0xff]
      %v7929 = vld [vmem:[%s725 + $0x8] sm:$0xff]
      %v7930 = vld [vmem:[%s725 + $0x10] sm:$0xff]
      %v7931 = vld [vmem:[%s725 + $0x18] sm:$0xff]
      %v7932 = vld [vmem:[%s728] sm:$0x1]
      %v7934 = vlaneseq
      %v7935 = vshrl.u32 %v7934, 7
      %v7936 = vsub.s32 0, %v7935
      %v7937 = vrot.slane %v7932, %v7936
      %v7940 = vsel %vm783, %v7912, 0
      %v7943 = vsel %vm783, %v7913, 0
      %v7946 = vsel %vm783, %v7914, 0
      %v7949 = vsel %vm783, %v7915, 0
      %v7952 = vsel %vm783, %v7916, 0
      %v7955 = vsel %vm783, %v7917, 0
      %v7958 = vsel %vm783, %v7918, 0
      %v7961 = vsel %vm783, %v7919, 0
      %v7964 = vsel %vm783, %v7920, 0
      %v7967 = vsel %vm783, %v7921, 0
      %v7970 = vsel %vm783, %v7922, 0
      %v7973 = vsel %vm783, %v7923, 0
      %v7976 = vsel %vm783, %v7924, 0
      %v7979 = vsel %vm783, %v7925, 0
      %v7982 = vsel %vm783, %v7926, 0
      %v7985 = vsel %vm783, %v7927, 0
      %7987 = vmatprep.subr.mxu0 0.0
      %7988 = vmatpush1.msra.mxu0 %v7928
      %7989 = vmatprep.subr.mxu0 0.0
      %7990 = vmatpush1.msra.mxu0 %v7929
      %7991 = vmatprep.subr.mxu0 0.0
      %7992 = vmatpush1.msra.mxu0 %v7930
      %7993 = vmatprep.subr.mxu0 0.0
      %7994 = vmatpush1.msra.mxu0 %v7931
      %7995 = vmatprep.subr.mxu0 0.0
      %7996 = vmatpush1.msra.mxu0 0.0
      %7997 = vmatprep.subr.mxu0 0.0
      %7998 = vmatpush1.msra.mxu0 0.0
      %7999 = vmatprep.subr.mxu0 0.0
      %8000 = vmatpush1.msra.mxu0 0.0
      %8001 = vmatprep.subr.mxu0 0.0
      %8002 = vmatpush1.msra.mxu0 0.0
      %8003 = vmatprep.subr.mxu0 0.0
      %8004 = vmatpush1.msra.mxu0 0.0
      %8005 = vmatprep.subr.mxu0 0.0
      %8006 = vmatpush1.msra.mxu0 0.0
      %8007 = vmatprep.subr.mxu0 0.0
      %8008 = vmatpush1.msra.mxu0 0.0
      %8009 = vmatprep.subr.mxu0 0.0
      %8010 = vmatpush1.msra.mxu0 0.0
      %8011 = vmatprep.subr.mxu0 0.0
      %8012 = vmatpush1.msra.mxu0 0.0
      %8013 = vmatprep.subr.mxu0 0.0
      %8014 = vmatpush1.msra.mxu0 0.0
      %8015 = vmatprep.subr.mxu0 0.0
      %8016 = vmatpush1.msra.mxu0 0.0
      %8017 = vmatprep.subr.mxu0 0.0
      %8018 = vmatpush1.msra.mxu0 0.0
      %8019 = vmatprep.subr.mxu0 0.0
      %8020 = vmatpush1.msra.mxu0 0.0
      %8021 = vmatprep.subr.mxu0 0.0
      %8022 = vmatpush1.msra.mxu0 0.0
      %8023 = vmatprep.subr.mxu0 0.0
      %8024 = vmatpush1.msra.mxu0 0.0
      %8025 = vmatprep.subr.mxu0 0.0
      %8026 = vmatpush1.msra.mxu0 0.0
      %8027 = vmatprep.subr.mxu0 0.0
      %8028 = vmatpush1.msra.mxu0 0.0
      %8029 = vmatprep.subr.mxu0 0.0
      %8030 = vmatpush1.msra.mxu0 0.0
      %8031 = vmatprep.subr.mxu0 0.0
      %8032 = vmatpush1.msra.mxu0 0.0
      %8033 = vmatprep.subr.mxu0 0.0
      %8034 = vmatpush1.msra.mxu0 0.0
      %8035 = vmatprep.subr.mxu0 0.0
      %8036 = vmatpush1.msra.mxu0 0.0
      %8037 = vmatprep.subr.mxu0 0.0
      %8038 = vmatpush1.msra.mxu0 0.0
      %8039 = vmatprep.subr.mxu0 0.0
      %8040 = vmatpush1.msra.mxu0 0.0
      %8041 = vmatprep.subr.mxu0 0.0
      %8042 = vmatpush1.msra.mxu0 0.0
      %8043 = vmatprep.subr.mxu0 0.0
      %8044 = vmatpush1.msra.mxu0 0.0
      %8045 = vmatprep.subr.mxu0 0.0
      %8046 = vmatpush1.msra.mxu0 0.0
      %8047 = vmatprep.subr.mxu0 0.0
      %8048 = vmatpush1.msra.mxu0 0.0
      %8049 = vmatprep.subr.mxu0 0.0
      %8050 = vmatpush1.msra.mxu0 0.0
      %8051 = vmatprep.mubr.f32.mxu0 0.0
      %8052 = vmatmul.mubr.f32.gmra.mrb[0].mxu0 %v7940
      %v8053 = vpop.f32.mrb[0].mxu0
      %v8054 = vadd.f32 %v7937, %v8053
      %v8055 = vpop.f32.mrb[0].mxu0
      %8056 = vmatprep.mubr.f32.mxu0 0.0
      %8057 = vmatmul.mubr.f32.gmra.mrb[0].mxu0 %v7943
      %v8058 = vpop.f32.mrb[0].mxu0
      %v8059 = vadd.f32 %v7937, %v8058
      %v8060 = vpop.f32.mrb[0].mxu0
      %8061 = vmatprep.mubr.f32.mxu0 0.0
      %8062 = vmatmul.mubr.f32.gmra.mrb[0].mxu0 %v7946
      %v8063 = vpop.f32.mrb[0].mxu0
      %v8064 = vadd.f32 %v7937, %v8063
      %v8065 = vpop.f32.mrb[0].mxu0
      %8066 = vmatprep.mubr.f32.mxu0 0.0
      %8067 = vmatmul.mubr.f32.gmra.mrb[0].mxu0 %v7949
      %v8068 = vpop.f32.mrb[0].mxu0
      %v8069 = vadd.f32 %v7937, %v8068
      %v8070 = vpop.f32.mrb[0].mxu0
      %8071 = vmatprep.mubr.f32.mxu0 0.0
      %8072 = vmatmul.mubr.f32.gmra.mrb[0].mxu0 %v7952
      %v8073 = vpop.f32.mrb[0].mxu0
      %v8074 = vadd.f32 %v7937, %v8073
      %v8075 = vpop.f32.mrb[0].mxu0
      %8076 = vmatprep.mubr.f32.mxu0 0.0
      %8077 = vmatmul.mubr.f32.gmra.mrb[0].mxu0 %v7955
      %v8078 = vpop.f32.mrb[0].mxu0
      %v8079 = vadd.f32 %v7937, %v8078
      %v8080 = vpop.f32.mrb[0].mxu0
      %8081 = vmatprep.mubr.f32.mxu0 0.0
      %8082 = vmatmul.mubr.f32.gmra.mrb[0].mxu0 %v7958
      %v8083 = vpop.f32.mrb[0].mxu0
      %v8084 = vadd.f32 %v7937, %v8083
      %v8085 = vpop.f32.mrb[0].mxu0
      %8086 = vmatprep.mubr.f32.mxu0 0.0
      %8087 = vmatmul.mubr.f32.gmra.mrb[0].mxu0 %v7961
      %v8088 = vpop.f32.mrb[0].mxu0
      %v8089 = vadd.f32 %v7937, %v8088
      %v8090 = vpop.f32.mrb[0].mxu0
      %8091 = vmatprep.mubr.f32.mxu0 0.0
      %8092 = vmatmul.mubr.f32.gmra.mrb[0].mxu0 %v7964
      %v8093 = vpop.f32.mrb[0].mxu0
      %v8094 = vadd.f32 %v7937, %v8093
      %v8095 = vpop.f32.mrb[0].mxu0
      %8096 = vmatprep.mubr.f32.mxu0 0.0
      %8097 = vmatmul.mubr.f32.gmra.mrb[0].mxu0 %v7967
      %v8098 = vpop.f32.mrb[0].mxu0
      %v8099 = vadd.f32 %v7937, %v8098
      %v8100 = vpop.f32.mrb[0].mxu0
      %8101 = vmatprep.mubr.f32.mxu0 0.0
      %8102 = vmatmul.mubr.f32.gmra.mrb[0].mxu0 %v7970
      %v8103 = vpop.f32.mrb[0].mxu0
      %v8104 = vadd.f32 %v7937, %v8103
      %v8105 = vpop.f32.mrb[0].mxu0
      %8106 = vmatprep.mubr.f32.mxu0 0.0
      %8107 = vmatmul.mubr.f32.gmra.mrb[0].mxu0 %v7973
      %v8108 = vpop.f32.mrb[0].mxu0
      %v8109 = vadd.f32 %v7937, %v8108
      %v8110 = vpop.f32.mrb[0].mxu0
      %8111 = vmatprep.mubr.f32.mxu0 0.0
      %8112 = vmatmul.mubr.f32.gmra.mrb[0].mxu0 %v7976
      %v8113 = vpop.f32.mrb[0].mxu0
      %v8114 = vadd.f32 %v7937, %v8113
      %v8115 = vpop.f32.mrb[0].mxu0
      %8116 = vmatprep.mubr.f32.mxu0 0.0
      %8117 = vmatmul.mubr.f32.gmra.mrb[0].mxu0 %v7979
      %v8118 = vpop.f32.mrb[0].mxu0
      %v8119 = vadd.f32 %v7937, %v8118
      %v8120 = vpop.f32.mrb[0].mxu0
      %8121 = vmatprep.mubr.f32.mxu0 0.0
      %8122 = vmatmul.mubr.f32.gmra.mrb[0].mxu0 %v7982
      %v8123 = vpop.f32.mrb[0].mxu0
      %v8124 = vadd.f32 %v7937, %v8123
      %v8125 = vpop.f32.mrb[0].mxu0
      %8126 = vmatprep.mubr.f32.mxu0 0.0
      %8127 = vmatmul.mubr.f32.gmra.mrb[0].mxu0 %v7985
      %v8128 = vpop.f32.mrb[0].mxu0
      %v8129 = vadd.f32 %v7937, %v8128
      %v8130 = vpop.f32.mrb[0].mxu0
      %8131 = vdwg.mxu0
      %v8132 = vld [vmem:[%s733] sm:$0xff]
      %v8133 = vld [vmem:[%s733 + $0x8] sm:$0x1]
      %v8134 = vld [vmem:[%s707] sm:$0xff]
      %v8135 = vld [vmem:[%s707 + $0x8] sm:$0xff]
      %v8136 = vld [vmem:[%s707 + $0x10] sm:$0xff]
      %v8137 = vld [vmem:[%s707 + $0x18] sm:$0xff]
      %v8138 = vld [vmem:[%s707 + $0x20] sm:$0xff]
      %v8139 = vld [vmem:[%s707 + $0x28] sm:$0xff]
      %v8140 = vld [vmem:[%s707 + $0x30] sm:$0xff]
      %v8141 = vld [vmem:[%s707 + $0x38] sm:$0xff]
      %v8142 = vld [vmem:[%s707 + $0x40] sm:$0xff]
      %v8143 = vld [vmem:[%s707 + $0x48] sm:$0xff]
      %v8144 = vld [vmem:[%s707 + $0x50] sm:$0xff]
      %v8145 = vld [vmem:[%s707 + $0x58] sm:$0xff]
      %v8146 = vld [vmem:[%s707 + $0x60] sm:$0xff]
      %v8147 = vld [vmem:[%s707 + $0x68] sm:$0xff]
      %v8148 = vld [vmem:[%s707 + $0x70] sm:$0xff]
      %v8149 = vld [vmem:[%s707 + $0x78] sm:$0xff]
      %v8150 = vlaneseq
      %v8151 = vshrl.u32 %v8150, 7
      %v8152 = vsub.s32 0, %v8151
      %v8153 = vrot.slane %v8132, %v8152
      %v8154 = vmul.f32 %v8134, %v8153
      %v8155 = vmul.f32 %v8135, %v8153
      %v8156 = vmul.f32 %v8136, %v8153
      %v8157 = vmul.f32 %v8137, %v8153
      %v8158 = vmul.f32 %v8138, %v8153
      %v8159 = vmul.f32 %v8139, %v8153
      %v8160 = vmul.f32 %v8140, %v8153
      %v8161 = vmul.f32 %v8141, %v8153
      %v8162 = vmul.f32 %v8142, %v8153
      %v8163 = vmul.f32 %v8143, %v8153
      %v8164 = vmul.f32 %v8144, %v8153
      %v8165 = vmul.f32 %v8145, %v8153
      %v8166 = vmul.f32 %v8146, %v8153
      %v8167 = vmul.f32 %v8147, %v8153
      %v8168 = vmul.f32 %v8148, %v8153
      %v8169 = vmul.f32 %v8149, %v8153
      %s8170 = scalar_lea.vmem %s707, 128
      %v8171 = vld [vmem:[%s8170] sm:$0xff]
      %v8172 = vld [vmem:[%s8170 + $0x8] sm:$0xff]
      %v8173 = vld [vmem:[%s8170 + $0x10] sm:$0xff]
      %v8174 = vld [vmem:[%s8170 + $0x18] sm:$0xff]
      %v8175 = vld [vmem:[%s8170 + $0x20] sm:$0xff]
      %v8176 = vld [vmem:[%s8170 + $0x28] sm:$0xff]
      %v8177 = vld [vmem:[%s8170 + $0x30] sm:$0xff]
      %v8178 = vld [vmem:[%s8170 + $0x38] sm:$0xff]
      %v8179 = vld [vmem:[%s8170 + $0x40] sm:$0xff]
      %v8180 = vld [vmem:[%s8170 + $0x48] sm:$0xff]
      %v8181 = vld [vmem:[%s8170 + $0x50] sm:$0xff]
      %v8182 = vld [vmem:[%s8170 + $0x58] sm:$0xff]
      %v8183 = vld [vmem:[%s8170 + $0x60] sm:$0xff]
      %v8184 = vld [vmem:[%s8170 + $0x68] sm:$0xff]
      %v8185 = vld [vmem:[%s8170 + $0x70] sm:$0xff]
      %v8186 = vld [vmem:[%s8170 + $0x78] sm:$0xff]
      %v8187 = vlaneseq
      %v8188 = vshrl.u32 %v8187, 7
      %v8189 = vsub.s32 1, %v8188
      %v8190 = vrot.slane %v8132, %v8189
      %v8191 = vmul.f32 %v8171, %v8190
      %v8192 = vmul.f32 %v8172, %v8190
      %v8193 = vmul.f32 %v8173, %v8190
      %v8194 = vmul.f32 %v8174, %v8190
      %v8195 = vmul.f32 %v8175, %v8190
      %v8196 = vmul.f32 %v8176, %v8190
      %v8197 = vmul.f32 %v8177, %v8190
      %v8198 = vmul.f32 %v8178, %v8190
      %v8199 = vmul.f32 %v8179, %v8190
      %v8200 = vmul.f32 %v8180, %v8190
      %v8201 = vmul.f32 %v8181, %v8190
      %v8202 = vmul.f32 %v8182, %v8190
      %v8203 = vmul.f32 %v8183, %v8190
      %v8204 = vmul.f32 %v8184, %v8190
      %v8205 = vmul.f32 %v8185, %v8190
      %v8206 = vmul.f32 %v8186, %v8190
      %v8207 = vadd.f32 %v8154, %v8191
      %v8208 = vadd.f32 %v8155, %v8192
      %v8209 = vadd.f32 %v8156, %v8193
      %v8210 = vadd.f32 %v8157, %v8194
      %v8211 = vadd.f32 %v8158, %v8195
      %v8212 = vadd.f32 %v8159, %v8196
      %v8213 = vadd.f32 %v8160, %v8197
      %v8214 = vadd.f32 %v8161, %v8198
      %v8215 = vadd.f32 %v8162, %v8199
      %v8216 = vadd.f32 %v8163, %v8200
      %v8217 = vadd.f32 %v8164, %v8201
      %v8218 = vadd.f32 %v8165, %v8202
      %v8219 = vadd.f32 %v8166, %v8203
      %v8220 = vadd.f32 %v8167, %v8204
      %v8221 = vadd.f32 %v8168, %v8205
      %v8222 = vadd.f32 %v8169, %v8206
      %s8223 = scalar_lea.vmem %s707, 256
      %v8224 = vld [vmem:[%s8223] sm:$0xff]
      %v8225 = vld [vmem:[%s8223 + $0x8] sm:$0xff]
      %v8226 = vld [vmem:[%s8223 + $0x10] sm:$0xff]
      %v8227 = vld [vmem:[%s8223 + $0x18] sm:$0xff]
      %v8228 = vld [vmem:[%s8223 + $0x20] sm:$0xff]
      %v8229 = vld [vmem:[%s8223 + $0x28] sm:$0xff]
      %v8230 = vld [vmem:[%s8223 + $0x30] sm:$0xff]
      %v8231 = vld [vmem:[%s8223 + $0x38] sm:$0xff]
      %v8232 = vld [vmem:[%s8223 + $0x40] sm:$0xff]
      %v8233 = vld [vmem:[%s8223 + $0x48] sm:$0xff]
      %v8234 = vld [vmem:[%s8223 + $0x50] sm:$0xff]
      %v8235 = vld [vmem:[%s8223 + $0x58] sm:$0xff]
      %v8236 = vld [vmem:[%s8223 + $0x60] sm:$0xff]
      %v8237 = vld [vmem:[%s8223 + $0x68] sm:$0xff]
      %v8238 = vld [vmem:[%s8223 + $0x70] sm:$0xff]
      %v8239 = vld [vmem:[%s8223 + $0x78] sm:$0xff]
      %v8240 = vlaneseq
      %v8241 = vshrl.u32 %v8240, 7
      %v8242 = vsub.s32 2, %v8241
      %v8243 = vrot.slane %v8132, %v8242
      %v8244 = vmul.f32 %v8224, %v8243
      %v8245 = vmul.f32 %v8225, %v8243
      %v8246 = vmul.f32 %v8226, %v8243
      %v8247 = vmul.f32 %v8227, %v8243
      %v8248 = vmul.f32 %v8228, %v8243
      %v8249 = vmul.f32 %v8229, %v8243
      %v8250 = vmul.f32 %v8230, %v8243
      %v8251 = vmul.f32 %v8231, %v8243
      %v8252 = vmul.f32 %v8232, %v8243
      %v8253 = vmul.f32 %v8233, %v8243
      %v8254 = vmul.f32 %v8234, %v8243
      %v8255 = vmul.f32 %v8235, %v8243
      %v8256 = vmul.f32 %v8236, %v8243
      %v8257 = vmul.f32 %v8237, %v8243
      %v8258 = vmul.f32 %v8238, %v8243
      %v8259 = vmul.f32 %v8239, %v8243
      %v8260 = vadd.f32 %v8207, %v8244
      %v8261 = vadd.f32 %v8208, %v8245
      %v8262 = vadd.f32 %v8209, %v8246
      %v8263 = vadd.f32 %v8210, %v8247
      %v8264 = vadd.f32 %v8211, %v8248
      %v8265 = vadd.f32 %v8212, %v8249
      %v8266 = vadd.f32 %v8213, %v8250
      %v8267 = vadd.f32 %v8214, %v8251
      %v8268 = vadd.f32 %v8215, %v8252
      %v8269 = vadd.f32 %v8216, %v8253
      %v8270 = vadd.f32 %v8217, %v8254
      %v8271 = vadd.f32 %v8218, %v8255
      %v8272 = vadd.f32 %v8219, %v8256
      %v8273 = vadd.f32 %v8220, %v8257
      %v8274 = vadd.f32 %v8221, %v8258
      %v8275 = vadd.f32 %v8222, %v8259
      %s8276 = scalar_lea.vmem %s707, 384
      %v8277 = vld [vmem:[%s8276] sm:$0xff]
      %v8278 = vld [vmem:[%s8276 + $0x8] sm:$0xff]
      %v8279 = vld [vmem:[%s8276 + $0x10] sm:$0xff]
      %v8280 = vld [vmem:[%s8276 + $0x18] sm:$0xff]
      %v8281 = vld [vmem:[%s8276 + $0x20] sm:$0xff]
      %v8282 = vld [vmem:[%s8276 + $0x28] sm:$0xff]
      %v8283 = vld [vmem:[%s8276 + $0x30] sm:$0xff]
      %v8284 = vld [vmem:[%s8276 + $0x38] sm:$0xff]
      %v8285 = vld [vmem:[%s8276 + $0x40] sm:$0xff]
      %v8286 = vld [vmem:[%s8276 + $0x48] sm:$0xff]
      %v8287 = vld [vmem:[%s8276 + $0x50] sm:$0xff]
      %v8288 = vld [vmem:[%s8276 + $0x58] sm:$0xff]
      %v8289 = vld [vmem:[%s8276 + $0x60] sm:$0xff]
      %v8290 = vld [vmem:[%s8276 + $0x68] sm:$0xff]
      %v8291 = vld [vmem:[%s8276 + $0x70] sm:$0xff]
      %v8292 = vld [vmem:[%s8276 + $0x78] sm:$0xff]
      %v8293 = vlaneseq
      %v8294 = vshrl.u32 %v8293, 7
      %v8295 = vsub.s32 3, %v8294
      %v8296 = vrot.slane %v8132, %v8295
      %v8297 = vmul.f32 %v8277, %v8296
      %v8298 = vmul.f32 %v8278, %v8296
      %v8299 = vmul.f32 %v8279, %v8296
      %v8300 = vmul.f32 %v8280, %v8296
      %v8301 = vmul.f32 %v8281, %v8296
      %v8302 = vmul.f32 %v8282, %v8296
      %v8303 = vmul.f32 %v8283, %v8296
      %v8304 = vmul.f32 %v8284, %v8296
      %v8305 = vmul.f32 %v8285, %v8296
      %v8306 = vmul.f32 %v8286, %v8296
      %v8307 = vmul.f32 %v8287, %v8296
      %v8308 = vmul.f32 %v8288, %v8296
      %v8309 = vmul.f32 %v8289, %v8296
      %v8310 = vmul.f32 %v8290, %v8296
      %v8311 = vmul.f32 %v8291, %v8296
      %v8312 = vmul.f32 %v8292, %v8296
      %v8313 = vadd.f32 %v8260, %v8297
      %v8314 = vadd.f32 %v8261, %v8298
      %v8315 = vadd.f32 %v8262, %v8299
      %v8316 = vadd.f32 %v8263, %v8300
      %v8317 = vadd.f32 %v8264, %v8301
      %v8318 = vadd.f32 %v8265, %v8302
      %v8319 = vadd.f32 %v8266, %v8303
      %v8320 = vadd.f32 %v8267, %v8304
      %v8321 = vadd.f32 %v8268, %v8305
      %v8322 = vadd.f32 %v8269, %v8306
      %v8323 = vadd.f32 %v8270, %v8307
      %v8324 = vadd.f32 %v8271, %v8308
      %v8325 = vadd.f32 %v8272, %v8309
      %v8326 = vadd.f32 %v8273, %v8310
      %v8327 = vadd.f32 %v8274, %v8311
      %v8328 = vadd.f32 %v8275, %v8312
      %s8329 = scalar_lea.vmem %s707, 512
      %v8330 = vld [vmem:[%s8329] sm:$0xff]
      %v8331 = vld [vmem:[%s8329 + $0x8] sm:$0xff]
      %v8332 = vld [vmem:[%s8329 + $0x10] sm:$0xff]
      %v8333 = vld [vmem:[%s8329 + $0x18] sm:$0xff]
      %v8334 = vld [vmem:[%s8329 + $0x20] sm:$0xff]
      %v8335 = vld [vmem:[%s8329 + $0x28] sm:$0xff]
      %v8336 = vld [vmem:[%s8329 + $0x30] sm:$0xff]
      %v8337 = vld [vmem:[%s8329 + $0x38] sm:$0xff]
      %v8338 = vld [vmem:[%s8329 + $0x40] sm:$0xff]
      %v8339 = vld [vmem:[%s8329 + $0x48] sm:$0xff]
      %v8340 = vld [vmem:[%s8329 + $0x50] sm:$0xff]
      %v8341 = vld [vmem:[%s8329 + $0x58] sm:$0xff]
      %v8342 = vld [vmem:[%s8329 + $0x60] sm:$0xff]
      %v8343 = vld [vmem:[%s8329 + $0x68] sm:$0xff]
      %v8344 = vld [vmem:[%s8329 + $0x70] sm:$0xff]
      %v8345 = vld [vmem:[%s8329 + $0x78] sm:$0xff]
      %v8346 = vlaneseq
      %v8347 = vshrl.u32 %v8346, 7
      %v8348 = vsub.s32 4, %v8347
      %v8349 = vrot.slane %v8132, %v8348
      %v8350 = vmul.f32 %v8330, %v8349
      %v8351 = vmul.f32 %v8331, %v8349
      %v8352 = vmul.f32 %v8332, %v8349
      %v8353 = vmul.f32 %v8333, %v8349
      %v8354 = vmul.f32 %v8334, %v8349
      %v8355 = vmul.f32 %v8335, %v8349
      %v8356 = vmul.f32 %v8336, %v8349
      %v8357 = vmul.f32 %v8337, %v8349
      %v8358 = vmul.f32 %v8338, %v8349
      %v8359 = vmul.f32 %v8339, %v8349
      %v8360 = vmul.f32 %v8340, %v8349
      %v8361 = vmul.f32 %v8341, %v8349
      %v8362 = vmul.f32 %v8342, %v8349
      %v8363 = vmul.f32 %v8343, %v8349
      %v8364 = vmul.f32 %v8344, %v8349
      %v8365 = vmul.f32 %v8345, %v8349
      %v8366 = vadd.f32 %v8313, %v8350
      %v8367 = vadd.f32 %v8314, %v8351
      %v8368 = vadd.f32 %v8315, %v8352
      %v8369 = vadd.f32 %v8316, %v8353
      %v8370 = vadd.f32 %v8317, %v8354
      %v8371 = vadd.f32 %v8318, %v8355
      %v8372 = vadd.f32 %v8319, %v8356
      %v8373 = vadd.f32 %v8320, %v8357
      %v8374 = vadd.f32 %v8321, %v8358
      %v8375 = vadd.f32 %v8322, %v8359
      %v8376 = vadd.f32 %v8323, %v8360
      %v8377 = vadd.f32 %v8324, %v8361
      %v8378 = vadd.f32 %v8325, %v8362
      %v8379 = vadd.f32 %v8326, %v8363
      %v8380 = vadd.f32 %v8327, %v8364
      %v8381 = vadd.f32 %v8328, %v8365
      %s8382 = scalar_lea.vmem %s707, 640
      %v8383 = vld [vmem:[%s8382] sm:$0xff]
      %v8384 = vld [vmem:[%s8382 + $0x8] sm:$0xff]
      %v8385 = vld [vmem:[%s8382 + $0x10] sm:$0xff]
      %v8386 = vld [vmem:[%s8382 + $0x18] sm:$0xff]
      %v8387 = vld [vmem:[%s8382 + $0x20] sm:$0xff]
      %v8388 = vld [vmem:[%s8382 + $0x28] sm:$0xff]
      %v8389 = vld [vmem:[%s8382 + $0x30] sm:$0xff]
      %v8390 = vld [vmem:[%s8382 + $0x38] sm:$0xff]
      %v8391 = vld [vmem:[%s8382 + $0x40] sm:$0xff]
      %v8392 = vld [vmem:[%s8382 + $0x48] sm:$0xff]
      %v8393 = vld [vmem:[%s8382 + $0x50] sm:$0xff]
      %v8394 = vld [vmem:[%s8382 + $0x58] sm:$0xff]
      %v8395 = vld [vmem:[%s8382 + $0x60] sm:$0xff]
      %v8396 = vld [vmem:[%s8382 + $0x68] sm:$0xff]
      %v8397 = vld [vmem:[%s8382 + $0x70] sm:$0xff]
      %v8398 = vld [vmem:[%s8382 + $0x78] sm:$0xff]
      %v8399 = vlaneseq
      %v8400 = vshrl.u32 %v8399, 7
      %v8401 = vsub.s32 5, %v8400
      %v8402 = vrot.slane %v8132, %v8401
      %v8403 = vmul.f32 %v8383, %v8402
      %v8404 = vmul.f32 %v8384, %v8402
      %v8405 = vmul.f32 %v8385, %v8402
      %v8406 = vmul.f32 %v8386, %v8402
      %v8407 = vmul.f32 %v8387, %v8402
      %v8408 = vmul.f32 %v8388, %v8402
      %v8409 = vmul.f32 %v8389, %v8402
      %v8410 = vmul.f32 %v8390, %v8402
      %v8411 = vmul.f32 %v8391, %v8402
      %v8412 = vmul.f32 %v8392, %v8402
      %v8413 = vmul.f32 %v8393, %v8402
      %v8414 = vmul.f32 %v8394, %v8402
      %v8415 = vmul.f32 %v8395, %v8402
      %v8416 = vmul.f32 %v8396, %v8402
      %v8417 = vmul.f32 %v8397, %v8402
      %v8418 = vmul.f32 %v8398, %v8402
      %v8419 = vadd.f32 %v8366, %v8403
      %v8420 = vadd.f32 %v8367, %v8404
      %v8421 = vadd.f32 %v8368, %v8405
      %v8422 = vadd.f32 %v8369, %v8406
      %v8423 = vadd.f32 %v8370, %v8407
      %v8424 = vadd.f32 %v8371, %v8408
      %v8425 = vadd.f32 %v8372, %v8409
      %v8426 = vadd.f32 %v8373, %v8410
      %v8427 = vadd.f32 %v8374, %v8411
      %v8428 = vadd.f32 %v8375, %v8412
      %v8429 = vadd.f32 %v8376, %v8413
      %v8430 = vadd.f32 %v8377, %v8414
      %v8431 = vadd.f32 %v8378, %v8415
      %v8432 = vadd.f32 %v8379, %v8416
      %v8433 = vadd.f32 %v8380, %v8417
      %v8434 = vadd.f32 %v8381, %v8418
      %s8435 = scalar_lea.vmem %s707, 768
      %v8436 = vld [vmem:[%s8435] sm:$0xff]
      %v8437 = vld [vmem:[%s8435 + $0x8] sm:$0xff]
      %v8438 = vld [vmem:[%s8435 + $0x10] sm:$0xff]
      %v8439 = vld [vmem:[%s8435 + $0x18] sm:$0xff]
      %v8440 = vld [vmem:[%s8435 + $0x20] sm:$0xff]
      %v8441 = vld [vmem:[%s8435 + $0x28] sm:$0xff]
      %v8442 = vld [vmem:[%s8435 + $0x30] sm:$0xff]
      %v8443 = vld [vmem:[%s8435 + $0x38] sm:$0xff]
      %v8444 = vld [vmem:[%s8435 + $0x40] sm:$0xff]
      %v8445 = vld [vmem:[%s8435 + $0x48] sm:$0xff]
      %v8446 = vld [vmem:[%s8435 + $0x50] sm:$0xff]
      %v8447 = vld [vmem:[%s8435 + $0x58] sm:$0xff]
      %v8448 = vld [vmem:[%s8435 + $0x60] sm:$0xff]
      %v8449 = vld [vmem:[%s8435 + $0x68] sm:$0xff]
      %v8450 = vld [vmem:[%s8435 + $0x70] sm:$0xff]
      %v8451 = vld [vmem:[%s8435 + $0x78] sm:$0xff]
      %v8452 = vlaneseq
      %v8453 = vshrl.u32 %v8452, 7
      %v8454 = vsub.s32 6, %v8453
      %v8455 = vrot.slane %v8132, %v8454
      %v8456 = vmul.f32 %v8436, %v8455
      %v8457 = vmul.f32 %v8437, %v8455
      %v8458 = vmul.f32 %v8438, %v8455
      %v8459 = vmul.f32 %v8439, %v8455
      %v8460 = vmul.f32 %v8440, %v8455
      %v8461 = vmul.f32 %v8441, %v8455
      %v8462 = vmul.f32 %v8442, %v8455
      %v8463 = vmul.f32 %v8443, %v8455
      %v8464 = vmul.f32 %v8444, %v8455
      %v8465 = vmul.f32 %v8445, %v8455
      %v8466 = vmul.f32 %v8446, %v8455
      %v8467 = vmul.f32 %v8447, %v8455
      %v8468 = vmul.f32 %v8448, %v8455
      %v8469 = vmul.f32 %v8449, %v8455
      %v8470 = vmul.f32 %v8450, %v8455
      %v8471 = vmul.f32 %v8451, %v8455
      %v8472 = vadd.f32 %v8419, %v8456
      %v8473 = vadd.f32 %v8420, %v8457
      %v8474 = vadd.f32 %v8421, %v8458
      %v8475 = vadd.f32 %v8422, %v8459
      %v8476 = vadd.f32 %v8423, %v8460
      %v8477 = vadd.f32 %v8424, %v8461
      %v8478 = vadd.f32 %v8425, %v8462
      %v8479 = vadd.f32 %v8426, %v8463
      %v8480 = vadd.f32 %v8427, %v8464
      %v8481 = vadd.f32 %v8428, %v8465
      %v8482 = vadd.f32 %v8429, %v8466
      %v8483 = vadd.f32 %v8430, %v8467
      %v8484 = vadd.f32 %v8431, %v8468
      %v8485 = vadd.f32 %v8432, %v8469
      %v8486 = vadd.f32 %v8433, %v8470
      %v8487 = vadd.f32 %v8434, %v8471
      %s8488 = scalar_lea.vmem %s707, 896
      %v8489 = vld [vmem:[%s8488] sm:$0xff]
      %v8490 = vld [vmem:[%s8488 + $0x8] sm:$0xff]
      %v8491 = vld [vmem:[%s8488 + $0x10] sm:$0xff]
      %v8492 = vld [vmem:[%s8488 + $0x18] sm:$0xff]
      %v8493 = vld [vmem:[%s8488 + $0x20] sm:$0xff]
      %v8494 = vld [vmem:[%s8488 + $0x28] sm:$0xff]
      %v8495 = vld [vmem:[%s8488 + $0x30] sm:$0xff]
      %v8496 = vld [vmem:[%s8488 + $0x38] sm:$0xff]
      %v8497 = vld [vmem:[%s8488 + $0x40] sm:$0xff]
      %v8498 = vld [vmem:[%s8488 + $0x48] sm:$0xff]
      %v8499 = vld [vmem:[%s8488 + $0x50] sm:$0xff]
      %v8500 = vld [vmem:[%s8488 + $0x58] sm:$0xff]
      %v8501 = vld [vmem:[%s8488 + $0x60] sm:$0xff]
      %v8502 = vld [vmem:[%s8488 + $0x68] sm:$0xff]
      %v8503 = vld [vmem:[%s8488 + $0x70] sm:$0xff]
      %v8504 = vld [vmem:[%s8488 + $0x78] sm:$0xff]
      %v8505 = vlaneseq
      %v8506 = vshrl.u32 %v8505, 7
      %v8507 = vsub.s32 7, %v8506
      %v8508 = vrot.slane %v8132, %v8507
      %v8509 = vmul.f32 %v8489, %v8508
      %v8510 = vmul.f32 %v8490, %v8508
      %v8511 = vmul.f32 %v8491, %v8508
      %v8512 = vmul.f32 %v8492, %v8508
      %v8513 = vmul.f32 %v8493, %v8508
      %v8514 = vmul.f32 %v8494, %v8508
      %v8515 = vmul.f32 %v8495, %v8508
      %v8516 = vmul.f32 %v8496, %v8508
      %v8517 = vmul.f32 %v8497, %v8508
      %v8518 = vmul.f32 %v8498, %v8508
      %v8519 = vmul.f32 %v8499, %v8508
      %v8520 = vmul.f32 %v8500, %v8508
      %v8521 = vmul.f32 %v8501, %v8508
      %v8522 = vmul.f32 %v8502, %v8508
      %v8523 = vmul.f32 %v8503, %v8508
      %v8524 = vmul.f32 %v8504, %v8508
      %v8525 = vadd.f32 %v8472, %v8509
      %v8526 = vadd.f32 %v8473, %v8510
      %v8527 = vadd.f32 %v8474, %v8511
      %v8528 = vadd.f32 %v8475, %v8512
      %v8529 = vadd.f32 %v8476, %v8513
      %v8530 = vadd.f32 %v8477, %v8514
      %v8531 = vadd.f32 %v8478, %v8515
      %v8532 = vadd.f32 %v8479, %v8516
      %v8533 = vadd.f32 %v8480, %v8517
      %v8534 = vadd.f32 %v8481, %v8518
      %v8535 = vadd.f32 %v8482, %v8519
      %v8536 = vadd.f32 %v8483, %v8520
      %v8537 = vadd.f32 %v8484, %v8521
      %v8538 = vadd.f32 %v8485, %v8522
      %v8539 = vadd.f32 %v8486, %v8523
      %v8540 = vadd.f32 %v8487, %v8524
      %s8541 = scalar_lea.vmem %s707, 1024
      %v8542 = vld [vmem:[%s8541] sm:$0xff]
      %v8543 = vld [vmem:[%s8541 + $0x8] sm:$0xff]
      %v8544 = vld [vmem:[%s8541 + $0x10] sm:$0xff]
      %v8545 = vld [vmem:[%s8541 + $0x18] sm:$0xff]
      %v8546 = vld [vmem:[%s8541 + $0x20] sm:$0xff]
      %v8547 = vld [vmem:[%s8541 + $0x28] sm:$0xff]
      %v8548 = vld [vmem:[%s8541 + $0x30] sm:$0xff]
      %v8549 = vld [vmem:[%s8541 + $0x38] sm:$0xff]
      %v8550 = vld [vmem:[%s8541 + $0x40] sm:$0xff]
      %v8551 = vld [vmem:[%s8541 + $0x48] sm:$0xff]
      %v8552 = vld [vmem:[%s8541 + $0x50] sm:$0xff]
      %v8553 = vld [vmem:[%s8541 + $0x58] sm:$0xff]
      %v8554 = vld [vmem:[%s8541 + $0x60] sm:$0xff]
      %v8555 = vld [vmem:[%s8541 + $0x68] sm:$0xff]
      %v8556 = vld [vmem:[%s8541 + $0x70] sm:$0xff]
      %v8557 = vld [vmem:[%s8541 + $0x78] sm:$0xff]
      %v8558 = vlaneseq
      %v8559 = vshrl.u32 %v8558, 7
      %v8560 = vsub.s32 0, %v8559
      %v8561 = vrot.slane %v8133, %v8560
      %v8562 = vmul.f32 %v8542, %v8561
      %v8563 = vmul.f32 %v8543, %v8561
      %v8564 = vmul.f32 %v8544, %v8561
      %v8565 = vmul.f32 %v8545, %v8561
      %v8566 = vmul.f32 %v8546, %v8561
      %v8567 = vmul.f32 %v8547, %v8561
      %v8568 = vmul.f32 %v8548, %v8561
      %v8569 = vmul.f32 %v8549, %v8561
      %v8570 = vmul.f32 %v8550, %v8561
      %v8571 = vmul.f32 %v8551, %v8561
      %v8572 = vmul.f32 %v8552, %v8561
      %v8573 = vmul.f32 %v8553, %v8561
      %v8574 = vmul.f32 %v8554, %v8561
      %v8575 = vmul.f32 %v8555, %v8561
      %v8576 = vmul.f32 %v8556, %v8561
      %v8577 = vmul.f32 %v8557, %v8561
      %v8578 = vadd.f32 %v8525, %v8562
      %v8579 = vadd.f32 %v8526, %v8563
      %v8580 = vadd.f32 %v8527, %v8564
      %v8581 = vadd.f32 %v8528, %v8565
      %v8582 = vadd.f32 %v8529, %v8566
      %v8583 = vadd.f32 %v8530, %v8567
      %v8584 = vadd.f32 %v8531, %v8568
      %v8585 = vadd.f32 %v8532, %v8569
      %v8586 = vadd.f32 %v8533, %v8570
      %v8587 = vadd.f32 %v8534, %v8571
      %v8588 = vadd.f32 %v8535, %v8572
      %v8589 = vadd.f32 %v8536, %v8573
      %v8590 = vadd.f32 %v8537, %v8574
      %v8591 = vadd.f32 %v8538, %v8575
      %v8592 = vadd.f32 %v8539, %v8576
      %v8593 = vadd.f32 %v8540, %v8577
      %v8594 = vld [vmem:[%s736] sm:$0x1]
      %v8596 = vlaneseq
      %v8597 = vshrl.u32 %v8596, 7
      %v8598 = vsub.s32 0, %v8597
      %v8599 = vrot.slane %v8594, %v8598
      %v8601 = vadd.f32 %v8578, %v8599
      %v8602 = vadd.f32 %v8579, %v8599
      %v8603 = vadd.f32 %v8580, %v8599
      %v8604 = vadd.f32 %v8581, %v8599
      %v8605 = vadd.f32 %v8582, %v8599
      %v8606 = vadd.f32 %v8583, %v8599
      %v8607 = vadd.f32 %v8584, %v8599
      %v8608 = vadd.f32 %v8585, %v8599
      %v8609 = vadd.f32 %v8586, %v8599
      %v8610 = vadd.f32 %v8587, %v8599
      %v8611 = vadd.f32 %v8588, %v8599
      %v8612 = vadd.f32 %v8589, %v8599
      %v8613 = vadd.f32 %v8590, %v8599
      %v8614 = vadd.f32 %v8591, %v8599
      %v8615 = vadd.f32 %v8592, %v8599
      %v8616 = vadd.f32 %v8593, %v8599
      %v8617 = vmul.f32 %v8601, %v8601
      %v8618 = vmul.f32 %v8602, %v8602
      %v8619 = vmul.f32 %v8603, %v8603
      %v8620 = vmul.f32 %v8604, %v8604
      %v8621 = vmul.f32 %v8605, %v8605
      %v8622 = vmul.f32 %v8606, %v8606
      %v8623 = vmul.f32 %v8607, %v8607
      %v8624 = vmul.f32 %v8608, %v8608
      %v8625 = vmul.f32 %v8609, %v8609
      %v8626 = vmul.f32 %v8610, %v8610
      %v8627 = vmul.f32 %v8611, %v8611
      %v8628 = vmul.f32 %v8612, %v8612
      %v8629 = vmul.f32 %v8613, %v8613
      %v8630 = vmul.f32 %v8614, %v8614
      %v8631 = vmul.f32 %v8615, %v8615
      %v8632 = vmul.f32 %v8616, %v8616
      %v8633 = vmul.f32 %v8601, %v8617
      %v8634 = vmul.f32 %v8602, %v8618
      %v8635 = vmul.f32 %v8603, %v8619
      %v8636 = vmul.f32 %v8604, %v8620
      %v8637 = vmul.f32 %v8605, %v8621
      %v8638 = vmul.f32 %v8606, %v8622
      %v8639 = vmul.f32 %v8607, %v8623
      %v8640 = vmul.f32 %v8608, %v8624
      %v8641 = vmul.f32 %v8609, %v8625
      %v8642 = vmul.f32 %v8610, %v8626
      %v8643 = vmul.f32 %v8611, %v8627
      %v8644 = vmul.f32 %v8612, %v8628
      %v8645 = vmul.f32 %v8613, %v8629
      %v8646 = vmul.f32 %v8614, %v8630
      %v8647 = vmul.f32 %v8615, %v8631
      %v8648 = vmul.f32 %v8616, %v8632
      %v8649 = vmul.f32 %v8633, 0.044715
      %v8650 = vmul.f32 %v8634, 0.044715
      %v8651 = vmul.f32 %v8635, 0.044715
      %v8652 = vmul.f32 %v8636, 0.044715
      %v8653 = vmul.f32 %v8637, 0.044715
      %v8654 = vmul.f32 %v8638, 0.044715
      %v8655 = vmul.f32 %v8639, 0.044715
      %v8656 = vmul.f32 %v8640, 0.044715
      %v8657 = vmul.f32 %v8641, 0.044715
      %v8658 = vmul.f32 %v8642, 0.044715
      %v8659 = vmul.f32 %v8643, 0.044715
      %v8660 = vmul.f32 %v8644, 0.044715
      %v8661 = vmul.f32 %v8645, 0.044715
      %v8662 = vmul.f32 %v8646, 0.044715
      %v8663 = vmul.f32 %v8647, 0.044715
      %v8664 = vmul.f32 %v8648, 0.044715
      %v8665 = vadd.f32 %v8601, %v8649
      %v8666 = vadd.f32 %v8602, %v8650
      %v8667 = vadd.f32 %v8603, %v8651
      %v8668 = vadd.f32 %v8604, %v8652
      %v8669 = vadd.f32 %v8605, %v8653
      %v8670 = vadd.f32 %v8606, %v8654
      %v8671 = vadd.f32 %v8607, %v8655
      %v8672 = vadd.f32 %v8608, %v8656
      %v8673 = vadd.f32 %v8609, %v8657
      %v8674 = vadd.f32 %v8610, %v8658
      %v8675 = vadd.f32 %v8611, %v8659
      %v8676 = vadd.f32 %v8612, %v8660
      %v8677 = vadd.f32 %v8613, %v8661
      %v8678 = vadd.f32 %v8614, %v8662
      %v8679 = vadd.f32 %v8615, %v8663
      %v8680 = vadd.f32 %v8616, %v8664
      %v8681 = vmul.f32 %v8665, 0.7978846
      %v8682 = vmul.f32 %v8666, 0.7978846
      %v8683 = vmul.f32 %v8667, 0.7978846
      %v8684 = vmul.f32 %v8668, 0.7978846
      %v8685 = vmul.f32 %v8669, 0.7978846
      %v8686 = vmul.f32 %v8670, 0.7978846
      %v8687 = vmul.f32 %v8671, 0.7978846
      %v8688 = vmul.f32 %v8672, 0.7978846
      %v8689 = vmul.f32 %v8673, 0.7978846
      %v8690 = vmul.f32 %v8674, 0.7978846
      %v8691 = vmul.f32 %v8675, 0.7978846
      %v8692 = vmul.f32 %v8676, 0.7978846
      %v8693 = vmul.f32 %v8677, 0.7978846
      %v8694 = vmul.f32 %v8678, 0.7978846
      %v8695 = vmul.f32 %v8679, 0.7978846
      %v8696 = vmul.f32 %v8680, 0.7978846
      %v8697 = vtanh.pop %v8681
      %v8698 = vtanh.pop %v8682
      %v8699 = vtanh.pop %v8683
      %v8700 = vtanh.pop %v8684
      %v8701 = vtanh.pop %v8685
      %v8702 = vtanh.pop %v8686
      %v8703 = vtanh.pop %v8687
      %v8704 = vtanh.pop %v8688
      %v8705 = vtanh.pop %v8689
      %v8706 = vtanh.pop %v8690
      %v8707 = vtanh.pop %v8691
      %v8708 = vtanh.pop %v8692
      %v8709 = vtanh.pop %v8693
      %v8710 = vtanh.pop %v8694
      %v8711 = vtanh.pop %v8695
      %v8712 = vtanh.pop %v8696
      %v8713 = vadd.f32 %v8697, 1.0
      %v8714 = vadd.f32 %v8698, 1.0
      %v8715 = vadd.f32 %v8699, 1.0
      %v8716 = vadd.f32 %v8700, 1.0
      %v8717 = vadd.f32 %v8701, 1.0
      %v8718 = vadd.f32 %v8702, 1.0
      %v8719 = vadd.f32 %v8703, 1.0
      %v8720 = vadd.f32 %v8704, 1.0
      %v8721 = vadd.f32 %v8705, 1.0
      %v8722 = vadd.f32 %v8706, 1.0
      %v8723 = vadd.f32 %v8707, 1.0
      %v8724 = vadd.f32 %v8708, 1.0
      %v8725 = vadd.f32 %v8709, 1.0
      %v8726 = vadd.f32 %v8710, 1.0
      %v8727 = vadd.f32 %v8711, 1.0
      %v8728 = vadd.f32 %v8712, 1.0
      %v8729 = vmul.f32 %v8713, 0.5
      %v8730 = vmul.f32 %v8714, 0.5
      %v8731 = vmul.f32 %v8715, 0.5
      %v8732 = vmul.f32 %v8716, 0.5
      %v8733 = vmul.f32 %v8717, 0.5
      %v8734 = vmul.f32 %v8718, 0.5
      %v8735 = vmul.f32 %v8719, 0.5
      %v8736 = vmul.f32 %v8720, 0.5
      %v8737 = vmul.f32 %v8721, 0.5
      %v8738 = vmul.f32 %v8722, 0.5
      %v8739 = vmul.f32 %v8723, 0.5
      %v8740 = vmul.f32 %v8724, 0.5
      %v8741 = vmul.f32 %v8725, 0.5
      %v8742 = vmul.f32 %v8726, 0.5
      %v8743 = vmul.f32 %v8727, 0.5
      %v8744 = vmul.f32 %v8728, 0.5
      %v8745 = vmul.f32 %v8601, %v8729
      %v8746 = vmul.f32 %v8602, %v8730
      %v8747 = vmul.f32 %v8603, %v8731
      %v8748 = vmul.f32 %v8604, %v8732
      %v8749 = vmul.f32 %v8605, %v8733
      %v8750 = vmul.f32 %v8606, %v8734
      %v8751 = vmul.f32 %v8607, %v8735
      %v8752 = vmul.f32 %v8608, %v8736
      %v8753 = vmul.f32 %v8609, %v8737
      %v8754 = vmul.f32 %v8610, %v8738
      %v8755 = vmul.f32 %v8611, %v8739
      %v8756 = vmul.f32 %v8612, %v8740
      %v8757 = vmul.f32 %v8613, %v8741
      %v8758 = vmul.f32 %v8614, %v8742
      %v8759 = vmul.f32 %v8615, %v8743
      %v8760 = vmul.f32 %v8616, %v8744
      %v8761 = vld [vmem:[%s741] sm:$0xff]
      %v8762 = vld [vmem:[%s741 + $0x8] sm:$0xff]
      %v8763 = vld [vmem:[%s741 + $0x10] sm:$0xff]
      %v8764 = vld [vmem:[%s741 + $0x18] sm:$0xff]
      %v8765 = vld [vmem:[%s744] sm:$0x1]
      %v8767 = vlaneseq
      %v8768 = vshrl.u32 %v8767, 7
      %v8769 = vsub.s32 0, %v8768
      %v8770 = vrot.slane %v8765, %v8769
      %v8773 = vsel %vm783, %v8745, 0
      %v8776 = vsel %vm783, %v8746, 0
      %v8779 = vsel %vm783, %v8747, 0
      %v8782 = vsel %vm783, %v8748, 0
      %v8785 = vsel %vm783, %v8749, 0
      %v8788 = vsel %vm783, %v8750, 0
      %v8791 = vsel %vm783, %v8751, 0
      %v8794 = vsel %vm783, %v8752, 0
      %v8797 = vsel %vm783, %v8753, 0
      %v8800 = vsel %vm783, %v8754, 0
      %v8803 = vsel %vm783, %v8755, 0
      %v8806 = vsel %vm783, %v8756, 0
      %v8809 = vsel %vm783, %v8757, 0
      %v8812 = vsel %vm783, %v8758, 0
      %v8815 = vsel %vm783, %v8759, 0
      %v8818 = vsel %vm783, %v8760, 0
      %8820 = vmatprep.subr.mxu0 0.0
      %8821 = vmatpush1.msra.mxu0 %v8761
      %8822 = vmatprep.subr.mxu0 0.0
      %8823 = vmatpush1.msra.mxu0 %v8762
      %8824 = vmatprep.subr.mxu0 0.0
      %8825 = vmatpush1.msra.mxu0 %v8763
      %8826 = vmatprep.subr.mxu0 0.0
      %8827 = vmatpush1.msra.mxu0 %v8764
      %8828 = vmatprep.subr.mxu0 0.0
      %8829 = vmatpush1.msra.mxu0 0.0
      %8830 = vmatprep.subr.mxu0 0.0
      %8831 = vmatpush1.msra.mxu0 0.0
      %8832 = vmatprep.subr.mxu0 0.0
      %8833 = vmatpush1.msra.mxu0 0.0
      %8834 = vmatprep.subr.mxu0 0.0
      %8835 = vmatpush1.msra.mxu0 0.0
      %8836 = vmatprep.subr.mxu0 0.0
      %8837 = vmatpush1.msra.mxu0 0.0
      %8838 = vmatprep.subr.mxu0 0.0
      %8839 = vmatpush1.msra.mxu0 0.0
      %8840 = vmatprep.subr.mxu0 0.0
      %8841 = vmatpush1.msra.mxu0 0.0
      %8842 = vmatprep.subr.mxu0 0.0
      %8843 = vmatpush1.msra.mxu0 0.0
      %8844 = vmatprep.subr.mxu0 0.0
      %8845 = vmatpush1.msra.mxu0 0.0
      %8846 = vmatprep.subr.mxu0 0.0
      %8847 = vmatpush1.msra.mxu0 0.0
      %8848 = vmatprep.subr.mxu0 0.0
      %8849 = vmatpush1.msra.mxu0 0.0
      %8850 = vmatprep.subr.mxu0 0.0
      %8851 = vmatpush1.msra.mxu0 0.0
      %8852 = vmatprep.subr.mxu0 0.0
      %8853 = vmatpush1.msra.mxu0 0.0
      %8854 = vmatprep.subr.mxu0 0.0
      %8855 = vmatpush1.msra.mxu0 0.0
      %8856 = vmatprep.subr.mxu0 0.0
      %8857 = vmatpush1.msra.mxu0 0.0
      %8858 = vmatprep.subr.mxu0 0.0
      %8859 = vmatpush1.msra.mxu0 0.0
      %8860 = vmatprep.subr.mxu0 0.0
      %8861 = vmatpush1.msra.mxu0 0.0
      %8862 = vmatprep.subr.mxu0 0.0
      %8863 = vmatpush1.msra.mxu0 0.0
      %8864 = vmatprep.subr.mxu0 0.0
      %8865 = vmatpush1.msra.mxu0 0.0
      %8866 = vmatprep.subr.mxu0 0.0
      %8867 = vmatpush1.msra.mxu0 0.0
      %8868 = vmatprep.subr.mxu0 0.0
      %8869 = vmatpush1.msra.mxu0 0.0
      %8870 = vmatprep.subr.mxu0 0.0
      %8871 = vmatpush1.msra.mxu0 0.0
      %8872 = vmatprep.subr.mxu0 0.0
      %8873 = vmatpush1.msra.mxu0 0.0
      %8874 = vmatprep.subr.mxu0 0.0
      %8875 = vmatpush1.msra.mxu0 0.0
      %8876 = vmatprep.subr.mxu0 0.0
      %8877 = vmatpush1.msra.mxu0 0.0
      %8878 = vmatprep.subr.mxu0 0.0
      %8879 = vmatpush1.msra.mxu0 0.0
      %8880 = vmatprep.subr.mxu0 0.0
      %8881 = vmatpush1.msra.mxu0 0.0
      %8882 = vmatprep.subr.mxu0 0.0
      %8883 = vmatpush1.msra.mxu0 0.0
      %8884 = vmatprep.mubr.f32.mxu0 0.0
      %8885 = vmatmul.mubr.f32.gmra.mrb[0].mxu0 %v8773
      %v8886 = vpop.f32.mrb[0].mxu0
      %v8887 = vadd.f32 %v8770, %v8886
      %v8888 = vpop.f32.mrb[0].mxu0
      %8889 = vmatprep.mubr.f32.mxu0 0.0
      %8890 = vmatmul.mubr.f32.gmra.mrb[0].mxu0 %v8776
      %v8891 = vpop.f32.mrb[0].mxu0
      %v8892 = vadd.f32 %v8770, %v8891
      %v8893 = vpop.f32.mrb[0].mxu0
      %8894 = vmatprep.mubr.f32.mxu0 0.0
      %8895 = vmatmul.mubr.f32.gmra.mrb[0].mxu0 %v8779
      %v8896 = vpop.f32.mrb[0].mxu0
      %v8897 = vadd.f32 %v8770, %v8896
      %v8898 = vpop.f32.mrb[0].mxu0
      %8899 = vmatprep.mubr.f32.mxu0 0.0
      %8900 = vmatmul.mubr.f32.gmra.mrb[0].mxu0 %v8782
      %v8901 = vpop.f32.mrb[0].mxu0
      %v8902 = vadd.f32 %v8770, %v8901
      %v8903 = vpop.f32.mrb[0].mxu0
      %8904 = vmatprep.mubr.f32.mxu0 0.0
      %8905 = vmatmul.mubr.f32.gmra.mrb[0].mxu0 %v8785
      %v8906 = vpop.f32.mrb[0].mxu0
      %v8907 = vadd.f32 %v8770, %v8906
      %v8908 = vpop.f32.mrb[0].mxu0
      %8909 = vmatprep.mubr.f32.mxu0 0.0
      %8910 = vmatmul.mubr.f32.gmra.mrb[0].mxu0 %v8788
      %v8911 = vpop.f32.mrb[0].mxu0
      %v8912 = vadd.f32 %v8770, %v8911
      %v8913 = vpop.f32.mrb[0].mxu0
      %8914 = vmatprep.mubr.f32.mxu0 0.0
      %8915 = vmatmul.mubr.f32.gmra.mrb[0].mxu0 %v8791
      %v8916 = vpop.f32.mrb[0].mxu0
      %v8917 = vadd.f32 %v8770, %v8916
      %v8918 = vpop.f32.mrb[0].mxu0
      %8919 = vmatprep.mubr.f32.mxu0 0.0
      %8920 = vmatmul.mubr.f32.gmra.mrb[0].mxu0 %v8794
      %v8921 = vpop.f32.mrb[0].mxu0
      %v8922 = vadd.f32 %v8770, %v8921
      %v8923 = vpop.f32.mrb[0].mxu0
      %8924 = vmatprep.mubr.f32.mxu0 0.0
      %8925 = vmatmul.mubr.f32.gmra.mrb[0].mxu0 %v8797
      %v8926 = vpop.f32.mrb[0].mxu0
      %v8927 = vadd.f32 %v8770, %v8926
      %v8928 = vpop.f32.mrb[0].mxu0
      %8929 = vmatprep.mubr.f32.mxu0 0.0
      %8930 = vmatmul.mubr.f32.gmra.mrb[0].mxu0 %v8800
      %v8931 = vpop.f32.mrb[0].mxu0
      %v8932 = vadd.f32 %v8770, %v8931
      %v8933 = vpop.f32.mrb[0].mxu0
      %8934 = vmatprep.mubr.f32.mxu0 0.0
      %8935 = vmatmul.mubr.f32.gmra.mrb[0].mxu0 %v8803
      %v8936 = vpop.f32.mrb[0].mxu0
      %v8937 = vadd.f32 %v8770, %v8936
      %v8938 = vpop.f32.mrb[0].mxu0
      %8939 = vmatprep.mubr.f32.mxu0 0.0
      %8940 = vmatmul.mubr.f32.gmra.mrb[0].mxu0 %v8806
      %v8941 = vpop.f32.mrb[0].mxu0
      %v8942 = vadd.f32 %v8770, %v8941
      %v8943 = vpop.f32.mrb[0].mxu0
      %8944 = vmatprep.mubr.f32.mxu0 0.0
      %8945 = vmatmul.mubr.f32.gmra.mrb[0].mxu0 %v8809
      %v8946 = vpop.f32.mrb[0].mxu0
      %v8947 = vadd.f32 %v8770, %v8946
      %v8948 = vpop.f32.mrb[0].mxu0
      %8949 = vmatprep.mubr.f32.mxu0 0.0
      %8950 = vmatmul.mubr.f32.gmra.mrb[0].mxu0 %v8812
      %v8951 = vpop.f32.mrb[0].mxu0
      %v8952 = vadd.f32 %v8770, %v8951
      %v8953 = vpop.f32.mrb[0].mxu0
      %8954 = vmatprep.mubr.f32.mxu0 0.0
      %8955 = vmatmul.mubr.f32.gmra.mrb[0].mxu0 %v8815
      %v8956 = vpop.f32.mrb[0].mxu0
      %v8957 = vadd.f32 %v8770, %v8956
      %v8958 = vpop.f32.mrb[0].mxu0
      %8959 = vmatprep.mubr.f32.mxu0 0.0
      %8960 = vmatmul.mubr.f32.gmra.mrb[0].mxu0 %v8818
      %v8961 = vpop.f32.mrb[0].mxu0
      %v8962 = vadd.f32 %v8770, %v8961
      %v8963 = vpop.f32.mrb[0].mxu0
      %8964 = vdwg.mxu0
      %v8965 = vadd.f32 %v766, %v8054
      %v8966 = vadd.f32 %v767, %v8059
      %v8967 = vadd.f32 %v768, %v8064
      %v8968 = vadd.f32 %v769, %v8069
      %v8969 = vadd.f32 %v770, %v8074
      %v8970 = vadd.f32 %v771, %v8079
      %v8971 = vadd.f32 %v772, %v8084
      %v8972 = vadd.f32 %v773, %v8089
      %v8973 = vadd.f32 %v774, %v8094
      %v8974 = vadd.f32 %v775, %v8099
      %v8975 = vadd.f32 %v776, %v8104
      %v8976 = vadd.f32 %v777, %v8109
      %v8977 = vadd.f32 %v778, %v8114
      %v8978 = vadd.f32 %v779, %v8119
      %v8979 = vadd.f32 %v780, %v8124
      %v8980 = vadd.f32 %v781, %v8129
      %v8981 = vadd.f32 %v8965, %v8887
      %v8982 = vadd.f32 %v8966, %v8892
      %v8983 = vadd.f32 %v8967, %v8897
      %v8984 = vadd.f32 %v8968, %v8902
      %v8985 = vadd.f32 %v8969, %v8907
      %v8986 = vadd.f32 %v8970, %v8912
      %v8987 = vadd.f32 %v8971, %v8917
      %v8988 = vadd.f32 %v8972, %v8922
      %v8989 = vadd.f32 %v8973, %v8927
      %v8990 = vadd.f32 %v8974, %v8932
      %v8991 = vadd.f32 %v8975, %v8937
      %v8992 = vadd.f32 %v8976, %v8942
      %v8993 = vadd.f32 %v8977, %v8947
      %v8994 = vadd.f32 %v8978, %v8952
      %v8995 = vadd.f32 %v8979, %v8957
      %v8996 = vadd.f32 %v8980, %v8962
      %v8997 = vsel %vm783, %v8981, 0.0
      %8998 = vadd.xlane.f32.xlu0 %v8997
      %v8999 = vpop.xlane.xlu0 %8998
      %v9000 = vsel %vm783, %v8982, 0.0
      %9001 = vadd.xlane.f32.xlu0 %v9000
      %v9002 = vpop.xlane.xlu0 %9001
      %v9003 = vsel %vm783, %v8983, 0.0
      %9004 = vadd.xlane.f32.xlu0 %v9003
      %v9005 = vpop.xlane.xlu0 %9004
      %v9006 = vsel %vm783, %v8984, 0.0
      %9007 = vadd.xlane.f32.xlu0 %v9006
      %v9008 = vpop.xlane.xlu0 %9007
      %v9009 = vsel %vm783, %v8985, 0.0
      %9010 = vadd.xlane.f32.xlu0 %v9009
      %v9011 = vpop.xlane.xlu0 %9010
      %v9012 = vsel %vm783, %v8986, 0.0
      %9013 = vadd.xlane.f32.xlu0 %v9012
      %v9014 = vpop.xlane.xlu0 %9013
      %v9015 = vsel %vm783, %v8987, 0.0
      %9016 = vadd.xlane.f32.xlu0 %v9015
      %v9017 = vpop.xlane.xlu0 %9016
      %v9018 = vsel %vm783, %v8988, 0.0
      %9019 = vadd.xlane.f32.xlu0 %v9018
      %v9020 = vpop.xlane.xlu0 %9019
      %v9021 = vsel %vm783, %v8989, 0.0
      %9022 = vadd.xlane.f32.xlu0 %v9021
      %v9023 = vpop.xlane.xlu0 %9022
      %v9024 = vsel %vm783, %v8990, 0.0
      %9025 = vadd.xlane.f32.xlu0 %v9024
      %v9026 = vpop.xlane.xlu0 %9025
      %v9027 = vsel %vm783, %v8991, 0.0
      %9028 = vadd.xlane.f32.xlu0 %v9027
      %v9029 = vpop.xlane.xlu0 %9028
      %v9030 = vsel %vm783, %v8992, 0.0
      %9031 = vadd.xlane.f32.xlu0 %v9030
      %v9032 = vpop.xlane.xlu0 %9031
      %v9033 = vsel %vm783, %v8993, 0.0
      %9034 = vadd.xlane.f32.xlu0 %v9033
      %v9035 = vpop.xlane.xlu0 %9034
      %v9036 = vsel %vm783, %v8994, 0.0
      %9037 = vadd.xlane.f32.xlu0 %v9036
      %v9038 = vpop.xlane.xlu0 %9037
      %v9039 = vsel %vm783, %v8995, 0.0
      %9040 = vadd.xlane.f32.xlu0 %v9039
      %v9041 = vpop.xlane.xlu0 %9040
      %v9042 = vsel %vm783, %v8996, 0.0
      %9043 = vadd.xlane.f32.xlu0 %v9042
      %v9044 = vpop.xlane.xlu0 %9043
      %v9045 = vmul.f32 %v8999, %v832
      %v9046 = vmul.f32 %v9002, %v832
      %v9047 = vmul.f32 %v9005, %v832
      %v9048 = vmul.f32 %v9008, %v832
      %v9049 = vmul.f32 %v9011, %v832
      %v9050 = vmul.f32 %v9014, %v832
      %v9051 = vmul.f32 %v9017, %v832
      %v9052 = vmul.f32 %v9020, %v832
      %v9053 = vmul.f32 %v9023, %v832
      %v9054 = vmul.f32 %v9026, %v832
      %v9055 = vmul.f32 %v9029, %v832
      %v9056 = vmul.f32 %v9032, %v832
      %v9057 = vmul.f32 %v9035, %v832
      %v9058 = vmul.f32 %v9038, %v832
      %v9059 = vmul.f32 %v9041, %v832
      %v9060 = vmul.f32 %v9044, %v832
      %v9061 = vsub.f32 %v8981, %v9045
      %v9062 = vsub.f32 %v8982, %v9046
      %v9063 = vsub.f32 %v8983, %v9047
      %v9064 = vsub.f32 %v8984, %v9048
      %v9065 = vsub.f32 %v8985, %v9049
      %v9066 = vsub.f32 %v8986, %v9050
      %v9067 = vsub.f32 %v8987, %v9051
      %v9068 = vsub.f32 %v8988, %v9052
      %v9069 = vsub.f32 %v8989, %v9053
      %v9070 = vsub.f32 %v8990, %v9054
      %v9071 = vsub.f32 %v8991, %v9055
      %v9072 = vsub.f32 %v8992, %v9056
      %v9073 = vsub.f32 %v8993, %v9057
      %v9074 = vsub.f32 %v8994, %v9058
      %v9075 = vsub.f32 %v8995, %v9059
      %v9076 = vsub.f32 %v8996, %v9060
      %v9077 = vmul.f32 %v9061, %v9061
      %v9078 = vmul.f32 %v9062, %v9062
      %v9079 = vmul.f32 %v9063, %v9063
      %v9080 = vmul.f32 %v9064, %v9064
      %v9081 = vmul.f32 %v9065, %v9065
      %v9082 = vmul.f32 %v9066, %v9066
      %v9083 = vmul.f32 %v9067, %v9067
      %v9084 = vmul.f32 %v9068, %v9068
      %v9085 = vmul.f32 %v9069, %v9069
      %v9086 = vmul.f32 %v9070, %v9070
      %v9087 = vmul.f32 %v9071, %v9071
      %v9088 = vmul.f32 %v9072, %v9072
      %v9089 = vmul.f32 %v9073, %v9073
      %v9090 = vmul.f32 %v9074, %v9074
      %v9091 = vmul.f32 %v9075, %v9075
      %v9092 = vmul.f32 %v9076, %v9076
      %v9093 = vsel %vm783, %v9077, 0.0
      %9094 = vadd.xlane.f32.xlu0 %v9093
      %v9095 = vpop.xlane.xlu0 %9094
      %v9096 = vsel %vm783, %v9078, 0.0
      %9097 = vadd.xlane.f32.xlu0 %v9096
      %v9098 = vpop.xlane.xlu0 %9097
      %v9099 = vsel %vm783, %v9079, 0.0
      %9100 = vadd.xlane.f32.xlu0 %v9099
      %v9101 = vpop.xlane.xlu0 %9100
      %v9102 = vsel %vm783, %v9080, 0.0
      %9103 = vadd.xlane.f32.xlu0 %v9102
      %v9104 = vpop.xlane.xlu0 %9103
      %v9105 = vsel %vm783, %v9081, 0.0
      %9106 = vadd.xlane.f32.xlu0 %v9105
      %v9107 = vpop.xlane.xlu0 %9106
      %v9108 = vsel %vm783, %v9082, 0.0
      %9109 = vadd.xlane.f32.xlu0 %v9108
      %v9110 = vpop.xlane.xlu0 %9109
      %v9111 = vsel %vm783, %v9083, 0.0
      %9112 = vadd.xlane.f32.xlu0 %v9111
      %v9113 = vpop.xlane.xlu0 %9112
      %v9114 = vsel %vm783, %v9084, 0.0
      %9115 = vadd.xlane.f32.xlu0 %v9114
      %v9116 = vpop.xlane.xlu0 %9115
      %v9117 = vsel %vm783, %v9085, 0.0
      %9118 = vadd.xlane.f32.xlu0 %v9117
      %v9119 = vpop.xlane.xlu0 %9118
      %v9120 = vsel %vm783, %v9086, 0.0
      %9121 = vadd.xlane.f32.xlu0 %v9120
      %v9122 = vpop.xlane.xlu0 %9121
      %v9123 = vsel %vm783, %v9087, 0.0
      %9124 = vadd.xlane.f32.xlu0 %v9123
      %v9125 = vpop.xlane.xlu0 %9124
      %v9126 = vsel %vm783, %v9088, 0.0
      %9127 = vadd.xlane.f32.xlu0 %v9126
      %v9128 = vpop.xlane.xlu0 %9127
      %v9129 = vsel %vm783, %v9089, 0.0
      %9130 = vadd.xlane.f32.xlu0 %v9129
      %v9131 = vpop.xlane.xlu0 %9130
      %v9132 = vsel %vm783, %v9090, 0.0
      %9133 = vadd.xlane.f32.xlu0 %v9132
      %v9134 = vpop.xlane.xlu0 %9133
      %v9135 = vsel %vm783, %v9091, 0.0
      %9136 = vadd.xlane.f32.xlu0 %v9135
      %v9137 = vpop.xlane.xlu0 %9136
      %v9138 = vsel %vm783, %v9092, 0.0
      %9139 = vadd.xlane.f32.xlu0 %v9138
      %v9140 = vpop.xlane.xlu0 %9139
      %v9141 = vmul.f32 %v9095, %v832
      %v9142 = vmul.f32 %v9098, %v832
      %v9143 = vmul.f32 %v9101, %v832
      %v9144 = vmul.f32 %v9104, %v832
      %v9145 = vmul.f32 %v9107, %v832
      %v9146 = vmul.f32 %v9110, %v832
      %v9147 = vmul.f32 %v9113, %v832
      %v9148 = vmul.f32 %v9116, %v832
      %v9149 = vmul.f32 %v9119, %v832
      %v9150 = vmul.f32 %v9122, %v832
      %v9151 = vmul.f32 %v9125, %v832
      %v9152 = vmul.f32 %v9128, %v832
      %v9153 = vmul.f32 %v9131, %v832
      %v9154 = vmul.f32 %v9134, %v832
      %v9155 = vmul.f32 %v9137, %v832
      %v9156 = vmul.f32 %v9140, %v832
      %v9157 = vadd.f32 %v9141, 1e-05
      %v9158 = vadd.f32 %v9142, 1e-05
      %v9159 = vadd.f32 %v9143, 1e-05
      %v9160 = vadd.f32 %v9144, 1e-05
      %v9161 = vadd.f32 %v9145, 1e-05
      %v9162 = vadd.f32 %v9146, 1e-05
      %v9163 = vadd.f32 %v9147, 1e-05
      %v9164 = vadd.f32 %v9148, 1e-05
      %v9165 = vadd.f32 %v9149, 1e-05
      %v9166 = vadd.f32 %v9150, 1e-05
      %v9167 = vadd.f32 %v9151, 1e-05
      %v9168 = vadd.f32 %v9152, 1e-05
      %v9169 = vadd.f32 %v9153, 1e-05
      %v9170 = vadd.f32 %v9154, 1e-05
      %v9171 = vadd.f32 %v9155, 1e-05
      %v9172 = vadd.f32 %v9156, 1e-05
      %v9173 = vrsqrt.pop %v9157
      %v9174 = vrsqrt.pop %v9158
      %v9175 = vrsqrt.pop %v9159
      %v9176 = vrsqrt.pop %v9160
      %v9177 = vrsqrt.pop %v9161
      %v9178 = vrsqrt.pop %v9162
      %v9179 = vrsqrt.pop %v9163
      %v9180 = vrsqrt.pop %v9164
      %v9181 = vrsqrt.pop %v9165
      %v9182 = vrsqrt.pop %v9166
      %v9183 = vrsqrt.pop %v9167
      %v9184 = vrsqrt.pop %v9168
      %v9185 = vrsqrt.pop %v9169
      %v9186 = vrsqrt.pop %v9170
      %v9187 = vrsqrt.pop %v9171
      %v9188 = vrsqrt.pop %v9172
      %v9189 = vmul.f32 %v9061, %v9173
      %v9190 = vmul.f32 %v9062, %v9174
      %v9191 = vmul.f32 %v9063, %v9175
      %v9192 = vmul.f32 %v9064, %v9176
      %v9193 = vmul.f32 %v9065, %v9177
      %v9194 = vmul.f32 %v9066, %v9178
      %v9195 = vmul.f32 %v9067, %v9179
      %v9196 = vmul.f32 %v9068, %v9180
      %v9197 = vmul.f32 %v9069, %v9181
      %v9198 = vmul.f32 %v9070, %v9182
      %v9199 = vmul.f32 %v9071, %v9183
      %v9200 = vmul.f32 %v9072, %v9184
      %v9201 = vmul.f32 %v9073, %v9185
      %v9202 = vmul.f32 %v9074, %v9186
      %v9203 = vmul.f32 %v9075, %v9187
      %v9204 = vmul.f32 %v9076, %v9188
      %v9205 = vlaneseq
      %v9206 = vshrl.u32 %v9205, 7
      %v9207 = vsub.s32 2, %v9206
      %v9208 = vrot.slane %v782, %v9207
      %v9209 = vmul.f32 %v9189, %v9208
      %v9210 = vmul.f32 %v9190, %v9208
      %v9211 = vmul.f32 %v9191, %v9208
      %v9212 = vmul.f32 %v9192, %v9208
      %v9213 = vmul.f32 %v9193, %v9208
      %v9214 = vmul.f32 %v9194, %v9208
      %v9215 = vmul.f32 %v9195, %v9208
      %v9216 = vmul.f32 %v9196, %v9208
      %v9217 = vmul.f32 %v9197, %v9208
      %v9218 = vmul.f32 %v9198, %v9208
      %v9219 = vmul.f32 %v9199, %v9208
      %v9220 = vmul.f32 %v9200, %v9208
      %v9221 = vmul.f32 %v9201, %v9208
      %v9222 = vmul.f32 %v9202, %v9208
      %v9223 = vmul.f32 %v9203, %v9208
      %v9224 = vmul.f32 %v9204, %v9208
      %v9225 = vlaneseq
      %v9226 = vshrl.u32 %v9225, 7
      %v9227 = vsub.s32 3, %v9226
      %v9228 = vrot.slane %v782, %v9227
      %v9229 = vadd.f32 %v9209, %v9228
      %v9230 = vadd.f32 %v9210, %v9228
      %v9231 = vadd.f32 %v9211, %v9228
      %v9232 = vadd.f32 %v9212, %v9228
      %v9233 = vadd.f32 %v9213, %v9228
      %v9234 = vadd.f32 %v9214, %v9228
      %v9235 = vadd.f32 %v9215, %v9228
      %v9236 = vadd.f32 %v9216, %v9228
      %v9237 = vadd.f32 %v9217, %v9228
      %v9238 = vadd.f32 %v9218, %v9228
      %v9239 = vadd.f32 %v9219, %v9228
      %v9240 = vadd.f32 %v9220, %v9228
      %v9241 = vadd.f32 %v9221, %v9228
      %v9242 = vadd.f32 %v9222, %v9228
      %v9243 = vadd.f32 %v9223, %v9228
      %v9244 = vadd.f32 %v9224, %v9228
      %v9245 = vld [vmem:[%s749] sm:$0xff]
      %v9246 = vld [vmem:[%s749 + $0x8] sm:$0xff]
      %v9247 = vld [vmem:[%s749 + $0x10] sm:$0xff]
      %v9248 = vld [vmem:[%s749 + $0x18] sm:$0xff]
      %v9249 = vld [vmem:[%s752] sm:$0x1]
      %v9251 = vlaneseq
      %v9252 = vshrl.u32 %v9251, 7
      %v9253 = vsub.s32 0, %v9252
      %v9254 = vrot.slane %v9249, %v9253
      %v9257 = vsel %vm783, %v9229, 0
      %v9260 = vsel %vm783, %v9230, 0
      %v9263 = vsel %vm783, %v9231, 0
      %v9266 = vsel %vm783, %v9232, 0
      %v9269 = vsel %vm783, %v9233, 0
      %v9272 = vsel %vm783, %v9234, 0
      %v9275 = vsel %vm783, %v9235, 0
      %v9278 = vsel %vm783, %v9236, 0
      %v9281 = vsel %vm783, %v9237, 0
      %v9284 = vsel %vm783, %v9238, 0
      %v9287 = vsel %vm783, %v9239, 0
      %v9290 = vsel %vm783, %v9240, 0
      %v9293 = vsel %vm783, %v9241, 0
      %v9296 = vsel %vm783, %v9242, 0
      %v9299 = vsel %vm783, %v9243, 0
      %v9302 = vsel %vm783, %v9244, 0
      %9304 = vmatprep.subr.mxu0 0.0
      %9305 = vmatpush1.msra.mxu0 %v9245
      %9306 = vmatprep.subr.mxu0 0.0
      %9307 = vmatpush1.msra.mxu0 %v9246
      %9308 = vmatprep.subr.mxu0 0.0
      %9309 = vmatpush1.msra.mxu0 %v9247
      %9310 = vmatprep.subr.mxu0 0.0
      %9311 = vmatpush1.msra.mxu0 %v9248
      %9312 = vmatprep.subr.mxu0 0.0
      %9313 = vmatpush1.msra.mxu0 0.0
      %9314 = vmatprep.subr.mxu0 0.0
      %9315 = vmatpush1.msra.mxu0 0.0
      %9316 = vmatprep.subr.mxu0 0.0
      %9317 = vmatpush1.msra.mxu0 0.0
      %9318 = vmatprep.subr.mxu0 0.0
      %9319 = vmatpush1.msra.mxu0 0.0
      %9320 = vmatprep.subr.mxu0 0.0
      %9321 = vmatpush1.msra.mxu0 0.0
      %9322 = vmatprep.subr.mxu0 0.0
      %9323 = vmatpush1.msra.mxu0 0.0
      %9324 = vmatprep.subr.mxu0 0.0
      %9325 = vmatpush1.msra.mxu0 0.0
      %9326 = vmatprep.subr.mxu0 0.0
      %9327 = vmatpush1.msra.mxu0 0.0
      %9328 = vmatprep.subr.mxu0 0.0
      %9329 = vmatpush1.msra.mxu0 0.0
      %9330 = vmatprep.subr.mxu0 0.0
      %9331 = vmatpush1.msra.mxu0 0.0
      %9332 = vmatprep.subr.mxu0 0.0
      %9333 = vmatpush1.msra.mxu0 0.0
      %9334 = vmatprep.subr.mxu0 0.0
      %9335 = vmatpush1.msra.mxu0 0.0
      %9336 = vmatprep.subr.mxu0 0.0
      %9337 = vmatpush1.msra.mxu0 0.0
      %9338 = vmatprep.subr.mxu0 0.0
      %9339 = vmatpush1.msra.mxu0 0.0
      %9340 = vmatprep.subr.mxu0 0.0
      %9341 = vmatpush1.msra.mxu0 0.0
      %9342 = vmatprep.subr.mxu0 0.0
      %9343 = vmatpush1.msra.mxu0 0.0
      %9344 = vmatprep.subr.mxu0 0.0
      %9345 = vmatpush1.msra.mxu0 0.0
      %9346 = vmatprep.subr.mxu0 0.0
      %9347 = vmatpush1.msra.mxu0 0.0
      %9348 = vmatprep.subr.mxu0 0.0
      %9349 = vmatpush1.msra.mxu0 0.0
      %9350 = vmatprep.subr.mxu0 0.0
      %9351 = vmatpush1.msra.mxu0 0.0
      %9352 = vmatprep.subr.mxu0 0.0
      %9353 = vmatpush1.msra.mxu0 0.0
      %9354 = vmatprep.subr.mxu0 0.0
      %9355 = vmatpush1.msra.mxu0 0.0
      %9356 = vmatprep.subr.mxu0 0.0
      %9357 = vmatpush1.msra.mxu0 0.0
      %9358 = vmatprep.subr.mxu0 0.0
      %9359 = vmatpush1.msra.mxu0 0.0
      %9360 = vmatprep.subr.mxu0 0.0
      %9361 = vmatpush1.msra.mxu0 0.0
      %9362 = vmatprep.subr.mxu0 0.0
      %9363 = vmatpush1.msra.mxu0 0.0
      %9364 = vmatprep.subr.mxu0 0.0
      %9365 = vmatpush1.msra.mxu0 0.0
      %9366 = vmatprep.subr.mxu0 0.0
      %9367 = vmatpush1.msra.mxu0 0.0
      %9368 = vmatprep.mubr.f32.mxu0 0.0
      %9369 = vmatmul.mubr.f32.gmra.mrb[0].mxu0 %v9257
      %v9370 = vpop.f32.mrb[0].mxu0
      %v9371 = vadd.f32 %v9254, %v9370
      %v9372 = vpop.f32.mrb[0].mxu0
      %9373 = vmatprep.mubr.f32.mxu0 0.0
      %9374 = vmatmul.mubr.f32.gmra.mrb[0].mxu0 %v9260
      %v9375 = vpop.f32.mrb[0].mxu0
      %v9376 = vadd.f32 %v9254, %v9375
      %v9377 = vpop.f32.mrb[0].mxu0
      %9378 = vmatprep.mubr.f32.mxu0 0.0
      %9379 = vmatmul.mubr.f32.gmra.mrb[0].mxu0 %v9263
      %v9380 = vpop.f32.mrb[0].mxu0
      %v9381 = vadd.f32 %v9254, %v9380
      %v9382 = vpop.f32.mrb[0].mxu0
      %9383 = vmatprep.mubr.f32.mxu0 0.0
      %9384 = vmatmul.mubr.f32.gmra.mrb[0].mxu0 %v9266
      %v9385 = vpop.f32.mrb[0].mxu0
      %v9386 = vadd.f32 %v9254, %v9385
      %v9387 = vpop.f32.mrb[0].mxu0
      %9388 = vmatprep.mubr.f32.mxu0 0.0
      %9389 = vmatmul.mubr.f32.gmra.mrb[0].mxu0 %v9269
      %v9390 = vpop.f32.mrb[0].mxu0
      %v9391 = vadd.f32 %v9254, %v9390
      %v9392 = vpop.f32.mrb[0].mxu0
      %9393 = vmatprep.mubr.f32.mxu0 0.0
      %9394 = vmatmul.mubr.f32.gmra.mrb[0].mxu0 %v9272
      %v9395 = vpop.f32.mrb[0].mxu0
      %v9396 = vadd.f32 %v9254, %v9395
      %v9397 = vpop.f32.mrb[0].mxu0
      %9398 = vmatprep.mubr.f32.mxu0 0.0
      %9399 = vmatmul.mubr.f32.gmra.mrb[0].mxu0 %v9275
      %v9400 = vpop.f32.mrb[0].mxu0
      %v9401 = vadd.f32 %v9254, %v9400
      %v9402 = vpop.f32.mrb[0].mxu0
      %9403 = vmatprep.mubr.f32.mxu0 0.0
      %9404 = vmatmul.mubr.f32.gmra.mrb[0].mxu0 %v9278
      %v9405 = vpop.f32.mrb[0].mxu0
      %v9406 = vadd.f32 %v9254, %v9405
      %v9407 = vpop.f32.mrb[0].mxu0
      %9408 = vmatprep.mubr.f32.mxu0 0.0
      %9409 = vmatmul.mubr.f32.gmra.mrb[0].mxu0 %v9281
      %v9410 = vpop.f32.mrb[0].mxu0
      %v9411 = vadd.f32 %v9254, %v9410
      %v9412 = vpop.f32.mrb[0].mxu0
      %9413 = vmatprep.mubr.f32.mxu0 0.0
      %9414 = vmatmul.mubr.f32.gmra.mrb[0].mxu0 %v9284
      %v9415 = vpop.f32.mrb[0].mxu0
      %v9416 = vadd.f32 %v9254, %v9415
      %v9417 = vpop.f32.mrb[0].mxu0
      %9418 = vmatprep.mubr.f32.mxu0 0.0
      %9419 = vmatmul.mubr.f32.gmra.mrb[0].mxu0 %v9287
      %v9420 = vpop.f32.mrb[0].mxu0
      %v9421 = vadd.f32 %v9254, %v9420
      %v9422 = vpop.f32.mrb[0].mxu0
      %9423 = vmatprep.mubr.f32.mxu0 0.0
      %9424 = vmatmul.mubr.f32.gmra.mrb[0].mxu0 %v9290
      %v9425 = vpop.f32.mrb[0].mxu0
      %v9426 = vadd.f32 %v9254, %v9425
      %v9427 = vpop.f32.mrb[0].mxu0
      %9428 = vmatprep.mubr.f32.mxu0 0.0
      %9429 = vmatmul.mubr.f32.gmra.mrb[0].mxu0 %v9293
      %v9430 = vpop.f32.mrb[0].mxu0
      %v9431 = vadd.f32 %v9254, %v9430
      %v9432 = vpop.f32.mrb[0].mxu0
      %9433 = vmatprep.mubr.f32.mxu0 0.0
      %9434 = vmatmul.mubr.f32.gmra.mrb[0].mxu0 %v9296
      %v9435 = vpop.f32.mrb[0].mxu0
      %v9436 = vadd.f32 %v9254, %v9435
      %v9437 = vpop.f32.mrb[0].mxu0
      %9438 = vmatprep.mubr.f32.mxu0 0.0
      %9439 = vmatmul.mubr.f32.gmra.mrb[0].mxu0 %v9299
      %v9440 = vpop.f32.mrb[0].mxu0
      %v9441 = vadd.f32 %v9254, %v9440
      %v9442 = vpop.f32.mrb[0].mxu0
      %9443 = vmatprep.mubr.f32.mxu0 0.0
      %9444 = vmatmul.mubr.f32.gmra.mrb[0].mxu0 %v9302
      %v9445 = vpop.f32.mrb[0].mxu0
      %v9446 = vadd.f32 %v9254, %v9445
      %v9447 = vpop.f32.mrb[0].mxu0
      %9448 = vdwg.mxu0
      %v9449 = vmul.f32 %v9371, %v9371
      %v9450 = vmul.f32 %v9376, %v9376
      %v9451 = vmul.f32 %v9381, %v9381
      %v9452 = vmul.f32 %v9386, %v9386
      %v9453 = vmul.f32 %v9391, %v9391
      %v9454 = vmul.f32 %v9396, %v9396
      %v9455 = vmul.f32 %v9401, %v9401
      %v9456 = vmul.f32 %v9406, %v9406
      %v9457 = vmul.f32 %v9411, %v9411
      %v9458 = vmul.f32 %v9416, %v9416
      %v9459 = vmul.f32 %v9421, %v9421
      %v9460 = vmul.f32 %v9426, %v9426
      %v9461 = vmul.f32 %v9431, %v9431
      %v9462 = vmul.f32 %v9436, %v9436
      %v9463 = vmul.f32 %v9441, %v9441
      %v9464 = vmul.f32 %v9446, %v9446
      %v9465 = vmul.f32 %v9371, %v9449
      %v9466 = vmul.f32 %v9376, %v9450
      %v9467 = vmul.f32 %v9381, %v9451
      %v9468 = vmul.f32 %v9386, %v9452
      %v9469 = vmul.f32 %v9391, %v9453
      %v9470 = vmul.f32 %v9396, %v9454
      %v9471 = vmul.f32 %v9401, %v9455
      %v9472 = vmul.f32 %v9406, %v9456
      %v9473 = vmul.f32 %v9411, %v9457
      %v9474 = vmul.f32 %v9416, %v9458
      %v9475 = vmul.f32 %v9421, %v9459
      %v9476 = vmul.f32 %v9426, %v9460
      %v9477 = vmul.f32 %v9431, %v9461
      %v9478 = vmul.f32 %v9436, %v9462
      %v9479 = vmul.f32 %v9441, %v9463
      %v9480 = vmul.f32 %v9446, %v9464
      %v9481 = vmul.f32 %v9465, 0.044715
      %v9482 = vmul.f32 %v9466, 0.044715
      %v9483 = vmul.f32 %v9467, 0.044715
      %v9484 = vmul.f32 %v9468, 0.044715
      %v9485 = vmul.f32 %v9469, 0.044715
      %v9486 = vmul.f32 %v9470, 0.044715
      %v9487 = vmul.f32 %v9471, 0.044715
      %v9488 = vmul.f32 %v9472, 0.044715
      %v9489 = vmul.f32 %v9473, 0.044715
      %v9490 = vmul.f32 %v9474, 0.044715
      %v9491 = vmul.f32 %v9475, 0.044715
      %v9492 = vmul.f32 %v9476, 0.044715
      %v9493 = vmul.f32 %v9477, 0.044715
      %v9494 = vmul.f32 %v9478, 0.044715
      %v9495 = vmul.f32 %v9479, 0.044715
      %v9496 = vmul.f32 %v9480, 0.044715
      %v9497 = vadd.f32 %v9371, %v9481
      %v9498 = vadd.f32 %v9376, %v9482
      %v9499 = vadd.f32 %v9381, %v9483
      %v9500 = vadd.f32 %v9386, %v9484
      %v9501 = vadd.f32 %v9391, %v9485
      %v9502 = vadd.f32 %v9396, %v9486
      %v9503 = vadd.f32 %v9401, %v9487
      %v9504 = vadd.f32 %v9406, %v9488
      %v9505 = vadd.f32 %v9411, %v9489
      %v9506 = vadd.f32 %v9416, %v9490
      %v9507 = vadd.f32 %v9421, %v9491
      %v9508 = vadd.f32 %v9426, %v9492
      %v9509 = vadd.f32 %v9431, %v9493
      %v9510 = vadd.f32 %v9436, %v9494
      %v9511 = vadd.f32 %v9441, %v9495
      %v9512 = vadd.f32 %v9446, %v9496
      %v9513 = vmul.f32 %v9497, 0.7978846
      %v9514 = vmul.f32 %v9498, 0.7978846
      %v9515 = vmul.f32 %v9499, 0.7978846
      %v9516 = vmul.f32 %v9500, 0.7978846
      %v9517 = vmul.f32 %v9501, 0.7978846
      %v9518 = vmul.f32 %v9502, 0.7978846
      %v9519 = vmul.f32 %v9503, 0.7978846
      %v9520 = vmul.f32 %v9504, 0.7978846
      %v9521 = vmul.f32 %v9505, 0.7978846
      %v9522 = vmul.f32 %v9506, 0.7978846
      %v9523 = vmul.f32 %v9507, 0.7978846
      %v9524 = vmul.f32 %v9508, 0.7978846
      %v9525 = vmul.f32 %v9509, 0.7978846
      %v9526 = vmul.f32 %v9510, 0.7978846
      %v9527 = vmul.f32 %v9511, 0.7978846
      %v9528 = vmul.f32 %v9512, 0.7978846
      %v9529 = vtanh.pop %v9513
      %v9530 = vtanh.pop %v9514
      %v9531 = vtanh.pop %v9515
      %v9532 = vtanh.pop %v9516
      %v9533 = vtanh.pop %v9517
      %v9534 = vtanh.pop %v9518
      %v9535 = vtanh.pop %v9519
      %v9536 = vtanh.pop %v9520
      %v9537 = vtanh.pop %v9521
      %v9538 = vtanh.pop %v9522
      %v9539 = vtanh.pop %v9523
      %v9540 = vtanh.pop %v9524
      %v9541 = vtanh.pop %v9525
      %v9542 = vtanh.pop %v9526
      %v9543 = vtanh.pop %v9527
      %v9544 = vtanh.pop %v9528
      %v9545 = vadd.f32 %v9529, 1.0
      %v9546 = vadd.f32 %v9530, 1.0
      %v9547 = vadd.f32 %v9531, 1.0
      %v9548 = vadd.f32 %v9532, 1.0
      %v9549 = vadd.f32 %v9533, 1.0
      %v9550 = vadd.f32 %v9534, 1.0
      %v9551 = vadd.f32 %v9535, 1.0
      %v9552 = vadd.f32 %v9536, 1.0
      %v9553 = vadd.f32 %v9537, 1.0
      %v9554 = vadd.f32 %v9538, 1.0
      %v9555 = vadd.f32 %v9539, 1.0
      %v9556 = vadd.f32 %v9540, 1.0
      %v9557 = vadd.f32 %v9541, 1.0
      %v9558 = vadd.f32 %v9542, 1.0
      %v9559 = vadd.f32 %v9543, 1.0
      %v9560 = vadd.f32 %v9544, 1.0
      %v9561 = vmul.f32 %v9545, 0.5
      %v9562 = vmul.f32 %v9546, 0.5
      %v9563 = vmul.f32 %v9547, 0.5
      %v9564 = vmul.f32 %v9548, 0.5
      %v9565 = vmul.f32 %v9549, 0.5
      %v9566 = vmul.f32 %v9550, 0.5
      %v9567 = vmul.f32 %v9551, 0.5
      %v9568 = vmul.f32 %v9552, 0.5
      %v9569 = vmul.f32 %v9553, 0.5
      %v9570 = vmul.f32 %v9554, 0.5
      %v9571 = vmul.f32 %v9555, 0.5
      %v9572 = vmul.f32 %v9556, 0.5
      %v9573 = vmul.f32 %v9557, 0.5
      %v9574 = vmul.f32 %v9558, 0.5
      %v9575 = vmul.f32 %v9559, 0.5
      %v9576 = vmul.f32 %v9560, 0.5
      %v9577 = vmul.f32 %v9371, %v9561
      %v9578 = vmul.f32 %v9376, %v9562
      %v9579 = vmul.f32 %v9381, %v9563
      %v9580 = vmul.f32 %v9386, %v9564
      %v9581 = vmul.f32 %v9391, %v9565
      %v9582 = vmul.f32 %v9396, %v9566
      %v9583 = vmul.f32 %v9401, %v9567
      %v9584 = vmul.f32 %v9406, %v9568
      %v9585 = vmul.f32 %v9411, %v9569
      %v9586 = vmul.f32 %v9416, %v9570
      %v9587 = vmul.f32 %v9421, %v9571
      %v9588 = vmul.f32 %v9426, %v9572
      %v9589 = vmul.f32 %v9431, %v9573
      %v9590 = vmul.f32 %v9436, %v9574
      %v9591 = vmul.f32 %v9441, %v9575
      %v9592 = vmul.f32 %v9446, %v9576
      %v9593 = vld [vmem:[%s757] sm:$0xff]
      %v9594 = vld [vmem:[%s757 + $0x8] sm:$0xff]
      %v9595 = vld [vmem:[%s757 + $0x10] sm:$0xff]
      %v9596 = vld [vmem:[%s757 + $0x18] sm:$0xff]
      %v9597 = vld [vmem:[%s757 + $0x20] sm:$0xff]
      %v9598 = vld [vmem:[%s757 + $0x28] sm:$0xff]
      %v9599 = vld [vmem:[%s757 + $0x30] sm:$0xff]
      %v9600 = vld [vmem:[%s757 + $0x38] sm:$0xff]
      %v9601 = vld [vmem:[%s757 + $0x40] sm:$0xff]
      %v9602 = vld [vmem:[%s757 + $0x48] sm:$0xff]
      %v9603 = vld [vmem:[%s757 + $0x50] sm:$0xff]
      %v9604 = vld [vmem:[%s757 + $0x58] sm:$0xff]
      %v9605 = vld [vmem:[%s757 + $0x60] sm:$0xff]
      %v9606 = vld [vmem:[%s757 + $0x68] sm:$0xff]
      %v9607 = vld [vmem:[%s757 + $0x70] sm:$0xff]
      %v9608 = vld [vmem:[%s757 + $0x78] sm:$0xff]
      %9609 = vmatprep.subr.mxu0 0.0
      %9610 = vmatpush1.msra.mxu0 %v9593
      %9611 = vmatprep.subr.mxu0 0.0
      %9612 = vmatpush1.msra.mxu0 %v9594
      %9613 = vmatprep.subr.mxu0 0.0
      %9614 = vmatpush1.msra.mxu0 %v9595
      %9615 = vmatprep.subr.mxu0 0.0
      %9616 = vmatpush1.msra.mxu0 %v9596
      %9617 = vmatprep.subr.mxu0 0.0
      %9618 = vmatpush1.msra.mxu0 %v9597
      %9619 = vmatprep.subr.mxu0 0.0
      %9620 = vmatpush1.msra.mxu0 %v9598
      %9621 = vmatprep.subr.mxu0 0.0
      %9622 = vmatpush1.msra.mxu0 %v9599
      %9623 = vmatprep.subr.mxu0 0.0
      %9624 = vmatpush1.msra.mxu0 %v9600
      %9625 = vmatprep.subr.mxu0 0.0
      %9626 = vmatpush1.msra.mxu0 %v9601
      %9627 = vmatprep.subr.mxu0 0.0
      %9628 = vmatpush1.msra.mxu0 %v9602
      %9629 = vmatprep.subr.mxu0 0.0
      %9630 = vmatpush1.msra.mxu0 %v9603
      %9631 = vmatprep.subr.mxu0 0.0
      %9632 = vmatpush1.msra.mxu0 %v9604
      %9633 = vmatprep.subr.mxu0 0.0
      %9634 = vmatpush1.msra.mxu0 %v9605
      %9635 = vmatprep.subr.mxu0 0.0
      %9636 = vmatpush1.msra.mxu0 %v9606
      %9637 = vmatprep.subr.mxu0 0.0
      %9638 = vmatpush1.msra.mxu0 %v9607
      %9639 = vmatprep.subr.mxu0 0.0
      %9640 = vmatpush1.msra.mxu0 %v9608
      %9641 = vmatprep.subr.mxu0 0.0
      %9642 = vmatpush1.msra.mxu0 0.0
      %9643 = vmatprep.subr.mxu0 0.0
      %9644 = vmatpush1.msra.mxu0 0.0
      %9645 = vmatprep.subr.mxu0 0.0
      %9646 = vmatpush1.msra.mxu0 0.0
      %9647 = vmatprep.subr.mxu0 0.0
      %9648 = vmatpush1.msra.mxu0 0.0
      %9649 = vmatprep.subr.mxu0 0.0
      %9650 = vmatpush1.msra.mxu0 0.0
      %9651 = vmatprep.subr.mxu0 0.0
      %9652 = vmatpush1.msra.mxu0 0.0
      %9653 = vmatprep.subr.mxu0 0.0
      %9654 = vmatpush1.msra.mxu0 0.0
      %9655 = vmatprep.subr.mxu0 0.0
      %9656 = vmatpush1.msra.mxu0 0.0
      %9657 = vmatprep.subr.mxu0 0.0
      %9658 = vmatpush1.msra.mxu0 0.0
      %9659 = vmatprep.subr.mxu0 0.0
      %9660 = vmatpush1.msra.mxu0 0.0
      %9661 = vmatprep.subr.mxu0 0.0
      %9662 = vmatpush1.msra.mxu0 0.0
      %9663 = vmatprep.subr.mxu0 0.0
      %9664 = vmatpush1.msra.mxu0 0.0
      %9665 = vmatprep.subr.mxu0 0.0
      %9666 = vmatpush1.msra.mxu0 0.0
      %9667 = vmatprep.subr.mxu0 0.0
      %9668 = vmatpush1.msra.mxu0 0.0
      %9669 = vmatprep.subr.mxu0 0.0
      %9670 = vmatpush1.msra.mxu0 0.0
      %9671 = vmatprep.subr.mxu0 0.0
      %9672 = vmatpush1.msra.mxu0 0.0
      %9673 = vmatprep.mubr.f32.mxu0 0.0
      %9674 = vmatmul.mubr.f32.gmra.mrb[0].mxu0 %v9577
      %v9675 = vpop.f32.mrb[0].mxu0
      %v9676 = vadd.f32 0.0, %v9675
      %v9677 = vpop.f32.mrb[0].mxu0
      %9678 = vmatprep.mubr.f32.mxu0 0.0
      %9679 = vmatmul.mubr.f32.gmra.mrb[0].mxu0 %v9578
      %v9680 = vpop.f32.mrb[0].mxu0
      %v9681 = vadd.f32 0.0, %v9680
      %v9682 = vpop.f32.mrb[0].mxu0
      %9683 = vmatprep.mubr.f32.mxu0 0.0
      %9684 = vmatmul.mubr.f32.gmra.mrb[0].mxu0 %v9579
      %v9685 = vpop.f32.mrb[0].mxu0
      %v9686 = vadd.f32 0.0, %v9685
      %v9687 = vpop.f32.mrb[0].mxu0
      %9688 = vmatprep.mubr.f32.mxu0 0.0
      %9689 = vmatmul.mubr.f32.gmra.mrb[0].mxu0 %v9580
      %v9690 = vpop.f32.mrb[0].mxu0
      %v9691 = vadd.f32 0.0, %v9690
      %v9692 = vpop.f32.mrb[0].mxu0
      %9693 = vmatprep.mubr.f32.mxu0 0.0
      %9694 = vmatmul.mubr.f32.gmra.mrb[0].mxu0 %v9581
      %v9695 = vpop.f32.mrb[0].mxu0
      %v9696 = vadd.f32 0.0, %v9695
      %v9697 = vpop.f32.mrb[0].mxu0
      %9698 = vmatprep.mubr.f32.mxu0 0.0
      %9699 = vmatmul.mubr.f32.gmra.mrb[0].mxu0 %v9582
      %v9700 = vpop.f32.mrb[0].mxu0
      %v9701 = vadd.f32 0.0, %v9700
      %v9702 = vpop.f32.mrb[0].mxu0
      %9703 = vmatprep.mubr.f32.mxu0 0.0
      %9704 = vmatmul.mubr.f32.gmra.mrb[0].mxu0 %v9583
      %v9705 = vpop.f32.mrb[0].mxu0
      %v9706 = vadd.f32 0.0, %v9705
      %v9707 = vpop.f32.mrb[0].mxu0
      %9708 = vmatprep.mubr.f32.mxu0 0.0
      %9709 = vmatmul.mubr.f32.gmra.mrb[0].mxu0 %v9584
      %v9710 = vpop.f32.mrb[0].mxu0
      %v9711 = vadd.f32 0.0, %v9710
      %v9712 = vpop.f32.mrb[0].mxu0
      %9713 = vmatprep.mubr.f32.mxu0 0.0
      %9714 = vmatmul.mubr.f32.gmra.mrb[0].mxu0 %v9585
      %v9715 = vpop.f32.mrb[0].mxu0
      %v9716 = vadd.f32 0.0, %v9715
      %v9717 = vpop.f32.mrb[0].mxu0
      %9718 = vmatprep.mubr.f32.mxu0 0.0
      %9719 = vmatmul.mubr.f32.gmra.mrb[0].mxu0 %v9586
      %v9720 = vpop.f32.mrb[0].mxu0
      %v9721 = vadd.f32 0.0, %v9720
      %v9722 = vpop.f32.mrb[0].mxu0
      %9723 = vmatprep.mubr.f32.mxu0 0.0
      %9724 = vmatmul.mubr.f32.gmra.mrb[0].mxu0 %v9587
      %v9725 = vpop.f32.mrb[0].mxu0
      %v9726 = vadd.f32 0.0, %v9725
      %v9727 = vpop.f32.mrb[0].mxu0
      %9728 = vmatprep.mubr.f32.mxu0 0.0
      %9729 = vmatmul.mubr.f32.gmra.mrb[0].mxu0 %v9588
      %v9730 = vpop.f32.mrb[0].mxu0
      %v9731 = vadd.f32 0.0, %v9730
      %v9732 = vpop.f32.mrb[0].mxu0
      %9733 = vmatprep.mubr.f32.mxu0 0.0
      %9734 = vmatmul.mubr.f32.gmra.mrb[0].mxu0 %v9589
      %v9735 = vpop.f32.mrb[0].mxu0
      %v9736 = vadd.f32 0.0, %v9735
      %v9737 = vpop.f32.mrb[0].mxu0
      %9738 = vmatprep.mubr.f32.mxu0 0.0
      %9739 = vmatmul.mubr.f32.gmra.mrb[0].mxu0 %v9590
      %v9740 = vpop.f32.mrb[0].mxu0
      %v9741 = vadd.f32 0.0, %v9740
      %v9742 = vpop.f32.mrb[0].mxu0
      %9743 = vmatprep.mubr.f32.mxu0 0.0
      %9744 = vmatmul.mubr.f32.gmra.mrb[0].mxu0 %v9591
      %v9745 = vpop.f32.mrb[0].mxu0
      %v9746 = vadd.f32 0.0, %v9745
      %v9747 = vpop.f32.mrb[0].mxu0
      %9748 = vmatprep.mubr.f32.mxu0 0.0
      %9749 = vmatmul.mubr.f32.gmra.mrb[0].mxu0 %v9592
      %v9750 = vpop.f32.mrb[0].mxu0
      %v9751 = vadd.f32 0.0, %v9750
      %v9752 = vpop.f32.mrb[0].mxu0
      %9753 = vdwg.mxu0
      %v9754 = vadd.f32 %v8981, %v9676
      %v9755 = vadd.f32 %v8982, %v9681
      %v9756 = vadd.f32 %v8983, %v9686
      %v9757 = vadd.f32 %v8984, %v9691
      %v9758 = vadd.f32 %v8985, %v9696
      %v9759 = vadd.f32 %v8986, %v9701
      %v9760 = vadd.f32 %v8987, %v9706
      %v9761 = vadd.f32 %v8988, %v9711
      %v9762 = vadd.f32 %v8989, %v9716
      %v9763 = vadd.f32 %v8990, %v9721
      %v9764 = vadd.f32 %v8991, %v9726
      %v9765 = vadd.f32 %v8992, %v9731
      %v9766 = vadd.f32 %v8993, %v9736
      %v9767 = vadd.f32 %v8994, %v9741
      %v9768 = vadd.f32 %v8995, %v9746
      %v9769 = vadd.f32 %v8996, %v9751
      %v9770 = vld [vmem:[%s760] sm:$0x1]
      %v9772 = vlaneseq
      %v9773 = vshrl.u32 %v9772, 7
      %v9774 = vsub.s32 0, %v9773
      %v9775 = vrot.slane %v9770, %v9774
      %v9777 = vadd.f32 %v9754, %v9775
      %v9778 = vadd.f32 %v9755, %v9775
      %v9779 = vadd.f32 %v9756, %v9775
      %v9780 = vadd.f32 %v9757, %v9775
      %v9781 = vadd.f32 %v9758, %v9775
      %v9782 = vadd.f32 %v9759, %v9775
      %v9783 = vadd.f32 %v9760, %v9775
      %v9784 = vadd.f32 %v9761, %v9775
      %v9785 = vadd.f32 %v9762, %v9775
      %v9786 = vadd.f32 %v9763, %v9775
      %v9787 = vadd.f32 %v9764, %v9775
      %v9788 = vadd.f32 %v9765, %v9775
      %v9789 = vadd.f32 %v9766, %v9775
      %v9790 = vadd.f32 %v9767, %v9775
      %v9791 = vadd.f32 %v9768, %v9775
      %v9792 = vadd.f32 %v9769, %v9775
      %9793 = vst.msk [vmem:[%s765] sm:$0xff] %vm783, %v9777
      %9794 = vst.msk [vmem:[%s765 + $0x8] sm:$0xff] %vm783, %v9778
      %9795 = vst.msk [vmem:[%s765 + $0x10] sm:$0xff] %vm783, %v9779
      %9796 = vst.msk [vmem:[%s765 + $0x18] sm:$0xff] %vm783, %v9780
      %9797 = vst.msk [vmem:[%s765 + $0x20] sm:$0xff] %vm783, %v9781
      %9798 = vst.msk [vmem:[%s765 + $0x28] sm:$0xff] %vm783, %v9782
      %9799 = vst.msk [vmem:[%s765 + $0x30] sm:$0xff] %vm783, %v9783
      %9800 = vst.msk [vmem:[%s765 + $0x38] sm:$0xff] %vm783, %v9784
      %9801 = vst.msk [vmem:[%s765 + $0x40] sm:$0xff] %vm783, %v9785
      %9802 = vst.msk [vmem:[%s765 + $0x48] sm:$0xff] %vm783, %v9786
      %9803 = vst.msk [vmem:[%s765 + $0x50] sm:$0xff] %vm783, %v9787
      %9804 = vst.msk [vmem:[%s765 + $0x58] sm:$0xff] %vm783, %v9788
      %9805 = vst.msk [vmem:[%s765 + $0x60] sm:$0xff] %vm783, %v9789
      %9806 = vst.msk [vmem:[%s765 + $0x68] sm:$0xff] %vm783, %v9790
      %9807 = vst.msk [vmem:[%s765 + $0x70] sm:$0xff] %vm783, %v9791
      %9808 = vst.msk [vmem:[%s765 + $0x78] sm:$0xff] %vm783, %v9792
      %p9809 = scmp.lt.s32.totalorder %s27, 1
      %s9810 = scalar_select %p9809, %s27, 1
      %s9811 = smul.addr %s9810, 16
      %s9812 = smul.addr %s9811, 8
      %s9813 = scalar_lea.vmem %s16, %s9812
      // Predicated region
      $region85: #{stblock_forward.1} parent=83 // pred_check
        %p9814 = pneg %p456
      $region86: #{stblock_forward.1} parent=83 // pred_check_branch
        %9816 = sbr.rel (%p9814) target = $region88
      $region87: #{stblock_forward.1} parent=83 // pred_region
        _
      $region88: #{stblock_forward.1} parent=83 // pred_fallthru
        _
    $region84: #{stblock_forward.1} parent=5 // pred_fallthru
      _
    %p9817 = scmp.le.s32.totalorder 2, %s22
    // Predicated region
    $region89: #{stblock_forward.1} parent=5 // pred_check
      %p9818 = pneg %p9817
    $region90: #{stblock_forward.1} parent=5 // pred_check_branch
      %9820 = sbr.rel (%p9818) target = $region92
    $region91: #{stblock_forward.1} parent=5 // pred_region
      %s9821 = ssub.s32 %s22, 2
      // Predicated region
      $region93: #{stblock_forward.1} parent=91 // pred_check
        %p9822 = pneg %p462
      $region94: #{stblock_forward.1} parent=91 // pred_check_branch
        %9824 = sbr.rel (%p9822) target = $region96
      $region95: #{stblock_forward.1} parent=91 // pred_region
        %p9825 = scmp.lt.s32.totalorder %s28, 1
        %s9826 = scalar_select %p9825, %s28, 1
        %s9827 = smul.addr %s9826, 16
        %s9828 = smul.addr %s9827, 8
        %s9829 = scalar_lea.vmem %s16, %s9828
      $region96: #{stblock_forward.1} parent=91 // pred_fallthru
        _
    $region92: #{stblock_forward.1} parent=5 // pred_fallthru
      _
  $region6: #{stblock_forward.1} parent=0 // loop_footer
    %s26 = sadd.s32 1, %s22
  $region7: #{stblock_forward.1} parent=0 // loop_footer_branch
    %21 = sbr.rel target = $region3
  $region8: #{stblock_forward.1} parent=0 // loop_exit
    _

</llo_original>
